<compile_context>
chip_gen: v7x
topology: tpu7x:2x2x1
jax: 0.10.0
libtpu: 0.0.40
codegen_flags: <defaults>
</compile_context>

<pallas_src>
import functools

import jax
import jax.numpy as jnp
from jax import lax
from jax.experimental import pallas as pl
from jax.experimental.pallas import tpu as pltpu

# 48 MiB: fits v7x's 64 MiB physical VMEM with pipelining headroom; on
# v5e/v6e (128 MiB) it simply raises the default scoped limit.
_VMEM_LIMIT = 48 * 1024 * 1024


# ----------------------------------------------------------------------------
# BlockSpec helpers
# ----------------------------------------------------------------------------
def _batch_block(B):
    """Batch tile: 8 rows (one full sublane group) when possible, else full B."""
    return 8 if (B >= 8 and B % 8 == 0) else B


def _axis_block_spec(shape, axis, block):
    """Block `axis` with size `block`; the single grid index walks that axis."""
    nd = len(shape)
    blk = tuple(int(block) if a == axis else int(shape[a]) for a in range(nd))

    def index_map(i):
        return tuple(i if a == axis else 0 for a in range(nd))

    return pl.BlockSpec(blk, index_map)


def _broadcast_spec(shape):
    """Full-array block, same block for every grid step (weights)."""
    nd = len(shape)
    zeros = (0,) * nd

    def index_map(i):
        return zeros

    return pl.BlockSpec(tuple(int(s) for s in shape), index_map)


# ----------------------------------------------------------------------------
# Fused bidirectional LSTM kernel (in-kernel sequence reversal)
# ----------------------------------------------------------------------------
def bilstm_kernel(x_ref, mask_ref, wi_ref, wh_ref, b_ref, out_f_ref, out_b_ref):
    """Fused bidirectional masked (variable-length) LSTM, one batch tile.

    x_ref:     (T, B, E)  time-major input, bf16
    mask_ref:  (T, B, 1)  1.0 for valid positions (pos < len), 0.0 for padding
    wi_ref:    (2E, 8H)   block-diag input->gates, interleaved gate layout
                          columns = [i_f i_b | f_f f_b | g_f g_b | o_f o_b], bf16
    wh_ref:    (2H, 8H)   block-diag hidden->gates, same column layout, bf16
    b_ref:     (1, 8H)    combined bias, f32
    out_f_ref: (T, B, H)  forward hidden states (zeros past length)
    out_b_ref: (T, B, H)  backward hidden states, stored at their TRUE positions
    """
    T, B, _ = x_ref.shape
    H = out_f_ref.shape[2]
    H2 = 2 * H

    # hoist loop-invariant weight / bias loads out of the recurrent loop
    wi = wi_ref[...]
    wh = wh_ref[...]
    b = b_ref[...]

    def step(t, carry):
        h, c = carry                                   # (B, 2H) f32, [fwd | bwd]
        tr = T - 1 - t
        x_f = x_ref[t]                                 # (B, E) bf16
        x_b = x_ref[tr]                                # (B, E) bf16  (in-kernel reverse)
        x_cat = jnp.concatenate([x_f, x_b], axis=-1)   # (B, 2E)
        gates = (jnp.dot(x_cat, wi, preferred_element_type=jnp.float32)
                 + jnp.dot(h.astype(wh.dtype), wh,
                           preferred_element_type=jnp.float32)
                 + b)                                  # (B, 8H) f32
        i = jax.nn.sigmoid(gates[:, 0 * H2:1 * H2])
        f = jax.nn.sigmoid(gates[:, 1 * H2:2 * H2])
        g = jnp.tanh(gates[:, 2 * H2:3 * H2])
        o = jax.nn.sigmoid(gates[:, 3 * H2:4 * H2])
        c_new = f * c + i * g
        h_new = o * jnp.tanh(c_new)
        # per-direction masks: fwd consumes position t, bwd consumes position tr
        m_f = mask_ref[t]                              # (B, 1)
        m_b = mask_ref[tr]                             # (B, 1)
        m = jnp.concatenate([jnp.broadcast_to(m_f, (B, H)),
                             jnp.broadcast_to(m_b, (B, H))], axis=-1)  # (B, 2H)
        h_out = h_new * m
        out_f_ref[t] = h_out[:, :H].astype(out_f_ref.dtype)
        out_b_ref[tr] = h_out[:, H:].astype(out_b_ref.dtype)
        h = m * h_new + (1.0 - m) * h
        c = m * c_new + (1.0 - m) * c
        return (h, c)

    h0 = jnp.zeros((B, H2), jnp.float32)
    c0 = jnp.zeros((B, H2), jnp.float32)
    if T <= 16:
        # full static unroll: gives the LLO scheduler visibility at small T
        carry = (h0, c0)
        for t in range(T):
            carry = step(t, carry)
    else:
        lax.fori_loop(0, T, step, (h0, c0))


def _pack_bilstm_weights(p, E, H):
    """Pack fwd/bwd LSTM weights block-diagonally with interleaved gate layout.

    Result columns: [i_f i_b | f_f f_b | g_f g_b | o_f o_b], each slab 2H wide.
    """
    def gates(w):                      # (IN, 4H) -> (IN, 4, H)
        return w.reshape(w.shape[0], 4, H)

    wi = jnp.zeros((2 * E, 4, 2 * H), jnp.float32)
    wi = wi.at[:E, :, :H].set(gates(p['wi_f']))
    wi = wi.at[E:, :, H:].set(gates(p['wi_b']))

    wh = jnp.zeros((2 * H, 4, 2 * H), jnp.float32)
    wh = wh.at[:H, :, :H].set(gates(p['wh_f']))
    wh = wh.at[H:, :, H:].set(gates(p['wh_b']))

    b = jnp.zeros((1, 4, 2 * H), jnp.float32)
    b = b.at[:, :, :H].set(p['b_f'].reshape(1, 4, H))
    b = b.at[:, :, H:].set(p['b_b'].reshape(1, 4, H))

    return (wi.reshape(2 * E, 8 * H), wh.reshape(2 * H, 8 * H),
            b.reshape(1, 8 * H))


def bilstm(x, lengths, p):
    """Bidirectional variable-length LSTM; returns (B, T, 2H), zeros past len."""
    B, T, E = x.shape
    H = p['wh_f'].shape[0]

    mask = (jnp.arange(T)[None, :] < lengths[:, None]).astype(jnp.float32)  # (B,T)
    mask_tm = jnp.transpose(mask)[:, :, None]                               # (T,B,1)
    x_tm = jnp.transpose(x, (1, 0, 2)).astype(jnp.bfloat16)                 # (T,B,E)

    wi, wh, b = _pack_bilstm_weights(p, E, H)
    wi = wi.astype(jnp.bfloat16)
    wh = wh.astype(jnp.bfloat16)

    bb = _batch_block(B)
    out_f, out_b = pl.pallas_call(
        bilstm_kernel,
        grid=(B // bb,),
        in_specs=[_axis_block_spec((T, B, E), 1, bb),
                  _axis_block_spec((T, B, 1), 1, bb),
                  _broadcast_spec(wi.shape),
                  _broadcast_spec(wh.shape),
                  _broadcast_spec(b.shape)],
        out_specs=(_axis_block_spec((T, B, H), 1, bb),
                   _axis_block_spec((T, B, H), 1, bb)),
        out_shape=(jax.ShapeDtypeStruct((T, B, H), jnp.float32),
                   jax.ShapeDtypeStruct((T, B, H), jnp.float32)),
        compiler_params=pltpu.CompilerParams(
            dimension_semantics=("parallel",),
            vmem_limit_bytes=_VMEM_LIMIT),
    )(x_tm, mask_tm, wi, wh, b)

    out = jnp.concatenate([out_f, out_b], axis=-1)                          # (T,B,2H)
    return jnp.transpose(out, (1, 0, 2))                                    # (B,T,2H)


# ----------------------------------------------------------------------------
# Fused interaction kernel: aspect mean-pool + hops x (4 attn + 2 GRU) + FC/softmax
# ----------------------------------------------------------------------------
def mimn_interaction_kernel(text_ref, img_ref, asp_ref, invlen_ref,
                            wk_t_ref, bk_t_ref, w1_t_ref,
                            wk_i_ref, bk_i_ref, w1_i_ref,
                            wq_t_ref, bq_t_ref, w2_t_ref,
                            wq_i_ref, bq_i_ref, w2_i_ref,
                            wp_t_ref, bp_t_ref, wp_i_ref, bp_i_ref,
                            gwih_ref, gwhh_ref, gbih_ref, gbhh_ref,
                            fcw_ref, fcb_ref, out_ref, *, hops):
    """One batch tile of the MIMN interaction phase.

    Attention module order (matches the PyTorch forward):
      0: attention_text     (text memory, query et_text)
      1: attention_img2text (text memory, query et_img)
      2: attention_img      (img  memory, query et_img)
      3: attention_text2img (img  memory, query et_text)
    Matmuls are merged pairwise: (0,1) / (2,3) share a memory (kx), (0,3) /
    (1,2) share a query (qx), and each pair's output projections are merged
    on the K axis.
    """
    D = asp_ref.shape[2]
    f32 = jnp.float32
    bf16 = jnp.bfloat16

    # ---- aspect mean pooling ----
    aspect_vec = jnp.sum(asp_ref[...].astype(f32), axis=1) * invlen_ref[...]  # (b, D)

    # ---- hop-invariant precompute (kx, s_k) per memory, both attns at once ----
    def precompute(mem_ref, wk_ref, bk_ref, w1_ref):
        mem = mem_ref[...]                                         # (b, T, D) bf16
        kx = (jnp.einsum('btd,de->bte', mem, wk_ref[...],
                         preferred_element_type=f32)
              + bk_ref[...][None, :, :])                           # (b, T, 2D) f32
        prod = kx * w1_ref[...][None, :, :]                        # VPU, no MXU
        sk_a = jnp.sum(prod[:, :, :D], axis=-1)                    # (b, T)
        sk_b = jnp.sum(prod[:, :, D:], axis=-1)                    # (b, T)
        return kx.astype(bf16), sk_a, sk_b                         # kx kept bf16

    kx_t, sk0, sk1 = precompute(text_ref, wk_t_ref, bk_t_ref, w1_t_ref)  # attn 0,1
    kx_i, sk2, sk3 = precompute(img_ref, wk_i_ref, bk_i_ref, w1_i_ref)   # attn 2,3

    # hoist hop-invariant weight loads
    wq_t = wq_t_ref[...]; bq_t = bq_t_ref[...]; w2_t = w2_t_ref[...]
    wq_i = wq_i_ref[...]; bq_i = bq_i_ref[...]; w2_i = w2_i_ref[...]
    wp_t = wp_t_ref[...]; bp_t = bp_t_ref[...]
    wp_i = wp_i_ref[...]; bp_i = bp_i_ref[...]
    wih = gwih_ref[...]; whh = gwhh_ref[...]
    bih = gbih_ref[...]; bhh = gbhh_ref[...]

    def softmax_ctx(sk, sq, kx_half):
        # sk: (b, T), sq: (b, 1), kx_half: (b, T, D) bf16
        score = jnp.tanh(sk + sq)
        score = score - jnp.max(score, axis=-1, keepdims=True)
        e = jnp.exp(score)
        alpha = e / jnp.sum(e, axis=-1, keepdims=True)
        # rank-1-per-row matvec: VPU multiply + reduce keeps the MXU free
        return jnp.sum(alpha[:, :, None] * kx_half.astype(f32), axis=1)   # (b, D)

    def gru(g, x, h):
        gi = (jnp.dot(x.astype(bf16), wih[g], preferred_element_type=f32)
              + bih[g][None, :])
        gh = (jnp.dot(h.astype(bf16), whh[g], preferred_element_type=f32)
              + bhh[g][None, :])
        r = jax.nn.sigmoid(gi[:, 0:D] + gh[:, 0:D])
        z = jax.nn.sigmoid(gi[:, D:2 * D] + gh[:, D:2 * D])
        n = jnp.tanh(gi[:, 2 * D:3 * D] + r * gh[:, 2 * D:3 * D])
        return (1.0 - z) * n + z * h

    et_text = aspect_vec
    et_img = aspect_vec
    for _ in range(hops):                     # static unroll (hops is tiny)
        # merged query projections: et_text -> [attn0 | attn3], et_img -> [attn1 | attn2]
        qx_t = (jnp.dot(et_text.astype(bf16), wq_t,
                        preferred_element_type=f32) + bq_t)        # (b, 2D)
        qx_i = (jnp.dot(et_img.astype(bf16), wq_i,
                        preferred_element_type=f32) + bq_i)        # (b, 2D)
        pt = qx_t * w2_t
        pi = qx_i * w2_i
        sq0 = jnp.sum(pt[:, :D], axis=-1, keepdims=True)
        sq3 = jnp.sum(pt[:, D:], axis=-1, keepdims=True)
        sq1 = jnp.sum(pi[:, :D], axis=-1, keepdims=True)
        sq2 = jnp.sum(pi[:, D:], axis=-1, keepdims=True)

        ctx0 = softmax_ctx(sk0, sq0, kx_t[:, :, :D])
        ctx1 = softmax_ctx(sk1, sq1, kx_t[:, :, D:])
        ctx2 = softmax_ctx(sk2, sq2, kx_i[:, :, :D])
        ctx3 = softmax_ctx(sk3, sq3, kx_i[:, :, D:])

        # merged output projections (concat on K); packed bias = bp_a + bp_b
        ctx_cat_t = jnp.concatenate([ctx0, ctx1], axis=-1).astype(bf16)   # (b, 2D)
        ctx_cat_i = jnp.concatenate([ctx2, ctx3], axis=-1).astype(bf16)
        it_text = (jnp.dot(ctx_cat_t, wp_t, preferred_element_type=f32)
                   + bp_t) * 0.5
        it_img = (jnp.dot(ctx_cat_i, wp_i, preferred_element_type=f32)
                  + bp_i) * 0.5

        et_text = gru(0, it_text, et_text)
        et_img = gru(1, it_img, et_img)

    # ---- final FC + softmax ----
    et = jnp.concatenate([et_text, et_img], axis=-1).astype(bf16)          # (b, 2D)
    logits = (jnp.dot(et, fcw_ref[...], preferred_element_type=f32)
              + fcb_ref[...])
    logits = logits - jnp.max(logits, axis=-1, keepdims=True)
    e = jnp.exp(logits)
    out_ref[...] = (e / jnp.sum(e, axis=-1, keepdims=True)).astype(out_ref.dtype)


def _pack_interaction_params(params):
    """Pack attention/GRU/FC params into the merged-matmul layout (bf16 weights)."""
    a_text = params['att_text']        # attn 0: text mem, query et_text
    a_i2t = params['att_img2text']     # attn 1: text mem, query et_img
    a_img = params['att_img']          # attn 2: img  mem, query et_img
    a_t2i = params['att_text2img']     # attn 3: img  mem, query et_text
    bf = jnp.bfloat16

    def cat_cols(a, b, key):           # (D, D) x2 -> (D, 2D)
        return jnp.concatenate([a[key], b[key]], axis=1).astype(bf)

    def cat_bias(a, b, key):           # (1, D) x2 -> (1, 2D)
        return jnp.concatenate([a[key], b[key]], axis=1)

    def cat_vec(a, b, key):            # (D, 1) x2 -> (1, 2D)
        return jnp.concatenate([a[key][:, 0], b[key][:, 0]])[None, :]

    return dict(
        # memory-key projections, paired by shared memory
        wk_t=cat_cols(a_text, a_i2t, 'wk'), bk_t=cat_bias(a_text, a_i2t, 'bk'),
        w1_t=cat_vec(a_text, a_i2t, 'w1'),
        wk_i=cat_cols(a_img, a_t2i, 'wk'), bk_i=cat_bias(a_img, a_t2i, 'bk'),
        w1_i=cat_vec(a_img, a_t2i, 'w1'),
        # query projections, paired by shared query (et_text -> 0,3 ; et_img -> 1,2)
        wq_t=cat_cols(a_text, a_t2i, 'wq'), bq_t=cat_bias(a_text, a_t2i, 'bq'),
        w2_t=cat_vec(a_text, a_t2i, 'w2'),
        wq_i=cat_cols(a_i2t, a_img, 'wq'), bq_i=cat_bias(a_i2t, a_img, 'bq'),
        w2_i=cat_vec(a_i2t, a_img, 'w2'),
        # output projections, merged on K ([ctx_a | ctx_b] @ [[wp_a],[wp_b]])
        wp_t=jnp.concatenate([a_text['wp'], a_i2t['wp']], axis=0).astype(bf),
        bp_t=a_text['bp'] + a_i2t['bp'],
        wp_i=jnp.concatenate([a_img['wp'], a_t2i['wp']], axis=0).astype(bf),
        bp_i=a_img['bp'] + a_t2i['bp'],
        # GRU cells (text=0, img=1)
        gwih=jnp.stack([params['gru_text']['wih'], params['gru_img']['wih']]).astype(bf),
        gwhh=jnp.stack([params['gru_text']['whh'], params['gru_img']['whh']]).astype(bf),
        gbih=jnp.stack([params['gru_text']['bih'][0], params['gru_img']['bih'][0]]),
        gbhh=jnp.stack([params['gru_text']['bhh'][0], params['gru_img']['bhh'][0]]),
        fcw=params['fc_w'].astype(bf),
        fcb=params['fc_b'],
    )


# ----------------------------------------------------------------------------
# Parameter initialization (deterministic, synthetic weights)
# ----------------------------------------------------------------------------
def _normal(key, shape, scale=0.1):
    return jax.random.normal(key, shape, jnp.float32) * scale


def init_lstm(key, E, H):
    k = jax.random.split(key, 6)
    return dict(
        wi_f=_normal(k[0], (E, 4 * H)), wh_f=_normal(k[1], (H, 4 * H)), b_f=_normal(k[2], (1, 4 * H)),
        wi_b=_normal(k[3], (E, 4 * H)), wh_b=_normal(k[4], (H, 4 * H)), b_b=_normal(k[5], (1, 4 * H)),
    )


def init_attention(key, D):
    k = jax.random.split(key, 8)
    return dict(
        wk=_normal(k[0], (D, D)), bk=_normal(k[1], (1, D)),
        wq=_normal(k[2], (D, D)), bq=_normal(k[3], (1, D)),
        w1=_normal(k[4], (D, 1)), w2=_normal(k[5], (D, 1)),   # split of the (2D,) mlp weight
        wp=_normal(k[6], (D, D)), bp=_normal(k[7], (1, D)),
    )


def init_gru(key, D):
    k = jax.random.split(key, 4)
    return dict(
        wih=_normal(k[0], (D, 3 * D)), whh=_normal(k[1], (D, 3 * D)),
        bih=_normal(k[2], (1, 3 * D)), bhh=_normal(k[3], (1, 3 * D)),
    )


def init_params(key, vocab, embed_dim, embed_dim_img, hidden_dim, polarities_dim):
    keys = jax.random.split(key, 12)
    D = 2 * hidden_dim
    return dict(
        embed=_normal(keys[0], (vocab, embed_dim), 1.0),
        lstm_ctx=init_lstm(keys[1], embed_dim, hidden_dim),
        lstm_asp=init_lstm(keys[2], embed_dim, hidden_dim),
        lstm_img=init_lstm(keys[3], embed_dim_img, hidden_dim),
        att_text=init_attention(keys[4], D),
        att_img=init_attention(keys[5], D),
        att_text2img=init_attention(keys[6], D),
        att_img2text=init_attention(keys[7], D),
        gru_text=init_gru(keys[8], D),
        gru_img=init_gru(keys[9], D),
        fc_w=_normal(keys[10], (2 * D, polarities_dim)),
        fc_b=_normal(keys[11], (1, polarities_dim)),
    )


# ----------------------------------------------------------------------------
# MIMN forward
# ----------------------------------------------------------------------------
def mimn_forward(params, text_raw_indices, aspect_indices, imgs, num_imgs, hops):
    text_len = jnp.sum(text_raw_indices != 0, axis=-1).astype(jnp.int32)
    aspect_len = jnp.sum(aspect_indices != 0, axis=-1).astype(jnp.int32)
    img_len = num_imgs.astype(jnp.int32)

    text_raw = params['embed'][text_raw_indices]             # (B, Tt, E)
    aspect_emb = params['embed'][aspect_indices]             # (B, Ta, E)

    text_memory = bilstm(text_raw, text_len, params['lstm_ctx'])     # (B, Tt, 2H)
    aspect_out = bilstm(aspect_emb, aspect_len, params['lstm_asp'])  # (B, Ta, 2H)
    img_memory = bilstm(imgs, img_len, params['lstm_img'])           # (B, Ti, 2H)

    # guard against all-padding aspect rows (reference would produce NaN)
    inv_len = (1.0 / jnp.maximum(aspect_len, 1).astype(jnp.float32))[:, None]

    ip = _pack_interaction_params(params)

    B, Tt, D = text_memory.shape
    Ti = img_memory.shape[1]
    Ta = aspect_out.shape[1]
    P = params['fc_w'].shape[1]

    weight_args = (ip['wk_t'], ip['bk_t'], ip['w1_t'],
                   ip['wk_i'], ip['bk_i'], ip['w1_i'],
                   ip['wq_t'], ip['bq_t'], ip['w2_t'],
                   ip['wq_i'], ip['bq_i'], ip['w2_i'],
                   ip['wp_t'], ip['bp_t'], ip['wp_i'], ip['bp_i'],
                   ip['gwih'], ip['gwhh'], ip['gbih'], ip['gbhh'],
                   ip['fcw'], ip['fcb'])

    bb = _batch_block(B)
    kernel = functools.partial(mimn_interaction_kernel, hops=hops)
    out = pl.pallas_call(
        kernel,
        grid=(B // bb,),
        in_specs=[_axis_block_spec((B, Tt, D), 0, bb),
                  _axis_block_spec((B, Ti, D), 0, bb),
                  _axis_block_spec((B, Ta, D), 0, bb),
                  _axis_block_spec((B, 1), 0, bb)]
                 + [_broadcast_spec(w.shape) for w in weight_args],
        out_specs=_axis_block_spec((B, P), 0, bb),
        out_shape=jax.ShapeDtypeStruct((B, P), jnp.float32),
        compiler_params=pltpu.CompilerParams(
            dimension_semantics=("parallel",),
            vmem_limit_bytes=_VMEM_LIMIT),
    )(text_memory.astype(jnp.bfloat16), img_memory.astype(jnp.bfloat16),
      aspect_out, inv_len, *weight_args)
    return out                                                      # (B, P)


# ----------------------------------------------------------------------------
# Example run
# ----------------------------------------------------------------------------
if __name__ == "__main__":
    # small synthetic config
    VOCAB, EMBED_DIM, EMBED_DIM_IMG = 20, 32, 64
    HIDDEN_DIM, POLARITIES, HOPS = 16, 3, 2
    B, T_TEXT, T_ASPECT, T_IMG = 2, 8, 4, 3

    key = jax.random.PRNGKey(0)
    k_param, k_text, k_aspect, k_img = jax.random.split(key, 4)

    params = init_params(k_param, VOCAB, EMBED_DIM, EMBED_DIM_IMG, HIDDEN_DIM, POLARITIES)

    # text indices with zero padding (row 0 length 6, row 1 length 8)
    text_idx = jax.random.randint(k_text, (B, T_TEXT), 1, VOCAB, dtype=jnp.int32)
    text_idx = text_idx.at[0, 6:].set(0)
    # aspect indices (row 0 length 2, row 1 length 3)
    aspect_idx = jax.random.randint(k_aspect, (B, T_ASPECT), 1, VOCAB, dtype=jnp.int32)
    aspect_idx = aspect_idx.at[0, 2:].set(0)
    aspect_idx = aspect_idx.at[1, 3:].set(0)
    # image features + number of valid images per example
    imgs = jax.random.normal(k_img, (B, T_IMG, EMBED_DIM_IMG), jnp.float32)
    num_imgs = jnp.array([3, 2], dtype=jnp.int32)

    fwd = jax.jit(functools.partial(mimn_forward, hops=HOPS))
    out = fwd(params, text_idx, aspect_idx, imgs, num_imgs)
    out = jax.block_until_ready(out)

    assert out.shape == (B, POLARITIES)
    assert bool(jnp.all(jnp.isfinite(out)))
    assert bool(jnp.allclose(jnp.sum(out, axis=-1), 1.0, atol=1e-5))
    print("KERNEL_OK")
</pallas_src>

<mosaic_0001>
module attributes {stable_mosaic.version = 11 : i64} {
  func.func @bilstm_kernel(%arg0: i32, %arg1: memref<8x2x32xbf16, #tpu.memory_space<vmem>>, %arg2: memref<8x2x1xf32, #tpu.memory_space<vmem>>, %arg3: memref<64x128xbf16, #tpu.memory_space<vmem>>, %arg4: memref<32x128xbf16, #tpu.memory_space<vmem>>, %arg5: memref<1x128xf32, #tpu.memory_space<vmem>>, %arg6: memref<8x2x16xf32, #tpu.memory_space<vmem>>, %arg7: memref<8x2x16xf32, #tpu.memory_space<vmem>>) attributes {dimension_semantics = [#tpu.dimension_semantics<parallel>], iteration_bounds = array<i64: 1>, scalar_prefetch = 0 : i64, scratch_operands = 0 : i64, tpu.core_type = #tpu.core_type<tc>, window_params = [{transform_indices = @transform_0, window_bounds = array<i64: 8, 2, 32>}, {transform_indices = @transform_1, window_bounds = array<i64: 8, 2, 1>}, {pipeline_mode = #tpu.pipeline_mode<synchronous>, transform_indices = @transform_2, window_bounds = array<i64: 64, 128>}, {pipeline_mode = #tpu.pipeline_mode<synchronous>, transform_indices = @transform_3, window_bounds = array<i64: 32, 128>}, {pipeline_mode = #tpu.pipeline_mode<synchronous>, transform_indices = @transform_4, window_bounds = array<i64: 1, 128>}, {transform_indices = @transform_5, window_bounds = array<i64: 8, 2, 16>}, {transform_indices = @transform_6, window_bounds = array<i64: 8, 2, 16>}]} {
    %c0 = arith.constant 0 : index
    %c0_0 = arith.constant 0 : index
    %0 = vector.load %arg3[%c0, %c0_0] : memref<64x128xbf16, #tpu.memory_space<vmem>>, vector<64x128xbf16>
    %c0_1 = arith.constant 0 : index
    %c0_2 = arith.constant 0 : index
    %1 = vector.load %arg4[%c0_1, %c0_2] : memref<32x128xbf16, #tpu.memory_space<vmem>>, vector<32x128xbf16>
    %c0_3 = arith.constant 0 : index
    %c0_4 = arith.constant 0 : index
    %2 = vector.load %arg5[%c0_3, %c0_4] : memref<1x128xf32, #tpu.memory_space<vmem>>, vector<1x128xf32>
    %cst = arith.constant 0.000000e+00 : f32
    %3 = vector.broadcast %cst : f32 to vector<2x32xf32>
    %cst_5 = arith.constant 0.000000e+00 : f32
    %4 = vector.broadcast %cst_5 : f32 to vector<2x32xf32>
    %c0_6 = arith.constant 0 : index
    %c0_7 = arith.constant 0 : index
    %c0_8 = arith.constant 0 : index
    %5 = vector.load %arg1[%c0_6, %c0_7, %c0_8] : memref<8x2x32xbf16, #tpu.memory_space<vmem>>, vector<1x2x32xbf16>
    %6 = vector.shape_cast %5 : vector<1x2x32xbf16> to vector<2x32xbf16>
    %c7 = arith.constant 7 : index
    %c0_9 = arith.constant 0 : index
    %c0_10 = arith.constant 0 : index
    %7 = vector.load %arg1[%c7, %c0_9, %c0_10] : memref<8x2x32xbf16, #tpu.memory_space<vmem>>, vector<1x2x32xbf16>
    %8 = vector.shape_cast %7 : vector<1x2x32xbf16> to vector<2x32xbf16>
    %9 = tpu.concatenate %6, %8 in 1 : vector<2x32xbf16>, vector<2x32xbf16> -> vector<2x64xbf16>
    %cst_11 = arith.constant dense<0.000000e+00> : vector<2x128xf32>
    %10 = tpu.matmul %9, %0, %cst_11 {dimension_numbers = #tpu.dot_dimension_numbers<[1], [0], [0], [1], [0, 0, 1, 1], [], []>} : vector<2x64xbf16>, vector<64x128xbf16>, vector<2x128xf32> -> vector<2x128xf32>
    %11 = arith.truncf %3 : vector<2x32xf32> to vector<2x32xbf16>
    %cst_12 = arith.constant dense<0.000000e+00> : vector<2x128xf32>
    %12 = tpu.matmul %11, %1, %cst_12 {dimension_numbers = #tpu.dot_dimension_numbers<[1], [0], [0], [1], [0, 0, 1, 1], [], []>} : vector<2x32xbf16>, vector<32x128xbf16>, vector<2x128xf32> -> vector<2x128xf32>
    %13 = arith.addf %10, %12 : vector<2x128xf32>
    %14 = vector.broadcast %2 : vector<1x128xf32> to vector<2x128xf32>
    %15 = arith.addf %13, %14 : vector<2x128xf32>
    %16 = vector.extract_strided_slice %15 {offsets = [0, 0], sizes = [2, 32], strides = [1, 1]} : vector<2x128xf32> to vector<2x32xf32>
    %17 = arith.negf %16 : vector<2x32xf32>
    %18 = math.exp %17 : vector<2x32xf32>
    %cst_13 = arith.constant 1.000000e+00 : f32
    %19 = vector.broadcast %cst_13 : f32 to vector<2x32xf32>
    %20 = arith.addf %19, %18 : vector<2x32xf32>
    %21 = arith.divf %19, %20 : vector<2x32xf32>
    %22 = vector.extract_strided_slice %15 {offsets = [0, 32], sizes = [2, 32], strides = [1, 1]} : vector<2x128xf32> to vector<2x32xf32>
    %23 = arith.negf %22 : vector<2x32xf32>
    %24 = math.exp %23 : vector<2x32xf32>
    %cst_14 = arith.constant 1.000000e+00 : f32
    %25 = vector.broadcast %cst_14 : f32 to vector<2x32xf32>
    %26 = arith.addf %25, %24 : vector<2x32xf32>
    %27 = arith.divf %25, %26 : vector<2x32xf32>
    %28 = vector.extract_strided_slice %15 {offsets = [0, 64], sizes = [2, 32], strides = [1, 1]} : vector<2x128xf32> to vector<2x32xf32>
    %29 = math.tanh %28 : vector<2x32xf32>
    %30 = vector.extract_strided_slice %15 {offsets = [0, 96], sizes = [2, 32], strides = [1, 1]} : vector<2x128xf32> to vector<2x32xf32>
    %31 = arith.negf %30 : vector<2x32xf32>
    %32 = math.exp %31 : vector<2x32xf32>
    %cst_15 = arith.constant 1.000000e+00 : f32
    %33 = vector.broadcast %cst_15 : f32 to vector<2x32xf32>
    %34 = arith.addf %33, %32 : vector<2x32xf32>
    %35 = arith.divf %33, %34 : vector<2x32xf32>
    %36 = arith.mulf %27, %4 : vector<2x32xf32>
    %37 = arith.mulf %21, %29 : vector<2x32xf32>
    %38 = arith.addf %36, %37 : vector<2x32xf32>
    %39 = math.tanh %38 : vector<2x32xf32>
    %40 = arith.mulf %35, %39 : vector<2x32xf32>
    %c0_16 = arith.constant 0 : index
    %c0_17 = arith.constant 0 : index
    %c0_18 = arith.constant 0 : index
    %41 = vector.load %arg2[%c0_16, %c0_17, %c0_18] : memref<8x2x1xf32, #tpu.memory_space<vmem>>, vector<1x2x1xf32>
    %42 = vector.shape_cast %41 : vector<1x2x1xf32> to vector<2x1xf32>
    %c7_19 = arith.constant 7 : index
    %c0_20 = arith.constant 0 : index
    %c0_21 = arith.constant 0 : index
    %43 = vector.load %arg2[%c7_19, %c0_20, %c0_21] : memref<8x2x1xf32, #tpu.memory_space<vmem>>, vector<1x2x1xf32>
    %44 = vector.shape_cast %43 : vector<1x2x1xf32> to vector<2x1xf32>
    %45 = vector.shape_cast %42 : vector<2x1xf32> to vector<2x1xf32>
    %46 = vector.broadcast %45 : vector<2x1xf32> to vector<2x16xf32>
    %47 = vector.shape_cast %44 : vector<2x1xf32> to vector<2x1xf32>
    %48 = vector.broadcast %47 : vector<2x1xf32> to vector<2x16xf32>
    %49 = tpu.concatenate %46, %48 in 1 : vector<2x16xf32>, vector<2x16xf32> -> vector<2x32xf32>
    %50 = arith.mulf %40, %49 : vector<2x32xf32>
    %51 = vector.extract_strided_slice %50 {offsets = [0, 0], sizes = [2, 16], strides = [1, 1]} : vector<2x32xf32> to vector<2x16xf32>
    %c0_22 = arith.constant 0 : index
    %c0_23 = arith.constant 0 : index
    %c0_24 = arith.constant 0 : index
    %52 = vector.load %arg6[%c0_22, %c0_23, %c0_24] : memref<8x2x16xf32, #tpu.memory_space<vmem>>, vector<1x2x16xf32>
    %53 = vector.shape_cast %52 : vector<1x2x16xf32> to vector<2x16xf32>
    %54 = vector.shape_cast %51 : vector<2x16xf32> to vector<1x2x16xf32>
    tpu.vector_store %arg6[%c0_22, %c0_23, %c0_24], %54 {strides = array<i32>} : memref<8x2x16xf32, #tpu.memory_space<vmem>>, vector<1x2x16xf32>,
    %55 = vector.extract_strided_slice %50 {offsets = [0, 16], sizes = [2, 16], strides = [1, 1]} : vector<2x32xf32> to vector<2x16xf32>
    %c7_25 = arith.constant 7 : index
    %c0_26 = arith.constant 0 : index
    %c0_27 = arith.constant 0 : index
    %56 = vector.load %arg7[%c7_25, %c0_26, %c0_27] : memref<8x2x16xf32, #tpu.memory_space<vmem>>, vector<1x2x16xf32>
    %57 = vector.shape_cast %56 : vector<1x2x16xf32> to vector<2x16xf32>
    %58 = vector.shape_cast %55 : vector<2x16xf32> to vector<1x2x16xf32>
    tpu.vector_store %arg7[%c7_25, %c0_26, %c0_27], %58 {strides = array<i32>} : memref<8x2x16xf32, #tpu.memory_space<vmem>>, vector<1x2x16xf32>,
    %59 = arith.mulf %49, %40 : vector<2x32xf32>
    %cst_28 = arith.constant 1.000000e+00 : f32
    %60 = vector.broadcast %cst_28 : f32 to vector<2x32xf32>
    %61 = arith.subf %60, %49 : vector<2x32xf32>
    %62 = arith.mulf %61, %3 : vector<2x32xf32>
    %63 = arith.addf %59, %62 : vector<2x32xf32>
    %64 = arith.mulf %49, %38 : vector<2x32xf32>
    %cst_29 = arith.constant 1.000000e+00 : f32
    %65 = vector.broadcast %cst_29 : f32 to vector<2x32xf32>
    %66 = arith.subf %65, %49 : vector<2x32xf32>
    %67 = arith.mulf %66, %4 : vector<2x32xf32>
    %68 = arith.addf %64, %67 : vector<2x32xf32>
    %c1 = arith.constant 1 : index
    %c0_30 = arith.constant 0 : index
    %c0_31 = arith.constant 0 : index
    %69 = vector.load %arg1[%c1, %c0_30, %c0_31] : memref<8x2x32xbf16, #tpu.memory_space<vmem>>, vector<1x2x32xbf16>
    %70 = vector.shape_cast %69 : vector<1x2x32xbf16> to vector<2x32xbf16>
    %c6 = arith.constant 6 : index
    %c0_32 = arith.constant 0 : index
    %c0_33 = arith.constant 0 : index
    %71 = vector.load %arg1[%c6, %c0_32, %c0_33] : memref<8x2x32xbf16, #tpu.memory_space<vmem>>, vector<1x2x32xbf16>
    %72 = vector.shape_cast %71 : vector<1x2x32xbf16> to vector<2x32xbf16>
    %73 = tpu.concatenate %70, %72 in 1 : vector<2x32xbf16>, vector<2x32xbf16> -> vector<2x64xbf16>
    %cst_34 = arith.constant dense<0.000000e+00> : vector<2x128xf32>
    %74 = tpu.matmul %73, %0, %cst_34 {dimension_numbers = #tpu.dot_dimension_numbers<[1], [0], [0], [1], [0, 0, 1, 1], [], []>} : vector<2x64xbf16>, vector<64x128xbf16>, vector<2x128xf32> -> vector<2x128xf32>
    %75 = arith.truncf %63 : vector<2x32xf32> to vector<2x32xbf16>
    %cst_35 = arith.constant dense<0.000000e+00> : vector<2x128xf32>
    %76 = tpu.matmul %75, %1, %cst_35 {dimension_numbers = #tpu.dot_dimension_numbers<[1], [0], [0], [1], [0, 0, 1, 1], [], []>} : vector<2x32xbf16>, vector<32x128xbf16>, vector<2x128xf32> -> vector<2x128xf32>
    %77 = arith.addf %74, %76 : vector<2x128xf32>
    %78 = vector.broadcast %2 : vector<1x128xf32> to vector<2x128xf32>
    %79 = arith.addf %77, %78 : vector<2x128xf32>
    %80 = vector.extract_strided_slice %79 {offsets = [0, 0], sizes = [2, 32], strides = [1, 1]} : vector<2x128xf32> to vector<2x32xf32>
    %81 = arith.negf %80 : vector<2x32xf32>
    %82 = math.exp %81 : vector<2x32xf32>
    %cst_36 = arith.constant 1.000000e+00 : f32
    %83 = vector.broadcast %cst_36 : f32 to vector<2x32xf32>
    %84 = arith.addf %83, %82 : vector<2x32xf32>
    %85 = arith.divf %83, %84 : vector<2x32xf32>
    %86 = vector.extract_strided_slice %79 {offsets = [0, 32], sizes = [2, 32], strides = [1, 1]} : vector<2x128xf32> to vector<2x32xf32>
    %87 = arith.negf %86 : vector<2x32xf32>
    %88 = math.exp %87 : vector<2x32xf32>
    %cst_37 = arith.constant 1.000000e+00 : f32
    %89 = vector.broadcast %cst_37 : f32 to vector<2x32xf32>
    %90 = arith.addf %89, %88 : vector<2x32xf32>
    %91 = arith.divf %89, %90 : vector<2x32xf32>
    %92 = vector.extract_strided_slice %79 {offsets = [0, 64], sizes = [2, 32], strides = [1, 1]} : vector<2x128xf32> to vector<2x32xf32>
    %93 = math.tanh %92 : vector<2x32xf32>
    %94 = vector.extract_strided_slice %79 {offsets = [0, 96], sizes = [2, 32], strides = [1, 1]} : vector<2x128xf32> to vector<2x32xf32>
    %95 = arith.negf %94 : vector<2x32xf32>
    %96 = math.exp %95 : vector<2x32xf32>
    %cst_38 = arith.constant 1.000000e+00 : f32
    %97 = vector.broadcast %cst_38 : f32 to vector<2x32xf32>
    %98 = arith.addf %97, %96 : vector<2x32xf32>
    %99 = arith.divf %97, %98 : vector<2x32xf32>
    %100 = arith.mulf %91, %68 : vector<2x32xf32>
    %101 = arith.mulf %85, %93 : vector<2x32xf32>
    %102 = arith.addf %100, %101 : vector<2x32xf32>
    %103 = math.tanh %102 : vector<2x32xf32>
    %104 = arith.mulf %99, %103 : vector<2x32xf32>
    %c1_39 = arith.constant 1 : index
    %c0_40 = arith.constant 0 : index
    %c0_41 = arith.constant 0 : index
    %105 = vector.load %arg2[%c1_39, %c0_40, %c0_41] : memref<8x2x1xf32, #tpu.memory_space<vmem>>, vector<1x2x1xf32>
    %106 = vector.shape_cast %105 : vector<1x2x1xf32> to vector<2x1xf32>
    %c6_42 = arith.constant 6 : index
    %c0_43 = arith.constant 0 : index
    %c0_44 = arith.constant 0 : index
    %107 = vector.load %arg2[%c6_42, %c0_43, %c0_44] : memref<8x2x1xf32, #tpu.memory_space<vmem>>, vector<1x2x1xf32>
    %108 = vector.shape_cast %107 : vector<1x2x1xf32> to vector<2x1xf32>
    %109 = vector.shape_cast %106 : vector<2x1xf32> to vector<2x1xf32>
    %110 = vector.broadcast %109 : vector<2x1xf32> to vector<2x16xf32>
    %111 = vector.shape_cast %108 : vector<2x1xf32> to vector<2x1xf32>
    %112 = vector.broadcast %111 : vector<2x1xf32> to vector<2x16xf32>
    %113 = tpu.concatenate %110, %112 in 1 : vector<2x16xf32>, vector<2x16xf32> -> vector<2x32xf32>
    %114 = arith.mulf %104, %113 : vector<2x32xf32>
    %115 = vector.extract_strided_slice %114 {offsets = [0, 0], sizes = [2, 16], strides = [1, 1]} : vector<2x32xf32> to vector<2x16xf32>
    %c1_45 = arith.constant 1 : index
    %c0_46 = arith.constant 0 : index
    %c0_47 = arith.constant 0 : index
    %116 = vector.load %arg6[%c1_45, %c0_46, %c0_47] : memref<8x2x16xf32, #tpu.memory_space<vmem>>, vector<1x2x16xf32>
    %117 = vector.shape_cast %116 : vector<1x2x16xf32> to vector<2x16xf32>
    %118 = vector.shape_cast %115 : vector<2x16xf32> to vector<1x2x16xf32>
    tpu.vector_store %arg6[%c1_45, %c0_46, %c0_47], %118 {strides = array<i32>} : memref<8x2x16xf32, #tpu.memory_space<vmem>>, vector<1x2x16xf32>,
    %119 = vector.extract_strided_slice %114 {offsets = [0, 16], sizes = [2, 16], strides = [1, 1]} : vector<2x32xf32> to vector<2x16xf32>
    %c6_48 = arith.constant 6 : index
    %c0_49 = arith.constant 0 : index
    %c0_50 = arith.constant 0 : index
    %120 = vector.load %arg7[%c6_48, %c0_49, %c0_50] : memref<8x2x16xf32, #tpu.memory_space<vmem>>, vector<1x2x16xf32>
    %121 = vector.shape_cast %120 : vector<1x2x16xf32> to vector<2x16xf32>
    %122 = vector.shape_cast %119 : vector<2x16xf32> to vector<1x2x16xf32>
    tpu.vector_store %arg7[%c6_48, %c0_49, %c0_50], %122 {strides = array<i32>} : memref<8x2x16xf32, #tpu.memory_space<vmem>>, vector<1x2x16xf32>,
    %123 = arith.mulf %113, %104 : vector<2x32xf32>
    %cst_51 = arith.constant 1.000000e+00 : f32
    %124 = vector.broadcast %cst_51 : f32 to vector<2x32xf32>
    %125 = arith.subf %124, %113 : vector<2x32xf32>
    %126 = arith.mulf %125, %63 : vector<2x32xf32>
    %127 = arith.addf %123, %126 : vector<2x32xf32>
    %128 = arith.mulf %113, %102 : vector<2x32xf32>
    %cst_52 = arith.constant 1.000000e+00 : f32
    %129 = vector.broadcast %cst_52 : f32 to vector<2x32xf32>
    %130 = arith.subf %129, %113 : vector<2x32xf32>
    %131 = arith.mulf %130, %68 : vector<2x32xf32>
    %132 = arith.addf %128, %131 : vector<2x32xf32>
    %c2 = arith.constant 2 : index
    %c0_53 = arith.constant 0 : index
    %c0_54 = arith.constant 0 : index
    %133 = vector.load %arg1[%c2, %c0_53, %c0_54] : memref<8x2x32xbf16, #tpu.memory_space<vmem>>, vector<1x2x32xbf16>
    %134 = vector.shape_cast %133 : vector<1x2x32xbf16> to vector<2x32xbf16>
    %c5 = arith.constant 5 : index
    %c0_55 = arith.constant 0 : index
    %c0_56 = arith.constant 0 : index
    %135 = vector.load %arg1[%c5, %c0_55, %c0_56] : memref<8x2x32xbf16, #tpu.memory_space<vmem>>, vector<1x2x32xbf16>
    %136 = vector.shape_cast %135 : vector<1x2x32xbf16> to vector<2x32xbf16>
    %137 = tpu.concatenate %134, %136 in 1 : vector<2x32xbf16>, vector<2x32xbf16> -> vector<2x64xbf16>
    %cst_57 = arith.constant dense<0.000000e+00> : vector<2x128xf32>
    %138 = tpu.matmul %137, %0, %cst_57 {dimension_numbers = #tpu.dot_dimension_numbers<[1], [0], [0], [1], [0, 0, 1, 1], [], []>} : vector<2x64xbf16>, vector<64x128xbf16>, vector<2x128xf32> -> vector<2x128xf32>
    %139 = arith.truncf %127 : vector<2x32xf32> to vector<2x32xbf16>
    %cst_58 = arith.constant dense<0.000000e+00> : vector<2x128xf32>
    %140 = tpu.matmul %139, %1, %cst_58 {dimension_numbers = #tpu.dot_dimension_numbers<[1], [0], [0], [1], [0, 0, 1, 1], [], []>} : vector<2x32xbf16>, vector<32x128xbf16>, vector<2x128xf32> -> vector<2x128xf32>
    %141 = arith.addf %138, %140 : vector<2x128xf32>
    %142 = vector.broadcast %2 : vector<1x128xf32> to vector<2x128xf32>
    %143 = arith.addf %141, %142 : vector<2x128xf32>
    %144 = vector.extract_strided_slice %143 {offsets = [0, 0], sizes = [2, 32], strides = [1, 1]} : vector<2x128xf32> to vector<2x32xf32>
    %145 = arith.negf %144 : vector<2x32xf32>
    %146 = math.exp %145 : vector<2x32xf32>
    %cst_59 = arith.constant 1.000000e+00 : f32
    %147 = vector.broadcast %cst_59 : f32 to vector<2x32xf32>
    %148 = arith.addf %147, %146 : vector<2x32xf32>
    %149 = arith.divf %147, %148 : vector<2x32xf32>
    %150 = vector.extract_strided_slice %143 {offsets = [0, 32], sizes = [2, 32], strides = [1, 1]} : vector<2x128xf32> to vector<2x32xf32>
    %151 = arith.negf %150 : vector<2x32xf32>
    %152 = math.exp %151 : vector<2x32xf32>
    %cst_60 = arith.constant 1.000000e+00 : f32
    %153 = vector.broadcast %cst_60 : f32 to vector<2x32xf32>
    %154 = arith.addf %153, %152 : vector<2x32xf32>
    %155 = arith.divf %153, %154 : vector<2x32xf32>
    %156 = vector.extract_strided_slice %143 {offsets = [0, 64], sizes = [2, 32], strides = [1, 1]} : vector<2x128xf32> to vector<2x32xf32>
    %157 = math.tanh %156 : vector<2x32xf32>
    %158 = vector.extract_strided_slice %143 {offsets = [0, 96], sizes = [2, 32], strides = [1, 1]} : vector<2x128xf32> to vector<2x32xf32>
    %159 = arith.negf %158 : vector<2x32xf32>
    %160 = math.exp %159 : vector<2x32xf32>
    %cst_61 = arith.constant 1.000000e+00 : f32
    %161 = vector.broadcast %cst_61 : f32 to vector<2x32xf32>
    %162 = arith.addf %161, %160 : vector<2x32xf32>
    %163 = arith.divf %161, %162 : vector<2x32xf32>
    %164 = arith.mulf %155, %132 : vector<2x32xf32>
    %165 = arith.mulf %149, %157 : vector<2x32xf32>
    %166 = arith.addf %164, %165 : vector<2x32xf32>
    %167 = math.tanh %166 : vector<2x32xf32>
    %168 = arith.mulf %163, %167 : vector<2x32xf32>
    %c2_62 = arith.constant 2 : index
    %c0_63 = arith.constant 0 : index
    %c0_64 = arith.constant 0 : index
    %169 = vector.load %arg2[%c2_62, %c0_63, %c0_64] : memref<8x2x1xf32, #tpu.memory_space<vmem>>, vector<1x2x1xf32>
    %170 = vector.shape_cast %169 : vector<1x2x1xf32> to vector<2x1xf32>
    %c5_65 = arith.constant 5 : index
    %c0_66 = arith.constant 0 : index
    %c0_67 = arith.constant 0 : index
    %171 = vector.load %arg2[%c5_65, %c0_66, %c0_67] : memref<8x2x1xf32, #tpu.memory_space<vmem>>, vector<1x2x1xf32>
    %172 = vector.shape_cast %171 : vector<1x2x1xf32> to vector<2x1xf32>
    %173 = vector.shape_cast %170 : vector<2x1xf32> to vector<2x1xf32>
    %174 = vector.broadcast %173 : vector<2x1xf32> to vector<2x16xf32>
    %175 = vector.shape_cast %172 : vector<2x1xf32> to vector<2x1xf32>
    %176 = vector.broadcast %175 : vector<2x1xf32> to vector<2x16xf32>
    %177 = tpu.concatenate %174, %176 in 1 : vector<2x16xf32>, vector<2x16xf32> -> vector<2x32xf32>
    %178 = arith.mulf %168, %177 : vector<2x32xf32>
    %179 = vector.extract_strided_slice %178 {offsets = [0, 0], sizes = [2, 16], strides = [1, 1]} : vector<2x32xf32> to vector<2x16xf32>
    %c2_68 = arith.constant 2 : index
    %c0_69 = arith.constant 0 : index
    %c0_70 = arith.constant 0 : index
    %180 = vector.load %arg6[%c2_68, %c0_69, %c0_70] : memref<8x2x16xf32, #tpu.memory_space<vmem>>, vector<1x2x16xf32>
    %181 = vector.shape_cast %180 : vector<1x2x16xf32> to vector<2x16xf32>
    %182 = vector.shape_cast %179 : vector<2x16xf32> to vector<1x2x16xf32>
    tpu.vector_store %arg6[%c2_68, %c0_69, %c0_70], %182 {strides = array<i32>} : memref<8x2x16xf32, #tpu.memory_space<vmem>>, vector<1x2x16xf32>,
    %183 = vector.extract_strided_slice %178 {offsets = [0, 16], sizes = [2, 16], strides = [1, 1]} : vector<2x32xf32> to vector<2x16xf32>
    %c5_71 = arith.constant 5 : index
    %c0_72 = arith.constant 0 : index
    %c0_73 = arith.constant 0 : index
    %184 = vector.load %arg7[%c5_71, %c0_72, %c0_73] : memref<8x2x16xf32, #tpu.memory_space<vmem>>, vector<1x2x16xf32>
    %185 = vector.shape_cast %184 : vector<1x2x16xf32> to vector<2x16xf32>
    %186 = vector.shape_cast %183 : vector<2x16xf32> to vector<1x2x16xf32>
    tpu.vector_store %arg7[%c5_71, %c0_72, %c0_73], %186 {strides = array<i32>} : memref<8x2x16xf32, #tpu.memory_space<vmem>>, vector<1x2x16xf32>,
    %187 = arith.mulf %177, %168 : vector<2x32xf32>
    %cst_74 = arith.constant 1.000000e+00 : f32
    %188 = vector.broadcast %cst_74 : f32 to vector<2x32xf32>
    %189 = arith.subf %188, %177 : vector<2x32xf32>
    %190 = arith.mulf %189, %127 : vector<2x32xf32>
    %191 = arith.addf %187, %190 : vector<2x32xf32>
    %192 = arith.mulf %177, %166 : vector<2x32xf32>
    %cst_75 = arith.constant 1.000000e+00 : f32
    %193 = vector.broadcast %cst_75 : f32 to vector<2x32xf32>
    %194 = arith.subf %193, %177 : vector<2x32xf32>
    %195 = arith.mulf %194, %132 : vector<2x32xf32>
    %196 = arith.addf %192, %195 : vector<2x32xf32>
    %c3 = arith.constant 3 : index
    %c0_76 = arith.constant 0 : index
    %c0_77 = arith.constant 0 : index
    %197 = vector.load %arg1[%c3, %c0_76, %c0_77] : memref<8x2x32xbf16, #tpu.memory_space<vmem>>, vector<1x2x32xbf16>
    %198 = vector.shape_cast %197 : vector<1x2x32xbf16> to vector<2x32xbf16>
    %c4 = arith.constant 4 : index
    %c0_78 = arith.constant 0 : index
    %c0_79 = arith.constant 0 : index
    %199 = vector.load %arg1[%c4, %c0_78, %c0_79] : memref<8x2x32xbf16, #tpu.memory_space<vmem>>, vector<1x2x32xbf16>
    %200 = vector.shape_cast %199 : vector<1x2x32xbf16> to vector<2x32xbf16>
    %201 = tpu.concatenate %198, %200 in 1 : vector<2x32xbf16>, vector<2x32xbf16> -> vector<2x64xbf16>
    %cst_80 = arith.constant dense<0.000000e+00> : vector<2x128xf32>
    %202 = tpu.matmul %201, %0, %cst_80 {dimension_numbers = #tpu.dot_dimension_numbers<[1], [0], [0], [1], [0, 0, 1, 1], [], []>} : vector<2x64xbf16>, vector<64x128xbf16>, vector<2x128xf32> -> vector<2x128xf32>
    %203 = arith.truncf %191 : vector<2x32xf32> to vector<2x32xbf16>
    %cst_81 = arith.constant dense<0.000000e+00> : vector<2x128xf32>
    %204 = tpu.matmul %203, %1, %cst_81 {dimension_numbers = #tpu.dot_dimension_numbers<[1], [0], [0], [1], [0, 0, 1, 1], [], []>} : vector<2x32xbf16>, vector<32x128xbf16>, vector<2x128xf32> -> vector<2x128xf32>
    %205 = arith.addf %202, %204 : vector<2x128xf32>
    %206 = vector.broadcast %2 : vector<1x128xf32> to vector<2x128xf32>
    %207 = arith.addf %205, %206 : vector<2x128xf32>
    %208 = vector.extract_strided_slice %207 {offsets = [0, 0], sizes = [2, 32], strides = [1, 1]} : vector<2x128xf32> to vector<2x32xf32>
    %209 = arith.negf %208 : vector<2x32xf32>
    %210 = math.exp %209 : vector<2x32xf32>
    %cst_82 = arith.constant 1.000000e+00 : f32
    %211 = vector.broadcast %cst_82 : f32 to vector<2x32xf32>
    %212 = arith.addf %211, %210 : vector<2x32xf32>
    %213 = arith.divf %211, %212 : vector<2x32xf32>
    %214 = vector.extract_strided_slice %207 {offsets = [0, 32], sizes = [2, 32], strides = [1, 1]} : vector<2x128xf32> to vector<2x32xf32>
    %215 = arith.negf %214 : vector<2x32xf32>
    %216 = math.exp %215 : vector<2x32xf32>
    %cst_83 = arith.constant 1.000000e+00 : f32
    %217 = vector.broadcast %cst_83 : f32 to vector<2x32xf32>
    %218 = arith.addf %217, %216 : vector<2x32xf32>
    %219 = arith.divf %217, %218 : vector<2x32xf32>
    %220 = vector.extract_strided_slice %207 {offsets = [0, 64], sizes = [2, 32], strides = [1, 1]} : vector<2x128xf32> to vector<2x32xf32>
    %221 = math.tanh %220 : vector<2x32xf32>
    %222 = vector.extract_strided_slice %207 {offsets = [0, 96], sizes = [2, 32], strides = [1, 1]} : vector<2x128xf32> to vector<2x32xf32>
    %223 = arith.negf %222 : vector<2x32xf32>
    %224 = math.exp %223 : vector<2x32xf32>
    %cst_84 = arith.constant 1.000000e+00 : f32
    %225 = vector.broadcast %cst_84 : f32 to vector<2x32xf32>
    %226 = arith.addf %225, %224 : vector<2x32xf32>
    %227 = arith.divf %225, %226 : vector<2x32xf32>
    %228 = arith.mulf %219, %196 : vector<2x32xf32>
    %229 = arith.mulf %213, %221 : vector<2x32xf32>
    %230 = arith.addf %228, %229 : vector<2x32xf32>
    %231 = math.tanh %230 : vector<2x32xf32>
    %232 = arith.mulf %227, %231 : vector<2x32xf32>
    %c3_85 = arith.constant 3 : index
    %c0_86 = arith.constant 0 : index
    %c0_87 = arith.constant 0 : index
    %233 = vector.load %arg2[%c3_85, %c0_86, %c0_87] : memref<8x2x1xf32, #tpu.memory_space<vmem>>, vector<1x2x1xf32>
    %234 = vector.shape_cast %233 : vector<1x2x1xf32> to vector<2x1xf32>
    %c4_88 = arith.constant 4 : index
    %c0_89 = arith.constant 0 : index
    %c0_90 = arith.constant 0 : index
    %235 = vector.load %arg2[%c4_88, %c0_89, %c0_90] : memref<8x2x1xf32, #tpu.memory_space<vmem>>, vector<1x2x1xf32>
    %236 = vector.shape_cast %235 : vector<1x2x1xf32> to vector<2x1xf32>
    %237 = vector.shape_cast %234 : vector<2x1xf32> to vector<2x1xf32>
    %238 = vector.broadcast %237 : vector<2x1xf32> to vector<2x16xf32>
    %239 = vector.shape_cast %236 : vector<2x1xf32> to vector<2x1xf32>
    %240 = vector.broadcast %239 : vector<2x1xf32> to vector<2x16xf32>
    %241 = tpu.concatenate %238, %240 in 1 : vector<2x16xf32>, vector<2x16xf32> -> vector<2x32xf32>
    %242 = arith.mulf %232, %241 : vector<2x32xf32>
    %243 = vector.extract_strided_slice %242 {offsets = [0, 0], sizes = [2, 16], strides = [1, 1]} : vector<2x32xf32> to vector<2x16xf32>
    %c3_91 = arith.constant 3 : index
    %c0_92 = arith.constant 0 : index
    %c0_93 = arith.constant 0 : index
    %244 = vector.load %arg6[%c3_91, %c0_92, %c0_93] : memref<8x2x16xf32, #tpu.memory_space<vmem>>, vector<1x2x16xf32>
    %245 = vector.shape_cast %244 : vector<1x2x16xf32> to vector<2x16xf32>
    %246 = vector.shape_cast %243 : vector<2x16xf32> to vector<1x2x16xf32>
    tpu.vector_store %arg6[%c3_91, %c0_92, %c0_93], %246 {strides = array<i32>} : memref<8x2x16xf32, #tpu.memory_space<vmem>>, vector<1x2x16xf32>,
    %247 = vector.extract_strided_slice %242 {offsets = [0, 16], sizes = [2, 16], strides = [1, 1]} : vector<2x32xf32> to vector<2x16xf32>
    %c4_94 = arith.constant 4 : index
    %c0_95 = arith.constant 0 : index
    %c0_96 = arith.constant 0 : index
    %248 = vector.load %arg7[%c4_94, %c0_95, %c0_96] : memref<8x2x16xf32, #tpu.memory_space<vmem>>, vector<1x2x16xf32>
    %249 = vector.shape_cast %248 : vector<1x2x16xf32> to vector<2x16xf32>
    %250 = vector.shape_cast %247 : vector<2x16xf32> to vector<1x2x16xf32>
    tpu.vector_store %arg7[%c4_94, %c0_95, %c0_96], %250 {strides = array<i32>} : memref<8x2x16xf32, #tpu.memory_space<vmem>>, vector<1x2x16xf32>,
    %251 = arith.mulf %241, %232 : vector<2x32xf32>
    %cst_97 = arith.constant 1.000000e+00 : f32
    %252 = vector.broadcast %cst_97 : f32 to vector<2x32xf32>
    %253 = arith.subf %252, %241 : vector<2x32xf32>
    %254 = arith.mulf %253, %191 : vector<2x32xf32>
    %255 = arith.addf %251, %254 : vector<2x32xf32>
    %256 = arith.mulf %241, %230 : vector<2x32xf32>
    %cst_98 = arith.constant 1.000000e+00 : f32
    %257 = vector.broadcast %cst_98 : f32 to vector<2x32xf32>
    %258 = arith.subf %257, %241 : vector<2x32xf32>
    %259 = arith.mulf %258, %196 : vector<2x32xf32>
    %260 = arith.addf %256, %259 : vector<2x32xf32>
    %c4_99 = arith.constant 4 : index
    %c0_100 = arith.constant 0 : index
    %c0_101 = arith.constant 0 : index
    %261 = vector.load %arg1[%c4_99, %c0_100, %c0_101] : memref<8x2x32xbf16, #tpu.memory_space<vmem>>, vector<1x2x32xbf16>
    %262 = vector.shape_cast %261 : vector<1x2x32xbf16> to vector<2x32xbf16>
    %c3_102 = arith.constant 3 : index
    %c0_103 = arith.constant 0 : index
    %c0_104 = arith.constant 0 : index
    %263 = vector.load %arg1[%c3_102, %c0_103, %c0_104] : memref<8x2x32xbf16, #tpu.memory_space<vmem>>, vector<1x2x32xbf16>
    %264 = vector.shape_cast %263 : vector<1x2x32xbf16> to vector<2x32xbf16>
    %265 = tpu.concatenate %262, %264 in 1 : vector<2x32xbf16>, vector<2x32xbf16> -> vector<2x64xbf16>
    %cst_105 = arith.constant dense<0.000000e+00> : vector<2x128xf32>
    %266 = tpu.matmul %265, %0, %cst_105 {dimension_numbers = #tpu.dot_dimension_numbers<[1], [0], [0], [1], [0, 0, 1, 1], [], []>} : vector<2x64xbf16>, vector<64x128xbf16>, vector<2x128xf32> -> vector<2x128xf32>
    %267 = arith.truncf %255 : vector<2x32xf32> to vector<2x32xbf16>
    %cst_106 = arith.constant dense<0.000000e+00> : vector<2x128xf32>
    %268 = tpu.matmul %267, %1, %cst_106 {dimension_numbers = #tpu.dot_dimension_numbers<[1], [0], [0], [1], [0, 0, 1, 1], [], []>} : vector<2x32xbf16>, vector<32x128xbf16>, vector<2x128xf32> -> vector<2x128xf32>
    %269 = arith.addf %266, %268 : vector<2x128xf32>
    %270 = vector.broadcast %2 : vector<1x128xf32> to vector<2x128xf32>
    %271 = arith.addf %269, %270 : vector<2x128xf32>
    %272 = vector.extract_strided_slice %271 {offsets = [0, 0], sizes = [2, 32], strides = [1, 1]} : vector<2x128xf32> to vector<2x32xf32>
    %273 = arith.negf %272 : vector<2x32xf32>
    %274 = math.exp %273 : vector<2x32xf32>
    %cst_107 = arith.constant 1.000000e+00 : f32
    %275 = vector.broadcast %cst_107 : f32 to vector<2x32xf32>
    %276 = arith.addf %275, %274 : vector<2x32xf32>
    %277 = arith.divf %275, %276 : vector<2x32xf32>
    %278 = vector.extract_strided_slice %271 {offsets = [0, 32], sizes = [2, 32], strides = [1, 1]} : vector<2x128xf32> to vector<2x32xf32>
    %279 = arith.negf %278 : vector<2x32xf32>
    %280 = math.exp %279 : vector<2x32xf32>
    %cst_108 = arith.constant 1.000000e+00 : f32
    %281 = vector.broadcast %cst_108 : f32 to vector<2x32xf32>
    %282 = arith.addf %281, %280 : vector<2x32xf32>
    %283 = arith.divf %281, %282 : vector<2x32xf32>
    %284 = vector.extract_strided_slice %271 {offsets = [0, 64], sizes = [2, 32], strides = [1, 1]} : vector<2x128xf32> to vector<2x32xf32>
    %285 = math.tanh %284 : vector<2x32xf32>
    %286 = vector.extract_strided_slice %271 {offsets = [0, 96], sizes = [2, 32], strides = [1, 1]} : vector<2x128xf32> to vector<2x32xf32>
    %287 = arith.negf %286 : vector<2x32xf32>
    %288 = math.exp %287 : vector<2x32xf32>
    %cst_109 = arith.constant 1.000000e+00 : f32
    %289 = vector.broadcast %cst_109 : f32 to vector<2x32xf32>
    %290 = arith.addf %289, %288 : vector<2x32xf32>
    %291 = arith.divf %289, %290 : vector<2x32xf32>
    %292 = arith.mulf %283, %260 : vector<2x32xf32>
    %293 = arith.mulf %277, %285 : vector<2x32xf32>
    %294 = arith.addf %292, %293 : vector<2x32xf32>
    %295 = math.tanh %294 : vector<2x32xf32>
    %296 = arith.mulf %291, %295 : vector<2x32xf32>
    %c4_110 = arith.constant 4 : index
    %c0_111 = arith.constant 0 : index
    %c0_112 = arith.constant 0 : index
    %297 = vector.load %arg2[%c4_110, %c0_111, %c0_112] : memref<8x2x1xf32, #tpu.memory_space<vmem>>, vector<1x2x1xf32>
    %298 = vector.shape_cast %297 : vector<1x2x1xf32> to vector<2x1xf32>
    %c3_113 = arith.constant 3 : index
    %c0_114 = arith.constant 0 : index
    %c0_115 = arith.constant 0 : index
    %299 = vector.load %arg2[%c3_113, %c0_114, %c0_115] : memref<8x2x1xf32, #tpu.memory_space<vmem>>, vector<1x2x1xf32>
    %300 = vector.shape_cast %299 : vector<1x2x1xf32> to vector<2x1xf32>
    %301 = vector.shape_cast %298 : vector<2x1xf32> to vector<2x1xf32>
    %302 = vector.broadcast %301 : vector<2x1xf32> to vector<2x16xf32>
    %303 = vector.shape_cast %300 : vector<2x1xf32> to vector<2x1xf32>
    %304 = vector.broadcast %303 : vector<2x1xf32> to vector<2x16xf32>
    %305 = tpu.concatenate %302, %304 in 1 : vector<2x16xf32>, vector<2x16xf32> -> vector<2x32xf32>
    %306 = arith.mulf %296, %305 : vector<2x32xf32>
    %307 = vector.extract_strided_slice %306 {offsets = [0, 0], sizes = [2, 16], strides = [1, 1]} : vector<2x32xf32> to vector<2x16xf32>
    %c4_116 = arith.constant 4 : index
    %c0_117 = arith.constant 0 : index
    %c0_118 = arith.constant 0 : index
    %308 = vector.load %arg6[%c4_116, %c0_117, %c0_118] : memref<8x2x16xf32, #tpu.memory_space<vmem>>, vector<1x2x16xf32>
    %309 = vector.shape_cast %308 : vector<1x2x16xf32> to vector<2x16xf32>
    %310 = vector.shape_cast %307 : vector<2x16xf32> to vector<1x2x16xf32>
    tpu.vector_store %arg6[%c4_116, %c0_117, %c0_118], %310 {strides = array<i32>} : memref<8x2x16xf32, #tpu.memory_space<vmem>>, vector<1x2x16xf32>,
    %311 = vector.extract_strided_slice %306 {offsets = [0, 16], sizes = [2, 16], strides = [1, 1]} : vector<2x32xf32> to vector<2x16xf32>
    %c3_119 = arith.constant 3 : index
    %c0_120 = arith.constant 0 : index
    %c0_121 = arith.constant 0 : index
    %312 = vector.load %arg7[%c3_119, %c0_120, %c0_121] : memref<8x2x16xf32, #tpu.memory_space<vmem>>, vector<1x2x16xf32>
    %313 = vector.shape_cast %312 : vector<1x2x16xf32> to vector<2x16xf32>
    %314 = vector.shape_cast %311 : vector<2x16xf32> to vector<1x2x16xf32>
    tpu.vector_store %arg7[%c3_119, %c0_120, %c0_121], %314 {strides = array<i32>} : memref<8x2x16xf32, #tpu.memory_space<vmem>>, vector<1x2x16xf32>,
    %315 = arith.mulf %305, %296 : vector<2x32xf32>
    %cst_122 = arith.constant 1.000000e+00 : f32
    %316 = vector.broadcast %cst_122 : f32 to vector<2x32xf32>
    %317 = arith.subf %316, %305 : vector<2x32xf32>
    %318 = arith.mulf %317, %255 : vector<2x32xf32>
    %319 = arith.addf %315, %318 : vector<2x32xf32>
    %320 = arith.mulf %305, %294 : vector<2x32xf32>
    %cst_123 = arith.constant 1.000000e+00 : f32
    %321 = vector.broadcast %cst_123 : f32 to vector<2x32xf32>
    %322 = arith.subf %321, %305 : vector<2x32xf32>
    %323 = arith.mulf %322, %260 : vector<2x32xf32>
    %324 = arith.addf %320, %323 : vector<2x32xf32>
    %c5_124 = arith.constant 5 : index
    %c0_125 = arith.constant 0 : index
    %c0_126 = arith.constant 0 : index
    %325 = vector.load %arg1[%c5_124, %c0_125, %c0_126] : memref<8x2x32xbf16, #tpu.memory_space<vmem>>, vector<1x2x32xbf16>
    %326 = vector.shape_cast %325 : vector<1x2x32xbf16> to vector<2x32xbf16>
    %c2_127 = arith.constant 2 : index
    %c0_128 = arith.constant 0 : index
    %c0_129 = arith.constant 0 : index
    %327 = vector.load %arg1[%c2_127, %c0_128, %c0_129] : memref<8x2x32xbf16, #tpu.memory_space<vmem>>, vector<1x2x32xbf16>
    %328 = vector.shape_cast %327 : vector<1x2x32xbf16> to vector<2x32xbf16>
    %329 = tpu.concatenate %326, %328 in 1 : vector<2x32xbf16>, vector<2x32xbf16> -> vector<2x64xbf16>
    %cst_130 = arith.constant dense<0.000000e+00> : vector<2x128xf32>
    %330 = tpu.matmul %329, %0, %cst_130 {dimension_numbers = #tpu.dot_dimension_numbers<[1], [0], [0], [1], [0, 0, 1, 1], [], []>} : vector<2x64xbf16>, vector<64x128xbf16>, vector<2x128xf32> -> vector<2x128xf32>
    %331 = arith.truncf %319 : vector<2x32xf32> to vector<2x32xbf16>
    %cst_131 = arith.constant dense<0.000000e+00> : vector<2x128xf32>
    %332 = tpu.matmul %331, %1, %cst_131 {dimension_numbers = #tpu.dot_dimension_numbers<[1], [0], [0], [1], [0, 0, 1, 1], [], []>} : vector<2x32xbf16>, vector<32x128xbf16>, vector<2x128xf32> -> vector<2x128xf32>
    %333 = arith.addf %330, %332 : vector<2x128xf32>
    %334 = vector.broadcast %2 : vector<1x128xf32> to vector<2x128xf32>
    %335 = arith.addf %333, %334 : vector<2x128xf32>
    %336 = vector.extract_strided_slice %335 {offsets = [0, 0], sizes = [2, 32], strides = [1, 1]} : vector<2x128xf32> to vector<2x32xf32>
    %337 = arith.negf %336 : vector<2x32xf32>
    %338 = math.exp %337 : vector<2x32xf32>
    %cst_132 = arith.constant 1.000000e+00 : f32
    %339 = vector.broadcast %cst_132 : f32 to vector<2x32xf32>
    %340 = arith.addf %339, %338 : vector<2x32xf32>
    %341 = arith.divf %339, %340 : vector<2x32xf32>
    %342 = vector.extract_strided_slice %335 {offsets = [0, 32], sizes = [2, 32], strides = [1, 1]} : vector<2x128xf32> to vector<2x32xf32>
    %343 = arith.negf %342 : vector<2x32xf32>
    %344 = math.exp %343 : vector<2x32xf32>
    %cst_133 = arith.constant 1.000000e+00 : f32
    %345 = vector.broadcast %cst_133 : f32 to vector<2x32xf32>
    %346 = arith.addf %345, %344 : vector<2x32xf32>
    %347 = arith.divf %345, %346 : vector<2x32xf32>
    %348 = vector.extract_strided_slice %335 {offsets = [0, 64], sizes = [2, 32], strides = [1, 1]} : vector<2x128xf32> to vector<2x32xf32>
    %349 = math.tanh %348 : vector<2x32xf32>
    %350 = vector.extract_strided_slice %335 {offsets = [0, 96], sizes = [2, 32], strides = [1, 1]} : vector<2x128xf32> to vector<2x32xf32>
    %351 = arith.negf %350 : vector<2x32xf32>
    %352 = math.exp %351 : vector<2x32xf32>
    %cst_134 = arith.constant 1.000000e+00 : f32
    %353 = vector.broadcast %cst_134 : f32 to vector<2x32xf32>
    %354 = arith.addf %353, %352 : vector<2x32xf32>
    %355 = arith.divf %353, %354 : vector<2x32xf32>
    %356 = arith.mulf %347, %324 : vector<2x32xf32>
    %357 = arith.mulf %341, %349 : vector<2x32xf32>
    %358 = arith.addf %356, %357 : vector<2x32xf32>
    %359 = math.tanh %358 : vector<2x32xf32>
    %360 = arith.mulf %355, %359 : vector<2x32xf32>
    %c5_135 = arith.constant 5 : index
    %c0_136 = arith.constant 0 : index
    %c0_137 = arith.constant 0 : index
    %361 = vector.load %arg2[%c5_135, %c0_136, %c0_137] : memref<8x2x1xf32, #tpu.memory_space<vmem>>, vector<1x2x1xf32>
    %362 = vector.shape_cast %361 : vector<1x2x1xf32> to vector<2x1xf32>
    %c2_138 = arith.constant 2 : index
    %c0_139 = arith.constant 0 : index
    %c0_140 = arith.constant 0 : index
    %363 = vector.load %arg2[%c2_138, %c0_139, %c0_140] : memref<8x2x1xf32, #tpu.memory_space<vmem>>, vector<1x2x1xf32>
    %364 = vector.shape_cast %363 : vector<1x2x1xf32> to vector<2x1xf32>
    %365 = vector.shape_cast %362 : vector<2x1xf32> to vector<2x1xf32>
    %366 = vector.broadcast %365 : vector<2x1xf32> to vector<2x16xf32>
    %367 = vector.shape_cast %364 : vector<2x1xf32> to vector<2x1xf32>
    %368 = vector.broadcast %367 : vector<2x1xf32> to vector<2x16xf32>
    %369 = tpu.concatenate %366, %368 in 1 : vector<2x16xf32>, vector<2x16xf32> -> vector<2x32xf32>
    %370 = arith.mulf %360, %369 : vector<2x32xf32>
    %371 = vector.extract_strided_slice %370 {offsets = [0, 0], sizes = [2, 16], strides = [1, 1]} : vector<2x32xf32> to vector<2x16xf32>
    %c5_141 = arith.constant 5 : index
    %c0_142 = arith.constant 0 : index
    %c0_143 = arith.constant 0 : index
    %372 = vector.load %arg6[%c5_141, %c0_142, %c0_143] : memref<8x2x16xf32, #tpu.memory_space<vmem>>, vector<1x2x16xf32>
    %373 = vector.shape_cast %372 : vector<1x2x16xf32> to vector<2x16xf32>
    %374 = vector.shape_cast %371 : vector<2x16xf32> to vector<1x2x16xf32>
    tpu.vector_store %arg6[%c5_141, %c0_142, %c0_143], %374 {strides = array<i32>} : memref<8x2x16xf32, #tpu.memory_space<vmem>>, vector<1x2x16xf32>,
    %375 = vector.extract_strided_slice %370 {offsets = [0, 16], sizes = [2, 16], strides = [1, 1]} : vector<2x32xf32> to vector<2x16xf32>
    %c2_144 = arith.constant 2 : index
    %c0_145 = arith.constant 0 : index
    %c0_146 = arith.constant 0 : index
    %376 = vector.load %arg7[%c2_144, %c0_145, %c0_146] : memref<8x2x16xf32, #tpu.memory_space<vmem>>, vector<1x2x16xf32>
    %377 = vector.shape_cast %376 : vector<1x2x16xf32> to vector<2x16xf32>
    %378 = vector.shape_cast %375 : vector<2x16xf32> to vector<1x2x16xf32>
    tpu.vector_store %arg7[%c2_144, %c0_145, %c0_146], %378 {strides = array<i32>} : memref<8x2x16xf32, #tpu.memory_space<vmem>>, vector<1x2x16xf32>,
    %379 = arith.mulf %369, %360 : vector<2x32xf32>
    %cst_147 = arith.constant 1.000000e+00 : f32
    %380 = vector.broadcast %cst_147 : f32 to vector<2x32xf32>
    %381 = arith.subf %380, %369 : vector<2x32xf32>
    %382 = arith.mulf %381, %319 : vector<2x32xf32>
    %383 = arith.addf %379, %382 : vector<2x32xf32>
    %384 = arith.mulf %369, %358 : vector<2x32xf32>
    %cst_148 = arith.constant 1.000000e+00 : f32
    %385 = vector.broadcast %cst_148 : f32 to vector<2x32xf32>
    %386 = arith.subf %385, %369 : vector<2x32xf32>
    %387 = arith.mulf %386, %324 : vector<2x32xf32>
    %388 = arith.addf %384, %387 : vector<2x32xf32>
    %c6_149 = arith.constant 6 : index
    %c0_150 = arith.constant 0 : index
    %c0_151 = arith.constant 0 : index
    %389 = vector.load %arg1[%c6_149, %c0_150, %c0_151] : memref<8x2x32xbf16, #tpu.memory_space<vmem>>, vector<1x2x32xbf16>
    %390 = vector.shape_cast %389 : vector<1x2x32xbf16> to vector<2x32xbf16>
    %c1_152 = arith.constant 1 : index
    %c0_153 = arith.constant 0 : index
    %c0_154 = arith.constant 0 : index
    %391 = vector.load %arg1[%c1_152, %c0_153, %c0_154] : memref<8x2x32xbf16, #tpu.memory_space<vmem>>, vector<1x2x32xbf16>
    %392 = vector.shape_cast %391 : vector<1x2x32xbf16> to vector<2x32xbf16>
    %393 = tpu.concatenate %390, %392 in 1 : vector<2x32xbf16>, vector<2x32xbf16> -> vector<2x64xbf16>
    %cst_155 = arith.constant dense<0.000000e+00> : vector<2x128xf32>
    %394 = tpu.matmul %393, %0, %cst_155 {dimension_numbers = #tpu.dot_dimension_numbers<[1], [0], [0], [1], [0, 0, 1, 1], [], []>} : vector<2x64xbf16>, vector<64x128xbf16>, vector<2x128xf32> -> vector<2x128xf32>
    %395 = arith.truncf %383 : vector<2x32xf32> to vector<2x32xbf16>
    %cst_156 = arith.constant dense<0.000000e+00> : vector<2x128xf32>
    %396 = tpu.matmul %395, %1, %cst_156 {dimension_numbers = #tpu.dot_dimension_numbers<[1], [0], [0], [1], [0, 0, 1, 1], [], []>} : vector<2x32xbf16>, vector<32x128xbf16>, vector<2x128xf32> -> vector<2x128xf32>
    %397 = arith.addf %394, %396 : vector<2x128xf32>
    %398 = vector.broadcast %2 : vector<1x128xf32> to vector<2x128xf32>
    %399 = arith.addf %397, %398 : vector<2x128xf32>
    %400 = vector.extract_strided_slice %399 {offsets = [0, 0], sizes = [2, 32], strides = [1, 1]} : vector<2x128xf32> to vector<2x32xf32>
    %401 = arith.negf %400 : vector<2x32xf32>
    %402 = math.exp %401 : vector<2x32xf32>
    %cst_157 = arith.constant 1.000000e+00 : f32
    %403 = vector.broadcast %cst_157 : f32 to vector<2x32xf32>
    %404 = arith.addf %403, %402 : vector<2x32xf32>
    %405 = arith.divf %403, %404 : vector<2x32xf32>
    %406 = vector.extract_strided_slice %399 {offsets = [0, 32], sizes = [2, 32], strides = [1, 1]} : vector<2x128xf32> to vector<2x32xf32>
    %407 = arith.negf %406 : vector<2x32xf32>
    %408 = math.exp %407 : vector<2x32xf32>
    %cst_158 = arith.constant 1.000000e+00 : f32
    %409 = vector.broadcast %cst_158 : f32 to vector<2x32xf32>
    %410 = arith.addf %409, %408 : vector<2x32xf32>
    %411 = arith.divf %409, %410 : vector<2x32xf32>
    %412 = vector.extract_strided_slice %399 {offsets = [0, 64], sizes = [2, 32], strides = [1, 1]} : vector<2x128xf32> to vector<2x32xf32>
    %413 = math.tanh %412 : vector<2x32xf32>
    %414 = vector.extract_strided_slice %399 {offsets = [0, 96], sizes = [2, 32], strides = [1, 1]} : vector<2x128xf32> to vector<2x32xf32>
    %415 = arith.negf %414 : vector<2x32xf32>
    %416 = math.exp %415 : vector<2x32xf32>
    %cst_159 = arith.constant 1.000000e+00 : f32
    %417 = vector.broadcast %cst_159 : f32 to vector<2x32xf32>
    %418 = arith.addf %417, %416 : vector<2x32xf32>
    %419 = arith.divf %417, %418 : vector<2x32xf32>
    %420 = arith.mulf %411, %388 : vector<2x32xf32>
    %421 = arith.mulf %405, %413 : vector<2x32xf32>
    %422 = arith.addf %420, %421 : vector<2x32xf32>
    %423 = math.tanh %422 : vector<2x32xf32>
    %424 = arith.mulf %419, %423 : vector<2x32xf32>
    %c6_160 = arith.constant 6 : index
    %c0_161 = arith.constant 0 : index
    %c0_162 = arith.constant 0 : index
    %425 = vector.load %arg2[%c6_160, %c0_161, %c0_162] : memref<8x2x1xf32, #tpu.memory_space<vmem>>, vector<1x2x1xf32>
    %426 = vector.shape_cast %425 : vector<1x2x1xf32> to vector<2x1xf32>
    %c1_163 = arith.constant 1 : index
    %c0_164 = arith.constant 0 : index
    %c0_165 = arith.constant 0 : index
    %427 = vector.load %arg2[%c1_163, %c0_164, %c0_165] : memref<8x2x1xf32, #tpu.memory_space<vmem>>, vector<1x2x1xf32>
    %428 = vector.shape_cast %427 : vector<1x2x1xf32> to vector<2x1xf32>
    %429 = vector.shape_cast %426 : vector<2x1xf32> to vector<2x1xf32>
    %430 = vector.broadcast %429 : vector<2x1xf32> to vector<2x16xf32>
    %431 = vector.shape_cast %428 : vector<2x1xf32> to vector<2x1xf32>
    %432 = vector.broadcast %431 : vector<2x1xf32> to vector<2x16xf32>
    %433 = tpu.concatenate %430, %432 in 1 : vector<2x16xf32>, vector<2x16xf32> -> vector<2x32xf32>
    %434 = arith.mulf %424, %433 : vector<2x32xf32>
    %435 = vector.extract_strided_slice %434 {offsets = [0, 0], sizes = [2, 16], strides = [1, 1]} : vector<2x32xf32> to vector<2x16xf32>
    %c6_166 = arith.constant 6 : index
    %c0_167 = arith.constant 0 : index
    %c0_168 = arith.constant 0 : index
    %436 = vector.load %arg6[%c6_166, %c0_167, %c0_168] : memref<8x2x16xf32, #tpu.memory_space<vmem>>, vector<1x2x16xf32>
    %437 = vector.shape_cast %436 : vector<1x2x16xf32> to vector<2x16xf32>
    %438 = vector.shape_cast %435 : vector<2x16xf32> to vector<1x2x16xf32>
    tpu.vector_store %arg6[%c6_166, %c0_167, %c0_168], %438 {strides = array<i32>} : memref<8x2x16xf32, #tpu.memory_space<vmem>>, vector<1x2x16xf32>,
    %439 = vector.extract_strided_slice %434 {offsets = [0, 16], sizes = [2, 16], strides = [1, 1]} : vector<2x32xf32> to vector<2x16xf32>
    %c1_169 = arith.constant 1 : index
    %c0_170 = arith.constant 0 : index
    %c0_171 = arith.constant 0 : index
    %440 = vector.load %arg7[%c1_169, %c0_170, %c0_171] : memref<8x2x16xf32, #tpu.memory_space<vmem>>, vector<1x2x16xf32>
    %441 = vector.shape_cast %440 : vector<1x2x16xf32> to vector<2x16xf32>
    %442 = vector.shape_cast %439 : vector<2x16xf32> to vector<1x2x16xf32>
    tpu.vector_store %arg7[%c1_169, %c0_170, %c0_171], %442 {strides = array<i32>} : memref<8x2x16xf32, #tpu.memory_space<vmem>>, vector<1x2x16xf32>,
    %443 = arith.mulf %433, %424 : vector<2x32xf32>
    %cst_172 = arith.constant 1.000000e+00 : f32
    %444 = vector.broadcast %cst_172 : f32 to vector<2x32xf32>
    %445 = arith.subf %444, %433 : vector<2x32xf32>
    %446 = arith.mulf %445, %383 : vector<2x32xf32>
    %447 = arith.addf %443, %446 : vector<2x32xf32>
    %448 = arith.mulf %433, %422 : vector<2x32xf32>
    %cst_173 = arith.constant 1.000000e+00 : f32
    %449 = vector.broadcast %cst_173 : f32 to vector<2x32xf32>
    %450 = arith.subf %449, %433 : vector<2x32xf32>
    %451 = arith.mulf %450, %388 : vector<2x32xf32>
    %452 = arith.addf %448, %451 : vector<2x32xf32>
    %c7_174 = arith.constant 7 : index
    %c0_175 = arith.constant 0 : index
    %c0_176 = arith.constant 0 : index
    %453 = vector.load %arg1[%c7_174, %c0_175, %c0_176] : memref<8x2x32xbf16, #tpu.memory_space<vmem>>, vector<1x2x32xbf16>
    %454 = vector.shape_cast %453 : vector<1x2x32xbf16> to vector<2x32xbf16>
    %c0_177 = arith.constant 0 : index
    %c0_178 = arith.constant 0 : index
    %c0_179 = arith.constant 0 : index
    %455 = vector.load %arg1[%c0_177, %c0_178, %c0_179] : memref<8x2x32xbf16, #tpu.memory_space<vmem>>, vector<1x2x32xbf16>
    %456 = vector.shape_cast %455 : vector<1x2x32xbf16> to vector<2x32xbf16>
    %457 = tpu.concatenate %454, %456 in 1 : vector<2x32xbf16>, vector<2x32xbf16> -> vector<2x64xbf16>
    %cst_180 = arith.constant dense<0.000000e+00> : vector<2x128xf32>
    %458 = tpu.matmul %457, %0, %cst_180 {dimension_numbers = #tpu.dot_dimension_numbers<[1], [0], [0], [1], [0, 0, 1, 1], [], []>} : vector<2x64xbf16>, vector<64x128xbf16>, vector<2x128xf32> -> vector<2x128xf32>
    %459 = arith.truncf %447 : vector<2x32xf32> to vector<2x32xbf16>
    %cst_181 = arith.constant dense<0.000000e+00> : vector<2x128xf32>
    %460 = tpu.matmul %459, %1, %cst_181 {dimension_numbers = #tpu.dot_dimension_numbers<[1], [0], [0], [1], [0, 0, 1, 1], [], []>} : vector<2x32xbf16>, vector<32x128xbf16>, vector<2x128xf32> -> vector<2x128xf32>
    %461 = arith.addf %458, %460 : vector<2x128xf32>
    %462 = vector.broadcast %2 : vector<1x128xf32> to vector<2x128xf32>
    %463 = arith.addf %461, %462 : vector<2x128xf32>
    %464 = vector.extract_strided_slice %463 {offsets = [0, 0], sizes = [2, 32], strides = [1, 1]} : vector<2x128xf32> to vector<2x32xf32>
    %465 = arith.negf %464 : vector<2x32xf32>
    %466 = math.exp %465 : vector<2x32xf32>
    %cst_182 = arith.constant 1.000000e+00 : f32
    %467 = vector.broadcast %cst_182 : f32 to vector<2x32xf32>
    %468 = arith.addf %467, %466 : vector<2x32xf32>
    %469 = arith.divf %467, %468 : vector<2x32xf32>
    %470 = vector.extract_strided_slice %463 {offsets = [0, 32], sizes = [2, 32], strides = [1, 1]} : vector<2x128xf32> to vector<2x32xf32>
    %471 = arith.negf %470 : vector<2x32xf32>
    %472 = math.exp %471 : vector<2x32xf32>
    %cst_183 = arith.constant 1.000000e+00 : f32
    %473 = vector.broadcast %cst_183 : f32 to vector<2x32xf32>
    %474 = arith.addf %473, %472 : vector<2x32xf32>
    %475 = arith.divf %473, %474 : vector<2x32xf32>
    %476 = vector.extract_strided_slice %463 {offsets = [0, 64], sizes = [2, 32], strides = [1, 1]} : vector<2x128xf32> to vector<2x32xf32>
    %477 = math.tanh %476 : vector<2x32xf32>
    %478 = vector.extract_strided_slice %463 {offsets = [0, 96], sizes = [2, 32], strides = [1, 1]} : vector<2x128xf32> to vector<2x32xf32>
    %479 = arith.negf %478 : vector<2x32xf32>
    %480 = math.exp %479 : vector<2x32xf32>
    %cst_184 = arith.constant 1.000000e+00 : f32
    %481 = vector.broadcast %cst_184 : f32 to vector<2x32xf32>
    %482 = arith.addf %481, %480 : vector<2x32xf32>
    %483 = arith.divf %481, %482 : vector<2x32xf32>
    %484 = arith.mulf %475, %452 : vector<2x32xf32>
    %485 = arith.mulf %469, %477 : vector<2x32xf32>
    %486 = arith.addf %484, %485 : vector<2x32xf32>
    %487 = math.tanh %486 : vector<2x32xf32>
    %488 = arith.mulf %483, %487 : vector<2x32xf32>
    %c7_185 = arith.constant 7 : index
    %c0_186 = arith.constant 0 : index
    %c0_187 = arith.constant 0 : index
    %489 = vector.load %arg2[%c7_185, %c0_186, %c0_187] : memref<8x2x1xf32, #tpu.memory_space<vmem>>, vector<1x2x1xf32>
    %490 = vector.shape_cast %489 : vector<1x2x1xf32> to vector<2x1xf32>
    %c0_188 = arith.constant 0 : index
    %c0_189 = arith.constant 0 : index
    %c0_190 = arith.constant 0 : index
    %491 = vector.load %arg2[%c0_188, %c0_189, %c0_190] : memref<8x2x1xf32, #tpu.memory_space<vmem>>, vector<1x2x1xf32>
    %492 = vector.shape_cast %491 : vector<1x2x1xf32> to vector<2x1xf32>
    %493 = vector.shape_cast %490 : vector<2x1xf32> to vector<2x1xf32>
    %494 = vector.broadcast %493 : vector<2x1xf32> to vector<2x16xf32>
    %495 = vector.shape_cast %492 : vector<2x1xf32> to vector<2x1xf32>
    %496 = vector.broadcast %495 : vector<2x1xf32> to vector<2x16xf32>
    %497 = tpu.concatenate %494, %496 in 1 : vector<2x16xf32>, vector<2x16xf32> -> vector<2x32xf32>
    %498 = arith.mulf %488, %497 : vector<2x32xf32>
    %499 = vector.extract_strided_slice %498 {offsets = [0, 0], sizes = [2, 16], strides = [1, 1]} : vector<2x32xf32> to vector<2x16xf32>
    %c7_191 = arith.constant 7 : index
    %c0_192 = arith.constant 0 : index
    %c0_193 = arith.constant 0 : index
    %500 = vector.load %arg6[%c7_191, %c0_192, %c0_193] : memref<8x2x16xf32, #tpu.memory_space<vmem>>, vector<1x2x16xf32>
    %501 = vector.shape_cast %500 : vector<1x2x16xf32> to vector<2x16xf32>
    %502 = vector.shape_cast %499 : vector<2x16xf32> to vector<1x2x16xf32>
    tpu.vector_store %arg6[%c7_191, %c0_192, %c0_193], %502 {strides = array<i32>} : memref<8x2x16xf32, #tpu.memory_space<vmem>>, vector<1x2x16xf32>,
    %503 = vector.extract_strided_slice %498 {offsets = [0, 16], sizes = [2, 16], strides = [1, 1]} : vector<2x32xf32> to vector<2x16xf32>
    %c0_194 = arith.constant 0 : index
    %c0_195 = arith.constant 0 : index
    %c0_196 = arith.constant 0 : index
    %504 = vector.load %arg7[%c0_194, %c0_195, %c0_196] : memref<8x2x16xf32, #tpu.memory_space<vmem>>, vector<1x2x16xf32>
    %505 = vector.shape_cast %504 : vector<1x2x16xf32> to vector<2x16xf32>
    %506 = vector.shape_cast %503 : vector<2x16xf32> to vector<1x2x16xf32>
    tpu.vector_store %arg7[%c0_194, %c0_195, %c0_196], %506 {strides = array<i32>} : memref<8x2x16xf32, #tpu.memory_space<vmem>>, vector<1x2x16xf32>,
    return
  }
  func.func @transform_0(%arg0: i32) -> (i32, i32, i32) {
    %c0_i32 = arith.constant 0 : i32
    %c0_i32_0 = arith.constant 0 : i32
    %c0_i32_1 = arith.constant 0 : i32
    return %c0_i32, %arg0, %c0_i32_0 : i32, i32, i32
  }
  func.func @transform_1(%arg0: i32) -> (i32, i32, i32) {
    %c0_i32 = arith.constant 0 : i32
    %c0_i32_0 = arith.constant 0 : i32
    %c0_i32_1 = arith.constant 0 : i32
    return %c0_i32, %arg0, %c0_i32_0 : i32, i32, i32
  }
  func.func @transform_2(%arg0: i32) -> (i32, i32) {
    %c0_i32 = arith.constant 0 : i32
    %c0_i32_0 = arith.constant 0 : i32
    %c0_i32_1 = arith.constant 0 : i32
    return %c0_i32, %c0_i32_0 : i32, i32
  }
  func.func @transform_3(%arg0: i32) -> (i32, i32) {
    %c0_i32 = arith.constant 0 : i32
    %c0_i32_0 = arith.constant 0 : i32
    %c0_i32_1 = arith.constant 0 : i32
    return %c0_i32, %c0_i32_0 : i32, i32
  }
  func.func @transform_4(%arg0: i32) -> (i32, i32) {
    %c0_i32 = arith.constant 0 : i32
    %c0_i32_0 = arith.constant 0 : i32
    %c0_i32_1 = arith.constant 0 : i32
    return %c0_i32, %c0_i32_0 : i32, i32
  }
  func.func @transform_5(%arg0: i32) -> (i32, i32, i32) {
    %c0_i32 = arith.constant 0 : i32
    %c0_i32_0 = arith.constant 0 : i32
    %c0_i32_1 = arith.constant 0 : i32
    return %c0_i32, %arg0, %c0_i32_0 : i32, i32, i32
  }
  func.func @transform_6(%arg0: i32) -> (i32, i32, i32) {
    %c0_i32 = arith.constant 0 : i32
    %c0_i32_0 = arith.constant 0 : i32
    %c0_i32_1 = arith.constant 0 : i32
    return %c0_i32, %arg0, %c0_i32_0 : i32, i32, i32
  }
}

module attributes {stable_mosaic.version = 11 : i64} {
  func.func @bilstm_kernel(%arg0: i32, %arg1: memref<3x2x64xbf16, #tpu.memory_space<vmem>>, %arg2: memref<3x2x1xf32, #tpu.memory_space<vmem>>, %arg3: memref<128x128xbf16, #tpu.memory_space<vmem>>, %arg4: memref<32x128xbf16, #tpu.memory_space<vmem>>, %arg5: memref<1x128xf32, #tpu.memory_space<vmem>>, %arg6: memref<3x2x16xf32, #tpu.memory_space<vmem>>, %arg7: memref<3x2x16xf32, #tpu.memory_space<vmem>>) attributes {dimension_semantics = [#tpu.dimension_semantics<parallel>], iteration_bounds = array<i64: 1>, scalar_prefetch = 0 : i64, scratch_operands = 0 : i64, tpu.core_type = #tpu.core_type<tc>, window_params = [{transform_indices = @transform_0, window_bounds = array<i64: 3, 2, 64>}, {transform_indices = @transform_1, window_bounds = array<i64: 3, 2, 1>}, {pipeline_mode = #tpu.pipeline_mode<synchronous>, transform_indices = @transform_2, window_bounds = array<i64: 128, 128>}, {pipeline_mode = #tpu.pipeline_mode<synchronous>, transform_indices = @transform_3, window_bounds = array<i64: 32, 128>}, {pipeline_mode = #tpu.pipeline_mode<synchronous>, transform_indices = @transform_4, window_bounds = array<i64: 1, 128>}, {transform_indices = @transform_5, window_bounds = array<i64: 3, 2, 16>}, {transform_indices = @transform_6, window_bounds = array<i64: 3, 2, 16>}]} {
    %c0 = arith.constant 0 : index
    %c0_0 = arith.constant 0 : index
    %0 = vector.load %arg3[%c0, %c0_0] : memref<128x128xbf16, #tpu.memory_space<vmem>>, vector<128x128xbf16>
    %c0_1 = arith.constant 0 : index
    %c0_2 = arith.constant 0 : index
    %1 = vector.load %arg4[%c0_1, %c0_2] : memref<32x128xbf16, #tpu.memory_space<vmem>>, vector<32x128xbf16>
    %c0_3 = arith.constant 0 : index
    %c0_4 = arith.constant 0 : index
    %2 = vector.load %arg5[%c0_3, %c0_4] : memref<1x128xf32, #tpu.memory_space<vmem>>, vector<1x128xf32>
    %cst = arith.constant 0.000000e+00 : f32
    %3 = vector.broadcast %cst : f32 to vector<2x32xf32>
    %cst_5 = arith.constant 0.000000e+00 : f32
    %4 = vector.broadcast %cst_5 : f32 to vector<2x32xf32>
    %c0_6 = arith.constant 0 : index
    %c0_7 = arith.constant 0 : index
    %c0_8 = arith.constant 0 : index
    %5 = vector.load %arg1[%c0_6, %c0_7, %c0_8] : memref<3x2x64xbf16, #tpu.memory_space<vmem>>, vector<1x2x64xbf16>
    %6 = vector.shape_cast %5 : vector<1x2x64xbf16> to vector<2x64xbf16>
    %c2 = arith.constant 2 : index
    %c0_9 = arith.constant 0 : index
    %c0_10 = arith.constant 0 : index
    %7 = vector.load %arg1[%c2, %c0_9, %c0_10] : memref<3x2x64xbf16, #tpu.memory_space<vmem>>, vector<1x2x64xbf16>
    %8 = vector.shape_cast %7 : vector<1x2x64xbf16> to vector<2x64xbf16>
    %9 = tpu.concatenate %6, %8 in 1 : vector<2x64xbf16>, vector<2x64xbf16> -> vector<2x128xbf16>
    %cst_11 = arith.constant dense<0.000000e+00> : vector<2x128xf32>
    %10 = tpu.matmul %9, %0, %cst_11 {dimension_numbers = #tpu.dot_dimension_numbers<[1], [0], [0], [1], [0, 0, 1, 1], [], []>} : vector<2x128xbf16>, vector<128x128xbf16>, vector<2x128xf32> -> vector<2x128xf32>
    %11 = arith.truncf %3 : vector<2x32xf32> to vector<2x32xbf16>
    %cst_12 = arith.constant dense<0.000000e+00> : vector<2x128xf32>
    %12 = tpu.matmul %11, %1, %cst_12 {dimension_numbers = #tpu.dot_dimension_numbers<[1], [0], [0], [1], [0, 0, 1, 1], [], []>} : vector<2x32xbf16>, vector<32x128xbf16>, vector<2x128xf32> -> vector<2x128xf32>
    %13 = arith.addf %10, %12 : vector<2x128xf32>
    %14 = vector.broadcast %2 : vector<1x128xf32> to vector<2x128xf32>
    %15 = arith.addf %13, %14 : vector<2x128xf32>
    %16 = vector.extract_strided_slice %15 {offsets = [0, 0], sizes = [2, 32], strides = [1, 1]} : vector<2x128xf32> to vector<2x32xf32>
    %17 = arith.negf %16 : vector<2x32xf32>
    %18 = math.exp %17 : vector<2x32xf32>
    %cst_13 = arith.constant 1.000000e+00 : f32
    %19 = vector.broadcast %cst_13 : f32 to vector<2x32xf32>
    %20 = arith.addf %19, %18 : vector<2x32xf32>
    %21 = arith.divf %19, %20 : vector<2x32xf32>
    %22 = vector.extract_strided_slice %15 {offsets = [0, 32], sizes = [2, 32], strides = [1, 1]} : vector<2x128xf32> to vector<2x32xf32>
    %23 = arith.negf %22 : vector<2x32xf32>
    %24 = math.exp %23 : vector<2x32xf32>
    %cst_14 = arith.constant 1.000000e+00 : f32
    %25 = vector.broadcast %cst_14 : f32 to vector<2x32xf32>
    %26 = arith.addf %25, %24 : vector<2x32xf32>
    %27 = arith.divf %25, %26 : vector<2x32xf32>
    %28 = vector.extract_strided_slice %15 {offsets = [0, 64], sizes = [2, 32], strides = [1, 1]} : vector<2x128xf32> to vector<2x32xf32>
    %29 = math.tanh %28 : vector<2x32xf32>
    %30 = vector.extract_strided_slice %15 {offsets = [0, 96], sizes = [2, 32], strides = [1, 1]} : vector<2x128xf32> to vector<2x32xf32>
    %31 = arith.negf %30 : vector<2x32xf32>
    %32 = math.exp %31 : vector<2x32xf32>
    %cst_15 = arith.constant 1.000000e+00 : f32
    %33 = vector.broadcast %cst_15 : f32 to vector<2x32xf32>
    %34 = arith.addf %33, %32 : vector<2x32xf32>
    %35 = arith.divf %33, %34 : vector<2x32xf32>
    %36 = arith.mulf %27, %4 : vector<2x32xf32>
    %37 = arith.mulf %21, %29 : vector<2x32xf32>
    %38 = arith.addf %36, %37 : vector<2x32xf32>
    %39 = math.tanh %38 : vector<2x32xf32>
    %40 = arith.mulf %35, %39 : vector<2x32xf32>
    %c0_16 = arith.constant 0 : index
    %c0_17 = arith.constant 0 : index
    %c0_18 = arith.constant 0 : index
    %41 = vector.load %arg2[%c0_16, %c0_17, %c0_18] : memref<3x2x1xf32, #tpu.memory_space<vmem>>, vector<1x2x1xf32>
    %42 = vector.shape_cast %41 : vector<1x2x1xf32> to vector<2x1xf32>
    %c2_19 = arith.constant 2 : index
    %c0_20 = arith.constant 0 : index
    %c0_21 = arith.constant 0 : index
    %43 = vector.load %arg2[%c2_19, %c0_20, %c0_21] : memref<3x2x1xf32, #tpu.memory_space<vmem>>, vector<1x2x1xf32>
    %44 = vector.shape_cast %43 : vector<1x2x1xf32> to vector<2x1xf32>
    %45 = vector.shape_cast %42 : vector<2x1xf32> to vector<2x1xf32>
    %46 = vector.broadcast %45 : vector<2x1xf32> to vector<2x16xf32>
    %47 = vector.shape_cast %44 : vector<2x1xf32> to vector<2x1xf32>
    %48 = vector.broadcast %47 : vector<2x1xf32> to vector<2x16xf32>
    %49 = tpu.concatenate %46, %48 in 1 : vector<2x16xf32>, vector<2x16xf32> -> vector<2x32xf32>
    %50 = arith.mulf %40, %49 : vector<2x32xf32>
    %51 = vector.extract_strided_slice %50 {offsets = [0, 0], sizes = [2, 16], strides = [1, 1]} : vector<2x32xf32> to vector<2x16xf32>
    %c0_22 = arith.constant 0 : index
    %c0_23 = arith.constant 0 : index
    %c0_24 = arith.constant 0 : index
    %52 = vector.load %arg6[%c0_22, %c0_23, %c0_24] : memref<3x2x16xf32, #tpu.memory_space<vmem>>, vector<1x2x16xf32>
    %53 = vector.shape_cast %52 : vector<1x2x16xf32> to vector<2x16xf32>
    %54 = vector.shape_cast %51 : vector<2x16xf32> to vector<1x2x16xf32>
    tpu.vector_store %arg6[%c0_22, %c0_23, %c0_24], %54 {strides = array<i32>} : memref<3x2x16xf32, #tpu.memory_space<vmem>>, vector<1x2x16xf32>,
    %55 = vector.extract_strided_slice %50 {offsets = [0, 16], sizes = [2, 16], strides = [1, 1]} : vector<2x32xf32> to vector<2x16xf32>
    %c2_25 = arith.constant 2 : index
    %c0_26 = arith.constant 0 : index
    %c0_27 = arith.constant 0 : index
    %56 = vector.load %arg7[%c2_25, %c0_26, %c0_27] : memref<3x2x16xf32, #tpu.memory_space<vmem>>, vector<1x2x16xf32>
    %57 = vector.shape_cast %56 : vector<1x2x16xf32> to vector<2x16xf32>
    %58 = vector.shape_cast %55 : vector<2x16xf32> to vector<1x2x16xf32>
    tpu.vector_store %arg7[%c2_25, %c0_26, %c0_27], %58 {strides = array<i32>} : memref<3x2x16xf32, #tpu.memory_space<vmem>>, vector<1x2x16xf32>,
    %59 = arith.mulf %49, %40 : vector<2x32xf32>
    %cst_28 = arith.constant 1.000000e+00 : f32
    %60 = vector.broadcast %cst_28 : f32 to vector<2x32xf32>
    %61 = arith.subf %60, %49 : vector<2x32xf32>
    %62 = arith.mulf %61, %3 : vector<2x32xf32>
    %63 = arith.addf %59, %62 : vector<2x32xf32>
    %64 = arith.mulf %49, %38 : vector<2x32xf32>
    %cst_29 = arith.constant 1.000000e+00 : f32
    %65 = vector.broadcast %cst_29 : f32 to vector<2x32xf32>
    %66 = arith.subf %65, %49 : vector<2x32xf32>
    %67 = arith.mulf %66, %4 : vector<2x32xf32>
    %68 = arith.addf %64, %67 : vector<2x32xf32>
    %c1 = arith.constant 1 : index
    %c0_30 = arith.constant 0 : index
    %c0_31 = arith.constant 0 : index
    %69 = vector.load %arg1[%c1, %c0_30, %c0_31] : memref<3x2x64xbf16, #tpu.memory_space<vmem>>, vector<1x2x64xbf16>
    %70 = vector.shape_cast %69 : vector<1x2x64xbf16> to vector<2x64xbf16>
    %c1_32 = arith.constant 1 : index
    %c0_33 = arith.constant 0 : index
    %c0_34 = arith.constant 0 : index
    %71 = vector.load %arg1[%c1_32, %c0_33, %c0_34] : memref<3x2x64xbf16, #tpu.memory_space<vmem>>, vector<1x2x64xbf16>
    %72 = vector.shape_cast %71 : vector<1x2x64xbf16> to vector<2x64xbf16>
    %73 = tpu.concatenate %70, %72 in 1 : vector<2x64xbf16>, vector<2x64xbf16> -> vector<2x128xbf16>
    %cst_35 = arith.constant dense<0.000000e+00> : vector<2x128xf32>
    %74 = tpu.matmul %73, %0, %cst_35 {dimension_numbers = #tpu.dot_dimension_numbers<[1], [0], [0], [1], [0, 0, 1, 1], [], []>} : vector<2x128xbf16>, vector<128x128xbf16>, vector<2x128xf32> -> vector<2x128xf32>
    %75 = arith.truncf %63 : vector<2x32xf32> to vector<2x32xbf16>
    %cst_36 = arith.constant dense<0.000000e+00> : vector<2x128xf32>
    %76 = tpu.matmul %75, %1, %cst_36 {dimension_numbers = #tpu.dot_dimension_numbers<[1], [0], [0], [1], [0, 0, 1, 1], [], []>} : vector<2x32xbf16>, vector<32x128xbf16>, vector<2x128xf32> -> vector<2x128xf32>
    %77 = arith.addf %74, %76 : vector<2x128xf32>
    %78 = vector.broadcast %2 : vector<1x128xf32> to vector<2x128xf32>
    %79 = arith.addf %77, %78 : vector<2x128xf32>
    %80 = vector.extract_strided_slice %79 {offsets = [0, 0], sizes = [2, 32], strides = [1, 1]} : vector<2x128xf32> to vector<2x32xf32>
    %81 = arith.negf %80 : vector<2x32xf32>
    %82 = math.exp %81 : vector<2x32xf32>
    %cst_37 = arith.constant 1.000000e+00 : f32
    %83 = vector.broadcast %cst_37 : f32 to vector<2x32xf32>
    %84 = arith.addf %83, %82 : vector<2x32xf32>
    %85 = arith.divf %83, %84 : vector<2x32xf32>
    %86 = vector.extract_strided_slice %79 {offsets = [0, 32], sizes = [2, 32], strides = [1, 1]} : vector<2x128xf32> to vector<2x32xf32>
    %87 = arith.negf %86 : vector<2x32xf32>
    %88 = math.exp %87 : vector<2x32xf32>
    %cst_38 = arith.constant 1.000000e+00 : f32
    %89 = vector.broadcast %cst_38 : f32 to vector<2x32xf32>
    %90 = arith.addf %89, %88 : vector<2x32xf32>
    %91 = arith.divf %89, %90 : vector<2x32xf32>
    %92 = vector.extract_strided_slice %79 {offsets = [0, 64], sizes = [2, 32], strides = [1, 1]} : vector<2x128xf32> to vector<2x32xf32>
    %93 = math.tanh %92 : vector<2x32xf32>
    %94 = vector.extract_strided_slice %79 {offsets = [0, 96], sizes = [2, 32], strides = [1, 1]} : vector<2x128xf32> to vector<2x32xf32>
    %95 = arith.negf %94 : vector<2x32xf32>
    %96 = math.exp %95 : vector<2x32xf32>
    %cst_39 = arith.constant 1.000000e+00 : f32
    %97 = vector.broadcast %cst_39 : f32 to vector<2x32xf32>
    %98 = arith.addf %97, %96 : vector<2x32xf32>
    %99 = arith.divf %97, %98 : vector<2x32xf32>
    %100 = arith.mulf %91, %68 : vector<2x32xf32>
    %101 = arith.mulf %85, %93 : vector<2x32xf32>
    %102 = arith.addf %100, %101 : vector<2x32xf32>
    %103 = math.tanh %102 : vector<2x32xf32>
    %104 = arith.mulf %99, %103 : vector<2x32xf32>
    %c1_40 = arith.constant 1 : index
    %c0_41 = arith.constant 0 : index
    %c0_42 = arith.constant 0 : index
    %105 = vector.load %arg2[%c1_40, %c0_41, %c0_42] : memref<3x2x1xf32, #tpu.memory_space<vmem>>, vector<1x2x1xf32>
    %106 = vector.shape_cast %105 : vector<1x2x1xf32> to vector<2x1xf32>
    %c1_43 = arith.constant 1 : index
    %c0_44 = arith.constant 0 : index
    %c0_45 = arith.constant 0 : index
    %107 = vector.load %arg2[%c1_43, %c0_44, %c0_45] : memref<3x2x1xf32, #tpu.memory_space<vmem>>, vector<1x2x1xf32>
    %108 = vector.shape_cast %107 : vector<1x2x1xf32> to vector<2x1xf32>
    %109 = vector.shape_cast %106 : vector<2x1xf32> to vector<2x1xf32>
    %110 = vector.broadcast %109 : vector<2x1xf32> to vector<2x16xf32>
    %111 = vector.shape_cast %108 : vector<2x1xf32> to vector<2x1xf32>
    %112 = vector.broadcast %111 : vector<2x1xf32> to vector<2x16xf32>
    %113 = tpu.concatenate %110, %112 in 1 : vector<2x16xf32>, vector<2x16xf32> -> vector<2x32xf32>
    %114 = arith.mulf %104, %113 : vector<2x32xf32>
    %115 = vector.extract_strided_slice %114 {offsets = [0, 0], sizes = [2, 16], strides = [1, 1]} : vector<2x32xf32> to vector<2x16xf32>
    %c1_46 = arith.constant 1 : index
    %c0_47 = arith.constant 0 : index
    %c0_48 = arith.constant 0 : index
    %116 = vector.load %arg6[%c1_46, %c0_47, %c0_48] : memref<3x2x16xf32, #tpu.memory_space<vmem>>, vector<1x2x16xf32>
    %117 = vector.shape_cast %116 : vector<1x2x16xf32> to vector<2x16xf32>
    %118 = vector.shape_cast %115 : vector<2x16xf32> to vector<1x2x16xf32>
    tpu.vector_store %arg6[%c1_46, %c0_47, %c0_48], %118 {strides = array<i32>} : memref<3x2x16xf32, #tpu.memory_space<vmem>>, vector<1x2x16xf32>,
    %119 = vector.extract_strided_slice %114 {offsets = [0, 16], sizes = [2, 16], strides = [1, 1]} : vector<2x32xf32> to vector<2x16xf32>
    %c1_49 = arith.constant 1 : index
    %c0_50 = arith.constant 0 : index
    %c0_51 = arith.constant 0 : index
    %120 = vector.load %arg7[%c1_49, %c0_50, %c0_51] : memref<3x2x16xf32, #tpu.memory_space<vmem>>, vector<1x2x16xf32>
    %121 = vector.shape_cast %120 : vector<1x2x16xf32> to vector<2x16xf32>
    %122 = vector.shape_cast %119 : vector<2x16xf32> to vector<1x2x16xf32>
    tpu.vector_store %arg7[%c1_49, %c0_50, %c0_51], %122 {strides = array<i32>} : memref<3x2x16xf32, #tpu.memory_space<vmem>>, vector<1x2x16xf32>,
    %123 = arith.mulf %113, %104 : vector<2x32xf32>
    %cst_52 = arith.constant 1.000000e+00 : f32
    %124 = vector.broadcast %cst_52 : f32 to vector<2x32xf32>
    %125 = arith.subf %124, %113 : vector<2x32xf32>
    %126 = arith.mulf %125, %63 : vector<2x32xf32>
    %127 = arith.addf %123, %126 : vector<2x32xf32>
    %128 = arith.mulf %113, %102 : vector<2x32xf32>
    %cst_53 = arith.constant 1.000000e+00 : f32
    %129 = vector.broadcast %cst_53 : f32 to vector<2x32xf32>
    %130 = arith.subf %129, %113 : vector<2x32xf32>
    %131 = arith.mulf %130, %68 : vector<2x32xf32>
    %132 = arith.addf %128, %131 : vector<2x32xf32>
    %c2_54 = arith.constant 2 : index
    %c0_55 = arith.constant 0 : index
    %c0_56 = arith.constant 0 : index
    %133 = vector.load %arg1[%c2_54, %c0_55, %c0_56] : memref<3x2x64xbf16, #tpu.memory_space<vmem>>, vector<1x2x64xbf16>
    %134 = vector.shape_cast %133 : vector<1x2x64xbf16> to vector<2x64xbf16>
    %c0_57 = arith.constant 0 : index
    %c0_58 = arith.constant 0 : index
    %c0_59 = arith.constant 0 : index
    %135 = vector.load %arg1[%c0_57, %c0_58, %c0_59] : memref<3x2x64xbf16, #tpu.memory_space<vmem>>, vector<1x2x64xbf16>
    %136 = vector.shape_cast %135 : vector<1x2x64xbf16> to vector<2x64xbf16>
    %137 = tpu.concatenate %134, %136 in 1 : vector<2x64xbf16>, vector<2x64xbf16> -> vector<2x128xbf16>
    %cst_60 = arith.constant dense<0.000000e+00> : vector<2x128xf32>
    %138 = tpu.matmul %137, %0, %cst_60 {dimension_numbers = #tpu.dot_dimension_numbers<[1], [0], [0], [1], [0, 0, 1, 1], [], []>} : vector<2x128xbf16>, vector<128x128xbf16>, vector<2x128xf32> -> vector<2x128xf32>
    %139 = arith.truncf %127 : vector<2x32xf32> to vector<2x32xbf16>
    %cst_61 = arith.constant dense<0.000000e+00> : vector<2x128xf32>
    %140 = tpu.matmul %139, %1, %cst_61 {dimension_numbers = #tpu.dot_dimension_numbers<[1], [0], [0], [1], [0, 0, 1, 1], [], []>} : vector<2x32xbf16>, vector<32x128xbf16>, vector<2x128xf32> -> vector<2x128xf32>
    %141 = arith.addf %138, %140 : vector<2x128xf32>
    %142 = vector.broadcast %2 : vector<1x128xf32> to vector<2x128xf32>
    %143 = arith.addf %141, %142 : vector<2x128xf32>
    %144 = vector.extract_strided_slice %143 {offsets = [0, 0], sizes = [2, 32], strides = [1, 1]} : vector<2x128xf32> to vector<2x32xf32>
    %145 = arith.negf %144 : vector<2x32xf32>
    %146 = math.exp %145 : vector<2x32xf32>
    %cst_62 = arith.constant 1.000000e+00 : f32
    %147 = vector.broadcast %cst_62 : f32 to vector<2x32xf32>
    %148 = arith.addf %147, %146 : vector<2x32xf32>
    %149 = arith.divf %147, %148 : vector<2x32xf32>
    %150 = vector.extract_strided_slice %143 {offsets = [0, 32], sizes = [2, 32], strides = [1, 1]} : vector<2x128xf32> to vector<2x32xf32>
    %151 = arith.negf %150 : vector<2x32xf32>
    %152 = math.exp %151 : vector<2x32xf32>
    %cst_63 = arith.constant 1.000000e+00 : f32
    %153 = vector.broadcast %cst_63 : f32 to vector<2x32xf32>
    %154 = arith.addf %153, %152 : vector<2x32xf32>
    %155 = arith.divf %153, %154 : vector<2x32xf32>
    %156 = vector.extract_strided_slice %143 {offsets = [0, 64], sizes = [2, 32], strides = [1, 1]} : vector<2x128xf32> to vector<2x32xf32>
    %157 = math.tanh %156 : vector<2x32xf32>
    %158 = vector.extract_strided_slice %143 {offsets = [0, 96], sizes = [2, 32], strides = [1, 1]} : vector<2x128xf32> to vector<2x32xf32>
    %159 = arith.negf %158 : vector<2x32xf32>
    %160 = math.exp %159 : vector<2x32xf32>
    %cst_64 = arith.constant 1.000000e+00 : f32
    %161 = vector.broadcast %cst_64 : f32 to vector<2x32xf32>
    %162 = arith.addf %161, %160 : vector<2x32xf32>
    %163 = arith.divf %161, %162 : vector<2x32xf32>
    %164 = arith.mulf %155, %132 : vector<2x32xf32>
    %165 = arith.mulf %149, %157 : vector<2x32xf32>
    %166 = arith.addf %164, %165 : vector<2x32xf32>
    %167 = math.tanh %166 : vector<2x32xf32>
    %168 = arith.mulf %163, %167 : vector<2x32xf32>
    %c2_65 = arith.constant 2 : index
    %c0_66 = arith.constant 0 : index
    %c0_67 = arith.constant 0 : index
    %169 = vector.load %arg2[%c2_65, %c0_66, %c0_67] : memref<3x2x1xf32, #tpu.memory_space<vmem>>, vector<1x2x1xf32>
    %170 = vector.shape_cast %169 : vector<1x2x1xf32> to vector<2x1xf32>
    %c0_68 = arith.constant 0 : index
    %c0_69 = arith.constant 0 : index
    %c0_70 = arith.constant 0 : index
    %171 = vector.load %arg2[%c0_68, %c0_69, %c0_70] : memref<3x2x1xf32, #tpu.memory_space<vmem>>, vector<1x2x1xf32>
    %172 = vector.shape_cast %171 : vector<1x2x1xf32> to vector<2x1xf32>
    %173 = vector.shape_cast %170 : vector<2x1xf32> to vector<2x1xf32>
    %174 = vector.broadcast %173 : vector<2x1xf32> to vector<2x16xf32>
    %175 = vector.shape_cast %172 : vector<2x1xf32> to vector<2x1xf32>
    %176 = vector.broadcast %175 : vector<2x1xf32> to vector<2x16xf32>
    %177 = tpu.concatenate %174, %176 in 1 : vector<2x16xf32>, vector<2x16xf32> -> vector<2x32xf32>
    %178 = arith.mulf %168, %177 : vector<2x32xf32>
    %179 = vector.extract_strided_slice %178 {offsets = [0, 0], sizes = [2, 16], strides = [1, 1]} : vector<2x32xf32> to vector<2x16xf32>
    %c2_71 = arith.constant 2 : index
    %c0_72 = arith.constant 0 : index
    %c0_73 = arith.constant 0 : index
    %180 = vector.load %arg6[%c2_71, %c0_72, %c0_73] : memref<3x2x16xf32, #tpu.memory_space<vmem>>, vector<1x2x16xf32>
    %181 = vector.shape_cast %180 : vector<1x2x16xf32> to vector<2x16xf32>
    %182 = vector.shape_cast %179 : vector<2x16xf32> to vector<1x2x16xf32>
    tpu.vector_store %arg6[%c2_71, %c0_72, %c0_73], %182 {strides = array<i32>} : memref<3x2x16xf32, #tpu.memory_space<vmem>>, vector<1x2x16xf32>,
    %183 = vector.extract_strided_slice %178 {offsets = [0, 16], sizes = [2, 16], strides = [1, 1]} : vector<2x32xf32> to vector<2x16xf32>
    %c0_74 = arith.constant 0 : index
    %c0_75 = arith.constant 0 : index
    %c0_76 = arith.constant 0 : index
    %184 = vector.load %arg7[%c0_74, %c0_75, %c0_76] : memref<3x2x16xf32, #tpu.memory_space<vmem>>, vector<1x2x16xf32>
    %185 = vector.shape_cast %184 : vector<1x2x16xf32> to vector<2x16xf32>
    %186 = vector.shape_cast %183 : vector<2x16xf32> to vector<1x2x16xf32>
    tpu.vector_store %arg7[%c0_74, %c0_75, %c0_76], %186 {strides = array<i32>} : memref<3x2x16xf32, #tpu.memory_space<vmem>>, vector<1x2x16xf32>,
    return
  }
  func.func @transform_0(%arg0: i32) -> (i32, i32, i32) {
    %c0_i32 = arith.constant 0 : i32
    %c0_i32_0 = arith.constant 0 : i32
    %c0_i32_1 = arith.constant 0 : i32
    return %c0_i32, %arg0, %c0_i32_0 : i32, i32, i32
  }
  func.func @transform_1(%arg0: i32) -> (i32, i32, i32) {
    %c0_i32 = arith.constant 0 : i32
    %c0_i32_0 = arith.constant 0 : i32
    %c0_i32_1 = arith.constant 0 : i32
    return %c0_i32, %arg0, %c0_i32_0 : i32, i32, i32
  }
  func.func @transform_2(%arg0: i32) -> (i32, i32) {
    %c0_i32 = arith.constant 0 : i32
    %c0_i32_0 = arith.constant 0 : i32
    %c0_i32_1 = arith.constant 0 : i32
    return %c0_i32, %c0_i32_0 : i32, i32
  }
  func.func @transform_3(%arg0: i32) -> (i32, i32) {
    %c0_i32 = arith.constant 0 : i32
    %c0_i32_0 = arith.constant 0 : i32
    %c0_i32_1 = arith.constant 0 : i32
    return %c0_i32, %c0_i32_0 : i32, i32
  }
  func.func @transform_4(%arg0: i32) -> (i32, i32) {
    %c0_i32 = arith.constant 0 : i32
    %c0_i32_0 = arith.constant 0 : i32
    %c0_i32_1 = arith.constant 0 : i32
    return %c0_i32, %c0_i32_0 : i32, i32
  }
  func.func @transform_5(%arg0: i32) -> (i32, i32, i32) {
    %c0_i32 = arith.constant 0 : i32
    %c0_i32_0 = arith.constant 0 : i32
    %c0_i32_1 = arith.constant 0 : i32
    return %c0_i32, %arg0, %c0_i32_0 : i32, i32, i32
  }
  func.func @transform_6(%arg0: i32) -> (i32, i32, i32) {
    %c0_i32 = arith.constant 0 : i32
    %c0_i32_0 = arith.constant 0 : i32
    %c0_i32_1 = arith.constant 0 : i32
    return %c0_i32, %arg0, %c0_i32_0 : i32, i32, i32
  }
}

module attributes {stable_mosaic.version = 11 : i64} {
  func.func @bilstm_kernel(%arg0: i32, %arg1: memref<4x2x32xbf16, #tpu.memory_space<vmem>>, %arg2: memref<4x2x1xf32, #tpu.memory_space<vmem>>, %arg3: memref<64x128xbf16, #tpu.memory_space<vmem>>, %arg4: memref<32x128xbf16, #tpu.memory_space<vmem>>, %arg5: memref<1x128xf32, #tpu.memory_space<vmem>>, %arg6: memref<4x2x16xf32, #tpu.memory_space<vmem>>, %arg7: memref<4x2x16xf32, #tpu.memory_space<vmem>>) attributes {dimension_semantics = [#tpu.dimension_semantics<parallel>], iteration_bounds = array<i64: 1>, scalar_prefetch = 0 : i64, scratch_operands = 0 : i64, tpu.core_type = #tpu.core_type<tc>, window_params = [{transform_indices = @transform_0, window_bounds = array<i64: 4, 2, 32>}, {transform_indices = @transform_1, window_bounds = array<i64: 4, 2, 1>}, {pipeline_mode = #tpu.pipeline_mode<synchronous>, transform_indices = @transform_2, window_bounds = array<i64: 64, 128>}, {pipeline_mode = #tpu.pipeline_mode<synchronous>, transform_indices = @transform_3, window_bounds = array<i64: 32, 128>}, {pipeline_mode = #tpu.pipeline_mode<synchronous>, transform_indices = @transform_4, window_bounds = array<i64: 1, 128>}, {transform_indices = @transform_5, window_bounds = array<i64: 4, 2, 16>}, {transform_indices = @transform_6, window_bounds = array<i64: 4, 2, 16>}]} {
    %c0 = arith.constant 0 : index
    %c0_0 = arith.constant 0 : index
    %0 = vector.load %arg3[%c0, %c0_0] : memref<64x128xbf16, #tpu.memory_space<vmem>>, vector<64x128xbf16>
    %c0_1 = arith.constant 0 : index
    %c0_2 = arith.constant 0 : index
    %1 = vector.load %arg4[%c0_1, %c0_2] : memref<32x128xbf16, #tpu.memory_space<vmem>>, vector<32x128xbf16>
    %c0_3 = arith.constant 0 : index
    %c0_4 = arith.constant 0 : index
    %2 = vector.load %arg5[%c0_3, %c0_4] : memref<1x128xf32, #tpu.memory_space<vmem>>, vector<1x128xf32>
    %cst = arith.constant 0.000000e+00 : f32
    %3 = vector.broadcast %cst : f32 to vector<2x32xf32>
    %cst_5 = arith.constant 0.000000e+00 : f32
    %4 = vector.broadcast %cst_5 : f32 to vector<2x32xf32>
    %c0_6 = arith.constant 0 : index
    %c0_7 = arith.constant 0 : index
    %c0_8 = arith.constant 0 : index
    %5 = vector.load %arg1[%c0_6, %c0_7, %c0_8] : memref<4x2x32xbf16, #tpu.memory_space<vmem>>, vector<1x2x32xbf16>
    %6 = vector.shape_cast %5 : vector<1x2x32xbf16> to vector<2x32xbf16>
    %c3 = arith.constant 3 : index
    %c0_9 = arith.constant 0 : index
    %c0_10 = arith.constant 0 : index
    %7 = vector.load %arg1[%c3, %c0_9, %c0_10] : memref<4x2x32xbf16, #tpu.memory_space<vmem>>, vector<1x2x32xbf16>
    %8 = vector.shape_cast %7 : vector<1x2x32xbf16> to vector<2x32xbf16>
    %9 = tpu.concatenate %6, %8 in 1 : vector<2x32xbf16>, vector<2x32xbf16> -> vector<2x64xbf16>
    %cst_11 = arith.constant dense<0.000000e+00> : vector<2x128xf32>
    %10 = tpu.matmul %9, %0, %cst_11 {dimension_numbers = #tpu.dot_dimension_numbers<[1], [0], [0], [1], [0, 0, 1, 1], [], []>} : vector<2x64xbf16>, vector<64x128xbf16>, vector<2x128xf32> -> vector<2x128xf32>
    %11 = arith.truncf %3 : vector<2x32xf32> to vector<2x32xbf16>
    %cst_12 = arith.constant dense<0.000000e+00> : vector<2x128xf32>
    %12 = tpu.matmul %11, %1, %cst_12 {dimension_numbers = #tpu.dot_dimension_numbers<[1], [0], [0], [1], [0, 0, 1, 1], [], []>} : vector<2x32xbf16>, vector<32x128xbf16>, vector<2x128xf32> -> vector<2x128xf32>
    %13 = arith.addf %10, %12 : vector<2x128xf32>
    %14 = vector.broadcast %2 : vector<1x128xf32> to vector<2x128xf32>
    %15 = arith.addf %13, %14 : vector<2x128xf32>
    %16 = vector.extract_strided_slice %15 {offsets = [0, 0], sizes = [2, 32], strides = [1, 1]} : vector<2x128xf32> to vector<2x32xf32>
    %17 = arith.negf %16 : vector<2x32xf32>
    %18 = math.exp %17 : vector<2x32xf32>
    %cst_13 = arith.constant 1.000000e+00 : f32
    %19 = vector.broadcast %cst_13 : f32 to vector<2x32xf32>
    %20 = arith.addf %19, %18 : vector<2x32xf32>
    %21 = arith.divf %19, %20 : vector<2x32xf32>
    %22 = vector.extract_strided_slice %15 {offsets = [0, 32], sizes = [2, 32], strides = [1, 1]} : vector<2x128xf32> to vector<2x32xf32>
    %23 = arith.negf %22 : vector<2x32xf32>
    %24 = math.exp %23 : vector<2x32xf32>
    %cst_14 = arith.constant 1.000000e+00 : f32
    %25 = vector.broadcast %cst_14 : f32 to vector<2x32xf32>
    %26 = arith.addf %25, %24 : vector<2x32xf32>
    %27 = arith.divf %25, %26 : vector<2x32xf32>
    %28 = vector.extract_strided_slice %15 {offsets = [0, 64], sizes = [2, 32], strides = [1, 1]} : vector<2x128xf32> to vector<2x32xf32>
    %29 = math.tanh %28 : vector<2x32xf32>
    %30 = vector.extract_strided_slice %15 {offsets = [0, 96], sizes = [2, 32], strides = [1, 1]} : vector<2x128xf32> to vector<2x32xf32>
    %31 = arith.negf %30 : vector<2x32xf32>
    %32 = math.exp %31 : vector<2x32xf32>
    %cst_15 = arith.constant 1.000000e+00 : f32
    %33 = vector.broadcast %cst_15 : f32 to vector<2x32xf32>
    %34 = arith.addf %33, %32 : vector<2x32xf32>
    %35 = arith.divf %33, %34 : vector<2x32xf32>
    %36 = arith.mulf %27, %4 : vector<2x32xf32>
    %37 = arith.mulf %21, %29 : vector<2x32xf32>
    %38 = arith.addf %36, %37 : vector<2x32xf32>
    %39 = math.tanh %38 : vector<2x32xf32>
    %40 = arith.mulf %35, %39 : vector<2x32xf32>
    %c0_16 = arith.constant 0 : index
    %c0_17 = arith.constant 0 : index
    %c0_18 = arith.constant 0 : index
    %41 = vector.load %arg2[%c0_16, %c0_17, %c0_18] : memref<4x2x1xf32, #tpu.memory_space<vmem>>, vector<1x2x1xf32>
    %42 = vector.shape_cast %41 : vector<1x2x1xf32> to vector<2x1xf32>
    %c3_19 = arith.constant 3 : index
    %c0_20 = arith.constant 0 : index
    %c0_21 = arith.constant 0 : index
    %43 = vector.load %arg2[%c3_19, %c0_20, %c0_21] : memref<4x2x1xf32, #tpu.memory_space<vmem>>, vector<1x2x1xf32>
    %44 = vector.shape_cast %43 : vector<1x2x1xf32> to vector<2x1xf32>
    %45 = vector.shape_cast %42 : vector<2x1xf32> to vector<2x1xf32>
    %46 = vector.broadcast %45 : vector<2x1xf32> to vector<2x16xf32>
    %47 = vector.shape_cast %44 : vector<2x1xf32> to vector<2x1xf32>
    %48 = vector.broadcast %47 : vector<2x1xf32> to vector<2x16xf32>
    %49 = tpu.concatenate %46, %48 in 1 : vector<2x16xf32>, vector<2x16xf32> -> vector<2x32xf32>
    %50 = arith.mulf %40, %49 : vector<2x32xf32>
    %51 = vector.extract_strided_slice %50 {offsets = [0, 0], sizes = [2, 16], strides = [1, 1]} : vector<2x32xf32> to vector<2x16xf32>
    %c0_22 = arith.constant 0 : index
    %c0_23 = arith.constant 0 : index
    %c0_24 = arith.constant 0 : index
    %52 = vector.load %arg6[%c0_22, %c0_23, %c0_24] : memref<4x2x16xf32, #tpu.memory_space<vmem>>, vector<1x2x16xf32>
    %53 = vector.shape_cast %52 : vector<1x2x16xf32> to vector<2x16xf32>
    %54 = vector.shape_cast %51 : vector<2x16xf32> to vector<1x2x16xf32>
    tpu.vector_store %arg6[%c0_22, %c0_23, %c0_24], %54 {strides = array<i32>} : memref<4x2x16xf32, #tpu.memory_space<vmem>>, vector<1x2x16xf32>,
    %55 = vector.extract_strided_slice %50 {offsets = [0, 16], sizes = [2, 16], strides = [1, 1]} : vector<2x32xf32> to vector<2x16xf32>
    %c3_25 = arith.constant 3 : index
    %c0_26 = arith.constant 0 : index
    %c0_27 = arith.constant 0 : index
    %56 = vector.load %arg7[%c3_25, %c0_26, %c0_27] : memref<4x2x16xf32, #tpu.memory_space<vmem>>, vector<1x2x16xf32>
    %57 = vector.shape_cast %56 : vector<1x2x16xf32> to vector<2x16xf32>
    %58 = vector.shape_cast %55 : vector<2x16xf32> to vector<1x2x16xf32>
    tpu.vector_store %arg7[%c3_25, %c0_26, %c0_27], %58 {strides = array<i32>} : memref<4x2x16xf32, #tpu.memory_space<vmem>>, vector<1x2x16xf32>,
    %59 = arith.mulf %49, %40 : vector<2x32xf32>
    %cst_28 = arith.constant 1.000000e+00 : f32
    %60 = vector.broadcast %cst_28 : f32 to vector<2x32xf32>
    %61 = arith.subf %60, %49 : vector<2x32xf32>
    %62 = arith.mulf %61, %3 : vector<2x32xf32>
    %63 = arith.addf %59, %62 : vector<2x32xf32>
    %64 = arith.mulf %49, %38 : vector<2x32xf32>
    %cst_29 = arith.constant 1.000000e+00 : f32
    %65 = vector.broadcast %cst_29 : f32 to vector<2x32xf32>
    %66 = arith.subf %65, %49 : vector<2x32xf32>
    %67 = arith.mulf %66, %4 : vector<2x32xf32>
    %68 = arith.addf %64, %67 : vector<2x32xf32>
    %c1 = arith.constant 1 : index
    %c0_30 = arith.constant 0 : index
    %c0_31 = arith.constant 0 : index
    %69 = vector.load %arg1[%c1, %c0_30, %c0_31] : memref<4x2x32xbf16, #tpu.memory_space<vmem>>, vector<1x2x32xbf16>
    %70 = vector.shape_cast %69 : vector<1x2x32xbf16> to vector<2x32xbf16>
    %c2 = arith.constant 2 : index
    %c0_32 = arith.constant 0 : index
    %c0_33 = arith.constant 0 : index
    %71 = vector.load %arg1[%c2, %c0_32, %c0_33] : memref<4x2x32xbf16, #tpu.memory_space<vmem>>, vector<1x2x32xbf16>
    %72 = vector.shape_cast %71 : vector<1x2x32xbf16> to vector<2x32xbf16>
    %73 = tpu.concatenate %70, %72 in 1 : vector<2x32xbf16>, vector<2x32xbf16> -> vector<2x64xbf16>
    %cst_34 = arith.constant dense<0.000000e+00> : vector<2x128xf32>
    %74 = tpu.matmul %73, %0, %cst_34 {dimension_numbers = #tpu.dot_dimension_numbers<[1], [0], [0], [1], [0, 0, 1, 1], [], []>} : vector<2x64xbf16>, vector<64x128xbf16>, vector<2x128xf32> -> vector<2x128xf32>
    %75 = arith.truncf %63 : vector<2x32xf32> to vector<2x32xbf16>
    %cst_35 = arith.constant dense<0.000000e+00> : vector<2x128xf32>
    %76 = tpu.matmul %75, %1, %cst_35 {dimension_numbers = #tpu.dot_dimension_numbers<[1], [0], [0], [1], [0, 0, 1, 1], [], []>} : vector<2x32xbf16>, vector<32x128xbf16>, vector<2x128xf32> -> vector<2x128xf32>
    %77 = arith.addf %74, %76 : vector<2x128xf32>
    %78 = vector.broadcast %2 : vector<1x128xf32> to vector<2x128xf32>
    %79 = arith.addf %77, %78 : vector<2x128xf32>
    %80 = vector.extract_strided_slice %79 {offsets = [0, 0], sizes = [2, 32], strides = [1, 1]} : vector<2x128xf32> to vector<2x32xf32>
    %81 = arith.negf %80 : vector<2x32xf32>
    %82 = math.exp %81 : vector<2x32xf32>
    %cst_36 = arith.constant 1.000000e+00 : f32
    %83 = vector.broadcast %cst_36 : f32 to vector<2x32xf32>
    %84 = arith.addf %83, %82 : vector<2x32xf32>
    %85 = arith.divf %83, %84 : vector<2x32xf32>
    %86 = vector.extract_strided_slice %79 {offsets = [0, 32], sizes = [2, 32], strides = [1, 1]} : vector<2x128xf32> to vector<2x32xf32>
    %87 = arith.negf %86 : vector<2x32xf32>
    %88 = math.exp %87 : vector<2x32xf32>
    %cst_37 = arith.constant 1.000000e+00 : f32
    %89 = vector.broadcast %cst_37 : f32 to vector<2x32xf32>
    %90 = arith.addf %89, %88 : vector<2x32xf32>
    %91 = arith.divf %89, %90 : vector<2x32xf32>
    %92 = vector.extract_strided_slice %79 {offsets = [0, 64], sizes = [2, 32], strides = [1, 1]} : vector<2x128xf32> to vector<2x32xf32>
    %93 = math.tanh %92 : vector<2x32xf32>
    %94 = vector.extract_strided_slice %79 {offsets = [0, 96], sizes = [2, 32], strides = [1, 1]} : vector<2x128xf32> to vector<2x32xf32>
    %95 = arith.negf %94 : vector<2x32xf32>
    %96 = math.exp %95 : vector<2x32xf32>
    %cst_38 = arith.constant 1.000000e+00 : f32
    %97 = vector.broadcast %cst_38 : f32 to vector<2x32xf32>
    %98 = arith.addf %97, %96 : vector<2x32xf32>
    %99 = arith.divf %97, %98 : vector<2x32xf32>
    %100 = arith.mulf %91, %68 : vector<2x32xf32>
    %101 = arith.mulf %85, %93 : vector<2x32xf32>
    %102 = arith.addf %100, %101 : vector<2x32xf32>
    %103 = math.tanh %102 : vector<2x32xf32>
    %104 = arith.mulf %99, %103 : vector<2x32xf32>
    %c1_39 = arith.constant 1 : index
    %c0_40 = arith.constant 0 : index
    %c0_41 = arith.constant 0 : index
    %105 = vector.load %arg2[%c1_39, %c0_40, %c0_41] : memref<4x2x1xf32, #tpu.memory_space<vmem>>, vector<1x2x1xf32>
    %106 = vector.shape_cast %105 : vector<1x2x1xf32> to vector<2x1xf32>
    %c2_42 = arith.constant 2 : index
    %c0_43 = arith.constant 0 : index
    %c0_44 = arith.constant 0 : index
    %107 = vector.load %arg2[%c2_42, %c0_43, %c0_44] : memref<4x2x1xf32, #tpu.memory_space<vmem>>, vector<1x2x1xf32>
    %108 = vector.shape_cast %107 : vector<1x2x1xf32> to vector<2x1xf32>
    %109 = vector.shape_cast %106 : vector<2x1xf32> to vector<2x1xf32>
    %110 = vector.broadcast %109 : vector<2x1xf32> to vector<2x16xf32>
    %111 = vector.shape_cast %108 : vector<2x1xf32> to vector<2x1xf32>
    %112 = vector.broadcast %111 : vector<2x1xf32> to vector<2x16xf32>
    %113 = tpu.concatenate %110, %112 in 1 : vector<2x16xf32>, vector<2x16xf32> -> vector<2x32xf32>
    %114 = arith.mulf %104, %113 : vector<2x32xf32>
    %115 = vector.extract_strided_slice %114 {offsets = [0, 0], sizes = [2, 16], strides = [1, 1]} : vector<2x32xf32> to vector<2x16xf32>
    %c1_45 = arith.constant 1 : index
    %c0_46 = arith.constant 0 : index
    %c0_47 = arith.constant 0 : index
    %116 = vector.load %arg6[%c1_45, %c0_46, %c0_47] : memref<4x2x16xf32, #tpu.memory_space<vmem>>, vector<1x2x16xf32>
    %117 = vector.shape_cast %116 : vector<1x2x16xf32> to vector<2x16xf32>
    %118 = vector.shape_cast %115 : vector<2x16xf32> to vector<1x2x16xf32>
    tpu.vector_store %arg6[%c1_45, %c0_46, %c0_47], %118 {strides = array<i32>} : memref<4x2x16xf32, #tpu.memory_space<vmem>>, vector<1x2x16xf32>,
    %119 = vector.extract_strided_slice %114 {offsets = [0, 16], sizes = [2, 16], strides = [1, 1]} : vector<2x32xf32> to vector<2x16xf32>
    %c2_48 = arith.constant 2 : index
    %c0_49 = arith.constant 0 : index
    %c0_50 = arith.constant 0 : index
    %120 = vector.load %arg7[%c2_48, %c0_49, %c0_50] : memref<4x2x16xf32, #tpu.memory_space<vmem>>, vector<1x2x16xf32>
    %121 = vector.shape_cast %120 : vector<1x2x16xf32> to vector<2x16xf32>
    %122 = vector.shape_cast %119 : vector<2x16xf32> to vector<1x2x16xf32>
    tpu.vector_store %arg7[%c2_48, %c0_49, %c0_50], %122 {strides = array<i32>} : memref<4x2x16xf32, #tpu.memory_space<vmem>>, vector<1x2x16xf32>,
    %123 = arith.mulf %113, %104 : vector<2x32xf32>
    %cst_51 = arith.constant 1.000000e+00 : f32
    %124 = vector.broadcast %cst_51 : f32 to vector<2x32xf32>
    %125 = arith.subf %124, %113 : vector<2x32xf32>
    %126 = arith.mulf %125, %63 : vector<2x32xf32>
    %127 = arith.addf %123, %126 : vector<2x32xf32>
    %128 = arith.mulf %113, %102 : vector<2x32xf32>
    %cst_52 = arith.constant 1.000000e+00 : f32
    %129 = vector.broadcast %cst_52 : f32 to vector<2x32xf32>
    %130 = arith.subf %129, %113 : vector<2x32xf32>
    %131 = arith.mulf %130, %68 : vector<2x32xf32>
    %132 = arith.addf %128, %131 : vector<2x32xf32>
    %c2_53 = arith.constant 2 : index
    %c0_54 = arith.constant 0 : index
    %c0_55 = arith.constant 0 : index
    %133 = vector.load %arg1[%c2_53, %c0_54, %c0_55] : memref<4x2x32xbf16, #tpu.memory_space<vmem>>, vector<1x2x32xbf16>
    %134 = vector.shape_cast %133 : vector<1x2x32xbf16> to vector<2x32xbf16>
    %c1_56 = arith.constant 1 : index
    %c0_57 = arith.constant 0 : index
    %c0_58 = arith.constant 0 : index
    %135 = vector.load %arg1[%c1_56, %c0_57, %c0_58] : memref<4x2x32xbf16, #tpu.memory_space<vmem>>, vector<1x2x32xbf16>
    %136 = vector.shape_cast %135 : vector<1x2x32xbf16> to vector<2x32xbf16>
    %137 = tpu.concatenate %134, %136 in 1 : vector<2x32xbf16>, vector<2x32xbf16> -> vector<2x64xbf16>
    %cst_59 = arith.constant dense<0.000000e+00> : vector<2x128xf32>
    %138 = tpu.matmul %137, %0, %cst_59 {dimension_numbers = #tpu.dot_dimension_numbers<[1], [0], [0], [1], [0, 0, 1, 1], [], []>} : vector<2x64xbf16>, vector<64x128xbf16>, vector<2x128xf32> -> vector<2x128xf32>
    %139 = arith.truncf %127 : vector<2x32xf32> to vector<2x32xbf16>
    %cst_60 = arith.constant dense<0.000000e+00> : vector<2x128xf32>
    %140 = tpu.matmul %139, %1, %cst_60 {dimension_numbers = #tpu.dot_dimension_numbers<[1], [0], [0], [1], [0, 0, 1, 1], [], []>} : vector<2x32xbf16>, vector<32x128xbf16>, vector<2x128xf32> -> vector<2x128xf32>
    %141 = arith.addf %138, %140 : vector<2x128xf32>
    %142 = vector.broadcast %2 : vector<1x128xf32> to vector<2x128xf32>
    %143 = arith.addf %141, %142 : vector<2x128xf32>
    %144 = vector.extract_strided_slice %143 {offsets = [0, 0], sizes = [2, 32], strides = [1, 1]} : vector<2x128xf32> to vector<2x32xf32>
    %145 = arith.negf %144 : vector<2x32xf32>
    %146 = math.exp %145 : vector<2x32xf32>
    %cst_61 = arith.constant 1.000000e+00 : f32
    %147 = vector.broadcast %cst_61 : f32 to vector<2x32xf32>
    %148 = arith.addf %147, %146 : vector<2x32xf32>
    %149 = arith.divf %147, %148 : vector<2x32xf32>
    %150 = vector.extract_strided_slice %143 {offsets = [0, 32], sizes = [2, 32], strides = [1, 1]} : vector<2x128xf32> to vector<2x32xf32>
    %151 = arith.negf %150 : vector<2x32xf32>
    %152 = math.exp %151 : vector<2x32xf32>
    %cst_62 = arith.constant 1.000000e+00 : f32
    %153 = vector.broadcast %cst_62 : f32 to vector<2x32xf32>
    %154 = arith.addf %153, %152 : vector<2x32xf32>
    %155 = arith.divf %153, %154 : vector<2x32xf32>
    %156 = vector.extract_strided_slice %143 {offsets = [0, 64], sizes = [2, 32], strides = [1, 1]} : vector<2x128xf32> to vector<2x32xf32>
    %157 = math.tanh %156 : vector<2x32xf32>
    %158 = vector.extract_strided_slice %143 {offsets = [0, 96], sizes = [2, 32], strides = [1, 1]} : vector<2x128xf32> to vector<2x32xf32>
    %159 = arith.negf %158 : vector<2x32xf32>
    %160 = math.exp %159 : vector<2x32xf32>
    %cst_63 = arith.constant 1.000000e+00 : f32
    %161 = vector.broadcast %cst_63 : f32 to vector<2x32xf32>
    %162 = arith.addf %161, %160 : vector<2x32xf32>
    %163 = arith.divf %161, %162 : vector<2x32xf32>
    %164 = arith.mulf %155, %132 : vector<2x32xf32>
    %165 = arith.mulf %149, %157 : vector<2x32xf32>
    %166 = arith.addf %164, %165 : vector<2x32xf32>
    %167 = math.tanh %166 : vector<2x32xf32>
    %168 = arith.mulf %163, %167 : vector<2x32xf32>
    %c2_64 = arith.constant 2 : index
    %c0_65 = arith.constant 0 : index
    %c0_66 = arith.constant 0 : index
    %169 = vector.load %arg2[%c2_64, %c0_65, %c0_66] : memref<4x2x1xf32, #tpu.memory_space<vmem>>, vector<1x2x1xf32>
    %170 = vector.shape_cast %169 : vector<1x2x1xf32> to vector<2x1xf32>
    %c1_67 = arith.constant 1 : index
    %c0_68 = arith.constant 0 : index
    %c0_69 = arith.constant 0 : index
    %171 = vector.load %arg2[%c1_67, %c0_68, %c0_69] : memref<4x2x1xf32, #tpu.memory_space<vmem>>, vector<1x2x1xf32>
    %172 = vector.shape_cast %171 : vector<1x2x1xf32> to vector<2x1xf32>
    %173 = vector.shape_cast %170 : vector<2x1xf32> to vector<2x1xf32>
    %174 = vector.broadcast %173 : vector<2x1xf32> to vector<2x16xf32>
    %175 = vector.shape_cast %172 : vector<2x1xf32> to vector<2x1xf32>
    %176 = vector.broadcast %175 : vector<2x1xf32> to vector<2x16xf32>
    %177 = tpu.concatenate %174, %176 in 1 : vector<2x16xf32>, vector<2x16xf32> -> vector<2x32xf32>
    %178 = arith.mulf %168, %177 : vector<2x32xf32>
    %179 = vector.extract_strided_slice %178 {offsets = [0, 0], sizes = [2, 16], strides = [1, 1]} : vector<2x32xf32> to vector<2x16xf32>
    %c2_70 = arith.constant 2 : index
    %c0_71 = arith.constant 0 : index
    %c0_72 = arith.constant 0 : index
    %180 = vector.load %arg6[%c2_70, %c0_71, %c0_72] : memref<4x2x16xf32, #tpu.memory_space<vmem>>, vector<1x2x16xf32>
    %181 = vector.shape_cast %180 : vector<1x2x16xf32> to vector<2x16xf32>
    %182 = vector.shape_cast %179 : vector<2x16xf32> to vector<1x2x16xf32>
    tpu.vector_store %arg6[%c2_70, %c0_71, %c0_72], %182 {strides = array<i32>} : memref<4x2x16xf32, #tpu.memory_space<vmem>>, vector<1x2x16xf32>,
    %183 = vector.extract_strided_slice %178 {offsets = [0, 16], sizes = [2, 16], strides = [1, 1]} : vector<2x32xf32> to vector<2x16xf32>
    %c1_73 = arith.constant 1 : index
    %c0_74 = arith.constant 0 : index
    %c0_75 = arith.constant 0 : index
    %184 = vector.load %arg7[%c1_73, %c0_74, %c0_75] : memref<4x2x16xf32, #tpu.memory_space<vmem>>, vector<1x2x16xf32>
    %185 = vector.shape_cast %184 : vector<1x2x16xf32> to vector<2x16xf32>
    %186 = vector.shape_cast %183 : vector<2x16xf32> to vector<1x2x16xf32>
    tpu.vector_store %arg7[%c1_73, %c0_74, %c0_75], %186 {strides = array<i32>} : memref<4x2x16xf32, #tpu.memory_space<vmem>>, vector<1x2x16xf32>,
    %187 = arith.mulf %177, %168 : vector<2x32xf32>
    %cst_76 = arith.constant 1.000000e+00 : f32
    %188 = vector.broadcast %cst_76 : f32 to vector<2x32xf32>
    %189 = arith.subf %188, %177 : vector<2x32xf32>
    %190 = arith.mulf %189, %127 : vector<2x32xf32>
    %191 = arith.addf %187, %190 : vector<2x32xf32>
    %192 = arith.mulf %177, %166 : vector<2x32xf32>
    %cst_77 = arith.constant 1.000000e+00 : f32
    %193 = vector.broadcast %cst_77 : f32 to vector<2x32xf32>
    %194 = arith.subf %193, %177 : vector<2x32xf32>
    %195 = arith.mulf %194, %132 : vector<2x32xf32>
    %196 = arith.addf %192, %195 : vector<2x32xf32>
    %c3_78 = arith.constant 3 : index
    %c0_79 = arith.constant 0 : index
    %c0_80 = arith.constant 0 : index
    %197 = vector.load %arg1[%c3_78, %c0_79, %c0_80] : memref<4x2x32xbf16, #tpu.memory_space<vmem>>, vector<1x2x32xbf16>
    %198 = vector.shape_cast %197 : vector<1x2x32xbf16> to vector<2x32xbf16>
    %c0_81 = arith.constant 0 : index
    %c0_82 = arith.constant 0 : index
    %c0_83 = arith.constant 0 : index
    %199 = vector.load %arg1[%c0_81, %c0_82, %c0_83] : memref<4x2x32xbf16, #tpu.memory_space<vmem>>, vector<1x2x32xbf16>
    %200 = vector.shape_cast %199 : vector<1x2x32xbf16> to vector<2x32xbf16>
    %201 = tpu.concatenate %198, %200 in 1 : vector<2x32xbf16>, vector<2x32xbf16> -> vector<2x64xbf16>
    %cst_84 = arith.constant dense<0.000000e+00> : vector<2x128xf32>
    %202 = tpu.matmul %201, %0, %cst_84 {dimension_numbers = #tpu.dot_dimension_numbers<[1], [0], [0], [1], [0, 0, 1, 1], [], []>} : vector<2x64xbf16>, vector<64x128xbf16>, vector<2x128xf32> -> vector<2x128xf32>
    %203 = arith.truncf %191 : vector<2x32xf32> to vector<2x32xbf16>
    %cst_85 = arith.constant dense<0.000000e+00> : vector<2x128xf32>
    %204 = tpu.matmul %203, %1, %cst_85 {dimension_numbers = #tpu.dot_dimension_numbers<[1], [0], [0], [1], [0, 0, 1, 1], [], []>} : vector<2x32xbf16>, vector<32x128xbf16>, vector<2x128xf32> -> vector<2x128xf32>
    %205 = arith.addf %202, %204 : vector<2x128xf32>
    %206 = vector.broadcast %2 : vector<1x128xf32> to vector<2x128xf32>
    %207 = arith.addf %205, %206 : vector<2x128xf32>
    %208 = vector.extract_strided_slice %207 {offsets = [0, 0], sizes = [2, 32], strides = [1, 1]} : vector<2x128xf32> to vector<2x32xf32>
    %209 = arith.negf %208 : vector<2x32xf32>
    %210 = math.exp %209 : vector<2x32xf32>
    %cst_86 = arith.constant 1.000000e+00 : f32
    %211 = vector.broadcast %cst_86 : f32 to vector<2x32xf32>
    %212 = arith.addf %211, %210 : vector<2x32xf32>
    %213 = arith.divf %211, %212 : vector<2x32xf32>
    %214 = vector.extract_strided_slice %207 {offsets = [0, 32], sizes = [2, 32], strides = [1, 1]} : vector<2x128xf32> to vector<2x32xf32>
    %215 = arith.negf %214 : vector<2x32xf32>
    %216 = math.exp %215 : vector<2x32xf32>
    %cst_87 = arith.constant 1.000000e+00 : f32
    %217 = vector.broadcast %cst_87 : f32 to vector<2x32xf32>
    %218 = arith.addf %217, %216 : vector<2x32xf32>
    %219 = arith.divf %217, %218 : vector<2x32xf32>
    %220 = vector.extract_strided_slice %207 {offsets = [0, 64], sizes = [2, 32], strides = [1, 1]} : vector<2x128xf32> to vector<2x32xf32>
    %221 = math.tanh %220 : vector<2x32xf32>
    %222 = vector.extract_strided_slice %207 {offsets = [0, 96], sizes = [2, 32], strides = [1, 1]} : vector<2x128xf32> to vector<2x32xf32>
    %223 = arith.negf %222 : vector<2x32xf32>
    %224 = math.exp %223 : vector<2x32xf32>
    %cst_88 = arith.constant 1.000000e+00 : f32
    %225 = vector.broadcast %cst_88 : f32 to vector<2x32xf32>
    %226 = arith.addf %225, %224 : vector<2x32xf32>
    %227 = arith.divf %225, %226 : vector<2x32xf32>
    %228 = arith.mulf %219, %196 : vector<2x32xf32>
    %229 = arith.mulf %213, %221 : vector<2x32xf32>
    %230 = arith.addf %228, %229 : vector<2x32xf32>
    %231 = math.tanh %230 : vector<2x32xf32>
    %232 = arith.mulf %227, %231 : vector<2x32xf32>
    %c3_89 = arith.constant 3 : index
    %c0_90 = arith.constant 0 : index
    %c0_91 = arith.constant 0 : index
    %233 = vector.load %arg2[%c3_89, %c0_90, %c0_91] : memref<4x2x1xf32, #tpu.memory_space<vmem>>, vector<1x2x1xf32>
    %234 = vector.shape_cast %233 : vector<1x2x1xf32> to vector<2x1xf32>
    %c0_92 = arith.constant 0 : index
    %c0_93 = arith.constant 0 : index
    %c0_94 = arith.constant 0 : index
    %235 = vector.load %arg2[%c0_92, %c0_93, %c0_94] : memref<4x2x1xf32, #tpu.memory_space<vmem>>, vector<1x2x1xf32>
    %236 = vector.shape_cast %235 : vector<1x2x1xf32> to vector<2x1xf32>
    %237 = vector.shape_cast %234 : vector<2x1xf32> to vector<2x1xf32>
    %238 = vector.broadcast %237 : vector<2x1xf32> to vector<2x16xf32>
    %239 = vector.shape_cast %236 : vector<2x1xf32> to vector<2x1xf32>
    %240 = vector.broadcast %239 : vector<2x1xf32> to vector<2x16xf32>
    %241 = tpu.concatenate %238, %240 in 1 : vector<2x16xf32>, vector<2x16xf32> -> vector<2x32xf32>
    %242 = arith.mulf %232, %241 : vector<2x32xf32>
    %243 = vector.extract_strided_slice %242 {offsets = [0, 0], sizes = [2, 16], strides = [1, 1]} : vector<2x32xf32> to vector<2x16xf32>
    %c3_95 = arith.constant 3 : index
    %c0_96 = arith.constant 0 : index
    %c0_97 = arith.constant 0 : index
    %244 = vector.load %arg6[%c3_95, %c0_96, %c0_97] : memref<4x2x16xf32, #tpu.memory_space<vmem>>, vector<1x2x16xf32>
    %245 = vector.shape_cast %244 : vector<1x2x16xf32> to vector<2x16xf32>
    %246 = vector.shape_cast %243 : vector<2x16xf32> to vector<1x2x16xf32>
    tpu.vector_store %arg6[%c3_95, %c0_96, %c0_97], %246 {strides = array<i32>} : memref<4x2x16xf32, #tpu.memory_space<vmem>>, vector<1x2x16xf32>,
    %247 = vector.extract_strided_slice %242 {offsets = [0, 16], sizes = [2, 16], strides = [1, 1]} : vector<2x32xf32> to vector<2x16xf32>
    %c0_98 = arith.constant 0 : index
    %c0_99 = arith.constant 0 : index
    %c0_100 = arith.constant 0 : index
    %248 = vector.load %arg7[%c0_98, %c0_99, %c0_100] : memref<4x2x16xf32, #tpu.memory_space<vmem>>, vector<1x2x16xf32>
    %249 = vector.shape_cast %248 : vector<1x2x16xf32> to vector<2x16xf32>
    %250 = vector.shape_cast %247 : vector<2x16xf32> to vector<1x2x16xf32>
    tpu.vector_store %arg7[%c0_98, %c0_99, %c0_100], %250 {strides = array<i32>} : memref<4x2x16xf32, #tpu.memory_space<vmem>>, vector<1x2x16xf32>,
    return
  }
  func.func @transform_0(%arg0: i32) -> (i32, i32, i32) {
    %c0_i32 = arith.constant 0 : i32
    %c0_i32_0 = arith.constant 0 : i32
    %c0_i32_1 = arith.constant 0 : i32
    return %c0_i32, %arg0, %c0_i32_0 : i32, i32, i32
  }
  func.func @transform_1(%arg0: i32) -> (i32, i32, i32) {
    %c0_i32 = arith.constant 0 : i32
    %c0_i32_0 = arith.constant 0 : i32
    %c0_i32_1 = arith.constant 0 : i32
    return %c0_i32, %arg0, %c0_i32_0 : i32, i32, i32
  }
  func.func @transform_2(%arg0: i32) -> (i32, i32) {
    %c0_i32 = arith.constant 0 : i32
    %c0_i32_0 = arith.constant 0 : i32
    %c0_i32_1 = arith.constant 0 : i32
    return %c0_i32, %c0_i32_0 : i32, i32
  }
  func.func @transform_3(%arg0: i32) -> (i32, i32) {
    %c0_i32 = arith.constant 0 : i32
    %c0_i32_0 = arith.constant 0 : i32
    %c0_i32_1 = arith.constant 0 : i32
    return %c0_i32, %c0_i32_0 : i32, i32
  }
  func.func @transform_4(%arg0: i32) -> (i32, i32) {
    %c0_i32 = arith.constant 0 : i32
    %c0_i32_0 = arith.constant 0 : i32
    %c0_i32_1 = arith.constant 0 : i32
    return %c0_i32, %c0_i32_0 : i32, i32
  }
  func.func @transform_5(%arg0: i32) -> (i32, i32, i32) {
    %c0_i32 = arith.constant 0 : i32
    %c0_i32_0 = arith.constant 0 : i32
    %c0_i32_1 = arith.constant 0 : i32
    return %c0_i32, %arg0, %c0_i32_0 : i32, i32, i32
  }
  func.func @transform_6(%arg0: i32) -> (i32, i32, i32) {
    %c0_i32 = arith.constant 0 : i32
    %c0_i32_0 = arith.constant 0 : i32
    %c0_i32_1 = arith.constant 0 : i32
    return %c0_i32, %arg0, %c0_i32_0 : i32, i32, i32
  }
}

module attributes {stable_mosaic.version = 11 : i64} {
  func.func @mimn_interaction_kernel(%arg0: i32, %arg1: memref<2x8x32xbf16, #tpu.memory_space<vmem>>, %arg2: memref<2x3x32xbf16, #tpu.memory_space<vmem>>, %arg3: memref<2x4x32xf32, #tpu.memory_space<vmem>>, %arg4: memref<2x1xf32, #tpu.memory_space<vmem>>, %arg5: memref<32x64xbf16, #tpu.memory_space<vmem>>, %arg6: memref<1x64xf32, #tpu.memory_space<vmem>>, %arg7: memref<1x64xf32, #tpu.memory_space<vmem>>, %arg8: memref<32x64xbf16, #tpu.memory_space<vmem>>, %arg9: memref<1x64xf32, #tpu.memory_space<vmem>>, %arg10: memref<1x64xf32, #tpu.memory_space<vmem>>, %arg11: memref<32x64xbf16, #tpu.memory_space<vmem>>, %arg12: memref<1x64xf32, #tpu.memory_space<vmem>>, %arg13: memref<1x64xf32, #tpu.memory_space<vmem>>, %arg14: memref<32x64xbf16, #tpu.memory_space<vmem>>, %arg15: memref<1x64xf32, #tpu.memory_space<vmem>>, %arg16: memref<1x64xf32, #tpu.memory_space<vmem>>, %arg17: memref<64x32xbf16, #tpu.memory_space<vmem>>, %arg18: memref<1x32xf32, #tpu.memory_space<vmem>>, %arg19: memref<64x32xbf16, #tpu.memory_space<vmem>>, %arg20: memref<1x32xf32, #tpu.memory_space<vmem>>, %arg21: memref<2x32x96xbf16, #tpu.memory_space<vmem>>, %arg22: memref<2x32x96xbf16, #tpu.memory_space<vmem>>, %arg23: memref<2x96xf32, #tpu.memory_space<vmem>>, %arg24: memref<2x96xf32, #tpu.memory_space<vmem>>, %arg25: memref<64x3xbf16, #tpu.memory_space<vmem>>, %arg26: memref<1x3xf32, #tpu.memory_space<vmem>>, %arg27: memref<2x3xf32, #tpu.memory_space<vmem>>) attributes {dimension_semantics = [#tpu.dimension_semantics<parallel>], iteration_bounds = array<i64: 1>, scalar_prefetch = 0 : i64, scratch_operands = 0 : i64, tpu.core_type = #tpu.core_type<tc>, window_params = [{transform_indices = @transform_0, window_bounds = array<i64: 2, 8, 32>}, {transform_indices = @transform_1, window_bounds = array<i64: 2, 3, 32>}, {transform_indices = @transform_2, window_bounds = array<i64: 2, 4, 32>}, {transform_indices = @transform_3, window_bounds = array<i64: 2, 1>}, {pipeline_mode = #tpu.pipeline_mode<synchronous>, transform_indices = @transform_4, window_bounds = array<i64: 32, 64>}, {pipeline_mode = #tpu.pipeline_mode<synchronous>, transform_indices = @transform_5, window_bounds = array<i64: 1, 64>}, {pipeline_mode = #tpu.pipeline_mode<synchronous>, transform_indices = @transform_6, window_bounds = array<i64: 1, 64>}, {pipeline_mode = #tpu.pipeline_mode<synchronous>, transform_indices = @transform_7, window_bounds = array<i64: 32, 64>}, {pipeline_mode = #tpu.pipeline_mode<synchronous>, transform_indices = @transform_8, window_bounds = array<i64: 1, 64>}, {pipeline_mode = #tpu.pipeline_mode<synchronous>, transform_indices = @transform_9, window_bounds = array<i64: 1, 64>}, {pipeline_mode = #tpu.pipeline_mode<synchronous>, transform_indices = @transform_10, window_bounds = array<i64: 32, 64>}, {pipeline_mode = #tpu.pipeline_mode<synchronous>, transform_indices = @transform_11, window_bounds = array<i64: 1, 64>}, {pipeline_mode = #tpu.pipeline_mode<synchronous>, transform_indices = @transform_12, window_bounds = array<i64: 1, 64>}, {pipeline_mode = #tpu.pipeline_mode<synchronous>, transform_indices = @transform_13, window_bounds = array<i64: 32, 64>}, {pipeline_mode = #tpu.pipeline_mode<synchronous>, transform_indices = @transform_14, window_bounds = array<i64: 1, 64>}, {pipeline_mode = #tpu.pipeline_mode<synchronous>, transform_indices = @transform_15, window_bounds = array<i64: 1, 64>}, {pipeline_mode = #tpu.pipeline_mode<synchronous>, transform_indices = @transform_16, window_bounds = array<i64: 64, 32>}, {pipeline_mode = #tpu.pipeline_mode<synchronous>, transform_indices = @transform_17, window_bounds = array<i64: 1, 32>}, {pipeline_mode = #tpu.pipeline_mode<synchronous>, transform_indices = @transform_18, window_bounds = array<i64: 64, 32>}, {pipeline_mode = #tpu.pipeline_mode<synchronous>, transform_indices = @transform_19, window_bounds = array<i64: 1, 32>}, {pipeline_mode = #tpu.pipeline_mode<synchronous>, transform_indices = @transform_20, window_bounds = array<i64: 2, 32, 96>}, {pipeline_mode = #tpu.pipeline_mode<synchronous>, transform_indices = @transform_21, window_bounds = array<i64: 2, 32, 96>}, {pipeline_mode = #tpu.pipeline_mode<synchronous>, transform_indices = @transform_22, window_bounds = array<i64: 2, 96>}, {pipeline_mode = #tpu.pipeline_mode<synchronous>, transform_indices = @transform_23, window_bounds = array<i64: 2, 96>}, {pipeline_mode = #tpu.pipeline_mode<synchronous>, transform_indices = @transform_24, window_bounds = array<i64: 64, 3>}, {pipeline_mode = #tpu.pipeline_mode<synchronous>, transform_indices = @transform_25, window_bounds = array<i64: 1, 3>}, {transform_indices = @transform_26, window_bounds = array<i64: 2, 3>}]} {
    %c0 = arith.constant 0 : index
    %c0_0 = arith.constant 0 : index
    %c0_1 = arith.constant 0 : index
    %0 = vector.load %arg3[%c0, %c0_0, %c0_1] : memref<2x4x32xf32, #tpu.memory_space<vmem>>, vector<2x4x32xf32>
    %cst = arith.constant dense<0.000000e+00> : vector<2x32xf32>
    %1 = vector.multi_reduction <add>, %0, %cst [1] : vector<2x4x32xf32> to vector<2x32xf32>
    %c0_2 = arith.constant 0 : index
    %c0_3 = arith.constant 0 : index
    %2 = vector.load %arg4[%c0_2, %c0_3] : memref<2x1xf32, #tpu.memory_space<vmem>>, vector<2x1xf32>
    %3 = vector.broadcast %2 : vector<2x1xf32> to vector<2x32xf32>
    %4 = arith.mulf %1, %3 : vector<2x32xf32>
    %c0_4 = arith.constant 0 : index
    %c0_5 = arith.constant 0 : index
    %c0_6 = arith.constant 0 : index
    %5 = vector.load %arg1[%c0_4, %c0_5, %c0_6] : memref<2x8x32xbf16, #tpu.memory_space<vmem>>, vector<2x8x32xbf16>
    %c0_7 = arith.constant 0 : index
    %c0_8 = arith.constant 0 : index
    %6 = vector.load %arg5[%c0_7, %c0_8] : memref<32x64xbf16, #tpu.memory_space<vmem>>, vector<32x64xbf16>
    "tpu.trace_start"() <{level = 10 : i32, message = "btd,de->bte"}> : () -> ()
    %cst_9 = arith.constant dense<0.000000e+00> : vector<2x8x64xf32>
    %7 = tpu.matmul %5, %6, %cst_9 {dimension_numbers = #tpu.dot_dimension_numbers<[2], [0], [0, 1], [1], [0, 0, 0, 1, 1, 1], [], []>} : vector<2x8x32xbf16>, vector<32x64xbf16>, vector<2x8x64xf32> -> vector<2x8x64xf32>
    "tpu.trace_stop"() : () -> ()
    %c0_10 = arith.constant 0 : index
    %c0_11 = arith.constant 0 : index
    %8 = vector.load %arg6[%c0_10, %c0_11] : memref<1x64xf32, #tpu.memory_space<vmem>>, vector<1x64xf32>
    %9 = vector.shape_cast %8 : vector<1x64xf32> to vector<1x1x64xf32>
    %10 = vector.broadcast %9 : vector<1x1x64xf32> to vector<2x8x64xf32>
    %11 = arith.addf %7, %10 : vector<2x8x64xf32>
    %c0_12 = arith.constant 0 : index
    %c0_13 = arith.constant 0 : index
    %12 = vector.load %arg7[%c0_12, %c0_13] : memref<1x64xf32, #tpu.memory_space<vmem>>, vector<1x64xf32>
    %13 = vector.shape_cast %12 : vector<1x64xf32> to vector<1x1x64xf32>
    %14 = vector.broadcast %13 : vector<1x1x64xf32> to vector<2x8x64xf32>
    %15 = arith.mulf %11, %14 : vector<2x8x64xf32>
    %16 = vector.extract_strided_slice %15 {offsets = [0, 0, 0], sizes = [2, 8, 32], strides = [1, 1, 1]} : vector<2x8x64xf32> to vector<2x8x32xf32>
    %cst_14 = arith.constant dense<0.000000e+00> : vector<2x8xf32>
    %17 = vector.multi_reduction <add>, %16, %cst_14 [2] : vector<2x8x32xf32> to vector<2x8xf32>
    %18 = vector.extract_strided_slice %15 {offsets = [0, 0, 32], sizes = [2, 8, 32], strides = [1, 1, 1]} : vector<2x8x64xf32> to vector<2x8x32xf32>
    %cst_15 = arith.constant dense<0.000000e+00> : vector<2x8xf32>
    %19 = vector.multi_reduction <add>, %18, %cst_15 [2] : vector<2x8x32xf32> to vector<2x8xf32>
    %20 = arith.truncf %11 : vector<2x8x64xf32> to vector<2x8x64xbf16>
    %c0_16 = arith.constant 0 : index
    %c0_17 = arith.constant 0 : index
    %c0_18 = arith.constant 0 : index
    %21 = vector.load %arg2[%c0_16, %c0_17, %c0_18] : memref<2x3x32xbf16, #tpu.memory_space<vmem>>, vector<2x3x32xbf16>
    %c0_19 = arith.constant 0 : index
    %c0_20 = arith.constant 0 : index
    %22 = vector.load %arg8[%c0_19, %c0_20] : memref<32x64xbf16, #tpu.memory_space<vmem>>, vector<32x64xbf16>
    "tpu.trace_start"() <{level = 10 : i32, message = "btd,de->bte"}> : () -> ()
    %cst_21 = arith.constant dense<0.000000e+00> : vector<2x3x64xf32>
    %23 = tpu.matmul %21, %22, %cst_21 {dimension_numbers = #tpu.dot_dimension_numbers<[2], [0], [0, 1], [1], [0, 0, 0, 1, 1, 1], [], []>} : vector<2x3x32xbf16>, vector<32x64xbf16>, vector<2x3x64xf32> -> vector<2x3x64xf32>
    "tpu.trace_stop"() : () -> ()
    %c0_22 = arith.constant 0 : index
    %c0_23 = arith.constant 0 : index
    %24 = vector.load %arg9[%c0_22, %c0_23] : memref<1x64xf32, #tpu.memory_space<vmem>>, vector<1x64xf32>
    %25 = vector.shape_cast %24 : vector<1x64xf32> to vector<1x1x64xf32>
    %26 = vector.broadcast %25 : vector<1x1x64xf32> to vector<2x3x64xf32>
    %27 = arith.addf %23, %26 : vector<2x3x64xf32>
    %c0_24 = arith.constant 0 : index
    %c0_25 = arith.constant 0 : index
    %28 = vector.load %arg10[%c0_24, %c0_25] : memref<1x64xf32, #tpu.memory_space<vmem>>, vector<1x64xf32>
    %29 = vector.shape_cast %28 : vector<1x64xf32> to vector<1x1x64xf32>
    %30 = vector.broadcast %29 : vector<1x1x64xf32> to vector<2x3x64xf32>
    %31 = arith.mulf %27, %30 : vector<2x3x64xf32>
    %32 = vector.extract_strided_slice %31 {offsets = [0, 0, 0], sizes = [2, 3, 32], strides = [1, 1, 1]} : vector<2x3x64xf32> to vector<2x3x32xf32>
    %cst_26 = arith.constant dense<0.000000e+00> : vector<2x3xf32>
    %33 = vector.multi_reduction <add>, %32, %cst_26 [2] : vector<2x3x32xf32> to vector<2x3xf32>
    %34 = vector.extract_strided_slice %31 {offsets = [0, 0, 32], sizes = [2, 3, 32], strides = [1, 1, 1]} : vector<2x3x64xf32> to vector<2x3x32xf32>
    %cst_27 = arith.constant dense<0.000000e+00> : vector<2x3xf32>
    %35 = vector.multi_reduction <add>, %34, %cst_27 [2] : vector<2x3x32xf32> to vector<2x3xf32>
    %36 = arith.truncf %27 : vector<2x3x64xf32> to vector<2x3x64xbf16>
    %c0_28 = arith.constant 0 : index
    %c0_29 = arith.constant 0 : index
    %37 = vector.load %arg11[%c0_28, %c0_29] : memref<32x64xbf16, #tpu.memory_space<vmem>>, vector<32x64xbf16>
    %c0_30 = arith.constant 0 : index
    %c0_31 = arith.constant 0 : index
    %38 = vector.load %arg12[%c0_30, %c0_31] : memref<1x64xf32, #tpu.memory_space<vmem>>, vector<1x64xf32>
    %c0_32 = arith.constant 0 : index
    %c0_33 = arith.constant 0 : index
    %39 = vector.load %arg13[%c0_32, %c0_33] : memref<1x64xf32, #tpu.memory_space<vmem>>, vector<1x64xf32>
    %c0_34 = arith.constant 0 : index
    %c0_35 = arith.constant 0 : index
    %40 = vector.load %arg14[%c0_34, %c0_35] : memref<32x64xbf16, #tpu.memory_space<vmem>>, vector<32x64xbf16>
    %c0_36 = arith.constant 0 : index
    %c0_37 = arith.constant 0 : index
    %41 = vector.load %arg15[%c0_36, %c0_37] : memref<1x64xf32, #tpu.memory_space<vmem>>, vector<1x64xf32>
    %c0_38 = arith.constant 0 : index
    %c0_39 = arith.constant 0 : index
    %42 = vector.load %arg16[%c0_38, %c0_39] : memref<1x64xf32, #tpu.memory_space<vmem>>, vector<1x64xf32>
    %c0_40 = arith.constant 0 : index
    %c0_41 = arith.constant 0 : index
    %43 = vector.load %arg17[%c0_40, %c0_41] : memref<64x32xbf16, #tpu.memory_space<vmem>>, vector<64x32xbf16>
    %c0_42 = arith.constant 0 : index
    %c0_43 = arith.constant 0 : index
    %44 = vector.load %arg18[%c0_42, %c0_43] : memref<1x32xf32, #tpu.memory_space<vmem>>, vector<1x32xf32>
    %c0_44 = arith.constant 0 : index
    %c0_45 = arith.constant 0 : index
    %45 = vector.load %arg19[%c0_44, %c0_45] : memref<64x32xbf16, #tpu.memory_space<vmem>>, vector<64x32xbf16>
    %c0_46 = arith.constant 0 : index
    %c0_47 = arith.constant 0 : index
    %46 = vector.load %arg20[%c0_46, %c0_47] : memref<1x32xf32, #tpu.memory_space<vmem>>, vector<1x32xf32>
    %c0_48 = arith.constant 0 : index
    %c0_49 = arith.constant 0 : index
    %c0_50 = arith.constant 0 : index
    %47 = vector.load %arg21[%c0_48, %c0_49, %c0_50] : memref<2x32x96xbf16, #tpu.memory_space<vmem>>, vector<2x32x96xbf16>
    %c0_51 = arith.constant 0 : index
    %c0_52 = arith.constant 0 : index
    %c0_53 = arith.constant 0 : index
    %48 = vector.load %arg22[%c0_51, %c0_52, %c0_53] : memref<2x32x96xbf16, #tpu.memory_space<vmem>>, vector<2x32x96xbf16>
    %c0_54 = arith.constant 0 : index
    %c0_55 = arith.constant 0 : index
    %49 = vector.load %arg23[%c0_54, %c0_55] : memref<2x96xf32, #tpu.memory_space<vmem>>, vector<2x96xf32>
    %c0_56 = arith.constant 0 : index
    %c0_57 = arith.constant 0 : index
    %50 = vector.load %arg24[%c0_56, %c0_57] : memref<2x96xf32, #tpu.memory_space<vmem>>, vector<2x96xf32>
    %51 = arith.truncf %4 : vector<2x32xf32> to vector<2x32xbf16>
    %cst_58 = arith.constant dense<0.000000e+00> : vector<2x64xf32>
    %52 = tpu.matmul %51, %37, %cst_58 {dimension_numbers = #tpu.dot_dimension_numbers<[1], [0], [0], [1], [0, 0, 1, 1], [], []>} : vector<2x32xbf16>, vector<32x64xbf16>, vector<2x64xf32> -> vector<2x64xf32>
    %53 = vector.broadcast %38 : vector<1x64xf32> to vector<2x64xf32>
    %54 = arith.addf %52, %53 : vector<2x64xf32>
    %55 = arith.truncf %4 : vector<2x32xf32> to vector<2x32xbf16>
    %cst_59 = arith.constant dense<0.000000e+00> : vector<2x64xf32>
    %56 = tpu.matmul %55, %40, %cst_59 {dimension_numbers = #tpu.dot_dimension_numbers<[1], [0], [0], [1], [0, 0, 1, 1], [], []>} : vector<2x32xbf16>, vector<32x64xbf16>, vector<2x64xf32> -> vector<2x64xf32>
    %57 = vector.broadcast %41 : vector<1x64xf32> to vector<2x64xf32>
    %58 = arith.addf %56, %57 : vector<2x64xf32>
    %59 = vector.broadcast %39 : vector<1x64xf32> to vector<2x64xf32>
    %60 = arith.mulf %54, %59 : vector<2x64xf32>
    %61 = vector.broadcast %42 : vector<1x64xf32> to vector<2x64xf32>
    %62 = arith.mulf %58, %61 : vector<2x64xf32>
    %63 = vector.extract_strided_slice %60 {offsets = [0, 0], sizes = [2, 32], strides = [1, 1]} : vector<2x64xf32> to vector<2x32xf32>
    %cst_60 = arith.constant dense<0.000000e+00> : vector<2xf32>
    %64 = vector.multi_reduction <add>, %63, %cst_60 [1] : vector<2x32xf32> to vector<2xf32>
    %65 = vector.shape_cast %64 : vector<2xf32> to vector<2x1xf32>
    %66 = vector.extract_strided_slice %60 {offsets = [0, 32], sizes = [2, 32], strides = [1, 1]} : vector<2x64xf32> to vector<2x32xf32>
    %cst_61 = arith.constant dense<0.000000e+00> : vector<2xf32>
    %67 = vector.multi_reduction <add>, %66, %cst_61 [1] : vector<2x32xf32> to vector<2xf32>
    %68 = vector.shape_cast %67 : vector<2xf32> to vector<2x1xf32>
    %69 = vector.extract_strided_slice %62 {offsets = [0, 0], sizes = [2, 32], strides = [1, 1]} : vector<2x64xf32> to vector<2x32xf32>
    %cst_62 = arith.constant dense<0.000000e+00> : vector<2xf32>
    %70 = vector.multi_reduction <add>, %69, %cst_62 [1] : vector<2x32xf32> to vector<2xf32>
    %71 = vector.shape_cast %70 : vector<2xf32> to vector<2x1xf32>
    %72 = vector.extract_strided_slice %62 {offsets = [0, 32], sizes = [2, 32], strides = [1, 1]} : vector<2x64xf32> to vector<2x32xf32>
    %cst_63 = arith.constant dense<0.000000e+00> : vector<2xf32>
    %73 = vector.multi_reduction <add>, %72, %cst_63 [1] : vector<2x32xf32> to vector<2xf32>
    %74 = vector.shape_cast %73 : vector<2xf32> to vector<2x1xf32>
    %75 = vector.extract_strided_slice %20 {offsets = [0, 0, 0], sizes = [2, 8, 32], strides = [1, 1, 1]} : vector<2x8x64xbf16> to vector<2x8x32xbf16>
    %76 = vector.broadcast %65 : vector<2x1xf32> to vector<2x8xf32>
    %77 = arith.addf %17, %76 : vector<2x8xf32>
    %78 = math.tanh %77 : vector<2x8xf32>
    %cst_64 = arith.constant dense<0xFF800000> : vector<2xf32>
    %79 = vector.multi_reduction <maximumf>, %78, %cst_64 [1] : vector<2x8xf32> to vector<2xf32>
    %80 = vector.shape_cast %79 : vector<2xf32> to vector<2x1xf32>
    %81 = vector.broadcast %80 : vector<2x1xf32> to vector<2x8xf32>
    %82 = arith.subf %78, %81 : vector<2x8xf32>
    %83 = math.exp %82 : vector<2x8xf32>
    %cst_65 = arith.constant dense<0.000000e+00> : vector<2xf32>
    %84 = vector.multi_reduction <add>, %83, %cst_65 [1] : vector<2x8xf32> to vector<2xf32>
    %85 = vector.shape_cast %84 : vector<2xf32> to vector<2x1xf32>
    %86 = vector.broadcast %85 : vector<2x1xf32> to vector<2x8xf32>
    %87 = arith.divf %83, %86 : vector<2x8xf32>
    %88 = vector.shape_cast %87 : vector<2x8xf32> to vector<2x8x1xf32>
    %89 = arith.extf %75 : vector<2x8x32xbf16> to vector<2x8x32xf32>
    %90 = vector.broadcast %88 : vector<2x8x1xf32> to vector<2x8x32xf32>
    %91 = arith.mulf %90, %89 : vector<2x8x32xf32>
    %cst_66 = arith.constant dense<0.000000e+00> : vector<2x32xf32>
    %92 = vector.multi_reduction <add>, %91, %cst_66 [1] : vector<2x8x32xf32> to vector<2x32xf32>
    %93 = vector.extract_strided_slice %20 {offsets = [0, 0, 32], sizes = [2, 8, 32], strides = [1, 1, 1]} : vector<2x8x64xbf16> to vector<2x8x32xbf16>
    %94 = vector.broadcast %71 : vector<2x1xf32> to vector<2x8xf32>
    %95 = arith.addf %19, %94 : vector<2x8xf32>
    %96 = math.tanh %95 : vector<2x8xf32>
    %cst_67 = arith.constant dense<0xFF800000> : vector<2xf32>
    %97 = vector.multi_reduction <maximumf>, %96, %cst_67 [1] : vector<2x8xf32> to vector<2xf32>
    %98 = vector.shape_cast %97 : vector<2xf32> to vector<2x1xf32>
    %99 = vector.broadcast %98 : vector<2x1xf32> to vector<2x8xf32>
    %100 = arith.subf %96, %99 : vector<2x8xf32>
    %101 = math.exp %100 : vector<2x8xf32>
    %cst_68 = arith.constant dense<0.000000e+00> : vector<2xf32>
    %102 = vector.multi_reduction <add>, %101, %cst_68 [1] : vector<2x8xf32> to vector<2xf32>
    %103 = vector.shape_cast %102 : vector<2xf32> to vector<2x1xf32>
    %104 = vector.broadcast %103 : vector<2x1xf32> to vector<2x8xf32>
    %105 = arith.divf %101, %104 : vector<2x8xf32>
    %106 = vector.shape_cast %105 : vector<2x8xf32> to vector<2x8x1xf32>
    %107 = arith.extf %93 : vector<2x8x32xbf16> to vector<2x8x32xf32>
    %108 = vector.broadcast %106 : vector<2x8x1xf32> to vector<2x8x32xf32>
    %109 = arith.mulf %108, %107 : vector<2x8x32xf32>
    %cst_69 = arith.constant dense<0.000000e+00> : vector<2x32xf32>
    %110 = vector.multi_reduction <add>, %109, %cst_69 [1] : vector<2x8x32xf32> to vector<2x32xf32>
    %111 = vector.extract_strided_slice %36 {offsets = [0, 0, 0], sizes = [2, 3, 32], strides = [1, 1, 1]} : vector<2x3x64xbf16> to vector<2x3x32xbf16>
    %112 = vector.broadcast %74 : vector<2x1xf32> to vector<2x3xf32>
    %113 = arith.addf %33, %112 : vector<2x3xf32>
    %114 = math.tanh %113 : vector<2x3xf32>
    %cst_70 = arith.constant dense<0xFF800000> : vector<2xf32>
    %115 = vector.multi_reduction <maximumf>, %114, %cst_70 [1] : vector<2x3xf32> to vector<2xf32>
    %116 = vector.shape_cast %115 : vector<2xf32> to vector<2x1xf32>
    %117 = vector.broadcast %116 : vector<2x1xf32> to vector<2x3xf32>
    %118 = arith.subf %114, %117 : vector<2x3xf32>
    %119 = math.exp %118 : vector<2x3xf32>
    %cst_71 = arith.constant dense<0.000000e+00> : vector<2xf32>
    %120 = vector.multi_reduction <add>, %119, %cst_71 [1] : vector<2x3xf32> to vector<2xf32>
    %121 = vector.shape_cast %120 : vector<2xf32> to vector<2x1xf32>
    %122 = vector.broadcast %121 : vector<2x1xf32> to vector<2x3xf32>
    %123 = arith.divf %119, %122 : vector<2x3xf32>
    %124 = vector.shape_cast %123 : vector<2x3xf32> to vector<2x3x1xf32>
    %125 = arith.extf %111 : vector<2x3x32xbf16> to vector<2x3x32xf32>
    %126 = vector.broadcast %124 : vector<2x3x1xf32> to vector<2x3x32xf32>
    %127 = arith.mulf %126, %125 : vector<2x3x32xf32>
    %cst_72 = arith.constant dense<0.000000e+00> : vector<2x32xf32>
    %128 = vector.multi_reduction <add>, %127, %cst_72 [1] : vector<2x3x32xf32> to vector<2x32xf32>
    %129 = vector.extract_strided_slice %36 {offsets = [0, 0, 32], sizes = [2, 3, 32], strides = [1, 1, 1]} : vector<2x3x64xbf16> to vector<2x3x32xbf16>
    %130 = vector.broadcast %68 : vector<2x1xf32> to vector<2x3xf32>
    %131 = arith.addf %35, %130 : vector<2x3xf32>
    %132 = math.tanh %131 : vector<2x3xf32>
    %cst_73 = arith.constant dense<0xFF800000> : vector<2xf32>
    %133 = vector.multi_reduction <maximumf>, %132, %cst_73 [1] : vector<2x3xf32> to vector<2xf32>
    %134 = vector.shape_cast %133 : vector<2xf32> to vector<2x1xf32>
    %135 = vector.broadcast %134 : vector<2x1xf32> to vector<2x3xf32>
    %136 = arith.subf %132, %135 : vector<2x3xf32>
    %137 = math.exp %136 : vector<2x3xf32>
    %cst_74 = arith.constant dense<0.000000e+00> : vector<2xf32>
    %138 = vector.multi_reduction <add>, %137, %cst_74 [1] : vector<2x3xf32> to vector<2xf32>
    %139 = vector.shape_cast %138 : vector<2xf32> to vector<2x1xf32>
    %140 = vector.broadcast %139 : vector<2x1xf32> to vector<2x3xf32>
    %141 = arith.divf %137, %140 : vector<2x3xf32>
    %142 = vector.shape_cast %141 : vector<2x3xf32> to vector<2x3x1xf32>
    %143 = arith.extf %129 : vector<2x3x32xbf16> to vector<2x3x32xf32>
    %144 = vector.broadcast %142 : vector<2x3x1xf32> to vector<2x3x32xf32>
    %145 = arith.mulf %144, %143 : vector<2x3x32xf32>
    %cst_75 = arith.constant dense<0.000000e+00> : vector<2x32xf32>
    %146 = vector.multi_reduction <add>, %145, %cst_75 [1] : vector<2x3x32xf32> to vector<2x32xf32>
    %147 = tpu.concatenate %92, %110 in 1 : vector<2x32xf32>, vector<2x32xf32> -> vector<2x64xf32>
    %148 = arith.truncf %147 : vector<2x64xf32> to vector<2x64xbf16>
    %149 = tpu.concatenate %128, %146 in 1 : vector<2x32xf32>, vector<2x32xf32> -> vector<2x64xf32>
    %150 = arith.truncf %149 : vector<2x64xf32> to vector<2x64xbf16>
    %cst_76 = arith.constant dense<0.000000e+00> : vector<2x32xf32>
    %151 = tpu.matmul %148, %43, %cst_76 {dimension_numbers = #tpu.dot_dimension_numbers<[1], [0], [0], [1], [0, 0, 1, 1], [], []>} : vector<2x64xbf16>, vector<64x32xbf16>, vector<2x32xf32> -> vector<2x32xf32>
    %152 = vector.broadcast %44 : vector<1x32xf32> to vector<2x32xf32>
    %153 = arith.addf %151, %152 : vector<2x32xf32>
    %cst_77 = arith.constant 5.000000e-01 : f32
    %154 = vector.broadcast %cst_77 : f32 to vector<2x32xf32>
    %155 = arith.mulf %153, %154 : vector<2x32xf32>
    %cst_78 = arith.constant dense<0.000000e+00> : vector<2x32xf32>
    %156 = tpu.matmul %150, %45, %cst_78 {dimension_numbers = #tpu.dot_dimension_numbers<[1], [0], [0], [1], [0, 0, 1, 1], [], []>} : vector<2x64xbf16>, vector<64x32xbf16>, vector<2x32xf32> -> vector<2x32xf32>
    %157 = vector.broadcast %46 : vector<1x32xf32> to vector<2x32xf32>
    %158 = arith.addf %156, %157 : vector<2x32xf32>
    %cst_79 = arith.constant 5.000000e-01 : f32
    %159 = vector.broadcast %cst_79 : f32 to vector<2x32xf32>
    %160 = arith.mulf %158, %159 : vector<2x32xf32>
    %161 = arith.truncf %155 : vector<2x32xf32> to vector<2x32xbf16>
    %162 = vector.extract_strided_slice %47 {offsets = [0, 0, 0], sizes = [1, 32, 96], strides = [1, 1, 1]} : vector<2x32x96xbf16> to vector<1x32x96xbf16>
    %163 = vector.shape_cast %162 : vector<1x32x96xbf16> to vector<32x96xbf16>
    %cst_80 = arith.constant dense<0.000000e+00> : vector<2x96xf32>
    %164 = tpu.matmul %161, %163, %cst_80 {dimension_numbers = #tpu.dot_dimension_numbers<[1], [0], [0], [1], [0, 0, 1, 1], [], []>} : vector<2x32xbf16>, vector<32x96xbf16>, vector<2x96xf32> -> vector<2x96xf32>
    %165 = vector.extract_strided_slice %49 {offsets = [0, 0], sizes = [1, 96], strides = [1, 1]} : vector<2x96xf32> to vector<1x96xf32>
    %166 = vector.shape_cast %165 : vector<1x96xf32> to vector<96xf32>
    %167 = vector.shape_cast %166 : vector<96xf32> to vector<1x96xf32>
    %168 = vector.broadcast %167 : vector<1x96xf32> to vector<2x96xf32>
    %169 = arith.addf %164, %168 : vector<2x96xf32>
    %170 = arith.truncf %4 : vector<2x32xf32> to vector<2x32xbf16>
    %171 = vector.extract_strided_slice %48 {offsets = [0, 0, 0], sizes = [1, 32, 96], strides = [1, 1, 1]} : vector<2x32x96xbf16> to vector<1x32x96xbf16>
    %172 = vector.shape_cast %171 : vector<1x32x96xbf16> to vector<32x96xbf16>
    %cst_81 = arith.constant dense<0.000000e+00> : vector<2x96xf32>
    %173 = tpu.matmul %170, %172, %cst_81 {dimension_numbers = #tpu.dot_dimension_numbers<[1], [0], [0], [1], [0, 0, 1, 1], [], []>} : vector<2x32xbf16>, vector<32x96xbf16>, vector<2x96xf32> -> vector<2x96xf32>
    %174 = vector.extract_strided_slice %50 {offsets = [0, 0], sizes = [1, 96], strides = [1, 1]} : vector<2x96xf32> to vector<1x96xf32>
    %175 = vector.shape_cast %174 : vector<1x96xf32> to vector<96xf32>
    %176 = vector.shape_cast %175 : vector<96xf32> to vector<1x96xf32>
    %177 = vector.broadcast %176 : vector<1x96xf32> to vector<2x96xf32>
    %178 = arith.addf %173, %177 : vector<2x96xf32>
    %179 = vector.extract_strided_slice %169 {offsets = [0, 0], sizes = [2, 32], strides = [1, 1]} : vector<2x96xf32> to vector<2x32xf32>
    %180 = vector.extract_strided_slice %178 {offsets = [0, 0], sizes = [2, 32], strides = [1, 1]} : vector<2x96xf32> to vector<2x32xf32>
    %181 = arith.addf %179, %180 : vector<2x32xf32>
    %182 = arith.negf %181 : vector<2x32xf32>
    %183 = math.exp %182 : vector<2x32xf32>
    %cst_82 = arith.constant 1.000000e+00 : f32
    %184 = vector.broadcast %cst_82 : f32 to vector<2x32xf32>
    %185 = arith.addf %184, %183 : vector<2x32xf32>
    %186 = arith.divf %184, %185 : vector<2x32xf32>
    %187 = vector.extract_strided_slice %169 {offsets = [0, 32], sizes = [2, 32], strides = [1, 1]} : vector<2x96xf32> to vector<2x32xf32>
    %188 = vector.extract_strided_slice %178 {offsets = [0, 32], sizes = [2, 32], strides = [1, 1]} : vector<2x96xf32> to vector<2x32xf32>
    %189 = arith.addf %187, %188 : vector<2x32xf32>
    %190 = arith.negf %189 : vector<2x32xf32>
    %191 = math.exp %190 : vector<2x32xf32>
    %cst_83 = arith.constant 1.000000e+00 : f32
    %192 = vector.broadcast %cst_83 : f32 to vector<2x32xf32>
    %193 = arith.addf %192, %191 : vector<2x32xf32>
    %194 = arith.divf %192, %193 : vector<2x32xf32>
    %195 = vector.extract_strided_slice %169 {offsets = [0, 64], sizes = [2, 32], strides = [1, 1]} : vector<2x96xf32> to vector<2x32xf32>
    %196 = vector.extract_strided_slice %178 {offsets = [0, 64], sizes = [2, 32], strides = [1, 1]} : vector<2x96xf32> to vector<2x32xf32>
    %197 = arith.mulf %186, %196 : vector<2x32xf32>
    %198 = arith.addf %195, %197 : vector<2x32xf32>
    %199 = math.tanh %198 : vector<2x32xf32>
    %cst_84 = arith.constant 1.000000e+00 : f32
    %200 = vector.broadcast %cst_84 : f32 to vector<2x32xf32>
    %201 = arith.subf %200, %194 : vector<2x32xf32>
    %202 = arith.mulf %201, %199 : vector<2x32xf32>
    %203 = arith.mulf %194, %4 : vector<2x32xf32>
    %204 = arith.addf %202, %203 : vector<2x32xf32>
    %205 = arith.truncf %160 : vector<2x32xf32> to vector<2x32xbf16>
    %206 = vector.extract_strided_slice %47 {offsets = [1, 0, 0], sizes = [1, 32, 96], strides = [1, 1, 1]} : vector<2x32x96xbf16> to vector<1x32x96xbf16>
    %207 = vector.shape_cast %206 : vector<1x32x96xbf16> to vector<32x96xbf16>
    %cst_85 = arith.constant dense<0.000000e+00> : vector<2x96xf32>
    %208 = tpu.matmul %205, %207, %cst_85 {dimension_numbers = #tpu.dot_dimension_numbers<[1], [0], [0], [1], [0, 0, 1, 1], [], []>} : vector<2x32xbf16>, vector<32x96xbf16>, vector<2x96xf32> -> vector<2x96xf32>
    %209 = vector.extract_strided_slice %49 {offsets = [1, 0], sizes = [1, 96], strides = [1, 1]} : vector<2x96xf32> to vector<1x96xf32>
    %210 = vector.shape_cast %209 : vector<1x96xf32> to vector<96xf32>
    %211 = vector.shape_cast %210 : vector<96xf32> to vector<1x96xf32>
    %212 = vector.broadcast %211 : vector<1x96xf32> to vector<2x96xf32>
    %213 = arith.addf %208, %212 : vector<2x96xf32>
    %214 = arith.truncf %4 : vector<2x32xf32> to vector<2x32xbf16>
    %215 = vector.extract_strided_slice %48 {offsets = [1, 0, 0], sizes = [1, 32, 96], strides = [1, 1, 1]} : vector<2x32x96xbf16> to vector<1x32x96xbf16>
    %216 = vector.shape_cast %215 : vector<1x32x96xbf16> to vector<32x96xbf16>
    %cst_86 = arith.constant dense<0.000000e+00> : vector<2x96xf32>
    %217 = tpu.matmul %214, %216, %cst_86 {dimension_numbers = #tpu.dot_dimension_numbers<[1], [0], [0], [1], [0, 0, 1, 1], [], []>} : vector<2x32xbf16>, vector<32x96xbf16>, vector<2x96xf32> -> vector<2x96xf32>
    %218 = vector.extract_strided_slice %50 {offsets = [1, 0], sizes = [1, 96], strides = [1, 1]} : vector<2x96xf32> to vector<1x96xf32>
    %219 = vector.shape_cast %218 : vector<1x96xf32> to vector<96xf32>
    %220 = vector.shape_cast %219 : vector<96xf32> to vector<1x96xf32>
    %221 = vector.broadcast %220 : vector<1x96xf32> to vector<2x96xf32>
    %222 = arith.addf %217, %221 : vector<2x96xf32>
    %223 = vector.extract_strided_slice %213 {offsets = [0, 0], sizes = [2, 32], strides = [1, 1]} : vector<2x96xf32> to vector<2x32xf32>
    %224 = vector.extract_strided_slice %222 {offsets = [0, 0], sizes = [2, 32], strides = [1, 1]} : vector<2x96xf32> to vector<2x32xf32>
    %225 = arith.addf %223, %224 : vector<2x32xf32>
    %226 = arith.negf %225 : vector<2x32xf32>
    %227 = math.exp %226 : vector<2x32xf32>
    %cst_87 = arith.constant 1.000000e+00 : f32
    %228 = vector.broadcast %cst_87 : f32 to vector<2x32xf32>
    %229 = arith.addf %228, %227 : vector<2x32xf32>
    %230 = arith.divf %228, %229 : vector<2x32xf32>
    %231 = vector.extract_strided_slice %213 {offsets = [0, 32], sizes = [2, 32], strides = [1, 1]} : vector<2x96xf32> to vector<2x32xf32>
    %232 = vector.extract_strided_slice %222 {offsets = [0, 32], sizes = [2, 32], strides = [1, 1]} : vector<2x96xf32> to vector<2x32xf32>
    %233 = arith.addf %231, %232 : vector<2x32xf32>
    %234 = arith.negf %233 : vector<2x32xf32>
    %235 = math.exp %234 : vector<2x32xf32>
    %cst_88 = arith.constant 1.000000e+00 : f32
    %236 = vector.broadcast %cst_88 : f32 to vector<2x32xf32>
    %237 = arith.addf %236, %235 : vector<2x32xf32>
    %238 = arith.divf %236, %237 : vector<2x32xf32>
    %239 = vector.extract_strided_slice %213 {offsets = [0, 64], sizes = [2, 32], strides = [1, 1]} : vector<2x96xf32> to vector<2x32xf32>
    %240 = vector.extract_strided_slice %222 {offsets = [0, 64], sizes = [2, 32], strides = [1, 1]} : vector<2x96xf32> to vector<2x32xf32>
    %241 = arith.mulf %230, %240 : vector<2x32xf32>
    %242 = arith.addf %239, %241 : vector<2x32xf32>
    %243 = math.tanh %242 : vector<2x32xf32>
    %cst_89 = arith.constant 1.000000e+00 : f32
    %244 = vector.broadcast %cst_89 : f32 to vector<2x32xf32>
    %245 = arith.subf %244, %238 : vector<2x32xf32>
    %246 = arith.mulf %245, %243 : vector<2x32xf32>
    %247 = arith.mulf %238, %4 : vector<2x32xf32>
    %248 = arith.addf %246, %247 : vector<2x32xf32>
    %249 = arith.truncf %204 : vector<2x32xf32> to vector<2x32xbf16>
    %cst_90 = arith.constant dense<0.000000e+00> : vector<2x64xf32>
    %250 = tpu.matmul %249, %37, %cst_90 {dimension_numbers = #tpu.dot_dimension_numbers<[1], [0], [0], [1], [0, 0, 1, 1], [], []>} : vector<2x32xbf16>, vector<32x64xbf16>, vector<2x64xf32> -> vector<2x64xf32>
    %251 = vector.broadcast %38 : vector<1x64xf32> to vector<2x64xf32>
    %252 = arith.addf %250, %251 : vector<2x64xf32>
    %253 = arith.truncf %248 : vector<2x32xf32> to vector<2x32xbf16>
    %cst_91 = arith.constant dense<0.000000e+00> : vector<2x64xf32>
    %254 = tpu.matmul %253, %40, %cst_91 {dimension_numbers = #tpu.dot_dimension_numbers<[1], [0], [0], [1], [0, 0, 1, 1], [], []>} : vector<2x32xbf16>, vector<32x64xbf16>, vector<2x64xf32> -> vector<2x64xf32>
    %255 = vector.broadcast %41 : vector<1x64xf32> to vector<2x64xf32>
    %256 = arith.addf %254, %255 : vector<2x64xf32>
    %257 = vector.broadcast %39 : vector<1x64xf32> to vector<2x64xf32>
    %258 = arith.mulf %252, %257 : vector<2x64xf32>
    %259 = vector.broadcast %42 : vector<1x64xf32> to vector<2x64xf32>
    %260 = arith.mulf %256, %259 : vector<2x64xf32>
    %261 = vector.extract_strided_slice %258 {offsets = [0, 0], sizes = [2, 32], strides = [1, 1]} : vector<2x64xf32> to vector<2x32xf32>
    %cst_92 = arith.constant dense<0.000000e+00> : vector<2xf32>
    %262 = vector.multi_reduction <add>, %261, %cst_92 [1] : vector<2x32xf32> to vector<2xf32>
    %263 = vector.shape_cast %262 : vector<2xf32> to vector<2x1xf32>
    %264 = vector.extract_strided_slice %258 {offsets = [0, 32], sizes = [2, 32], strides = [1, 1]} : vector<2x64xf32> to vector<2x32xf32>
    %cst_93 = arith.constant dense<0.000000e+00> : vector<2xf32>
    %265 = vector.multi_reduction <add>, %264, %cst_93 [1] : vector<2x32xf32> to vector<2xf32>
    %266 = vector.shape_cast %265 : vector<2xf32> to vector<2x1xf32>
    %267 = vector.extract_strided_slice %260 {offsets = [0, 0], sizes = [2, 32], strides = [1, 1]} : vector<2x64xf32> to vector<2x32xf32>
    %cst_94 = arith.constant dense<0.000000e+00> : vector<2xf32>
    %268 = vector.multi_reduction <add>, %267, %cst_94 [1] : vector<2x32xf32> to vector<2xf32>
    %269 = vector.shape_cast %268 : vector<2xf32> to vector<2x1xf32>
    %270 = vector.extract_strided_slice %260 {offsets = [0, 32], sizes = [2, 32], strides = [1, 1]} : vector<2x64xf32> to vector<2x32xf32>
    %cst_95 = arith.constant dense<0.000000e+00> : vector<2xf32>
    %271 = vector.multi_reduction <add>, %270, %cst_95 [1] : vector<2x32xf32> to vector<2xf32>
    %272 = vector.shape_cast %271 : vector<2xf32> to vector<2x1xf32>
    %273 = vector.extract_strided_slice %20 {offsets = [0, 0, 0], sizes = [2, 8, 32], strides = [1, 1, 1]} : vector<2x8x64xbf16> to vector<2x8x32xbf16>
    %274 = vector.broadcast %263 : vector<2x1xf32> to vector<2x8xf32>
    %275 = arith.addf %17, %274 : vector<2x8xf32>
    %276 = math.tanh %275 : vector<2x8xf32>
    %cst_96 = arith.constant dense<0xFF800000> : vector<2xf32>
    %277 = vector.multi_reduction <maximumf>, %276, %cst_96 [1] : vector<2x8xf32> to vector<2xf32>
    %278 = vector.shape_cast %277 : vector<2xf32> to vector<2x1xf32>
    %279 = vector.broadcast %278 : vector<2x1xf32> to vector<2x8xf32>
    %280 = arith.subf %276, %279 : vector<2x8xf32>
    %281 = math.exp %280 : vector<2x8xf32>
    %cst_97 = arith.constant dense<0.000000e+00> : vector<2xf32>
    %282 = vector.multi_reduction <add>, %281, %cst_97 [1] : vector<2x8xf32> to vector<2xf32>
    %283 = vector.shape_cast %282 : vector<2xf32> to vector<2x1xf32>
    %284 = vector.broadcast %283 : vector<2x1xf32> to vector<2x8xf32>
    %285 = arith.divf %281, %284 : vector<2x8xf32>
    %286 = vector.shape_cast %285 : vector<2x8xf32> to vector<2x8x1xf32>
    %287 = arith.extf %273 : vector<2x8x32xbf16> to vector<2x8x32xf32>
    %288 = vector.broadcast %286 : vector<2x8x1xf32> to vector<2x8x32xf32>
    %289 = arith.mulf %288, %287 : vector<2x8x32xf32>
    %cst_98 = arith.constant dense<0.000000e+00> : vector<2x32xf32>
    %290 = vector.multi_reduction <add>, %289, %cst_98 [1] : vector<2x8x32xf32> to vector<2x32xf32>
    %291 = vector.extract_strided_slice %20 {offsets = [0, 0, 32], sizes = [2, 8, 32], strides = [1, 1, 1]} : vector<2x8x64xbf16> to vector<2x8x32xbf16>
    %292 = vector.broadcast %269 : vector<2x1xf32> to vector<2x8xf32>
    %293 = arith.addf %19, %292 : vector<2x8xf32>
    %294 = math.tanh %293 : vector<2x8xf32>
    %cst_99 = arith.constant dense<0xFF800000> : vector<2xf32>
    %295 = vector.multi_reduction <maximumf>, %294, %cst_99 [1] : vector<2x8xf32> to vector<2xf32>
    %296 = vector.shape_cast %295 : vector<2xf32> to vector<2x1xf32>
    %297 = vector.broadcast %296 : vector<2x1xf32> to vector<2x8xf32>
    %298 = arith.subf %294, %297 : vector<2x8xf32>
    %299 = math.exp %298 : vector<2x8xf32>
    %cst_100 = arith.constant dense<0.000000e+00> : vector<2xf32>
    %300 = vector.multi_reduction <add>, %299, %cst_100 [1] : vector<2x8xf32> to vector<2xf32>
    %301 = vector.shape_cast %300 : vector<2xf32> to vector<2x1xf32>
    %302 = vector.broadcast %301 : vector<2x1xf32> to vector<2x8xf32>
    %303 = arith.divf %299, %302 : vector<2x8xf32>
    %304 = vector.shape_cast %303 : vector<2x8xf32> to vector<2x8x1xf32>
    %305 = arith.extf %291 : vector<2x8x32xbf16> to vector<2x8x32xf32>
    %306 = vector.broadcast %304 : vector<2x8x1xf32> to vector<2x8x32xf32>
    %307 = arith.mulf %306, %305 : vector<2x8x32xf32>
    %cst_101 = arith.constant dense<0.000000e+00> : vector<2x32xf32>
    %308 = vector.multi_reduction <add>, %307, %cst_101 [1] : vector<2x8x32xf32> to vector<2x32xf32>
    %309 = vector.extract_strided_slice %36 {offsets = [0, 0, 0], sizes = [2, 3, 32], strides = [1, 1, 1]} : vector<2x3x64xbf16> to vector<2x3x32xbf16>
    %310 = vector.broadcast %272 : vector<2x1xf32> to vector<2x3xf32>
    %311 = arith.addf %33, %310 : vector<2x3xf32>
    %312 = math.tanh %311 : vector<2x3xf32>
    %cst_102 = arith.constant dense<0xFF800000> : vector<2xf32>
    %313 = vector.multi_reduction <maximumf>, %312, %cst_102 [1] : vector<2x3xf32> to vector<2xf32>
    %314 = vector.shape_cast %313 : vector<2xf32> to vector<2x1xf32>
    %315 = vector.broadcast %314 : vector<2x1xf32> to vector<2x3xf32>
    %316 = arith.subf %312, %315 : vector<2x3xf32>
    %317 = math.exp %316 : vector<2x3xf32>
    %cst_103 = arith.constant dense<0.000000e+00> : vector<2xf32>
    %318 = vector.multi_reduction <add>, %317, %cst_103 [1] : vector<2x3xf32> to vector<2xf32>
    %319 = vector.shape_cast %318 : vector<2xf32> to vector<2x1xf32>
    %320 = vector.broadcast %319 : vector<2x1xf32> to vector<2x3xf32>
    %321 = arith.divf %317, %320 : vector<2x3xf32>
    %322 = vector.shape_cast %321 : vector<2x3xf32> to vector<2x3x1xf32>
    %323 = arith.extf %309 : vector<2x3x32xbf16> to vector<2x3x32xf32>
    %324 = vector.broadcast %322 : vector<2x3x1xf32> to vector<2x3x32xf32>
    %325 = arith.mulf %324, %323 : vector<2x3x32xf32>
    %cst_104 = arith.constant dense<0.000000e+00> : vector<2x32xf32>
    %326 = vector.multi_reduction <add>, %325, %cst_104 [1] : vector<2x3x32xf32> to vector<2x32xf32>
    %327 = vector.extract_strided_slice %36 {offsets = [0, 0, 32], sizes = [2, 3, 32], strides = [1, 1, 1]} : vector<2x3x64xbf16> to vector<2x3x32xbf16>
    %328 = vector.broadcast %266 : vector<2x1xf32> to vector<2x3xf32>
    %329 = arith.addf %35, %328 : vector<2x3xf32>
    %330 = math.tanh %329 : vector<2x3xf32>
    %cst_105 = arith.constant dense<0xFF800000> : vector<2xf32>
    %331 = vector.multi_reduction <maximumf>, %330, %cst_105 [1] : vector<2x3xf32> to vector<2xf32>
    %332 = vector.shape_cast %331 : vector<2xf32> to vector<2x1xf32>
    %333 = vector.broadcast %332 : vector<2x1xf32> to vector<2x3xf32>
    %334 = arith.subf %330, %333 : vector<2x3xf32>
    %335 = math.exp %334 : vector<2x3xf32>
    %cst_106 = arith.constant dense<0.000000e+00> : vector<2xf32>
    %336 = vector.multi_reduction <add>, %335, %cst_106 [1] : vector<2x3xf32> to vector<2xf32>
    %337 = vector.shape_cast %336 : vector<2xf32> to vector<2x1xf32>
    %338 = vector.broadcast %337 : vector<2x1xf32> to vector<2x3xf32>
    %339 = arith.divf %335, %338 : vector<2x3xf32>
    %340 = vector.shape_cast %339 : vector<2x3xf32> to vector<2x3x1xf32>
    %341 = arith.extf %327 : vector<2x3x32xbf16> to vector<2x3x32xf32>
    %342 = vector.broadcast %340 : vector<2x3x1xf32> to vector<2x3x32xf32>
    %343 = arith.mulf %342, %341 : vector<2x3x32xf32>
    %cst_107 = arith.constant dense<0.000000e+00> : vector<2x32xf32>
    %344 = vector.multi_reduction <add>, %343, %cst_107 [1] : vector<2x3x32xf32> to vector<2x32xf32>
    %345 = tpu.concatenate %290, %308 in 1 : vector<2x32xf32>, vector<2x32xf32> -> vector<2x64xf32>
    %346 = arith.truncf %345 : vector<2x64xf32> to vector<2x64xbf16>
    %347 = tpu.concatenate %326, %344 in 1 : vector<2x32xf32>, vector<2x32xf32> -> vector<2x64xf32>
    %348 = arith.truncf %347 : vector<2x64xf32> to vector<2x64xbf16>
    %cst_108 = arith.constant dense<0.000000e+00> : vector<2x32xf32>
    %349 = tpu.matmul %346, %43, %cst_108 {dimension_numbers = #tpu.dot_dimension_numbers<[1], [0], [0], [1], [0, 0, 1, 1], [], []>} : vector<2x64xbf16>, vector<64x32xbf16>, vector<2x32xf32> -> vector<2x32xf32>
    %350 = vector.broadcast %44 : vector<1x32xf32> to vector<2x32xf32>
    %351 = arith.addf %349, %350 : vector<2x32xf32>
    %cst_109 = arith.constant 5.000000e-01 : f32
    %352 = vector.broadcast %cst_109 : f32 to vector<2x32xf32>
    %353 = arith.mulf %351, %352 : vector<2x32xf32>
    %cst_110 = arith.constant dense<0.000000e+00> : vector<2x32xf32>
    %354 = tpu.matmul %348, %45, %cst_110 {dimension_numbers = #tpu.dot_dimension_numbers<[1], [0], [0], [1], [0, 0, 1, 1], [], []>} : vector<2x64xbf16>, vector<64x32xbf16>, vector<2x32xf32> -> vector<2x32xf32>
    %355 = vector.broadcast %46 : vector<1x32xf32> to vector<2x32xf32>
    %356 = arith.addf %354, %355 : vector<2x32xf32>
    %cst_111 = arith.constant 5.000000e-01 : f32
    %357 = vector.broadcast %cst_111 : f32 to vector<2x32xf32>
    %358 = arith.mulf %356, %357 : vector<2x32xf32>
    %359 = arith.truncf %353 : vector<2x32xf32> to vector<2x32xbf16>
    %360 = vector.extract_strided_slice %47 {offsets = [0, 0, 0], sizes = [1, 32, 96], strides = [1, 1, 1]} : vector<2x32x96xbf16> to vector<1x32x96xbf16>
    %361 = vector.shape_cast %360 : vector<1x32x96xbf16> to vector<32x96xbf16>
    %cst_112 = arith.constant dense<0.000000e+00> : vector<2x96xf32>
    %362 = tpu.matmul %359, %361, %cst_112 {dimension_numbers = #tpu.dot_dimension_numbers<[1], [0], [0], [1], [0, 0, 1, 1], [], []>} : vector<2x32xbf16>, vector<32x96xbf16>, vector<2x96xf32> -> vector<2x96xf32>
    %363 = vector.extract_strided_slice %49 {offsets = [0, 0], sizes = [1, 96], strides = [1, 1]} : vector<2x96xf32> to vector<1x96xf32>
    %364 = vector.shape_cast %363 : vector<1x96xf32> to vector<96xf32>
    %365 = vector.shape_cast %364 : vector<96xf32> to vector<1x96xf32>
    %366 = vector.broadcast %365 : vector<1x96xf32> to vector<2x96xf32>
    %367 = arith.addf %362, %366 : vector<2x96xf32>
    %368 = arith.truncf %204 : vector<2x32xf32> to vector<2x32xbf16>
    %369 = vector.extract_strided_slice %48 {offsets = [0, 0, 0], sizes = [1, 32, 96], strides = [1, 1, 1]} : vector<2x32x96xbf16> to vector<1x32x96xbf16>
    %370 = vector.shape_cast %369 : vector<1x32x96xbf16> to vector<32x96xbf16>
    %cst_113 = arith.constant dense<0.000000e+00> : vector<2x96xf32>
    %371 = tpu.matmul %368, %370, %cst_113 {dimension_numbers = #tpu.dot_dimension_numbers<[1], [0], [0], [1], [0, 0, 1, 1], [], []>} : vector<2x32xbf16>, vector<32x96xbf16>, vector<2x96xf32> -> vector<2x96xf32>
    %372 = vector.extract_strided_slice %50 {offsets = [0, 0], sizes = [1, 96], strides = [1, 1]} : vector<2x96xf32> to vector<1x96xf32>
    %373 = vector.shape_cast %372 : vector<1x96xf32> to vector<96xf32>
    %374 = vector.shape_cast %373 : vector<96xf32> to vector<1x96xf32>
    %375 = vector.broadcast %374 : vector<1x96xf32> to vector<2x96xf32>
    %376 = arith.addf %371, %375 : vector<2x96xf32>
    %377 = vector.extract_strided_slice %367 {offsets = [0, 0], sizes = [2, 32], strides = [1, 1]} : vector<2x96xf32> to vector<2x32xf32>
    %378 = vector.extract_strided_slice %376 {offsets = [0, 0], sizes = [2, 32], strides = [1, 1]} : vector<2x96xf32> to vector<2x32xf32>
    %379 = arith.addf %377, %378 : vector<2x32xf32>
    %380 = arith.negf %379 : vector<2x32xf32>
    %381 = math.exp %380 : vector<2x32xf32>
    %cst_114 = arith.constant 1.000000e+00 : f32
    %382 = vector.broadcast %cst_114 : f32 to vector<2x32xf32>
    %383 = arith.addf %382, %381 : vector<2x32xf32>
    %384 = arith.divf %382, %383 : vector<2x32xf32>
    %385 = vector.extract_strided_slice %367 {offsets = [0, 32], sizes = [2, 32], strides = [1, 1]} : vector<2x96xf32> to vector<2x32xf32>
    %386 = vector.extract_strided_slice %376 {offsets = [0, 32], sizes = [2, 32], strides = [1, 1]} : vector<2x96xf32> to vector<2x32xf32>
    %387 = arith.addf %385, %386 : vector<2x32xf32>
    %388 = arith.negf %387 : vector<2x32xf32>
    %389 = math.exp %388 : vector<2x32xf32>
    %cst_115 = arith.constant 1.000000e+00 : f32
    %390 = vector.broadcast %cst_115 : f32 to vector<2x32xf32>
    %391 = arith.addf %390, %389 : vector<2x32xf32>
    %392 = arith.divf %390, %391 : vector<2x32xf32>
    %393 = vector.extract_strided_slice %367 {offsets = [0, 64], sizes = [2, 32], strides = [1, 1]} : vector<2x96xf32> to vector<2x32xf32>
    %394 = vector.extract_strided_slice %376 {offsets = [0, 64], sizes = [2, 32], strides = [1, 1]} : vector<2x96xf32> to vector<2x32xf32>
    %395 = arith.mulf %384, %394 : vector<2x32xf32>
    %396 = arith.addf %393, %395 : vector<2x32xf32>
    %397 = math.tanh %396 : vector<2x32xf32>
    %cst_116 = arith.constant 1.000000e+00 : f32
    %398 = vector.broadcast %cst_116 : f32 to vector<2x32xf32>
    %399 = arith.subf %398, %392 : vector<2x32xf32>
    %400 = arith.mulf %399, %397 : vector<2x32xf32>
    %401 = arith.mulf %392, %204 : vector<2x32xf32>
    %402 = arith.addf %400, %401 : vector<2x32xf32>
    %403 = arith.truncf %358 : vector<2x32xf32> to vector<2x32xbf16>
    %404 = vector.extract_strided_slice %47 {offsets = [1, 0, 0], sizes = [1, 32, 96], strides = [1, 1, 1]} : vector<2x32x96xbf16> to vector<1x32x96xbf16>
    %405 = vector.shape_cast %404 : vector<1x32x96xbf16> to vector<32x96xbf16>
    %cst_117 = arith.constant dense<0.000000e+00> : vector<2x96xf32>
    %406 = tpu.matmul %403, %405, %cst_117 {dimension_numbers = #tpu.dot_dimension_numbers<[1], [0], [0], [1], [0, 0, 1, 1], [], []>} : vector<2x32xbf16>, vector<32x96xbf16>, vector<2x96xf32> -> vector<2x96xf32>
    %407 = vector.extract_strided_slice %49 {offsets = [1, 0], sizes = [1, 96], strides = [1, 1]} : vector<2x96xf32> to vector<1x96xf32>
    %408 = vector.shape_cast %407 : vector<1x96xf32> to vector<96xf32>
    %409 = vector.shape_cast %408 : vector<96xf32> to vector<1x96xf32>
    %410 = vector.broadcast %409 : vector<1x96xf32> to vector<2x96xf32>
    %411 = arith.addf %406, %410 : vector<2x96xf32>
    %412 = arith.truncf %248 : vector<2x32xf32> to vector<2x32xbf16>
    %413 = vector.extract_strided_slice %48 {offsets = [1, 0, 0], sizes = [1, 32, 96], strides = [1, 1, 1]} : vector<2x32x96xbf16> to vector<1x32x96xbf16>
    %414 = vector.shape_cast %413 : vector<1x32x96xbf16> to vector<32x96xbf16>
    %cst_118 = arith.constant dense<0.000000e+00> : vector<2x96xf32>
    %415 = tpu.matmul %412, %414, %cst_118 {dimension_numbers = #tpu.dot_dimension_numbers<[1], [0], [0], [1], [0, 0, 1, 1], [], []>} : vector<2x32xbf16>, vector<32x96xbf16>, vector<2x96xf32> -> vector<2x96xf32>
    %416 = vector.extract_strided_slice %50 {offsets = [1, 0], sizes = [1, 96], strides = [1, 1]} : vector<2x96xf32> to vector<1x96xf32>
    %417 = vector.shape_cast %416 : vector<1x96xf32> to vector<96xf32>
    %418 = vector.shape_cast %417 : vector<96xf32> to vector<1x96xf32>
    %419 = vector.broadcast %418 : vector<1x96xf32> to vector<2x96xf32>
    %420 = arith.addf %415, %419 : vector<2x96xf32>
    %421 = vector.extract_strided_slice %411 {offsets = [0, 0], sizes = [2, 32], strides = [1, 1]} : vector<2x96xf32> to vector<2x32xf32>
    %422 = vector.extract_strided_slice %420 {offsets = [0, 0], sizes = [2, 32], strides = [1, 1]} : vector<2x96xf32> to vector<2x32xf32>
    %423 = arith.addf %421, %422 : vector<2x32xf32>
    %424 = arith.negf %423 : vector<2x32xf32>
    %425 = math.exp %424 : vector<2x32xf32>
    %cst_119 = arith.constant 1.000000e+00 : f32
    %426 = vector.broadcast %cst_119 : f32 to vector<2x32xf32>
    %427 = arith.addf %426, %425 : vector<2x32xf32>
    %428 = arith.divf %426, %427 : vector<2x32xf32>
    %429 = vector.extract_strided_slice %411 {offsets = [0, 32], sizes = [2, 32], strides = [1, 1]} : vector<2x96xf32> to vector<2x32xf32>
    %430 = vector.extract_strided_slice %420 {offsets = [0, 32], sizes = [2, 32], strides = [1, 1]} : vector<2x96xf32> to vector<2x32xf32>
    %431 = arith.addf %429, %430 : vector<2x32xf32>
    %432 = arith.negf %431 : vector<2x32xf32>
    %433 = math.exp %432 : vector<2x32xf32>
    %cst_120 = arith.constant 1.000000e+00 : f32
    %434 = vector.broadcast %cst_120 : f32 to vector<2x32xf32>
    %435 = arith.addf %434, %433 : vector<2x32xf32>
    %436 = arith.divf %434, %435 : vector<2x32xf32>
    %437 = vector.extract_strided_slice %411 {offsets = [0, 64], sizes = [2, 32], strides = [1, 1]} : vector<2x96xf32> to vector<2x32xf32>
    %438 = vector.extract_strided_slice %420 {offsets = [0, 64], sizes = [2, 32], strides = [1, 1]} : vector<2x96xf32> to vector<2x32xf32>
    %439 = arith.mulf %428, %438 : vector<2x32xf32>
    %440 = arith.addf %437, %439 : vector<2x32xf32>
    %441 = math.tanh %440 : vector<2x32xf32>
    %cst_121 = arith.constant 1.000000e+00 : f32
    %442 = vector.broadcast %cst_121 : f32 to vector<2x32xf32>
    %443 = arith.subf %442, %436 : vector<2x32xf32>
    %444 = arith.mulf %443, %441 : vector<2x32xf32>
    %445 = arith.mulf %436, %248 : vector<2x32xf32>
    %446 = arith.addf %444, %445 : vector<2x32xf32>
    %447 = tpu.concatenate %402, %446 in 1 : vector<2x32xf32>, vector<2x32xf32> -> vector<2x64xf32>
    %448 = arith.truncf %447 : vector<2x64xf32> to vector<2x64xbf16>
    %c0_122 = arith.constant 0 : index
    %c0_123 = arith.constant 0 : index
    %449 = vector.load %arg25[%c0_122, %c0_123] : memref<64x3xbf16, #tpu.memory_space<vmem>>, vector<64x3xbf16>
    %cst_124 = arith.constant dense<0.000000e+00> : vector<2x3xf32>
    %450 = tpu.matmul %448, %449, %cst_124 {dimension_numbers = #tpu.dot_dimension_numbers<[1], [0], [0], [1], [0, 0, 1, 1], [], []>} : vector<2x64xbf16>, vector<64x3xbf16>, vector<2x3xf32> -> vector<2x3xf32>
    %c0_125 = arith.constant 0 : index
    %c0_126 = arith.constant 0 : index
    %451 = vector.load %arg26[%c0_125, %c0_126] : memref<1x3xf32, #tpu.memory_space<vmem>>, vector<1x3xf32>
    %452 = vector.broadcast %451 : vector<1x3xf32> to vector<2x3xf32>
    %453 = arith.addf %450, %452 : vector<2x3xf32>
    %cst_127 = arith.constant dense<0xFF800000> : vector<2xf32>
    %454 = vector.multi_reduction <maximumf>, %453, %cst_127 [1] : vector<2x3xf32> to vector<2xf32>
    %455 = vector.shape_cast %454 : vector<2xf32> to vector<2x1xf32>
    %456 = vector.broadcast %455 : vector<2x1xf32> to vector<2x3xf32>
    %457 = arith.subf %453, %456 : vector<2x3xf32>
    %458 = math.exp %457 : vector<2x3xf32>
    %cst_128 = arith.constant dense<0.000000e+00> : vector<2xf32>
    %459 = vector.multi_reduction <add>, %458, %cst_128 [1] : vector<2x3xf32> to vector<2xf32>
    %460 = vector.shape_cast %459 : vector<2xf32> to vector<2x1xf32>
    %461 = vector.broadcast %460 : vector<2x1xf32> to vector<2x3xf32>
    %462 = arith.divf %458, %461 : vector<2x3xf32>
    %c0_129 = arith.constant 0 : index
    %c0_130 = arith.constant 0 : index
    %463 = vector.load %arg27[%c0_129, %c0_130] : memref<2x3xf32, #tpu.memory_space<vmem>>, vector<2x3xf32>
    tpu.vector_store %arg27[%c0_129, %c0_130], %462 {strides = array<i32>} : memref<2x3xf32, #tpu.memory_space<vmem>>, vector<2x3xf32>,
    return
  }
  func.func @transform_0(%arg0: i32) -> (i32, i32, i32) {
    %c0_i32 = arith.constant 0 : i32
    %c0_i32_0 = arith.constant 0 : i32
    %c0_i32_1 = arith.constant 0 : i32
    return %arg0, %c0_i32, %c0_i32_0 : i32, i32, i32
  }
  func.func @transform_1(%arg0: i32) -> (i32, i32, i32) {
    %c0_i32 = arith.constant 0 : i32
    %c0_i32_0 = arith.constant 0 : i32
    %c0_i32_1 = arith.constant 0 : i32
    return %arg0, %c0_i32, %c0_i32_0 : i32, i32, i32
  }
  func.func @transform_2(%arg0: i32) -> (i32, i32, i32) {
    %c0_i32 = arith.constant 0 : i32
    %c0_i32_0 = arith.constant 0 : i32
    %c0_i32_1 = arith.constant 0 : i32
    return %arg0, %c0_i32, %c0_i32_0 : i32, i32, i32
  }
  func.func @transform_3(%arg0: i32) -> (i32, i32) {
    %c0_i32 = arith.constant 0 : i32
    %c0_i32_0 = arith.constant 0 : i32
    return %arg0, %c0_i32 : i32, i32
  }
  func.func @transform_4(%arg0: i32) -> (i32, i32) {
    %c0_i32 = arith.constant 0 : i32
    %c0_i32_0 = arith.constant 0 : i32
    %c0_i32_1 = arith.constant 0 : i32
    return %c0_i32, %c0_i32_0 : i32, i32
  }
  func.func @transform_5(%arg0: i32) -> (i32, i32) {
    %c0_i32 = arith.constant 0 : i32
    %c0_i32_0 = arith.constant 0 : i32
    %c0_i32_1 = arith.constant 0 : i32
    return %c0_i32, %c0_i32_0 : i32, i32
  }
  func.func @transform_6(%arg0: i32) -> (i32, i32) {
    %c0_i32 = arith.constant 0 : i32
    %c0_i32_0 = arith.constant 0 : i32
    %c0_i32_1 = arith.constant 0 : i32
    return %c0_i32, %c0_i32_0 : i32, i32
  }
  func.func @transform_7(%arg0: i32) -> (i32, i32) {
    %c0_i32 = arith.constant 0 : i32
    %c0_i32_0 = arith.constant 0 : i32
    %c0_i32_1 = arith.constant 0 : i32
    return %c0_i32, %c0_i32_0 : i32, i32
  }
  func.func @transform_8(%arg0: i32) -> (i32, i32) {
    %c0_i32 = arith.constant 0 : i32
    %c0_i32_0 = arith.constant 0 : i32
    %c0_i32_1 = arith.constant 0 : i32
    return %c0_i32, %c0_i32_0 : i32, i32
  }
  func.func @transform_9(%arg0: i32) -> (i32, i32) {
    %c0_i32 = arith.constant 0 : i32
    %c0_i32_0 = arith.constant 0 : i32
    %c0_i32_1 = arith.constant 0 : i32
    return %c0_i32, %c0_i32_0 : i32, i32
  }
  func.func @transform_10(%arg0: i32) -> (i32, i32) {
    %c0_i32 = arith.constant 0 : i32
    %c0_i32_0 = arith.constant 0 : i32
    %c0_i32_1 = arith.constant 0 : i32
    return %c0_i32, %c0_i32_0 : i32, i32
  }
  func.func @transform_11(%arg0: i32) -> (i32, i32) {
    %c0_i32 = arith.constant 0 : i32
    %c0_i32_0 = arith.constant 0 : i32
    %c0_i32_1 = arith.constant 0 : i32
    return %c0_i32, %c0_i32_0 : i32, i32
  }
  func.func @transform_12(%arg0: i32) -> (i32, i32) {
    %c0_i32 = arith.constant 0 : i32
    %c0_i32_0 = arith.constant 0 : i32
    %c0_i32_1 = arith.constant 0 : i32
    return %c0_i32, %c0_i32_0 : i32, i32
  }
  func.func @transform_13(%arg0: i32) -> (i32, i32) {
    %c0_i32 = arith.constant 0 : i32
    %c0_i32_0 = arith.constant 0 : i32
    %c0_i32_1 = arith.constant 0 : i32
    return %c0_i32, %c0_i32_0 : i32, i32
  }
  func.func @transform_14(%arg0: i32) -> (i32, i32) {
    %c0_i32 = arith.constant 0 : i32
    %c0_i32_0 = arith.constant 0 : i32
    %c0_i32_1 = arith.constant 0 : i32
    return %c0_i32, %c0_i32_0 : i32, i32
  }
  func.func @transform_15(%arg0: i32) -> (i32, i32) {
    %c0_i32 = arith.constant 0 : i32
    %c0_i32_0 = arith.constant 0 : i32
    %c0_i32_1 = arith.constant 0 : i32
    return %c0_i32, %c0_i32_0 : i32, i32
  }
  func.func @transform_16(%arg0: i32) -> (i32, i32) {
    %c0_i32 = arith.constant 0 : i32
    %c0_i32_0 = arith.constant 0 : i32
    %c0_i32_1 = arith.constant 0 : i32
    return %c0_i32, %c0_i32_0 : i32, i32
  }
  func.func @transform_17(%arg0: i32) -> (i32, i32) {
    %c0_i32 = arith.constant 0 : i32
    %c0_i32_0 = arith.constant 0 : i32
    %c0_i32_1 = arith.constant 0 : i32
    return %c0_i32, %c0_i32_0 : i32, i32
  }
  func.func @transform_18(%arg0: i32) -> (i32, i32) {
    %c0_i32 = arith.constant 0 : i32
    %c0_i32_0 = arith.constant 0 : i32
    %c0_i32_1 = arith.constant 0 : i32
    return %c0_i32, %c0_i32_0 : i32, i32
  }
  func.func @transform_19(%arg0: i32) -> (i32, i32) {
    %c0_i32 = arith.constant 0 : i32
    %c0_i32_0 = arith.constant 0 : i32
    %c0_i32_1 = arith.constant 0 : i32
    return %c0_i32, %c0_i32_0 : i32, i32
  }
  func.func @transform_20(%arg0: i32) -> (i32, i32, i32) {
    %c0_i32 = arith.constant 0 : i32
    %c0_i32_0 = arith.constant 0 : i32
    %c0_i32_1 = arith.constant 0 : i32
    %c0_i32_2 = arith.constant 0 : i32
    return %c0_i32, %c0_i32_0, %c0_i32_1 : i32, i32, i32
  }
  func.func @transform_21(%arg0: i32) -> (i32, i32, i32) {
    %c0_i32 = arith.constant 0 : i32
    %c0_i32_0 = arith.constant 0 : i32
    %c0_i32_1 = arith.constant 0 : i32
    %c0_i32_2 = arith.constant 0 : i32
    return %c0_i32, %c0_i32_0, %c0_i32_1 : i32, i32, i32
  }
  func.func @transform_22(%arg0: i32) -> (i32, i32) {
    %c0_i32 = arith.constant 0 : i32
    %c0_i32_0 = arith.constant 0 : i32
    %c0_i32_1 = arith.constant 0 : i32
    return %c0_i32, %c0_i32_0 : i32, i32
  }
  func.func @transform_23(%arg0: i32) -> (i32, i32) {
    %c0_i32 = arith.constant 0 : i32
    %c0_i32_0 = arith.constant 0 : i32
    %c0_i32_1 = arith.constant 0 : i32
    return %c0_i32, %c0_i32_0 : i32, i32
  }
  func.func @transform_24(%arg0: i32) -> (i32, i32) {
    %c0_i32 = arith.constant 0 : i32
    %c0_i32_0 = arith.constant 0 : i32
    %c0_i32_1 = arith.constant 0 : i32
    return %c0_i32, %c0_i32_0 : i32, i32
  }
  func.func @transform_25(%arg0: i32) -> (i32, i32) {
    %c0_i32 = arith.constant 0 : i32
    %c0_i32_0 = arith.constant 0 : i32
    %c0_i32_1 = arith.constant 0 : i32
    return %c0_i32, %c0_i32_0 : i32, i32
  }
  func.func @transform_26(%arg0: i32) -> (i32, i32) {
    %c0_i32 = arith.constant 0 : i32
    %c0_i32_0 = arith.constant 0 : i32
    return %arg0, %c0_i32 : i32, i32
  }
}

</mosaic_0001>

<llo_original>
// kernel: mimn_forward.6
$region0: #{mimn_forward.6}
  #allocation0 [shape = 'u32[]', space=smem, size = 0x4, offset = 0x4, fixed_abs, tag = 'smem constant byte address 0x4 - core index']
  #allocation1 [shape = 'u32[144,128]{1,0:T(1,128)}', space=vmem, size = 0x12000, scoped, tag = 'internal scratch']
  %s0 = inlined_call_operand.vmem [shape: bf16[3,2,64], index: 0, kind: input, shape index: {}]
  %s1 = inlined_call_operand.vmem [shape: f32[3,2,1], index: 1, kind: input, shape index: {}]
  %s2 = inlined_call_operand.vmem [shape: bf16[128,128], index: 2, kind: input, shape index: {}]
  %s3 = inlined_call_operand.vmem [shape: bf16[32,128], index: 3, kind: input, shape index: {}]
  %s4 = inlined_call_operand.vmem [shape: f32[1,128], index: 4, kind: input, shape index: {}]
  %s5 = inlined_call_operand.vmem [shape: f32[3,2,16], index: 5, kind: output, shape index: {0}]
  %s6 = inlined_call_operand.vmem [shape: f32[3,2,16], index: 6, kind: output, shape index: {1}]
  %7 = xla_tuple %s5, %s6
  %s8 = sld [smem:[#allocation0]]
  $region38: #{mimn_forward.6} parent=0
    _
  %s10 = ssub.s32 1, %s8
  %s11 = scalar_select 0, %s10, %s8
  // Predicated region
  $region2: #{mimn_forward.6} parent=0 // pred_check
    _
  $region3: #{mimn_forward.6} parent=0 // pred_check_branch
    %13 = sbr.rel (0) target = $region5
  $region4: #{mimn_forward.6} parent=0 // pred_region
    _
  $region5: #{mimn_forward.6} parent=0 // pred_fallthru
    _
  // Predicated region
  $region6: #{mimn_forward.6} parent=0 // pred_check
    _
  $region7: #{mimn_forward.6} parent=0 // pred_check_branch
    %15 = sbr.rel (0) target = $region9
  $region8: #{mimn_forward.6} parent=0 // pred_region
    _
  $region9: #{mimn_forward.6} parent=0 // pred_fallthru
    _
  // Predicated region
  $region10: #{mimn_forward.6} parent=0 // pred_check
    _
  $region11: #{mimn_forward.6} parent=0 // pred_check_branch
    %17 = sbr.rel (0) target = $region13
  $region12: #{mimn_forward.6} parent=0 // pred_region
    _
  $region13: #{mimn_forward.6} parent=0 // pred_fallthru
    _
  // Predicated region
  $region14: #{mimn_forward.6} parent=0 // pred_check
    _
  $region15: #{mimn_forward.6} parent=0 // pred_check_branch
    %19 = sbr.rel (0) target = $region17
  $region16: #{mimn_forward.6} parent=0 // pred_region
    _
  $region17: #{mimn_forward.6} parent=0 // pred_fallthru
    _
  // Predicated region
  $region18: #{mimn_forward.6} parent=0 // pred_check
    _
  $region19: #{mimn_forward.6} parent=0 // pred_check_branch
    %21 = sbr.rel (0) target = $region21
  $region20: #{mimn_forward.6} parent=0 // pred_region
    _
  $region21: #{mimn_forward.6} parent=0 // pred_fallthru
    _
  %v23 = vld [vmem:[%s2] sm:$0xf]
  %v24 = vld [vmem:[%s2 + $0x4] sm:$0xf]
  %v25 = vld [vmem:[%s2 + $0x8] sm:$0xf]
  %v26 = vld [vmem:[%s2 + $0xc] sm:$0xf]
  %v27 = vld [vmem:[%s2 + $0x10] sm:$0xf]
  %v28 = vld [vmem:[%s2 + $0x14] sm:$0xf]
  %v29 = vld [vmem:[%s2 + $0x18] sm:$0xf]
  %v30 = vld [vmem:[%s2 + $0x1c] sm:$0xf]
  %v31 = vld [vmem:[%s2 + $0x20] sm:$0xf]
  %v32 = vld [vmem:[%s2 + $0x24] sm:$0xf]
  %v33 = vld [vmem:[%s2 + $0x28] sm:$0xf]
  %v34 = vld [vmem:[%s2 + $0x2c] sm:$0xf]
  %v35 = vld [vmem:[%s2 + $0x30] sm:$0xf]
  %v36 = vld [vmem:[%s2 + $0x34] sm:$0xf]
  %v37 = vld [vmem:[%s2 + $0x38] sm:$0xf]
  %v38 = vld [vmem:[%s2 + $0x3c] sm:$0xf]
  %v39 = vld [vmem:[%s3] sm:$0xf]
  %v40 = vld [vmem:[%s3 + $0x4] sm:$0xf]
  %v41 = vld [vmem:[%s3 + $0x8] sm:$0xf]
  %v42 = vld [vmem:[%s3 + $0xc] sm:$0xf]
  %v43 = vld [vmem:[%s4] sm:$0x1]
  %v44 = vld [vmem:[%s0] sm:$0x1]
  %s45 = scalar_lea.vmem %s0, 2
  %v46 = vld [vmem:[%s45] sm:$0x1]
  %v49 = vunpack.c.l.s4 1966171168
  %v50 = vunpack.c.0.s8 %v49
  %v51 = vlaneseq
  %v52 = vshrl.u32 %v51, 7
  %v53 = vsub.s32 %v50, %v52
  %v54 = vrot.slane %v46, %v53
  %v56 = vunpack.c.l.s4 1966171168
  %v57 = vunpack.c.0.s8 %v56
  %v58 = vlaneseq
  %v59 = vshrl.u32 %v58, 7
  %v60 = vsub.s32 %v57, %v59
  %v61 = vrot.slane %v54, %v60
  %62 = vrot.lane.b32.xlu0 %v61, 64
  %v63 = vpop.permute.xlu0 %62
  %vm64 = vcmask 523264
  %v67 = vsel %vm64, %v44, %v63
  %v73 = vunpack.c.l.b16 %v39
  %v74 = vunpack.c.l.b16 %v40
  %v75 = vunpack.c.l.b16 %v41
  %v76 = vunpack.c.l.b16 %v42
  %v77 = vpack.c.b16 %v74, %v73
  %v78 = vpack.c.b16 %v76, %v75
  %vm81 = vcmask 261120
  %v83 = vsel %vm81, 0, 0
  %85 = vmatprep.subr.bf16.mxu0 0
  %86 = vmatpush1.bf16.msra.mxu0 %v77
  %87 = vmatprep.subr.bf16.mxu0 0
  %88 = vmatpush1.bf16.msra.mxu0 %v78
  %89 = vmatprep.subr.bf16.mxu0 0
  %90 = vmatpush1.bf16.msra.mxu0 0
  %91 = vmatprep.subr.bf16.mxu0 0
  %92 = vmatpush1.bf16.msra.mxu0 0
  %93 = vmatprep.subr.bf16.mxu0 0
  %94 = vmatpush1.bf16.msra.mxu0 0
  %95 = vmatprep.subr.bf16.mxu0 0
  %96 = vmatpush1.bf16.msra.mxu0 0
  %97 = vmatprep.subr.bf16.mxu0 0
  %98 = vmatpush1.bf16.msra.mxu0 0
  %99 = vmatprep.subr.bf16.mxu0 0
  %100 = vmatpush1.bf16.msra.mxu0 0
  %101 = vmatprep.subr.bf16.mxu0 0
  %102 = vmatpush1.bf16.msra.mxu0 0
  %103 = vmatprep.subr.bf16.mxu0 0
  %104 = vmatpush1.bf16.msra.mxu0 0
  %105 = vmatprep.subr.bf16.mxu0 0
  %106 = vmatpush1.bf16.msra.mxu0 0
  %107 = vmatprep.subr.bf16.mxu0 0
  %108 = vmatpush1.bf16.msra.mxu0 0
  %109 = vmatprep.subr.bf16.mxu0 0
  %110 = vmatpush1.bf16.msra.mxu0 0
  %111 = vmatprep.subr.bf16.mxu0 0
  %112 = vmatpush1.bf16.msra.mxu0 0
  %113 = vmatprep.subr.bf16.mxu0 0
  %114 = vmatpush1.bf16.msra.mxu0 0
  %115 = vmatprep.subr.bf16.mxu0 0
  %116 = vmatpush1.bf16.msra.mxu0 0
  %117 = vmatprep.mubr.bf16.mxu0 0
  %118 = vmatmul.mubr.bf16.gmra.mrb[0].mxu0 %v83
  %v119 = vpop.f32.mrb[0].mxu0
  %v120 = vadd.f32 0.0, %v119
  %v121 = vpop.f32.mrb[0].mxu0
  %v122 = vpop.f32.mrb[0].mxu0
  %v123 = vpop.f32.mrb[0].mxu0
  %124 = vdwg.mxu0
  %v141 = vunpack.c.l.b16 %v23
  %v142 = vunpack.c.l.b16 %v24
  %v143 = vunpack.c.l.b16 %v25
  %v144 = vunpack.c.l.b16 %v26
  %v145 = vunpack.c.l.b16 %v27
  %v146 = vunpack.c.l.b16 %v28
  %v147 = vunpack.c.l.b16 %v29
  %v148 = vunpack.c.l.b16 %v30
  %v149 = vunpack.c.l.b16 %v31
  %v150 = vunpack.c.l.b16 %v32
  %v151 = vunpack.c.l.b16 %v33
  %v152 = vunpack.c.l.b16 %v34
  %v153 = vunpack.c.l.b16 %v35
  %v154 = vunpack.c.l.b16 %v36
  %v155 = vunpack.c.l.b16 %v37
  %v156 = vunpack.c.l.b16 %v38
  %v157 = vpack.c.b16 %v142, %v141
  %v158 = vpack.c.b16 %v144, %v143
  %v159 = vpack.c.b16 %v146, %v145
  %v160 = vpack.c.b16 %v148, %v147
  %v161 = vpack.c.b16 %v150, %v149
  %v162 = vpack.c.b16 %v152, %v151
  %v163 = vpack.c.b16 %v154, %v153
  %v164 = vpack.c.b16 %v156, %v155
  %173 = vmatprep.subr.bf16.mxu0 0
  %174 = vmatpush1.bf16.msra.mxu0 %v157
  %175 = vmatprep.subr.bf16.mxu0 0
  %176 = vmatpush1.bf16.msra.mxu0 %v158
  %177 = vmatprep.subr.bf16.mxu0 0
  %178 = vmatpush1.bf16.msra.mxu0 %v159
  %179 = vmatprep.subr.bf16.mxu0 0
  %180 = vmatpush1.bf16.msra.mxu0 %v160
  %181 = vmatprep.subr.bf16.mxu0 0
  %182 = vmatpush1.bf16.msra.mxu0 %v161
  %183 = vmatprep.subr.bf16.mxu0 0
  %184 = vmatpush1.bf16.msra.mxu0 %v162
  %185 = vmatprep.subr.bf16.mxu0 0
  %186 = vmatpush1.bf16.msra.mxu0 %v163
  %187 = vmatprep.subr.bf16.mxu0 0
  %188 = vmatpush1.bf16.msra.mxu0 %v164
  %189 = vmatprep.subr.bf16.mxu0 0
  %190 = vmatpush1.bf16.msra.mxu0 0
  %191 = vmatprep.subr.bf16.mxu0 0
  %192 = vmatpush1.bf16.msra.mxu0 0
  %193 = vmatprep.subr.bf16.mxu0 0
  %194 = vmatpush1.bf16.msra.mxu0 0
  %195 = vmatprep.subr.bf16.mxu0 0
  %196 = vmatpush1.bf16.msra.mxu0 0
  %197 = vmatprep.subr.bf16.mxu0 0
  %198 = vmatpush1.bf16.msra.mxu0 0
  %199 = vmatprep.subr.bf16.mxu0 0
  %200 = vmatpush1.bf16.msra.mxu0 0
  %201 = vmatprep.subr.bf16.mxu0 0
  %202 = vmatpush1.bf16.msra.mxu0 0
  %203 = vmatprep.subr.bf16.mxu0 0
  %204 = vmatpush1.bf16.msra.mxu0 0
  %205 = vmatprep.mubr.bf16.mxu0 0
  %206 = vmatmul.mubr.bf16.gmra.mrb[0].mxu0 %v67
  %v207 = vpop.f32.mrb[0].mxu0
  %v208 = vadd.f32 %v120, %v207
  %v209 = vpop.f32.mrb[0].mxu0
  %v210 = vpop.f32.mrb[0].mxu0
  %v211 = vpop.f32.mrb[0].mxu0
  %212 = vdwg.mxu0
  %v214 = vlaneseq
  %v215 = vshrl.u32 %v214, 7
  %v216 = vsub.s32 0, %v215
  %v217 = vrot.slane %v43, %v216
  %v219 = vadd.f32 %v208, %v217
  %v220 = vxor.u32 %v219, 2147483648
  %v221 = vmul.f32 %v220, 1.442695
  %v222 = vpow.pop %v221
  %v223 = vadd.f32 %v222, 1.0
  %v224 = vrcp.pop %v223
  %v225 = vmul.f32 1.0, %v224
  %v226 = vtanh.pop %v219
  %v227 = vmul.f32 %v225, 0.0
  %229 = vrot.lane.b32.xlu0 %v226, 64
  %v230 = vpop.permute.xlu0 %229
  %v232 = vmul.f32 %v225, %v230
  %234 = vrot.lane.b32.xlu0 %v232, 32
  %v235 = vpop.permute.xlu0 %234
  %v237 = vadd.f32 %v227, %v235
  %v238 = vtanh.pop %v237
  %240 = vrot.lane.b32.xlu0 %v238, 64
  %v241 = vpop.permute.xlu0 %240
  %v243 = vmul.f32 %v225, %v241
  %v244 = vld [vmem:[%s1] sm:$0x3]
  %s245 = scalar_lea.vmem %s1, 4
  %v246 = vld [vmem:[%s245] sm:$0x3]
  %248 = vset.pattern.permute.xlu0 0
  %249 = vperm.xlu0 %248, %v244
  %v250 = vpop.permute.xlu0 %249
  %253 = vset.pattern.permute.xlu0 0
  %254 = vperm.xlu0 %253, %v246
  %v255 = vpop.permute.xlu0 %254
  %vm257 = vcmask 130048
  %v258 = vsel %vm257, %v250, %v255
  %260 = vrot.lane.b32.xlu0 %v258, 96
  %v261 = vpop.permute.xlu0 %260
  %v263 = vmul.f32 %v243, %v261
  %265 = vrot.lane.b32.xlu0 %v263, 32
  %v266 = vpop.permute.xlu0 %265
  %vm268 = vcmask 123904
  %269 = vst.msk [vmem:[%s5] sm:$0x3] %vm268, %v266
  %270 = vrot.lane.b32.xlu0 %v263, 16
  %v271 = vpop.permute.xlu0 %270
  %s273 = scalar_lea.vmem %s6, 4
  %274 = vst.msk [vmem:[%s273] sm:$0x3] %vm268, %v271
  %v275 = vsub.f32 1.0, %v258
  %v276 = vmul.f32 %v275, 0.0
  %278 = vrot.lane.b32.xlu0 %v276, 96
  %v279 = vpop.permute.xlu0 %278
  %v281 = vadd.f32 %v263, %v279
  %283 = vrot.lane.b32.xlu0 %v237, 96
  %v284 = vpop.permute.xlu0 %283
  %v286 = vmul.f32 %v258, %v284
  %v287 = vadd.f32 %v286, %v276
  %s288 = scalar_lea.vmem %s0, 1
  %v289 = vld [vmem:[%s288] sm:$0x1]
  %v292 = vunpack.c.l.s4 1966171168
  %v293 = vunpack.c.0.s8 %v292
  %v294 = vlaneseq
  %v295 = vshrl.u32 %v294, 7
  %v296 = vsub.s32 %v293, %v295
  %v297 = vrot.slane %v289, %v296
  %v299 = vunpack.c.l.s4 1966171168
  %v300 = vunpack.c.0.s8 %v299
  %v301 = vlaneseq
  %v302 = vshrl.u32 %v301, 7
  %v303 = vsub.s32 %v300, %v302
  %v304 = vrot.slane %v297, %v303
  %305 = vrot.lane.b32.xlu0 %v304, 64
  %v306 = vpop.permute.xlu0 %305
  %v309 = vsel %vm64, %v289, %v306
  %v311 = vpack.c.bf16 %v281, %v281
  %313 = vrot.lane.b32.xlu0 %v311, 32
  %v314 = vpop.permute.xlu0 %313
  %v316 = vsel %vm81, %v314, 0
  %318 = vmatprep.subr.bf16.mxu0 0
  %319 = vmatpush1.bf16.msra.mxu0 %v77
  %320 = vmatprep.subr.bf16.mxu0 0
  %321 = vmatpush1.bf16.msra.mxu0 %v78
  %322 = vmatprep.subr.bf16.mxu0 0
  %323 = vmatpush1.bf16.msra.mxu0 0
  %324 = vmatprep.subr.bf16.mxu0 0
  %325 = vmatpush1.bf16.msra.mxu0 0
  %326 = vmatprep.subr.bf16.mxu0 0
  %327 = vmatpush1.bf16.msra.mxu0 0
  %328 = vmatprep.subr.bf16.mxu0 0
  %329 = vmatpush1.bf16.msra.mxu0 0
  %330 = vmatprep.subr.bf16.mxu0 0
  %331 = vmatpush1.bf16.msra.mxu0 0
  %332 = vmatprep.subr.bf16.mxu0 0
  %333 = vmatpush1.bf16.msra.mxu0 0
  %334 = vmatprep.subr.bf16.mxu0 0
  %335 = vmatpush1.bf16.msra.mxu0 0
  %336 = vmatprep.subr.bf16.mxu0 0
  %337 = vmatpush1.bf16.msra.mxu0 0
  %338 = vmatprep.subr.bf16.mxu0 0
  %339 = vmatpush1.bf16.msra.mxu0 0
  %340 = vmatprep.subr.bf16.mxu0 0
  %341 = vmatpush1.bf16.msra.mxu0 0
  %342 = vmatprep.subr.bf16.mxu0 0
  %343 = vmatpush1.bf16.msra.mxu0 0
  %344 = vmatprep.subr.bf16.mxu0 0
  %345 = vmatpush1.bf16.msra.mxu0 0
  %346 = vmatprep.subr.bf16.mxu0 0
  %347 = vmatpush1.bf16.msra.mxu0 0
  %348 = vmatprep.subr.bf16.mxu0 0
  %349 = vmatpush1.bf16.msra.mxu0 0
  %350 = vmatprep.mubr.bf16.mxu0 0
  %351 = vmatmul.mubr.bf16.gmra.mrb[0].mxu0 %v316
  %v352 = vpop.f32.mrb[0].mxu0
  %v353 = vadd.f32 0.0, %v352
  %v354 = vpop.f32.mrb[0].mxu0
  %v355 = vpop.f32.mrb[0].mxu0
  %v356 = vpop.f32.mrb[0].mxu0
  %357 = vdwg.mxu0
  %358 = vmatprep.subr.bf16.mxu0 0
  %359 = vmatpush1.bf16.msra.mxu0 %v157
  %360 = vmatprep.subr.bf16.mxu0 0
  %361 = vmatpush1.bf16.msra.mxu0 %v158
  %362 = vmatprep.subr.bf16.mxu0 0
  %363 = vmatpush1.bf16.msra.mxu0 %v159
  %364 = vmatprep.subr.bf16.mxu0 0
  %365 = vmatpush1.bf16.msra.mxu0 %v160
  %366 = vmatprep.subr.bf16.mxu0 0
  %367 = vmatpush1.bf16.msra.mxu0 %v161
  %368 = vmatprep.subr.bf16.mxu0 0
  %369 = vmatpush1.bf16.msra.mxu0 %v162
  %370 = vmatprep.subr.bf16.mxu0 0
  %371 = vmatpush1.bf16.msra.mxu0 %v163
  %372 = vmatprep.subr.bf16.mxu0 0
  %373 = vmatpush1.bf16.msra.mxu0 %v164
  %374 = vmatprep.subr.bf16.mxu0 0
  %375 = vmatpush1.bf16.msra.mxu0 0
  %376 = vmatprep.subr.bf16.mxu0 0
  %377 = vmatpush1.bf16.msra.mxu0 0
  %378 = vmatprep.subr.bf16.mxu0 0
  %379 = vmatpush1.bf16.msra.mxu0 0
  %380 = vmatprep.subr.bf16.mxu0 0
  %381 = vmatpush1.bf16.msra.mxu0 0
  %382 = vmatprep.subr.bf16.mxu0 0
  %383 = vmatpush1.bf16.msra.mxu0 0
  %384 = vmatprep.subr.bf16.mxu0 0
  %385 = vmatpush1.bf16.msra.mxu0 0
  %386 = vmatprep.subr.bf16.mxu0 0
  %387 = vmatpush1.bf16.msra.mxu0 0
  %388 = vmatprep.subr.bf16.mxu0 0
  %389 = vmatpush1.bf16.msra.mxu0 0
  %390 = vmatprep.mubr.bf16.mxu0 0
  %391 = vmatmul.mubr.bf16.gmra.mrb[0].mxu0 %v309
  %v392 = vpop.f32.mrb[0].mxu0
  %v393 = vadd.f32 %v353, %v392
  %v394 = vpop.f32.mrb[0].mxu0
  %v395 = vpop.f32.mrb[0].mxu0
  %v396 = vpop.f32.mrb[0].mxu0
  %397 = vdwg.mxu0
  %v398 = vadd.f32 %v393, %v217
  %v399 = vxor.u32 %v398, 2147483648
  %v400 = vmul.f32 %v399, 1.442695
  %v401 = vpow.pop %v400
  %v402 = vadd.f32 %v401, 1.0
  %v403 = vrcp.pop %v402
  %v404 = vmul.f32 1.0, %v403
  %v405 = vtanh.pop %v398
  %407 = vrot.lane.b32.xlu0 %v287, 32
  %v408 = vpop.permute.xlu0 %407
  %v410 = vmul.f32 %v404, %v408
  %412 = vrot.lane.b32.xlu0 %v405, 64
  %v413 = vpop.permute.xlu0 %412
  %v415 = vmul.f32 %v404, %v413
  %417 = vrot.lane.b32.xlu0 %v415, 32
  %v418 = vpop.permute.xlu0 %417
  %v420 = vadd.f32 %v410, %v418
  %v421 = vtanh.pop %v420
  %423 = vrot.lane.b32.xlu0 %v421, 64
  %v424 = vpop.permute.xlu0 %423
  %v426 = vmul.f32 %v404, %v424
  %s427 = scalar_lea.vmem %s1, 2
  %v428 = vld [vmem:[%s427] sm:$0x3]
  %430 = vset.pattern.permute.xlu0 0
  %431 = vperm.xlu0 %430, %v428
  %v432 = vpop.permute.xlu0 %431
  %434 = vrot.lane.b32.xlu0 %v432, 96
  %v435 = vpop.permute.xlu0 %434
  %v437 = vmul.f32 %v426, %v435
  %439 = vrot.lane.b32.xlu0 %v437, 32
  %v440 = vpop.permute.xlu0 %439
  %s442 = scalar_lea.vmem %s5, 2
  %443 = vst.msk [vmem:[%s442] sm:$0x3] %vm268, %v440
  %444 = vrot.lane.b32.xlu0 %v437, 16
  %v445 = vpop.permute.xlu0 %444
  %s447 = scalar_lea.vmem %s6, 2
  %448 = vst.msk [vmem:[%s447] sm:$0x3] %vm268, %v445
  %v449 = vsub.f32 1.0, %v432
  %451 = vrot.lane.b32.xlu0 %v281, 32
  %v452 = vpop.permute.xlu0 %451
  %v454 = vmul.f32 %v449, %v452
  %456 = vrot.lane.b32.xlu0 %v454, 96
  %v457 = vpop.permute.xlu0 %456
  %v459 = vadd.f32 %v437, %v457
  %461 = vrot.lane.b32.xlu0 %v420, 96
  %v462 = vpop.permute.xlu0 %461
  %v464 = vmul.f32 %v432, %v462
  %v465 = vmul.f32 %v449, %v287
  %v466 = vadd.f32 %v464, %v465
  %v467 = vld [vmem:[%s45] sm:$0x1]
  %v468 = vld [vmem:[%s0] sm:$0x1]
  %v471 = vunpack.c.l.s4 1966171168
  %v472 = vunpack.c.0.s8 %v471
  %v473 = vlaneseq
  %v474 = vshrl.u32 %v473, 7
  %v475 = vsub.s32 %v472, %v474
  %v476 = vrot.slane %v468, %v475
  %v478 = vunpack.c.l.s4 1966171168
  %v479 = vunpack.c.0.s8 %v478
  %v480 = vlaneseq
  %v481 = vshrl.u32 %v480, 7
  %v482 = vsub.s32 %v479, %v481
  %v483 = vrot.slane %v476, %v482
  %484 = vrot.lane.b32.xlu0 %v483, 64
  %v485 = vpop.permute.xlu0 %484
  %v488 = vsel %vm64, %v467, %v485
  %v490 = vpack.c.bf16 %v459, %v459
  %492 = vrot.lane.b32.xlu0 %v490, 32
  %v493 = vpop.permute.xlu0 %492
  %v495 = vsel %vm81, %v493, 0
  %497 = vmatprep.subr.bf16.mxu0 0
  %498 = vmatpush1.bf16.msra.mxu0 %v77
  %499 = vmatprep.subr.bf16.mxu0 0
  %500 = vmatpush1.bf16.msra.mxu0 %v78
  %501 = vmatprep.subr.bf16.mxu0 0
  %502 = vmatpush1.bf16.msra.mxu0 0
  %503 = vmatprep.subr.bf16.mxu0 0
  %504 = vmatpush1.bf16.msra.mxu0 0
  %505 = vmatprep.subr.bf16.mxu0 0
  %506 = vmatpush1.bf16.msra.mxu0 0
  %507 = vmatprep.subr.bf16.mxu0 0
  %508 = vmatpush1.bf16.msra.mxu0 0
  %509 = vmatprep.subr.bf16.mxu0 0
  %510 = vmatpush1.bf16.msra.mxu0 0
  %511 = vmatprep.subr.bf16.mxu0 0
  %512 = vmatpush1.bf16.msra.mxu0 0
  %513 = vmatprep.subr.bf16.mxu0 0
  %514 = vmatpush1.bf16.msra.mxu0 0
  %515 = vmatprep.subr.bf16.mxu0 0
  %516 = vmatpush1.bf16.msra.mxu0 0
  %517 = vmatprep.subr.bf16.mxu0 0
  %518 = vmatpush1.bf16.msra.mxu0 0
  %519 = vmatprep.subr.bf16.mxu0 0
  %520 = vmatpush1.bf16.msra.mxu0 0
  %521 = vmatprep.subr.bf16.mxu0 0
  %522 = vmatpush1.bf16.msra.mxu0 0
  %523 = vmatprep.subr.bf16.mxu0 0
  %524 = vmatpush1.bf16.msra.mxu0 0
  %525 = vmatprep.subr.bf16.mxu0 0
  %526 = vmatpush1.bf16.msra.mxu0 0
  %527 = vmatprep.subr.bf16.mxu0 0
  %528 = vmatpush1.bf16.msra.mxu0 0
  %529 = vmatprep.mubr.bf16.mxu0 0
  %530 = vmatmul.mubr.bf16.gmra.mrb[0].mxu0 %v495
  %v531 = vpop.f32.mrb[0].mxu0
  %v532 = vadd.f32 0.0, %v531
  %v533 = vpop.f32.mrb[0].mxu0
  %v534 = vpop.f32.mrb[0].mxu0
  %v535 = vpop.f32.mrb[0].mxu0
  %536 = vdwg.mxu0
  %537 = vmatprep.subr.bf16.mxu0 0
  %538 = vmatpush1.bf16.msra.mxu0 %v157
  %539 = vmatprep.subr.bf16.mxu0 0
  %540 = vmatpush1.bf16.msra.mxu0 %v158
  %541 = vmatprep.subr.bf16.mxu0 0
  %542 = vmatpush1.bf16.msra.mxu0 %v159
  %543 = vmatprep.subr.bf16.mxu0 0
  %544 = vmatpush1.bf16.msra.mxu0 %v160
  %545 = vmatprep.subr.bf16.mxu0 0
  %546 = vmatpush1.bf16.msra.mxu0 %v161
  %547 = vmatprep.subr.bf16.mxu0 0
  %548 = vmatpush1.bf16.msra.mxu0 %v162
  %549 = vmatprep.subr.bf16.mxu0 0
  %550 = vmatpush1.bf16.msra.mxu0 %v163
  %551 = vmatprep.subr.bf16.mxu0 0
  %552 = vmatpush1.bf16.msra.mxu0 %v164
  %553 = vmatprep.subr.bf16.mxu0 0
  %554 = vmatpush1.bf16.msra.mxu0 0
  %555 = vmatprep.subr.bf16.mxu0 0
  %556 = vmatpush1.bf16.msra.mxu0 0
  %557 = vmatprep.subr.bf16.mxu0 0
  %558 = vmatpush1.bf16.msra.mxu0 0
  %559 = vmatprep.subr.bf16.mxu0 0
  %560 = vmatpush1.bf16.msra.mxu0 0
  %561 = vmatprep.subr.bf16.mxu0 0
  %562 = vmatpush1.bf16.msra.mxu0 0
  %563 = vmatprep.subr.bf16.mxu0 0
  %564 = vmatpush1.bf16.msra.mxu0 0
  %565 = vmatprep.subr.bf16.mxu0 0
  %566 = vmatpush1.bf16.msra.mxu0 0
  %567 = vmatprep.subr.bf16.mxu0 0
  %568 = vmatpush1.bf16.msra.mxu0 0
  %569 = vmatprep.mubr.bf16.mxu0 0
  %570 = vmatmul.mubr.bf16.gmra.mrb[0].mxu0 %v488
  %v571 = vpop.f32.mrb[0].mxu0
  %v572 = vadd.f32 %v532, %v571
  %v573 = vpop.f32.mrb[0].mxu0
  %v574 = vpop.f32.mrb[0].mxu0
  %v575 = vpop.f32.mrb[0].mxu0
  %576 = vdwg.mxu0
  %v577 = vadd.f32 %v572, %v217
  %v578 = vxor.u32 %v577, 2147483648
  %v579 = vmul.f32 %v578, 1.442695
  %v580 = vpow.pop %v579
  %v581 = vadd.f32 %v580, 1.0
  %v582 = vrcp.pop %v581
  %v583 = vmul.f32 1.0, %v582
  %v584 = vtanh.pop %v577
  %586 = vrot.lane.b32.xlu0 %v466, 32
  %v587 = vpop.permute.xlu0 %586
  %v589 = vmul.f32 %v583, %v587
  %591 = vrot.lane.b32.xlu0 %v584, 64
  %v592 = vpop.permute.xlu0 %591
  %v594 = vmul.f32 %v583, %v592
  %596 = vrot.lane.b32.xlu0 %v594, 32
  %v597 = vpop.permute.xlu0 %596
  %v599 = vadd.f32 %v589, %v597
  %v600 = vtanh.pop %v599
  %602 = vrot.lane.b32.xlu0 %v600, 64
  %v603 = vpop.permute.xlu0 %602
  %v605 = vmul.f32 %v583, %v603
  %v606 = vld [vmem:[%s245] sm:$0x3]
  %v607 = vld [vmem:[%s1] sm:$0x3]
  %609 = vset.pattern.permute.xlu0 0
  %610 = vperm.xlu0 %609, %v606
  %v611 = vpop.permute.xlu0 %610
  %614 = vset.pattern.permute.xlu0 0
  %615 = vperm.xlu0 %614, %v607
  %v616 = vpop.permute.xlu0 %615
  %v618 = vsel %vm257, %v611, %v616
  %620 = vrot.lane.b32.xlu0 %v618, 96
  %v621 = vpop.permute.xlu0 %620
  %v623 = vmul.f32 %v605, %v621
  %625 = vrot.lane.b32.xlu0 %v623, 32
  %v626 = vpop.permute.xlu0 %625
  %s628 = scalar_lea.vmem %s5, 4
  %629 = vst.msk [vmem:[%s628] sm:$0x3] %vm268, %v626
  %630 = vrot.lane.b32.xlu0 %v623, 16
  %v631 = vpop.permute.xlu0 %630
  %633 = vst.msk [vmem:[%s6] sm:$0x3] %vm268, %v631
  // Predicated region
  $region22: #{mimn_forward.6} parent=0 // pred_check
    _
  $region23: #{mimn_forward.6} parent=0 // pred_check_branch
    %635 = sbr.rel (0) target = $region25
  $region24: #{mimn_forward.6} parent=0 // pred_region
    _
  $region25: #{mimn_forward.6} parent=0 // pred_fallthru
    _
  // Predicated region
  $region26: #{mimn_forward.6} parent=0 // pred_check
    _
  $region27: #{mimn_forward.6} parent=0 // pred_check_branch
    %637 = sbr.rel (0) target = $region29
  $region28: #{mimn_forward.6} parent=0 // pred_region
    _
  $region29: #{mimn_forward.6} parent=0 // pred_fallthru
    _
  // Predicated region
  $region30: #{mimn_forward.6} parent=0 // pred_check
    _
  $region31: #{mimn_forward.6} parent=0 // pred_check_branch
    %639 = sbr.rel (0) target = $region33
  $region32: #{mimn_forward.6} parent=0 // pred_region
    _
  $region33: #{mimn_forward.6} parent=0 // pred_fallthru
    _
  // Predicated region
  $region34: #{mimn_forward.6} parent=0 // pred_check
    _
  $region35: #{mimn_forward.6} parent=0 // pred_check_branch
    %641 = sbr.rel (0) target = $region37
  $region36: #{mimn_forward.6} parent=0 // pred_region
    _
  $region37: #{mimn_forward.6} parent=0 // pred_fallthru
    _

// kernel: mimn_forward.4
$region0: #{mimn_forward.4}
  #allocation0 [shape = 'u32[]', space=smem, size = 0x4, offset = 0x4, fixed_abs, tag = 'smem constant byte address 0x4 - core index']
  #allocation1 [shape = 'u32[144,128]{1,0:T(1,128)}', space=vmem, size = 0x12000, scoped, tag = 'internal scratch']
  %s0 = inlined_call_operand.vmem [shape: bf16[8,2,32], index: 0, kind: input, shape index: {}]
  %s1 = inlined_call_operand.vmem [shape: f32[8,2,1], index: 1, kind: input, shape index: {}]
  %s2 = inlined_call_operand.vmem [shape: bf16[64,128], index: 2, kind: input, shape index: {}]
  %s3 = inlined_call_operand.vmem [shape: bf16[32,128], index: 3, kind: input, shape index: {}]
  %s4 = inlined_call_operand.vmem [shape: f32[1,128], index: 4, kind: input, shape index: {}]
  %s5 = inlined_call_operand.vmem [shape: f32[8,2,16], index: 5, kind: output, shape index: {0}]
  %s6 = inlined_call_operand.vmem [shape: f32[8,2,16], index: 6, kind: output, shape index: {1}]
  %7 = xla_tuple %s5, %s6
  %s8 = sld [smem:[#allocation0]]
  $region38: #{mimn_forward.4} parent=0
    _
  %s10 = ssub.s32 1, %s8
  %s11 = scalar_select 0, %s10, %s8
  // Predicated region
  $region2: #{mimn_forward.4} parent=0 // pred_check
    _
  $region3: #{mimn_forward.4} parent=0 // pred_check_branch
    %13 = sbr.rel (0) target = $region5
  $region4: #{mimn_forward.4} parent=0 // pred_region
    _
  $region5: #{mimn_forward.4} parent=0 // pred_fallthru
    _
  // Predicated region
  $region6: #{mimn_forward.4} parent=0 // pred_check
    _
  $region7: #{mimn_forward.4} parent=0 // pred_check_branch
    %15 = sbr.rel (0) target = $region9
  $region8: #{mimn_forward.4} parent=0 // pred_region
    _
  $region9: #{mimn_forward.4} parent=0 // pred_fallthru
    _
  // Predicated region
  $region10: #{mimn_forward.4} parent=0 // pred_check
    _
  $region11: #{mimn_forward.4} parent=0 // pred_check_branch
    %17 = sbr.rel (0) target = $region13
  $region12: #{mimn_forward.4} parent=0 // pred_region
    _
  $region13: #{mimn_forward.4} parent=0 // pred_fallthru
    _
  // Predicated region
  $region14: #{mimn_forward.4} parent=0 // pred_check
    _
  $region15: #{mimn_forward.4} parent=0 // pred_check_branch
    %19 = sbr.rel (0) target = $region17
  $region16: #{mimn_forward.4} parent=0 // pred_region
    _
  $region17: #{mimn_forward.4} parent=0 // pred_fallthru
    _
  // Predicated region
  $region18: #{mimn_forward.4} parent=0 // pred_check
    _
  $region19: #{mimn_forward.4} parent=0 // pred_check_branch
    %21 = sbr.rel (0) target = $region21
  $region20: #{mimn_forward.4} parent=0 // pred_region
    _
  $region21: #{mimn_forward.4} parent=0 // pred_fallthru
    _
  %v23 = vld [vmem:[%s2] sm:$0xf]
  %v24 = vld [vmem:[%s2 + $0x4] sm:$0xf]
  %v25 = vld [vmem:[%s2 + $0x8] sm:$0xf]
  %v26 = vld [vmem:[%s2 + $0xc] sm:$0xf]
  %v27 = vld [vmem:[%s2 + $0x10] sm:$0xf]
  %v28 = vld [vmem:[%s2 + $0x14] sm:$0xf]
  %v29 = vld [vmem:[%s2 + $0x18] sm:$0xf]
  %v30 = vld [vmem:[%s2 + $0x1c] sm:$0xf]
  %v31 = vld [vmem:[%s3] sm:$0xf]
  %v32 = vld [vmem:[%s3 + $0x4] sm:$0xf]
  %v33 = vld [vmem:[%s3 + $0x8] sm:$0xf]
  %v34 = vld [vmem:[%s3 + $0xc] sm:$0xf]
  %v35 = vld [vmem:[%s4] sm:$0x1]
  %v36 = vld [vmem:[%s0] sm:$0x1]
  %s37 = scalar_lea.vmem %s0, 7
  %v38 = vld [vmem:[%s37] sm:$0x1]
  %v41 = vunpack.c.l.s4 1966171168
  %v42 = vunpack.c.0.s8 %v41
  %v43 = vlaneseq
  %v44 = vshrl.u32 %v43, 7
  %v45 = vsub.s32 %v42, %v44
  %v46 = vrot.slane %v38, %v45
  %v48 = vunpack.c.l.s4 1966171168
  %v49 = vunpack.c.0.s8 %v48
  %v50 = vlaneseq
  %v51 = vshrl.u32 %v50, 7
  %v52 = vsub.s32 %v49, %v51
  %v53 = vrot.slane %v46, %v52
  %54 = vrot.lane.b32.xlu0 %v53, 32
  %v55 = vpop.permute.xlu0 %54
  %vm56 = vcmask 261120
  %v59 = vsel %vm56, %v36, %v55
  %v64 = vunpack.c.l.b16 %v31
  %v65 = vunpack.c.l.b16 %v32
  %v66 = vunpack.c.l.b16 %v33
  %v67 = vunpack.c.l.b16 %v34
  %v68 = vpack.c.b16 %v65, %v64
  %v69 = vpack.c.b16 %v67, %v66
  %v73 = vsel %vm56, 0, 0
  %75 = vmatprep.subr.bf16.mxu0 0
  %76 = vmatpush1.bf16.msra.mxu0 %v68
  %77 = vmatprep.subr.bf16.mxu0 0
  %78 = vmatpush1.bf16.msra.mxu0 %v69
  %79 = vmatprep.subr.bf16.mxu0 0
  %80 = vmatpush1.bf16.msra.mxu0 0
  %81 = vmatprep.subr.bf16.mxu0 0
  %82 = vmatpush1.bf16.msra.mxu0 0
  %83 = vmatprep.subr.bf16.mxu0 0
  %84 = vmatpush1.bf16.msra.mxu0 0
  %85 = vmatprep.subr.bf16.mxu0 0
  %86 = vmatpush1.bf16.msra.mxu0 0
  %87 = vmatprep.subr.bf16.mxu0 0
  %88 = vmatpush1.bf16.msra.mxu0 0
  %89 = vmatprep.subr.bf16.mxu0 0
  %90 = vmatpush1.bf16.msra.mxu0 0
  %91 = vmatprep.subr.bf16.mxu0 0
  %92 = vmatpush1.bf16.msra.mxu0 0
  %93 = vmatprep.subr.bf16.mxu0 0
  %94 = vmatpush1.bf16.msra.mxu0 0
  %95 = vmatprep.subr.bf16.mxu0 0
  %96 = vmatpush1.bf16.msra.mxu0 0
  %97 = vmatprep.subr.bf16.mxu0 0
  %98 = vmatpush1.bf16.msra.mxu0 0
  %99 = vmatprep.subr.bf16.mxu0 0
  %100 = vmatpush1.bf16.msra.mxu0 0
  %101 = vmatprep.subr.bf16.mxu0 0
  %102 = vmatpush1.bf16.msra.mxu0 0
  %103 = vmatprep.subr.bf16.mxu0 0
  %104 = vmatpush1.bf16.msra.mxu0 0
  %105 = vmatprep.subr.bf16.mxu0 0
  %106 = vmatpush1.bf16.msra.mxu0 0
  %107 = vmatprep.mubr.bf16.mxu0 0
  %108 = vmatmul.mubr.bf16.gmra.mrb[0].mxu0 %v73
  %v109 = vpop.f32.mrb[0].mxu0
  %v110 = vadd.f32 0.0, %v109
  %v111 = vpop.f32.mrb[0].mxu0
  %v112 = vpop.f32.mrb[0].mxu0
  %v113 = vpop.f32.mrb[0].mxu0
  %114 = vdwg.mxu0
  %v123 = vunpack.c.l.b16 %v23
  %v124 = vunpack.c.l.b16 %v24
  %v125 = vunpack.c.l.b16 %v25
  %v126 = vunpack.c.l.b16 %v26
  %v127 = vunpack.c.l.b16 %v27
  %v128 = vunpack.c.l.b16 %v28
  %v129 = vunpack.c.l.b16 %v29
  %v130 = vunpack.c.l.b16 %v30
  %v131 = vpack.c.b16 %v124, %v123
  %v132 = vpack.c.b16 %v126, %v125
  %v133 = vpack.c.b16 %v128, %v127
  %v134 = vpack.c.b16 %v130, %v129
  %vm139 = vcmask 523264
  %v140 = vsel %vm139, %v59, 0
  %142 = vmatprep.subr.bf16.mxu0 0
  %143 = vmatpush1.bf16.msra.mxu0 %v131
  %144 = vmatprep.subr.bf16.mxu0 0
  %145 = vmatpush1.bf16.msra.mxu0 %v132
  %146 = vmatprep.subr.bf16.mxu0 0
  %147 = vmatpush1.bf16.msra.mxu0 %v133
  %148 = vmatprep.subr.bf16.mxu0 0
  %149 = vmatpush1.bf16.msra.mxu0 %v134
  %150 = vmatprep.subr.bf16.mxu0 0
  %151 = vmatpush1.bf16.msra.mxu0 0
  %152 = vmatprep.subr.bf16.mxu0 0
  %153 = vmatpush1.bf16.msra.mxu0 0
  %154 = vmatprep.subr.bf16.mxu0 0
  %155 = vmatpush1.bf16.msra.mxu0 0
  %156 = vmatprep.subr.bf16.mxu0 0
  %157 = vmatpush1.bf16.msra.mxu0 0
  %158 = vmatprep.subr.bf16.mxu0 0
  %159 = vmatpush1.bf16.msra.mxu0 0
  %160 = vmatprep.subr.bf16.mxu0 0
  %161 = vmatpush1.bf16.msra.mxu0 0
  %162 = vmatprep.subr.bf16.mxu0 0
  %163 = vmatpush1.bf16.msra.mxu0 0
  %164 = vmatprep.subr.bf16.mxu0 0
  %165 = vmatpush1.bf16.msra.mxu0 0
  %166 = vmatprep.subr.bf16.mxu0 0
  %167 = vmatpush1.bf16.msra.mxu0 0
  %168 = vmatprep.subr.bf16.mxu0 0
  %169 = vmatpush1.bf16.msra.mxu0 0
  %170 = vmatprep.subr.bf16.mxu0 0
  %171 = vmatpush1.bf16.msra.mxu0 0
  %172 = vmatprep.subr.bf16.mxu0 0
  %173 = vmatpush1.bf16.msra.mxu0 0
  %174 = vmatprep.mubr.bf16.mxu0 0
  %175 = vmatmul.mubr.bf16.gmra.mrb[0].mxu0 %v140
  %v176 = vpop.f32.mrb[0].mxu0
  %v177 = vadd.f32 %v110, %v176
  %v178 = vpop.f32.mrb[0].mxu0
  %v179 = vpop.f32.mrb[0].mxu0
  %v180 = vpop.f32.mrb[0].mxu0
  %181 = vdwg.mxu0
  %v183 = vlaneseq
  %v184 = vshrl.u32 %v183, 7
  %v185 = vsub.s32 0, %v184
  %v186 = vrot.slane %v35, %v185
  %v188 = vadd.f32 %v177, %v186
  %v189 = vxor.u32 %v188, 2147483648
  %v190 = vmul.f32 %v189, 1.442695
  %v191 = vpow.pop %v190
  %v192 = vadd.f32 %v191, 1.0
  %v193 = vrcp.pop %v192
  %v194 = vmul.f32 1.0, %v193
  %v195 = vtanh.pop %v188
  %v196 = vmul.f32 %v194, 0.0
  %198 = vrot.lane.b32.xlu0 %v195, 64
  %v199 = vpop.permute.xlu0 %198
  %v201 = vmul.f32 %v194, %v199
  %203 = vrot.lane.b32.xlu0 %v201, 32
  %v204 = vpop.permute.xlu0 %203
  %v206 = vadd.f32 %v196, %v204
  %v207 = vtanh.pop %v206
  %209 = vrot.lane.b32.xlu0 %v207, 64
  %v210 = vpop.permute.xlu0 %209
  %v212 = vmul.f32 %v194, %v210
  %v213 = vld [vmem:[%s1] sm:$0x3]
  %s214 = scalar_lea.vmem %s1, 14
  %v215 = vld [vmem:[%s214] sm:$0x3]
  %217 = vset.pattern.permute.xlu0 0
  %218 = vperm.xlu0 %217, %v213
  %v219 = vpop.permute.xlu0 %218
  %222 = vset.pattern.permute.xlu0 0
  %223 = vperm.xlu0 %222, %v215
  %v224 = vpop.permute.xlu0 %223
  %vm226 = vcmask 130048
  %v227 = vsel %vm226, %v219, %v224
  %229 = vrot.lane.b32.xlu0 %v227, 96
  %v230 = vpop.permute.xlu0 %229
  %v232 = vmul.f32 %v212, %v230
  %234 = vrot.lane.b32.xlu0 %v232, 32
  %v235 = vpop.permute.xlu0 %234
  %vm237 = vcmask 123904
  %238 = vst.msk [vmem:[%s5] sm:$0x3] %vm237, %v235
  %239 = vrot.lane.b32.xlu0 %v232, 16
  %v240 = vpop.permute.xlu0 %239
  %s242 = scalar_lea.vmem %s6, 14
  %243 = vst.msk [vmem:[%s242] sm:$0x3] %vm237, %v240
  %v244 = vsub.f32 1.0, %v227
  %v245 = vmul.f32 %v244, 0.0
  %247 = vrot.lane.b32.xlu0 %v245, 96
  %v248 = vpop.permute.xlu0 %247
  %v250 = vadd.f32 %v232, %v248
  %252 = vrot.lane.b32.xlu0 %v206, 96
  %v253 = vpop.permute.xlu0 %252
  %v255 = vmul.f32 %v227, %v253
  %v256 = vadd.f32 %v255, %v245
  %s257 = scalar_lea.vmem %s0, 1
  %v258 = vld [vmem:[%s257] sm:$0x1]
  %s259 = scalar_lea.vmem %s0, 6
  %v260 = vld [vmem:[%s259] sm:$0x1]
  %v263 = vunpack.c.l.s4 1966171168
  %v264 = vunpack.c.0.s8 %v263
  %v265 = vlaneseq
  %v266 = vshrl.u32 %v265, 7
  %v267 = vsub.s32 %v264, %v266
  %v268 = vrot.slane %v260, %v267
  %v270 = vunpack.c.l.s4 1966171168
  %v271 = vunpack.c.0.s8 %v270
  %v272 = vlaneseq
  %v273 = vshrl.u32 %v272, 7
  %v274 = vsub.s32 %v271, %v273
  %v275 = vrot.slane %v268, %v274
  %276 = vrot.lane.b32.xlu0 %v275, 32
  %v277 = vpop.permute.xlu0 %276
  %v280 = vsel %vm56, %v258, %v277
  %v281 = vpack.c.bf16 %v250, %v250
  %283 = vrot.lane.b32.xlu0 %v281, 32
  %v284 = vpop.permute.xlu0 %283
  %v286 = vsel %vm56, %v284, 0
  %288 = vmatprep.subr.bf16.mxu0 0
  %289 = vmatpush1.bf16.msra.mxu0 %v68
  %290 = vmatprep.subr.bf16.mxu0 0
  %291 = vmatpush1.bf16.msra.mxu0 %v69
  %292 = vmatprep.subr.bf16.mxu0 0
  %293 = vmatpush1.bf16.msra.mxu0 0
  %294 = vmatprep.subr.bf16.mxu0 0
  %295 = vmatpush1.bf16.msra.mxu0 0
  %296 = vmatprep.subr.bf16.mxu0 0
  %297 = vmatpush1.bf16.msra.mxu0 0
  %298 = vmatprep.subr.bf16.mxu0 0
  %299 = vmatpush1.bf16.msra.mxu0 0
  %300 = vmatprep.subr.bf16.mxu0 0
  %301 = vmatpush1.bf16.msra.mxu0 0
  %302 = vmatprep.subr.bf16.mxu0 0
  %303 = vmatpush1.bf16.msra.mxu0 0
  %304 = vmatprep.subr.bf16.mxu0 0
  %305 = vmatpush1.bf16.msra.mxu0 0
  %306 = vmatprep.subr.bf16.mxu0 0
  %307 = vmatpush1.bf16.msra.mxu0 0
  %308 = vmatprep.subr.bf16.mxu0 0
  %309 = vmatpush1.bf16.msra.mxu0 0
  %310 = vmatprep.subr.bf16.mxu0 0
  %311 = vmatpush1.bf16.msra.mxu0 0
  %312 = vmatprep.subr.bf16.mxu0 0
  %313 = vmatpush1.bf16.msra.mxu0 0
  %314 = vmatprep.subr.bf16.mxu0 0
  %315 = vmatpush1.bf16.msra.mxu0 0
  %316 = vmatprep.subr.bf16.mxu0 0
  %317 = vmatpush1.bf16.msra.mxu0 0
  %318 = vmatprep.subr.bf16.mxu0 0
  %319 = vmatpush1.bf16.msra.mxu0 0
  %320 = vmatprep.mubr.bf16.mxu0 0
  %321 = vmatmul.mubr.bf16.gmra.mrb[0].mxu0 %v286
  %v322 = vpop.f32.mrb[0].mxu0
  %v323 = vadd.f32 0.0, %v322
  %v324 = vpop.f32.mrb[0].mxu0
  %v325 = vpop.f32.mrb[0].mxu0
  %v326 = vpop.f32.mrb[0].mxu0
  %327 = vdwg.mxu0
  %v328 = vsel %vm139, %v280, 0
  %330 = vmatprep.subr.bf16.mxu0 0
  %331 = vmatpush1.bf16.msra.mxu0 %v131
  %332 = vmatprep.subr.bf16.mxu0 0
  %333 = vmatpush1.bf16.msra.mxu0 %v132
  %334 = vmatprep.subr.bf16.mxu0 0
  %335 = vmatpush1.bf16.msra.mxu0 %v133
  %336 = vmatprep.subr.bf16.mxu0 0
  %337 = vmatpush1.bf16.msra.mxu0 %v134
  %338 = vmatprep.subr.bf16.mxu0 0
  %339 = vmatpush1.bf16.msra.mxu0 0
  %340 = vmatprep.subr.bf16.mxu0 0
  %341 = vmatpush1.bf16.msra.mxu0 0
  %342 = vmatprep.subr.bf16.mxu0 0
  %343 = vmatpush1.bf16.msra.mxu0 0
  %344 = vmatprep.subr.bf16.mxu0 0
  %345 = vmatpush1.bf16.msra.mxu0 0
  %346 = vmatprep.subr.bf16.mxu0 0
  %347 = vmatpush1.bf16.msra.mxu0 0
  %348 = vmatprep.subr.bf16.mxu0 0
  %349 = vmatpush1.bf16.msra.mxu0 0
  %350 = vmatprep.subr.bf16.mxu0 0
  %351 = vmatpush1.bf16.msra.mxu0 0
  %352 = vmatprep.subr.bf16.mxu0 0
  %353 = vmatpush1.bf16.msra.mxu0 0
  %354 = vmatprep.subr.bf16.mxu0 0
  %355 = vmatpush1.bf16.msra.mxu0 0
  %356 = vmatprep.subr.bf16.mxu0 0
  %357 = vmatpush1.bf16.msra.mxu0 0
  %358 = vmatprep.subr.bf16.mxu0 0
  %359 = vmatpush1.bf16.msra.mxu0 0
  %360 = vmatprep.subr.bf16.mxu0 0
  %361 = vmatpush1.bf16.msra.mxu0 0
  %362 = vmatprep.mubr.bf16.mxu0 0
  %363 = vmatmul.mubr.bf16.gmra.mrb[0].mxu0 %v328
  %v364 = vpop.f32.mrb[0].mxu0
  %v365 = vadd.f32 %v323, %v364
  %v366 = vpop.f32.mrb[0].mxu0
  %v367 = vpop.f32.mrb[0].mxu0
  %v368 = vpop.f32.mrb[0].mxu0
  %369 = vdwg.mxu0
  %v370 = vadd.f32 %v365, %v186
  %v371 = vxor.u32 %v370, 2147483648
  %v372 = vmul.f32 %v371, 1.442695
  %v373 = vpow.pop %v372
  %v374 = vadd.f32 %v373, 1.0
  %v375 = vrcp.pop %v374
  %v376 = vmul.f32 1.0, %v375
  %v377 = vtanh.pop %v370
  %379 = vrot.lane.b32.xlu0 %v256, 32
  %v380 = vpop.permute.xlu0 %379
  %v382 = vmul.f32 %v376, %v380
  %384 = vrot.lane.b32.xlu0 %v377, 64
  %v385 = vpop.permute.xlu0 %384
  %v387 = vmul.f32 %v376, %v385
  %389 = vrot.lane.b32.xlu0 %v387, 32
  %v390 = vpop.permute.xlu0 %389
  %v392 = vadd.f32 %v382, %v390
  %v393 = vtanh.pop %v392
  %395 = vrot.lane.b32.xlu0 %v393, 64
  %v396 = vpop.permute.xlu0 %395
  %v398 = vmul.f32 %v376, %v396
  %s399 = scalar_lea.vmem %s1, 2
  %v400 = vld [vmem:[%s399] sm:$0x3]
  %s401 = scalar_lea.vmem %s1, 12
  %v402 = vld [vmem:[%s401] sm:$0x3]
  %404 = vset.pattern.permute.xlu0 0
  %405 = vperm.xlu0 %404, %v400
  %v406 = vpop.permute.xlu0 %405
  %409 = vset.pattern.permute.xlu0 0
  %410 = vperm.xlu0 %409, %v402
  %v411 = vpop.permute.xlu0 %410
  %v413 = vsel %vm226, %v406, %v411
  %415 = vrot.lane.b32.xlu0 %v413, 96
  %v416 = vpop.permute.xlu0 %415
  %v418 = vmul.f32 %v398, %v416
  %420 = vrot.lane.b32.xlu0 %v418, 32
  %v421 = vpop.permute.xlu0 %420
  %s423 = scalar_lea.vmem %s5, 2
  %424 = vst.msk [vmem:[%s423] sm:$0x3] %vm237, %v421
  %425 = vrot.lane.b32.xlu0 %v418, 16
  %v426 = vpop.permute.xlu0 %425
  %s428 = scalar_lea.vmem %s6, 12
  %429 = vst.msk [vmem:[%s428] sm:$0x3] %vm237, %v426
  %v430 = vsub.f32 1.0, %v413
  %432 = vrot.lane.b32.xlu0 %v250, 32
  %v433 = vpop.permute.xlu0 %432
  %v435 = vmul.f32 %v430, %v433
  %437 = vrot.lane.b32.xlu0 %v435, 96
  %v438 = vpop.permute.xlu0 %437
  %v440 = vadd.f32 %v418, %v438
  %442 = vrot.lane.b32.xlu0 %v392, 96
  %v443 = vpop.permute.xlu0 %442
  %v445 = vmul.f32 %v413, %v443
  %v446 = vmul.f32 %v430, %v256
  %v447 = vadd.f32 %v445, %v446
  %s448 = scalar_lea.vmem %s0, 2
  %v449 = vld [vmem:[%s448] sm:$0x1]
  %s450 = scalar_lea.vmem %s0, 5
  %v451 = vld [vmem:[%s450] sm:$0x1]
  %v454 = vunpack.c.l.s4 1966171168
  %v455 = vunpack.c.0.s8 %v454
  %v456 = vlaneseq
  %v457 = vshrl.u32 %v456, 7
  %v458 = vsub.s32 %v455, %v457
  %v459 = vrot.slane %v451, %v458
  %v461 = vunpack.c.l.s4 1966171168
  %v462 = vunpack.c.0.s8 %v461
  %v463 = vlaneseq
  %v464 = vshrl.u32 %v463, 7
  %v465 = vsub.s32 %v462, %v464
  %v466 = vrot.slane %v459, %v465
  %467 = vrot.lane.b32.xlu0 %v466, 32
  %v468 = vpop.permute.xlu0 %467
  %v471 = vsel %vm56, %v449, %v468
  %v472 = vpack.c.bf16 %v440, %v440
  %474 = vrot.lane.b32.xlu0 %v472, 32
  %v475 = vpop.permute.xlu0 %474
  %v477 = vsel %vm56, %v475, 0
  %479 = vmatprep.subr.bf16.mxu0 0
  %480 = vmatpush1.bf16.msra.mxu0 %v68
  %481 = vmatprep.subr.bf16.mxu0 0
  %482 = vmatpush1.bf16.msra.mxu0 %v69
  %483 = vmatprep.subr.bf16.mxu0 0
  %484 = vmatpush1.bf16.msra.mxu0 0
  %485 = vmatprep.subr.bf16.mxu0 0
  %486 = vmatpush1.bf16.msra.mxu0 0
  %487 = vmatprep.subr.bf16.mxu0 0
  %488 = vmatpush1.bf16.msra.mxu0 0
  %489 = vmatprep.subr.bf16.mxu0 0
  %490 = vmatpush1.bf16.msra.mxu0 0
  %491 = vmatprep.subr.bf16.mxu0 0
  %492 = vmatpush1.bf16.msra.mxu0 0
  %493 = vmatprep.subr.bf16.mxu0 0
  %494 = vmatpush1.bf16.msra.mxu0 0
  %495 = vmatprep.subr.bf16.mxu0 0
  %496 = vmatpush1.bf16.msra.mxu0 0
  %497 = vmatprep.subr.bf16.mxu0 0
  %498 = vmatpush1.bf16.msra.mxu0 0
  %499 = vmatprep.subr.bf16.mxu0 0
  %500 = vmatpush1.bf16.msra.mxu0 0
  %501 = vmatprep.subr.bf16.mxu0 0
  %502 = vmatpush1.bf16.msra.mxu0 0
  %503 = vmatprep.subr.bf16.mxu0 0
  %504 = vmatpush1.bf16.msra.mxu0 0
  %505 = vmatprep.subr.bf16.mxu0 0
  %506 = vmatpush1.bf16.msra.mxu0 0
  %507 = vmatprep.subr.bf16.mxu0 0
  %508 = vmatpush1.bf16.msra.mxu0 0
  %509 = vmatprep.subr.bf16.mxu0 0
  %510 = vmatpush1.bf16.msra.mxu0 0
  %511 = vmatprep.mubr.bf16.mxu0 0
  %512 = vmatmul.mubr.bf16.gmra.mrb[0].mxu0 %v477
  %v513 = vpop.f32.mrb[0].mxu0
  %v514 = vadd.f32 0.0, %v513
  %v515 = vpop.f32.mrb[0].mxu0
  %v516 = vpop.f32.mrb[0].mxu0
  %v517 = vpop.f32.mrb[0].mxu0
  %518 = vdwg.mxu0
  %v519 = vsel %vm139, %v471, 0
  %521 = vmatprep.subr.bf16.mxu0 0
  %522 = vmatpush1.bf16.msra.mxu0 %v131
  %523 = vmatprep.subr.bf16.mxu0 0
  %524 = vmatpush1.bf16.msra.mxu0 %v132
  %525 = vmatprep.subr.bf16.mxu0 0
  %526 = vmatpush1.bf16.msra.mxu0 %v133
  %527 = vmatprep.subr.bf16.mxu0 0
  %528 = vmatpush1.bf16.msra.mxu0 %v134
  %529 = vmatprep.subr.bf16.mxu0 0
  %530 = vmatpush1.bf16.msra.mxu0 0
  %531 = vmatprep.subr.bf16.mxu0 0
  %532 = vmatpush1.bf16.msra.mxu0 0
  %533 = vmatprep.subr.bf16.mxu0 0
  %534 = vmatpush1.bf16.msra.mxu0 0
  %535 = vmatprep.subr.bf16.mxu0 0
  %536 = vmatpush1.bf16.msra.mxu0 0
  %537 = vmatprep.subr.bf16.mxu0 0
  %538 = vmatpush1.bf16.msra.mxu0 0
  %539 = vmatprep.subr.bf16.mxu0 0
  %540 = vmatpush1.bf16.msra.mxu0 0
  %541 = vmatprep.subr.bf16.mxu0 0
  %542 = vmatpush1.bf16.msra.mxu0 0
  %543 = vmatprep.subr.bf16.mxu0 0
  %544 = vmatpush1.bf16.msra.mxu0 0
  %545 = vmatprep.subr.bf16.mxu0 0
  %546 = vmatpush1.bf16.msra.mxu0 0
  %547 = vmatprep.subr.bf16.mxu0 0
  %548 = vmatpush1.bf16.msra.mxu0 0
  %549 = vmatprep.subr.bf16.mxu0 0
  %550 = vmatpush1.bf16.msra.mxu0 0
  %551 = vmatprep.subr.bf16.mxu0 0
  %552 = vmatpush1.bf16.msra.mxu0 0
  %553 = vmatprep.mubr.bf16.mxu0 0
  %554 = vmatmul.mubr.bf16.gmra.mrb[0].mxu0 %v519
  %v555 = vpop.f32.mrb[0].mxu0
  %v556 = vadd.f32 %v514, %v555
  %v557 = vpop.f32.mrb[0].mxu0
  %v558 = vpop.f32.mrb[0].mxu0
  %v559 = vpop.f32.mrb[0].mxu0
  %560 = vdwg.mxu0
  %v561 = vadd.f32 %v556, %v186
  %v562 = vxor.u32 %v561, 2147483648
  %v563 = vmul.f32 %v562, 1.442695
  %v564 = vpow.pop %v563
  %v565 = vadd.f32 %v564, 1.0
  %v566 = vrcp.pop %v565
  %v567 = vmul.f32 1.0, %v566
  %v568 = vtanh.pop %v561
  %570 = vrot.lane.b32.xlu0 %v447, 32
  %v571 = vpop.permute.xlu0 %570
  %v573 = vmul.f32 %v567, %v571
  %575 = vrot.lane.b32.xlu0 %v568, 64
  %v576 = vpop.permute.xlu0 %575
  %v578 = vmul.f32 %v567, %v576
  %580 = vrot.lane.b32.xlu0 %v578, 32
  %v581 = vpop.permute.xlu0 %580
  %v583 = vadd.f32 %v573, %v581
  %v584 = vtanh.pop %v583
  %586 = vrot.lane.b32.xlu0 %v584, 64
  %v587 = vpop.permute.xlu0 %586
  %v589 = vmul.f32 %v567, %v587
  %s590 = scalar_lea.vmem %s1, 4
  %v591 = vld [vmem:[%s590] sm:$0x3]
  %s592 = scalar_lea.vmem %s1, 10
  %v593 = vld [vmem:[%s592] sm:$0x3]
  %595 = vset.pattern.permute.xlu0 0
  %596 = vperm.xlu0 %595, %v591
  %v597 = vpop.permute.xlu0 %596
  %600 = vset.pattern.permute.xlu0 0
  %601 = vperm.xlu0 %600, %v593
  %v602 = vpop.permute.xlu0 %601
  %v604 = vsel %vm226, %v597, %v602
  %606 = vrot.lane.b32.xlu0 %v604, 96
  %v607 = vpop.permute.xlu0 %606
  %v609 = vmul.f32 %v589, %v607
  %611 = vrot.lane.b32.xlu0 %v609, 32
  %v612 = vpop.permute.xlu0 %611
  %s614 = scalar_lea.vmem %s5, 4
  %615 = vst.msk [vmem:[%s614] sm:$0x3] %vm237, %v612
  %616 = vrot.lane.b32.xlu0 %v609, 16
  %v617 = vpop.permute.xlu0 %616
  %s619 = scalar_lea.vmem %s6, 10
  %620 = vst.msk [vmem:[%s619] sm:$0x3] %vm237, %v617
  %v621 = vsub.f32 1.0, %v604
  %623 = vrot.lane.b32.xlu0 %v440, 32
  %v624 = vpop.permute.xlu0 %623
  %v626 = vmul.f32 %v621, %v624
  %628 = vrot.lane.b32.xlu0 %v626, 96
  %v629 = vpop.permute.xlu0 %628
  %v631 = vadd.f32 %v609, %v629
  %633 = vrot.lane.b32.xlu0 %v583, 96
  %v634 = vpop.permute.xlu0 %633
  %v636 = vmul.f32 %v604, %v634
  %v637 = vmul.f32 %v621, %v447
  %v638 = vadd.f32 %v636, %v637
  %s639 = scalar_lea.vmem %s0, 3
  %v640 = vld [vmem:[%s639] sm:$0x1]
  %s641 = scalar_lea.vmem %s0, 4
  %v642 = vld [vmem:[%s641] sm:$0x1]
  %v645 = vunpack.c.l.s4 1966171168
  %v646 = vunpack.c.0.s8 %v645
  %v647 = vlaneseq
  %v648 = vshrl.u32 %v647, 7
  %v649 = vsub.s32 %v646, %v648
  %v650 = vrot.slane %v642, %v649
  %v652 = vunpack.c.l.s4 1966171168
  %v653 = vunpack.c.0.s8 %v652
  %v654 = vlaneseq
  %v655 = vshrl.u32 %v654, 7
  %v656 = vsub.s32 %v653, %v655
  %v657 = vrot.slane %v650, %v656
  %658 = vrot.lane.b32.xlu0 %v657, 32
  %v659 = vpop.permute.xlu0 %658
  %v662 = vsel %vm56, %v640, %v659
  %v663 = vpack.c.bf16 %v631, %v631
  %665 = vrot.lane.b32.xlu0 %v663, 32
  %v666 = vpop.permute.xlu0 %665
  %v668 = vsel %vm56, %v666, 0
  %670 = vmatprep.subr.bf16.mxu0 0
  %671 = vmatpush1.bf16.msra.mxu0 %v68
  %672 = vmatprep.subr.bf16.mxu0 0
  %673 = vmatpush1.bf16.msra.mxu0 %v69
  %674 = vmatprep.subr.bf16.mxu0 0
  %675 = vmatpush1.bf16.msra.mxu0 0
  %676 = vmatprep.subr.bf16.mxu0 0
  %677 = vmatpush1.bf16.msra.mxu0 0
  %678 = vmatprep.subr.bf16.mxu0 0
  %679 = vmatpush1.bf16.msra.mxu0 0
  %680 = vmatprep.subr.bf16.mxu0 0
  %681 = vmatpush1.bf16.msra.mxu0 0
  %682 = vmatprep.subr.bf16.mxu0 0
  %683 = vmatpush1.bf16.msra.mxu0 0
  %684 = vmatprep.subr.bf16.mxu0 0
  %685 = vmatpush1.bf16.msra.mxu0 0
  %686 = vmatprep.subr.bf16.mxu0 0
  %687 = vmatpush1.bf16.msra.mxu0 0
  %688 = vmatprep.subr.bf16.mxu0 0
  %689 = vmatpush1.bf16.msra.mxu0 0
  %690 = vmatprep.subr.bf16.mxu0 0
  %691 = vmatpush1.bf16.msra.mxu0 0
  %692 = vmatprep.subr.bf16.mxu0 0
  %693 = vmatpush1.bf16.msra.mxu0 0
  %694 = vmatprep.subr.bf16.mxu0 0
  %695 = vmatpush1.bf16.msra.mxu0 0
  %696 = vmatprep.subr.bf16.mxu0 0
  %697 = vmatpush1.bf16.msra.mxu0 0
  %698 = vmatprep.subr.bf16.mxu0 0
  %699 = vmatpush1.bf16.msra.mxu0 0
  %700 = vmatprep.subr.bf16.mxu0 0
  %701 = vmatpush1.bf16.msra.mxu0 0
  %702 = vmatprep.mubr.bf16.mxu0 0
  %703 = vmatmul.mubr.bf16.gmra.mrb[0].mxu0 %v668
  %v704 = vpop.f32.mrb[0].mxu0
  %v705 = vadd.f32 0.0, %v704
  %v706 = vpop.f32.mrb[0].mxu0
  %v707 = vpop.f32.mrb[0].mxu0
  %v708 = vpop.f32.mrb[0].mxu0
  %709 = vdwg.mxu0
  %v710 = vsel %vm139, %v662, 0
  %712 = vmatprep.subr.bf16.mxu0 0
  %713 = vmatpush1.bf16.msra.mxu0 %v131
  %714 = vmatprep.subr.bf16.mxu0 0
  %715 = vmatpush1.bf16.msra.mxu0 %v132
  %716 = vmatprep.subr.bf16.mxu0 0
  %717 = vmatpush1.bf16.msra.mxu0 %v133
  %718 = vmatprep.subr.bf16.mxu0 0
  %719 = vmatpush1.bf16.msra.mxu0 %v134
  %720 = vmatprep.subr.bf16.mxu0 0
  %721 = vmatpush1.bf16.msra.mxu0 0
  %722 = vmatprep.subr.bf16.mxu0 0
  %723 = vmatpush1.bf16.msra.mxu0 0
  %724 = vmatprep.subr.bf16.mxu0 0
  %725 = vmatpush1.bf16.msra.mxu0 0
  %726 = vmatprep.subr.bf16.mxu0 0
  %727 = vmatpush1.bf16.msra.mxu0 0
  %728 = vmatprep.subr.bf16.mxu0 0
  %729 = vmatpush1.bf16.msra.mxu0 0
  %730 = vmatprep.subr.bf16.mxu0 0
  %731 = vmatpush1.bf16.msra.mxu0 0
  %732 = vmatprep.subr.bf16.mxu0 0
  %733 = vmatpush1.bf16.msra.mxu0 0
  %734 = vmatprep.subr.bf16.mxu0 0
  %735 = vmatpush1.bf16.msra.mxu0 0
  %736 = vmatprep.subr.bf16.mxu0 0
  %737 = vmatpush1.bf16.msra.mxu0 0
  %738 = vmatprep.subr.bf16.mxu0 0
  %739 = vmatpush1.bf16.msra.mxu0 0
  %740 = vmatprep.subr.bf16.mxu0 0
  %741 = vmatpush1.bf16.msra.mxu0 0
  %742 = vmatprep.subr.bf16.mxu0 0
  %743 = vmatpush1.bf16.msra.mxu0 0
  %744 = vmatprep.mubr.bf16.mxu0 0
  %745 = vmatmul.mubr.bf16.gmra.mrb[0].mxu0 %v710
  %v746 = vpop.f32.mrb[0].mxu0
  %v747 = vadd.f32 %v705, %v746
  %v748 = vpop.f32.mrb[0].mxu0
  %v749 = vpop.f32.mrb[0].mxu0
  %v750 = vpop.f32.mrb[0].mxu0
  %751 = vdwg.mxu0
  %v752 = vadd.f32 %v747, %v186
  %v753 = vxor.u32 %v752, 2147483648
  %v754 = vmul.f32 %v753, 1.442695
  %v755 = vpow.pop %v754
  %v756 = vadd.f32 %v755, 1.0
  %v757 = vrcp.pop %v756
  %v758 = vmul.f32 1.0, %v757
  %v759 = vtanh.pop %v752
  %761 = vrot.lane.b32.xlu0 %v638, 32
  %v762 = vpop.permute.xlu0 %761
  %v764 = vmul.f32 %v758, %v762
  %766 = vrot.lane.b32.xlu0 %v759, 64
  %v767 = vpop.permute.xlu0 %766
  %v769 = vmul.f32 %v758, %v767
  %771 = vrot.lane.b32.xlu0 %v769, 32
  %v772 = vpop.permute.xlu0 %771
  %v774 = vadd.f32 %v764, %v772
  %v775 = vtanh.pop %v774
  %777 = vrot.lane.b32.xlu0 %v775, 64
  %v778 = vpop.permute.xlu0 %777
  %v780 = vmul.f32 %v758, %v778
  %s781 = scalar_lea.vmem %s1, 6
  %v782 = vld [vmem:[%s781] sm:$0x3]
  %s783 = scalar_lea.vmem %s1, 8
  %v784 = vld [vmem:[%s783] sm:$0x3]
  %786 = vset.pattern.permute.xlu0 0
  %787 = vperm.xlu0 %786, %v782
  %v788 = vpop.permute.xlu0 %787
  %791 = vset.pattern.permute.xlu0 0
  %792 = vperm.xlu0 %791, %v784
  %v793 = vpop.permute.xlu0 %792
  %v795 = vsel %vm226, %v788, %v793
  %797 = vrot.lane.b32.xlu0 %v795, 96
  %v798 = vpop.permute.xlu0 %797
  %v800 = vmul.f32 %v780, %v798
  %802 = vrot.lane.b32.xlu0 %v800, 32
  %v803 = vpop.permute.xlu0 %802
  %s805 = scalar_lea.vmem %s5, 6
  %806 = vst.msk [vmem:[%s805] sm:$0x3] %vm237, %v803
  %807 = vrot.lane.b32.xlu0 %v800, 16
  %v808 = vpop.permute.xlu0 %807
  %s810 = scalar_lea.vmem %s6, 8
  %811 = vst.msk [vmem:[%s810] sm:$0x3] %vm237, %v808
  %v812 = vsub.f32 1.0, %v795
  %814 = vrot.lane.b32.xlu0 %v631, 32
  %v815 = vpop.permute.xlu0 %814
  %v817 = vmul.f32 %v812, %v815
  %819 = vrot.lane.b32.xlu0 %v817, 96
  %v820 = vpop.permute.xlu0 %819
  %v822 = vadd.f32 %v800, %v820
  %824 = vrot.lane.b32.xlu0 %v774, 96
  %v825 = vpop.permute.xlu0 %824
  %v827 = vmul.f32 %v795, %v825
  %v828 = vmul.f32 %v812, %v638
  %v829 = vadd.f32 %v827, %v828
  %v830 = vld [vmem:[%s641] sm:$0x1]
  %v831 = vld [vmem:[%s639] sm:$0x1]
  %v834 = vunpack.c.l.s4 1966171168
  %v835 = vunpack.c.0.s8 %v834
  %v836 = vlaneseq
  %v837 = vshrl.u32 %v836, 7
  %v838 = vsub.s32 %v835, %v837
  %v839 = vrot.slane %v831, %v838
  %v841 = vunpack.c.l.s4 1966171168
  %v842 = vunpack.c.0.s8 %v841
  %v843 = vlaneseq
  %v844 = vshrl.u32 %v843, 7
  %v845 = vsub.s32 %v842, %v844
  %v846 = vrot.slane %v839, %v845
  %847 = vrot.lane.b32.xlu0 %v846, 32
  %v848 = vpop.permute.xlu0 %847
  %v851 = vsel %vm56, %v830, %v848
  %v852 = vpack.c.bf16 %v822, %v822
  %854 = vrot.lane.b32.xlu0 %v852, 32
  %v855 = vpop.permute.xlu0 %854
  %v857 = vsel %vm56, %v855, 0
  %859 = vmatprep.subr.bf16.mxu0 0
  %860 = vmatpush1.bf16.msra.mxu0 %v68
  %861 = vmatprep.subr.bf16.mxu0 0
  %862 = vmatpush1.bf16.msra.mxu0 %v69
  %863 = vmatprep.subr.bf16.mxu0 0
  %864 = vmatpush1.bf16.msra.mxu0 0
  %865 = vmatprep.subr.bf16.mxu0 0
  %866 = vmatpush1.bf16.msra.mxu0 0
  %867 = vmatprep.subr.bf16.mxu0 0
  %868 = vmatpush1.bf16.msra.mxu0 0
  %869 = vmatprep.subr.bf16.mxu0 0
  %870 = vmatpush1.bf16.msra.mxu0 0
  %871 = vmatprep.subr.bf16.mxu0 0
  %872 = vmatpush1.bf16.msra.mxu0 0
  %873 = vmatprep.subr.bf16.mxu0 0
  %874 = vmatpush1.bf16.msra.mxu0 0
  %875 = vmatprep.subr.bf16.mxu0 0
  %876 = vmatpush1.bf16.msra.mxu0 0
  %877 = vmatprep.subr.bf16.mxu0 0
  %878 = vmatpush1.bf16.msra.mxu0 0
  %879 = vmatprep.subr.bf16.mxu0 0
  %880 = vmatpush1.bf16.msra.mxu0 0
  %881 = vmatprep.subr.bf16.mxu0 0
  %882 = vmatpush1.bf16.msra.mxu0 0
  %883 = vmatprep.subr.bf16.mxu0 0
  %884 = vmatpush1.bf16.msra.mxu0 0
  %885 = vmatprep.subr.bf16.mxu0 0
  %886 = vmatpush1.bf16.msra.mxu0 0
  %887 = vmatprep.subr.bf16.mxu0 0
  %888 = vmatpush1.bf16.msra.mxu0 0
  %889 = vmatprep.subr.bf16.mxu0 0
  %890 = vmatpush1.bf16.msra.mxu0 0
  %891 = vmatprep.mubr.bf16.mxu0 0
  %892 = vmatmul.mubr.bf16.gmra.mrb[0].mxu0 %v857
  %v893 = vpop.f32.mrb[0].mxu0
  %v894 = vadd.f32 0.0, %v893
  %v895 = vpop.f32.mrb[0].mxu0
  %v896 = vpop.f32.mrb[0].mxu0
  %v897 = vpop.f32.mrb[0].mxu0
  %898 = vdwg.mxu0
  %v899 = vsel %vm139, %v851, 0
  %901 = vmatprep.subr.bf16.mxu0 0
  %902 = vmatpush1.bf16.msra.mxu0 %v131
  %903 = vmatprep.subr.bf16.mxu0 0
  %904 = vmatpush1.bf16.msra.mxu0 %v132
  %905 = vmatprep.subr.bf16.mxu0 0
  %906 = vmatpush1.bf16.msra.mxu0 %v133
  %907 = vmatprep.subr.bf16.mxu0 0
  %908 = vmatpush1.bf16.msra.mxu0 %v134
  %909 = vmatprep.subr.bf16.mxu0 0
  %910 = vmatpush1.bf16.msra.mxu0 0
  %911 = vmatprep.subr.bf16.mxu0 0
  %912 = vmatpush1.bf16.msra.mxu0 0
  %913 = vmatprep.subr.bf16.mxu0 0
  %914 = vmatpush1.bf16.msra.mxu0 0
  %915 = vmatprep.subr.bf16.mxu0 0
  %916 = vmatpush1.bf16.msra.mxu0 0
  %917 = vmatprep.subr.bf16.mxu0 0
  %918 = vmatpush1.bf16.msra.mxu0 0
  %919 = vmatprep.subr.bf16.mxu0 0
  %920 = vmatpush1.bf16.msra.mxu0 0
  %921 = vmatprep.subr.bf16.mxu0 0
  %922 = vmatpush1.bf16.msra.mxu0 0
  %923 = vmatprep.subr.bf16.mxu0 0
  %924 = vmatpush1.bf16.msra.mxu0 0
  %925 = vmatprep.subr.bf16.mxu0 0
  %926 = vmatpush1.bf16.msra.mxu0 0
  %927 = vmatprep.subr.bf16.mxu0 0
  %928 = vmatpush1.bf16.msra.mxu0 0
  %929 = vmatprep.subr.bf16.mxu0 0
  %930 = vmatpush1.bf16.msra.mxu0 0
  %931 = vmatprep.subr.bf16.mxu0 0
  %932 = vmatpush1.bf16.msra.mxu0 0
  %933 = vmatprep.mubr.bf16.mxu0 0
  %934 = vmatmul.mubr.bf16.gmra.mrb[0].mxu0 %v899
  %v935 = vpop.f32.mrb[0].mxu0
  %v936 = vadd.f32 %v894, %v935
  %v937 = vpop.f32.mrb[0].mxu0
  %v938 = vpop.f32.mrb[0].mxu0
  %v939 = vpop.f32.mrb[0].mxu0
  %940 = vdwg.mxu0
  %v941 = vadd.f32 %v936, %v186
  %v942 = vxor.u32 %v941, 2147483648
  %v943 = vmul.f32 %v942, 1.442695
  %v944 = vpow.pop %v943
  %v945 = vadd.f32 %v944, 1.0
  %v946 = vrcp.pop %v945
  %v947 = vmul.f32 1.0, %v946
  %v948 = vtanh.pop %v941
  %950 = vrot.lane.b32.xlu0 %v829, 32
  %v951 = vpop.permute.xlu0 %950
  %v953 = vmul.f32 %v947, %v951
  %955 = vrot.lane.b32.xlu0 %v948, 64
  %v956 = vpop.permute.xlu0 %955
  %v958 = vmul.f32 %v947, %v956
  %960 = vrot.lane.b32.xlu0 %v958, 32
  %v961 = vpop.permute.xlu0 %960
  %v963 = vadd.f32 %v953, %v961
  %v964 = vtanh.pop %v963
  %966 = vrot.lane.b32.xlu0 %v964, 64
  %v967 = vpop.permute.xlu0 %966
  %v969 = vmul.f32 %v947, %v967
  %v970 = vld [vmem:[%s783] sm:$0x3]
  %v971 = vld [vmem:[%s781] sm:$0x3]
  %973 = vset.pattern.permute.xlu0 0
  %974 = vperm.xlu0 %973, %v970
  %v975 = vpop.permute.xlu0 %974
  %978 = vset.pattern.permute.xlu0 0
  %979 = vperm.xlu0 %978, %v971
  %v980 = vpop.permute.xlu0 %979
  %v982 = vsel %vm226, %v975, %v980
  %984 = vrot.lane.b32.xlu0 %v982, 96
  %v985 = vpop.permute.xlu0 %984
  %v987 = vmul.f32 %v969, %v985
  %989 = vrot.lane.b32.xlu0 %v987, 32
  %v990 = vpop.permute.xlu0 %989
  %s992 = scalar_lea.vmem %s5, 8
  %993 = vst.msk [vmem:[%s992] sm:$0x3] %vm237, %v990
  %994 = vrot.lane.b32.xlu0 %v987, 16
  %v995 = vpop.permute.xlu0 %994
  %s997 = scalar_lea.vmem %s6, 6
  %998 = vst.msk [vmem:[%s997] sm:$0x3] %vm237, %v995
  %v999 = vsub.f32 1.0, %v982
  %1001 = vrot.lane.b32.xlu0 %v822, 32
  %v1002 = vpop.permute.xlu0 %1001
  %v1004 = vmul.f32 %v999, %v1002
  %1006 = vrot.lane.b32.xlu0 %v1004, 96
  %v1007 = vpop.permute.xlu0 %1006
  %v1009 = vadd.f32 %v987, %v1007
  %1011 = vrot.lane.b32.xlu0 %v963, 96
  %v1012 = vpop.permute.xlu0 %1011
  %v1014 = vmul.f32 %v982, %v1012
  %v1015 = vmul.f32 %v999, %v829
  %v1016 = vadd.f32 %v1014, %v1015
  %v1017 = vld [vmem:[%s450] sm:$0x1]
  %v1018 = vld [vmem:[%s448] sm:$0x1]
  %v1021 = vunpack.c.l.s4 1966171168
  %v1022 = vunpack.c.0.s8 %v1021
  %v1023 = vlaneseq
  %v1024 = vshrl.u32 %v1023, 7
  %v1025 = vsub.s32 %v1022, %v1024
  %v1026 = vrot.slane %v1018, %v1025
  %v1028 = vunpack.c.l.s4 1966171168
  %v1029 = vunpack.c.0.s8 %v1028
  %v1030 = vlaneseq
  %v1031 = vshrl.u32 %v1030, 7
  %v1032 = vsub.s32 %v1029, %v1031
  %v1033 = vrot.slane %v1026, %v1032
  %1034 = vrot.lane.b32.xlu0 %v1033, 32
  %v1035 = vpop.permute.xlu0 %1034
  %v1038 = vsel %vm56, %v1017, %v1035
  %v1039 = vpack.c.bf16 %v1009, %v1009
  %1041 = vrot.lane.b32.xlu0 %v1039, 32
  %v1042 = vpop.permute.xlu0 %1041
  %v1044 = vsel %vm56, %v1042, 0
  %1046 = vmatprep.subr.bf16.mxu0 0
  %1047 = vmatpush1.bf16.msra.mxu0 %v68
  %1048 = vmatprep.subr.bf16.mxu0 0
  %1049 = vmatpush1.bf16.msra.mxu0 %v69
  %1050 = vmatprep.subr.bf16.mxu0 0
  %1051 = vmatpush1.bf16.msra.mxu0 0
  %1052 = vmatprep.subr.bf16.mxu0 0
  %1053 = vmatpush1.bf16.msra.mxu0 0
  %1054 = vmatprep.subr.bf16.mxu0 0
  %1055 = vmatpush1.bf16.msra.mxu0 0
  %1056 = vmatprep.subr.bf16.mxu0 0
  %1057 = vmatpush1.bf16.msra.mxu0 0
  %1058 = vmatprep.subr.bf16.mxu0 0
  %1059 = vmatpush1.bf16.msra.mxu0 0
  %1060 = vmatprep.subr.bf16.mxu0 0
  %1061 = vmatpush1.bf16.msra.mxu0 0
  %1062 = vmatprep.subr.bf16.mxu0 0
  %1063 = vmatpush1.bf16.msra.mxu0 0
  %1064 = vmatprep.subr.bf16.mxu0 0
  %1065 = vmatpush1.bf16.msra.mxu0 0
  %1066 = vmatprep.subr.bf16.mxu0 0
  %1067 = vmatpush1.bf16.msra.mxu0 0
  %1068 = vmatprep.subr.bf16.mxu0 0
  %1069 = vmatpush1.bf16.msra.mxu0 0
  %1070 = vmatprep.subr.bf16.mxu0 0
  %1071 = vmatpush1.bf16.msra.mxu0 0
  %1072 = vmatprep.subr.bf16.mxu0 0
  %1073 = vmatpush1.bf16.msra.mxu0 0
  %1074 = vmatprep.subr.bf16.mxu0 0
  %1075 = vmatpush1.bf16.msra.mxu0 0
  %1076 = vmatprep.subr.bf16.mxu0 0
  %1077 = vmatpush1.bf16.msra.mxu0 0
  %1078 = vmatprep.mubr.bf16.mxu0 0
  %1079 = vmatmul.mubr.bf16.gmra.mrb[0].mxu0 %v1044
  %v1080 = vpop.f32.mrb[0].mxu0
  %v1081 = vadd.f32 0.0, %v1080
  %v1082 = vpop.f32.mrb[0].mxu0
  %v1083 = vpop.f32.mrb[0].mxu0
  %v1084 = vpop.f32.mrb[0].mxu0
  %1085 = vdwg.mxu0
  %v1086 = vsel %vm139, %v1038, 0
  %1088 = vmatprep.subr.bf16.mxu0 0
  %1089 = vmatpush1.bf16.msra.mxu0 %v131
  %1090 = vmatprep.subr.bf16.mxu0 0
  %1091 = vmatpush1.bf16.msra.mxu0 %v132
  %1092 = vmatprep.subr.bf16.mxu0 0
  %1093 = vmatpush1.bf16.msra.mxu0 %v133
  %1094 = vmatprep.subr.bf16.mxu0 0
  %1095 = vmatpush1.bf16.msra.mxu0 %v134
  %1096 = vmatprep.subr.bf16.mxu0 0
  %1097 = vmatpush1.bf16.msra.mxu0 0
  %1098 = vmatprep.subr.bf16.mxu0 0
  %1099 = vmatpush1.bf16.msra.mxu0 0
  %1100 = vmatprep.subr.bf16.mxu0 0
  %1101 = vmatpush1.bf16.msra.mxu0 0
  %1102 = vmatprep.subr.bf16.mxu0 0
  %1103 = vmatpush1.bf16.msra.mxu0 0
  %1104 = vmatprep.subr.bf16.mxu0 0
  %1105 = vmatpush1.bf16.msra.mxu0 0
  %1106 = vmatprep.subr.bf16.mxu0 0
  %1107 = vmatpush1.bf16.msra.mxu0 0
  %1108 = vmatprep.subr.bf16.mxu0 0
  %1109 = vmatpush1.bf16.msra.mxu0 0
  %1110 = vmatprep.subr.bf16.mxu0 0
  %1111 = vmatpush1.bf16.msra.mxu0 0
  %1112 = vmatprep.subr.bf16.mxu0 0
  %1113 = vmatpush1.bf16.msra.mxu0 0
  %1114 = vmatprep.subr.bf16.mxu0 0
  %1115 = vmatpush1.bf16.msra.mxu0 0
  %1116 = vmatprep.subr.bf16.mxu0 0
  %1117 = vmatpush1.bf16.msra.mxu0 0
  %1118 = vmatprep.subr.bf16.mxu0 0
  %1119 = vmatpush1.bf16.msra.mxu0 0
  %1120 = vmatprep.mubr.bf16.mxu0 0
  %1121 = vmatmul.mubr.bf16.gmra.mrb[0].mxu0 %v1086
  %v1122 = vpop.f32.mrb[0].mxu0
  %v1123 = vadd.f32 %v1081, %v1122
  %v1124 = vpop.f32.mrb[0].mxu0
  %v1125 = vpop.f32.mrb[0].mxu0
  %v1126 = vpop.f32.mrb[0].mxu0
  %1127 = vdwg.mxu0
  %v1128 = vadd.f32 %v1123, %v186
  %v1129 = vxor.u32 %v1128, 2147483648
  %v1130 = vmul.f32 %v1129, 1.442695
  %v1131 = vpow.pop %v1130
  %v1132 = vadd.f32 %v1131, 1.0
  %v1133 = vrcp.pop %v1132
  %v1134 = vmul.f32 1.0, %v1133
  %v1135 = vtanh.pop %v1128
  %1137 = vrot.lane.b32.xlu0 %v1016, 32
  %v1138 = vpop.permute.xlu0 %1137
  %v1140 = vmul.f32 %v1134, %v1138
  %1142 = vrot.lane.b32.xlu0 %v1135, 64
  %v1143 = vpop.permute.xlu0 %1142
  %v1145 = vmul.f32 %v1134, %v1143
  %1147 = vrot.lane.b32.xlu0 %v1145, 32
  %v1148 = vpop.permute.xlu0 %1147
  %v1150 = vadd.f32 %v1140, %v1148
  %v1151 = vtanh.pop %v1150
  %1153 = vrot.lane.b32.xlu0 %v1151, 64
  %v1154 = vpop.permute.xlu0 %1153
  %v1156 = vmul.f32 %v1134, %v1154
  %v1157 = vld [vmem:[%s592] sm:$0x3]
  %v1158 = vld [vmem:[%s590] sm:$0x3]
  %1160 = vset.pattern.permute.xlu0 0
  %1161 = vperm.xlu0 %1160, %v1157
  %v1162 = vpop.permute.xlu0 %1161
  %1165 = vset.pattern.permute.xlu0 0
  %1166 = vperm.xlu0 %1165, %v1158
  %v1167 = vpop.permute.xlu0 %1166
  %v1169 = vsel %vm226, %v1162, %v1167
  %1171 = vrot.lane.b32.xlu0 %v1169, 96
  %v1172 = vpop.permute.xlu0 %1171
  %v1174 = vmul.f32 %v1156, %v1172
  %1176 = vrot.lane.b32.xlu0 %v1174, 32
  %v1177 = vpop.permute.xlu0 %1176
  %s1179 = scalar_lea.vmem %s5, 10
  %1180 = vst.msk [vmem:[%s1179] sm:$0x3] %vm237, %v1177
  %1181 = vrot.lane.b32.xlu0 %v1174, 16
  %v1182 = vpop.permute.xlu0 %1181
  %s1184 = scalar_lea.vmem %s6, 4
  %1185 = vst.msk [vmem:[%s1184] sm:$0x3] %vm237, %v1182
  %v1186 = vsub.f32 1.0, %v1169
  %1188 = vrot.lane.b32.xlu0 %v1009, 32
  %v1189 = vpop.permute.xlu0 %1188
  %v1191 = vmul.f32 %v1186, %v1189
  %1193 = vrot.lane.b32.xlu0 %v1191, 96
  %v1194 = vpop.permute.xlu0 %1193
  %v1196 = vadd.f32 %v1174, %v1194
  %1198 = vrot.lane.b32.xlu0 %v1150, 96
  %v1199 = vpop.permute.xlu0 %1198
  %v1201 = vmul.f32 %v1169, %v1199
  %v1202 = vmul.f32 %v1186, %v1016
  %v1203 = vadd.f32 %v1201, %v1202
  %v1204 = vld [vmem:[%s259] sm:$0x1]
  %v1205 = vld [vmem:[%s257] sm:$0x1]
  %v1208 = vunpack.c.l.s4 1966171168
  %v1209 = vunpack.c.0.s8 %v1208
  %v1210 = vlaneseq
  %v1211 = vshrl.u32 %v1210, 7
  %v1212 = vsub.s32 %v1209, %v1211
  %v1213 = vrot.slane %v1205, %v1212
  %v1215 = vunpack.c.l.s4 1966171168
  %v1216 = vunpack.c.0.s8 %v1215
  %v1217 = vlaneseq
  %v1218 = vshrl.u32 %v1217, 7
  %v1219 = vsub.s32 %v1216, %v1218
  %v1220 = vrot.slane %v1213, %v1219
  %1221 = vrot.lane.b32.xlu0 %v1220, 32
  %v1222 = vpop.permute.xlu0 %1221
  %v1225 = vsel %vm56, %v1204, %v1222
  %v1226 = vpack.c.bf16 %v1196, %v1196
  %1228 = vrot.lane.b32.xlu0 %v1226, 32
  %v1229 = vpop.permute.xlu0 %1228
  %v1231 = vsel %vm56, %v1229, 0
  %1233 = vmatprep.subr.bf16.mxu0 0
  %1234 = vmatpush1.bf16.msra.mxu0 %v68
  %1235 = vmatprep.subr.bf16.mxu0 0
  %1236 = vmatpush1.bf16.msra.mxu0 %v69
  %1237 = vmatprep.subr.bf16.mxu0 0
  %1238 = vmatpush1.bf16.msra.mxu0 0
  %1239 = vmatprep.subr.bf16.mxu0 0
  %1240 = vmatpush1.bf16.msra.mxu0 0
  %1241 = vmatprep.subr.bf16.mxu0 0
  %1242 = vmatpush1.bf16.msra.mxu0 0
  %1243 = vmatprep.subr.bf16.mxu0 0
  %1244 = vmatpush1.bf16.msra.mxu0 0
  %1245 = vmatprep.subr.bf16.mxu0 0
  %1246 = vmatpush1.bf16.msra.mxu0 0
  %1247 = vmatprep.subr.bf16.mxu0 0
  %1248 = vmatpush1.bf16.msra.mxu0 0
  %1249 = vmatprep.subr.bf16.mxu0 0
  %1250 = vmatpush1.bf16.msra.mxu0 0
  %1251 = vmatprep.subr.bf16.mxu0 0
  %1252 = vmatpush1.bf16.msra.mxu0 0
  %1253 = vmatprep.subr.bf16.mxu0 0
  %1254 = vmatpush1.bf16.msra.mxu0 0
  %1255 = vmatprep.subr.bf16.mxu0 0
  %1256 = vmatpush1.bf16.msra.mxu0 0
  %1257 = vmatprep.subr.bf16.mxu0 0
  %1258 = vmatpush1.bf16.msra.mxu0 0
  %1259 = vmatprep.subr.bf16.mxu0 0
  %1260 = vmatpush1.bf16.msra.mxu0 0
  %1261 = vmatprep.subr.bf16.mxu0 0
  %1262 = vmatpush1.bf16.msra.mxu0 0
  %1263 = vmatprep.subr.bf16.mxu0 0
  %1264 = vmatpush1.bf16.msra.mxu0 0
  %1265 = vmatprep.mubr.bf16.mxu0 0
  %1266 = vmatmul.mubr.bf16.gmra.mrb[0].mxu0 %v1231
  %v1267 = vpop.f32.mrb[0].mxu0
  %v1268 = vadd.f32 0.0, %v1267
  %v1269 = vpop.f32.mrb[0].mxu0
  %v1270 = vpop.f32.mrb[0].mxu0
  %v1271 = vpop.f32.mrb[0].mxu0
  %1272 = vdwg.mxu0
  %v1273 = vsel %vm139, %v1225, 0
  %1275 = vmatprep.subr.bf16.mxu0 0
  %1276 = vmatpush1.bf16.msra.mxu0 %v131
  %1277 = vmatprep.subr.bf16.mxu0 0
  %1278 = vmatpush1.bf16.msra.mxu0 %v132
  %1279 = vmatprep.subr.bf16.mxu0 0
  %1280 = vmatpush1.bf16.msra.mxu0 %v133
  %1281 = vmatprep.subr.bf16.mxu0 0
  %1282 = vmatpush1.bf16.msra.mxu0 %v134
  %1283 = vmatprep.subr.bf16.mxu0 0
  %1284 = vmatpush1.bf16.msra.mxu0 0
  %1285 = vmatprep.subr.bf16.mxu0 0
  %1286 = vmatpush1.bf16.msra.mxu0 0
  %1287 = vmatprep.subr.bf16.mxu0 0
  %1288 = vmatpush1.bf16.msra.mxu0 0
  %1289 = vmatprep.subr.bf16.mxu0 0
  %1290 = vmatpush1.bf16.msra.mxu0 0
  %1291 = vmatprep.subr.bf16.mxu0 0
  %1292 = vmatpush1.bf16.msra.mxu0 0
  %1293 = vmatprep.subr.bf16.mxu0 0
  %1294 = vmatpush1.bf16.msra.mxu0 0
  %1295 = vmatprep.subr.bf16.mxu0 0
  %1296 = vmatpush1.bf16.msra.mxu0 0
  %1297 = vmatprep.subr.bf16.mxu0 0
  %1298 = vmatpush1.bf16.msra.mxu0 0
  %1299 = vmatprep.subr.bf16.mxu0 0
  %1300 = vmatpush1.bf16.msra.mxu0 0
  %1301 = vmatprep.subr.bf16.mxu0 0
  %1302 = vmatpush1.bf16.msra.mxu0 0
  %1303 = vmatprep.subr.bf16.mxu0 0
  %1304 = vmatpush1.bf16.msra.mxu0 0
  %1305 = vmatprep.subr.bf16.mxu0 0
  %1306 = vmatpush1.bf16.msra.mxu0 0
  %1307 = vmatprep.mubr.bf16.mxu0 0
  %1308 = vmatmul.mubr.bf16.gmra.mrb[0].mxu0 %v1273
  %v1309 = vpop.f32.mrb[0].mxu0
  %v1310 = vadd.f32 %v1268, %v1309
  %v1311 = vpop.f32.mrb[0].mxu0
  %v1312 = vpop.f32.mrb[0].mxu0
  %v1313 = vpop.f32.mrb[0].mxu0
  %1314 = vdwg.mxu0
  %v1315 = vadd.f32 %v1310, %v186
  %v1316 = vxor.u32 %v1315, 2147483648
  %v1317 = vmul.f32 %v1316, 1.442695
  %v1318 = vpow.pop %v1317
  %v1319 = vadd.f32 %v1318, 1.0
  %v1320 = vrcp.pop %v1319
  %v1321 = vmul.f32 1.0, %v1320
  %v1322 = vtanh.pop %v1315
  %1324 = vrot.lane.b32.xlu0 %v1203, 32
  %v1325 = vpop.permute.xlu0 %1324
  %v1327 = vmul.f32 %v1321, %v1325
  %1329 = vrot.lane.b32.xlu0 %v1322, 64
  %v1330 = vpop.permute.xlu0 %1329
  %v1332 = vmul.f32 %v1321, %v1330
  %1334 = vrot.lane.b32.xlu0 %v1332, 32
  %v1335 = vpop.permute.xlu0 %1334
  %v1337 = vadd.f32 %v1327, %v1335
  %v1338 = vtanh.pop %v1337
  %1340 = vrot.lane.b32.xlu0 %v1338, 64
  %v1341 = vpop.permute.xlu0 %1340
  %v1343 = vmul.f32 %v1321, %v1341
  %v1344 = vld [vmem:[%s401] sm:$0x3]
  %v1345 = vld [vmem:[%s399] sm:$0x3]
  %1347 = vset.pattern.permute.xlu0 0
  %1348 = vperm.xlu0 %1347, %v1344
  %v1349 = vpop.permute.xlu0 %1348
  %1352 = vset.pattern.permute.xlu0 0
  %1353 = vperm.xlu0 %1352, %v1345
  %v1354 = vpop.permute.xlu0 %1353
  %v1356 = vsel %vm226, %v1349, %v1354
  %1358 = vrot.lane.b32.xlu0 %v1356, 96
  %v1359 = vpop.permute.xlu0 %1358
  %v1361 = vmul.f32 %v1343, %v1359
  %1363 = vrot.lane.b32.xlu0 %v1361, 32
  %v1364 = vpop.permute.xlu0 %1363
  %s1366 = scalar_lea.vmem %s5, 12
  %1367 = vst.msk [vmem:[%s1366] sm:$0x3] %vm237, %v1364
  %1368 = vrot.lane.b32.xlu0 %v1361, 16
  %v1369 = vpop.permute.xlu0 %1368
  %s1371 = scalar_lea.vmem %s6, 2
  %1372 = vst.msk [vmem:[%s1371] sm:$0x3] %vm237, %v1369
  %v1373 = vsub.f32 1.0, %v1356
  %1375 = vrot.lane.b32.xlu0 %v1196, 32
  %v1376 = vpop.permute.xlu0 %1375
  %v1378 = vmul.f32 %v1373, %v1376
  %1380 = vrot.lane.b32.xlu0 %v1378, 96
  %v1381 = vpop.permute.xlu0 %1380
  %v1383 = vadd.f32 %v1361, %v1381
  %1385 = vrot.lane.b32.xlu0 %v1337, 96
  %v1386 = vpop.permute.xlu0 %1385
  %v1388 = vmul.f32 %v1356, %v1386
  %v1389 = vmul.f32 %v1373, %v1203
  %v1390 = vadd.f32 %v1388, %v1389
  %v1391 = vld [vmem:[%s37] sm:$0x1]
  %v1392 = vld [vmem:[%s0] sm:$0x1]
  %v1395 = vunpack.c.l.s4 1966171168
  %v1396 = vunpack.c.0.s8 %v1395
  %v1397 = vlaneseq
  %v1398 = vshrl.u32 %v1397, 7
  %v1399 = vsub.s32 %v1396, %v1398
  %v1400 = vrot.slane %v1392, %v1399
  %v1402 = vunpack.c.l.s4 1966171168
  %v1403 = vunpack.c.0.s8 %v1402
  %v1404 = vlaneseq
  %v1405 = vshrl.u32 %v1404, 7
  %v1406 = vsub.s32 %v1403, %v1405
  %v1407 = vrot.slane %v1400, %v1406
  %1408 = vrot.lane.b32.xlu0 %v1407, 32
  %v1409 = vpop.permute.xlu0 %1408
  %v1412 = vsel %vm56, %v1391, %v1409
  %v1413 = vpack.c.bf16 %v1383, %v1383
  %1415 = vrot.lane.b32.xlu0 %v1413, 32
  %v1416 = vpop.permute.xlu0 %1415
  %v1418 = vsel %vm56, %v1416, 0
  %1420 = vmatprep.subr.bf16.mxu0 0
  %1421 = vmatpush1.bf16.msra.mxu0 %v68
  %1422 = vmatprep.subr.bf16.mxu0 0
  %1423 = vmatpush1.bf16.msra.mxu0 %v69
  %1424 = vmatprep.subr.bf16.mxu0 0
  %1425 = vmatpush1.bf16.msra.mxu0 0
  %1426 = vmatprep.subr.bf16.mxu0 0
  %1427 = vmatpush1.bf16.msra.mxu0 0
  %1428 = vmatprep.subr.bf16.mxu0 0
  %1429 = vmatpush1.bf16.msra.mxu0 0
  %1430 = vmatprep.subr.bf16.mxu0 0
  %1431 = vmatpush1.bf16.msra.mxu0 0
  %1432 = vmatprep.subr.bf16.mxu0 0
  %1433 = vmatpush1.bf16.msra.mxu0 0
  %1434 = vmatprep.subr.bf16.mxu0 0
  %1435 = vmatpush1.bf16.msra.mxu0 0
  %1436 = vmatprep.subr.bf16.mxu0 0
  %1437 = vmatpush1.bf16.msra.mxu0 0
  %1438 = vmatprep.subr.bf16.mxu0 0
  %1439 = vmatpush1.bf16.msra.mxu0 0
  %1440 = vmatprep.subr.bf16.mxu0 0
  %1441 = vmatpush1.bf16.msra.mxu0 0
  %1442 = vmatprep.subr.bf16.mxu0 0
  %1443 = vmatpush1.bf16.msra.mxu0 0
  %1444 = vmatprep.subr.bf16.mxu0 0
  %1445 = vmatpush1.bf16.msra.mxu0 0
  %1446 = vmatprep.subr.bf16.mxu0 0
  %1447 = vmatpush1.bf16.msra.mxu0 0
  %1448 = vmatprep.subr.bf16.mxu0 0
  %1449 = vmatpush1.bf16.msra.mxu0 0
  %1450 = vmatprep.subr.bf16.mxu0 0
  %1451 = vmatpush1.bf16.msra.mxu0 0
  %1452 = vmatprep.mubr.bf16.mxu0 0
  %1453 = vmatmul.mubr.bf16.gmra.mrb[0].mxu0 %v1418
  %v1454 = vpop.f32.mrb[0].mxu0
  %v1455 = vadd.f32 0.0, %v1454
  %v1456 = vpop.f32.mrb[0].mxu0
  %v1457 = vpop.f32.mrb[0].mxu0
  %v1458 = vpop.f32.mrb[0].mxu0
  %1459 = vdwg.mxu0
  %v1460 = vsel %vm139, %v1412, 0
  %1462 = vmatprep.subr.bf16.mxu0 0
  %1463 = vmatpush1.bf16.msra.mxu0 %v131
  %1464 = vmatprep.subr.bf16.mxu0 0
  %1465 = vmatpush1.bf16.msra.mxu0 %v132
  %1466 = vmatprep.subr.bf16.mxu0 0
  %1467 = vmatpush1.bf16.msra.mxu0 %v133
  %1468 = vmatprep.subr.bf16.mxu0 0
  %1469 = vmatpush1.bf16.msra.mxu0 %v134
  %1470 = vmatprep.subr.bf16.mxu0 0
  %1471 = vmatpush1.bf16.msra.mxu0 0
  %1472 = vmatprep.subr.bf16.mxu0 0
  %1473 = vmatpush1.bf16.msra.mxu0 0
  %1474 = vmatprep.subr.bf16.mxu0 0
  %1475 = vmatpush1.bf16.msra.mxu0 0
  %1476 = vmatprep.subr.bf16.mxu0 0
  %1477 = vmatpush1.bf16.msra.mxu0 0
  %1478 = vmatprep.subr.bf16.mxu0 0
  %1479 = vmatpush1.bf16.msra.mxu0 0
  %1480 = vmatprep.subr.bf16.mxu0 0
  %1481 = vmatpush1.bf16.msra.mxu0 0
  %1482 = vmatprep.subr.bf16.mxu0 0
  %1483 = vmatpush1.bf16.msra.mxu0 0
  %1484 = vmatprep.subr.bf16.mxu0 0
  %1485 = vmatpush1.bf16.msra.mxu0 0
  %1486 = vmatprep.subr.bf16.mxu0 0
  %1487 = vmatpush1.bf16.msra.mxu0 0
  %1488 = vmatprep.subr.bf16.mxu0 0
  %1489 = vmatpush1.bf16.msra.mxu0 0
  %1490 = vmatprep.subr.bf16.mxu0 0
  %1491 = vmatpush1.bf16.msra.mxu0 0
  %1492 = vmatprep.subr.bf16.mxu0 0
  %1493 = vmatpush1.bf16.msra.mxu0 0
  %1494 = vmatprep.mubr.bf16.mxu0 0
  %1495 = vmatmul.mubr.bf16.gmra.mrb[0].mxu0 %v1460
  %v1496 = vpop.f32.mrb[0].mxu0
  %v1497 = vadd.f32 %v1455, %v1496
  %v1498 = vpop.f32.mrb[0].mxu0
  %v1499 = vpop.f32.mrb[0].mxu0
  %v1500 = vpop.f32.mrb[0].mxu0
  %1501 = vdwg.mxu0
  %v1502 = vadd.f32 %v1497, %v186
  %v1503 = vxor.u32 %v1502, 2147483648
  %v1504 = vmul.f32 %v1503, 1.442695
  %v1505 = vpow.pop %v1504
  %v1506 = vadd.f32 %v1505, 1.0
  %v1507 = vrcp.pop %v1506
  %v1508 = vmul.f32 1.0, %v1507
  %v1509 = vtanh.pop %v1502
  %1511 = vrot.lane.b32.xlu0 %v1390, 32
  %v1512 = vpop.permute.xlu0 %1511
  %v1514 = vmul.f32 %v1508, %v1512
  %1516 = vrot.lane.b32.xlu0 %v1509, 64
  %v1517 = vpop.permute.xlu0 %1516
  %v1519 = vmul.f32 %v1508, %v1517
  %1521 = vrot.lane.b32.xlu0 %v1519, 32
  %v1522 = vpop.permute.xlu0 %1521
  %v1524 = vadd.f32 %v1514, %v1522
  %v1525 = vtanh.pop %v1524
  %1527 = vrot.lane.b32.xlu0 %v1525, 64
  %v1528 = vpop.permute.xlu0 %1527
  %v1530 = vmul.f32 %v1508, %v1528
  %v1531 = vld [vmem:[%s214] sm:$0x3]
  %v1532 = vld [vmem:[%s1] sm:$0x3]
  %1534 = vset.pattern.permute.xlu0 0
  %1535 = vperm.xlu0 %1534, %v1531
  %v1536 = vpop.permute.xlu0 %1535
  %1539 = vset.pattern.permute.xlu0 0
  %1540 = vperm.xlu0 %1539, %v1532
  %v1541 = vpop.permute.xlu0 %1540
  %v1543 = vsel %vm226, %v1536, %v1541
  %1545 = vrot.lane.b32.xlu0 %v1543, 96
  %v1546 = vpop.permute.xlu0 %1545
  %v1548 = vmul.f32 %v1530, %v1546
  %1550 = vrot.lane.b32.xlu0 %v1548, 32
  %v1551 = vpop.permute.xlu0 %1550
  %s1553 = scalar_lea.vmem %s5, 14
  %1554 = vst.msk [vmem:[%s1553] sm:$0x3] %vm237, %v1551
  %1555 = vrot.lane.b32.xlu0 %v1548, 16
  %v1556 = vpop.permute.xlu0 %1555
  %1558 = vst.msk [vmem:[%s6] sm:$0x3] %vm237, %v1556
  // Predicated region
  $region22: #{mimn_forward.4} parent=0 // pred_check
    _
  $region23: #{mimn_forward.4} parent=0 // pred_check_branch
    %1560 = sbr.rel (0) target = $region25
  $region24: #{mimn_forward.4} parent=0 // pred_region
    _
  $region25: #{mimn_forward.4} parent=0 // pred_fallthru
    _
  // Predicated region
  $region26: #{mimn_forward.4} parent=0 // pred_check
    _
  $region27: #{mimn_forward.4} parent=0 // pred_check_branch
    %1562 = sbr.rel (0) target = $region29
  $region28: #{mimn_forward.4} parent=0 // pred_region
    _
  $region29: #{mimn_forward.4} parent=0 // pred_fallthru
    _
  // Predicated region
  $region30: #{mimn_forward.4} parent=0 // pred_check
    _
  $region31: #{mimn_forward.4} parent=0 // pred_check_branch
    %1564 = sbr.rel (0) target = $region33
  $region32: #{mimn_forward.4} parent=0 // pred_region
    _
  $region33: #{mimn_forward.4} parent=0 // pred_fallthru
    _
  // Predicated region
  $region34: #{mimn_forward.4} parent=0 // pred_check
    _
  $region35: #{mimn_forward.4} parent=0 // pred_check_branch
    %1566 = sbr.rel (0) target = $region37
  $region36: #{mimn_forward.4} parent=0 // pred_region
    _
  $region37: #{mimn_forward.4} parent=0 // pred_fallthru
    _

// kernel: mimn_forward.5
$region0: #{mimn_forward.5}
  #allocation0 [shape = 'u32[]', space=smem, size = 0x4, offset = 0x4, fixed_abs, tag = 'smem constant byte address 0x4 - core index']
  #allocation1 [shape = 'u32[144,128]{1,0:T(1,128)}', space=vmem, size = 0x12000, scoped, tag = 'internal scratch']
  %s0 = inlined_call_operand.vmem [shape: bf16[4,2,32], index: 0, kind: input, shape index: {}]
  %s1 = inlined_call_operand.vmem [shape: f32[4,2,1], index: 1, kind: input, shape index: {}]
  %s2 = inlined_call_operand.vmem [shape: bf16[64,128], index: 2, kind: input, shape index: {}]
  %s3 = inlined_call_operand.vmem [shape: bf16[32,128], index: 3, kind: input, shape index: {}]
  %s4 = inlined_call_operand.vmem [shape: f32[1,128], index: 4, kind: input, shape index: {}]
  %s5 = inlined_call_operand.vmem [shape: f32[4,2,16], index: 5, kind: output, shape index: {0}]
  %s6 = inlined_call_operand.vmem [shape: f32[4,2,16], index: 6, kind: output, shape index: {1}]
  %7 = xla_tuple %s5, %s6
  %s8 = sld [smem:[#allocation0]]
  $region38: #{mimn_forward.5} parent=0
    _
  %s10 = ssub.s32 1, %s8
  %s11 = scalar_select 0, %s10, %s8
  // Predicated region
  $region2: #{mimn_forward.5} parent=0 // pred_check
    _
  $region3: #{mimn_forward.5} parent=0 // pred_check_branch
    %13 = sbr.rel (0) target = $region5
  $region4: #{mimn_forward.5} parent=0 // pred_region
    _
  $region5: #{mimn_forward.5} parent=0 // pred_fallthru
    _
  // Predicated region
  $region6: #{mimn_forward.5} parent=0 // pred_check
    _
  $region7: #{mimn_forward.5} parent=0 // pred_check_branch
    %15 = sbr.rel (0) target = $region9
  $region8: #{mimn_forward.5} parent=0 // pred_region
    _
  $region9: #{mimn_forward.5} parent=0 // pred_fallthru
    _
  // Predicated region
  $region10: #{mimn_forward.5} parent=0 // pred_check
    _
  $region11: #{mimn_forward.5} parent=0 // pred_check_branch
    %17 = sbr.rel (0) target = $region13
  $region12: #{mimn_forward.5} parent=0 // pred_region
    _
  $region13: #{mimn_forward.5} parent=0 // pred_fallthru
    _
  // Predicated region
  $region14: #{mimn_forward.5} parent=0 // pred_check
    _
  $region15: #{mimn_forward.5} parent=0 // pred_check_branch
    %19 = sbr.rel (0) target = $region17
  $region16: #{mimn_forward.5} parent=0 // pred_region
    _
  $region17: #{mimn_forward.5} parent=0 // pred_fallthru
    _
  // Predicated region
  $region18: #{mimn_forward.5} parent=0 // pred_check
    _
  $region19: #{mimn_forward.5} parent=0 // pred_check_branch
    %21 = sbr.rel (0) target = $region21
  $region20: #{mimn_forward.5} parent=0 // pred_region
    _
  $region21: #{mimn_forward.5} parent=0 // pred_fallthru
    _
  %v23 = vld [vmem:[%s2] sm:$0xf]
  %v24 = vld [vmem:[%s2 + $0x4] sm:$0xf]
  %v25 = vld [vmem:[%s2 + $0x8] sm:$0xf]
  %v26 = vld [vmem:[%s2 + $0xc] sm:$0xf]
  %v27 = vld [vmem:[%s2 + $0x10] sm:$0xf]
  %v28 = vld [vmem:[%s2 + $0x14] sm:$0xf]
  %v29 = vld [vmem:[%s2 + $0x18] sm:$0xf]
  %v30 = vld [vmem:[%s2 + $0x1c] sm:$0xf]
  %v31 = vld [vmem:[%s3] sm:$0xf]
  %v32 = vld [vmem:[%s3 + $0x4] sm:$0xf]
  %v33 = vld [vmem:[%s3 + $0x8] sm:$0xf]
  %v34 = vld [vmem:[%s3 + $0xc] sm:$0xf]
  %v35 = vld [vmem:[%s4] sm:$0x1]
  %v36 = vld [vmem:[%s0] sm:$0x1]
  %s37 = scalar_lea.vmem %s0, 3
  %v38 = vld [vmem:[%s37] sm:$0x1]
  %v41 = vunpack.c.l.s4 1966171168
  %v42 = vunpack.c.0.s8 %v41
  %v43 = vlaneseq
  %v44 = vshrl.u32 %v43, 7
  %v45 = vsub.s32 %v42, %v44
  %v46 = vrot.slane %v38, %v45
  %v48 = vunpack.c.l.s4 1966171168
  %v49 = vunpack.c.0.s8 %v48
  %v50 = vlaneseq
  %v51 = vshrl.u32 %v50, 7
  %v52 = vsub.s32 %v49, %v51
  %v53 = vrot.slane %v46, %v52
  %54 = vrot.lane.b32.xlu0 %v53, 32
  %v55 = vpop.permute.xlu0 %54
  %vm56 = vcmask 261120
  %v59 = vsel %vm56, %v36, %v55
  %v64 = vunpack.c.l.b16 %v31
  %v65 = vunpack.c.l.b16 %v32
  %v66 = vunpack.c.l.b16 %v33
  %v67 = vunpack.c.l.b16 %v34
  %v68 = vpack.c.b16 %v65, %v64
  %v69 = vpack.c.b16 %v67, %v66
  %v73 = vsel %vm56, 0, 0
  %75 = vmatprep.subr.bf16.mxu0 0
  %76 = vmatpush1.bf16.msra.mxu0 %v68
  %77 = vmatprep.subr.bf16.mxu0 0
  %78 = vmatpush1.bf16.msra.mxu0 %v69
  %79 = vmatprep.subr.bf16.mxu0 0
  %80 = vmatpush1.bf16.msra.mxu0 0
  %81 = vmatprep.subr.bf16.mxu0 0
  %82 = vmatpush1.bf16.msra.mxu0 0
  %83 = vmatprep.subr.bf16.mxu0 0
  %84 = vmatpush1.bf16.msra.mxu0 0
  %85 = vmatprep.subr.bf16.mxu0 0
  %86 = vmatpush1.bf16.msra.mxu0 0
  %87 = vmatprep.subr.bf16.mxu0 0
  %88 = vmatpush1.bf16.msra.mxu0 0
  %89 = vmatprep.subr.bf16.mxu0 0
  %90 = vmatpush1.bf16.msra.mxu0 0
  %91 = vmatprep.subr.bf16.mxu0 0
  %92 = vmatpush1.bf16.msra.mxu0 0
  %93 = vmatprep.subr.bf16.mxu0 0
  %94 = vmatpush1.bf16.msra.mxu0 0
  %95 = vmatprep.subr.bf16.mxu0 0
  %96 = vmatpush1.bf16.msra.mxu0 0
  %97 = vmatprep.subr.bf16.mxu0 0
  %98 = vmatpush1.bf16.msra.mxu0 0
  %99 = vmatprep.subr.bf16.mxu0 0
  %100 = vmatpush1.bf16.msra.mxu0 0
  %101 = vmatprep.subr.bf16.mxu0 0
  %102 = vmatpush1.bf16.msra.mxu0 0
  %103 = vmatprep.subr.bf16.mxu0 0
  %104 = vmatpush1.bf16.msra.mxu0 0
  %105 = vmatprep.subr.bf16.mxu0 0
  %106 = vmatpush1.bf16.msra.mxu0 0
  %107 = vmatprep.mubr.bf16.mxu0 0
  %108 = vmatmul.mubr.bf16.gmra.mrb[0].mxu0 %v73
  %v109 = vpop.f32.mrb[0].mxu0
  %v110 = vadd.f32 0.0, %v109
  %v111 = vpop.f32.mrb[0].mxu0
  %v112 = vpop.f32.mrb[0].mxu0
  %v113 = vpop.f32.mrb[0].mxu0
  %114 = vdwg.mxu0
  %v123 = vunpack.c.l.b16 %v23
  %v124 = vunpack.c.l.b16 %v24
  %v125 = vunpack.c.l.b16 %v25
  %v126 = vunpack.c.l.b16 %v26
  %v127 = vunpack.c.l.b16 %v27
  %v128 = vunpack.c.l.b16 %v28
  %v129 = vunpack.c.l.b16 %v29
  %v130 = vunpack.c.l.b16 %v30
  %v131 = vpack.c.b16 %v124, %v123
  %v132 = vpack.c.b16 %v126, %v125
  %v133 = vpack.c.b16 %v128, %v127
  %v134 = vpack.c.b16 %v130, %v129
  %vm139 = vcmask 523264
  %v140 = vsel %vm139, %v59, 0
  %142 = vmatprep.subr.bf16.mxu0 0
  %143 = vmatpush1.bf16.msra.mxu0 %v131
  %144 = vmatprep.subr.bf16.mxu0 0
  %145 = vmatpush1.bf16.msra.mxu0 %v132
  %146 = vmatprep.subr.bf16.mxu0 0
  %147 = vmatpush1.bf16.msra.mxu0 %v133
  %148 = vmatprep.subr.bf16.mxu0 0
  %149 = vmatpush1.bf16.msra.mxu0 %v134
  %150 = vmatprep.subr.bf16.mxu0 0
  %151 = vmatpush1.bf16.msra.mxu0 0
  %152 = vmatprep.subr.bf16.mxu0 0
  %153 = vmatpush1.bf16.msra.mxu0 0
  %154 = vmatprep.subr.bf16.mxu0 0
  %155 = vmatpush1.bf16.msra.mxu0 0
  %156 = vmatprep.subr.bf16.mxu0 0
  %157 = vmatpush1.bf16.msra.mxu0 0
  %158 = vmatprep.subr.bf16.mxu0 0
  %159 = vmatpush1.bf16.msra.mxu0 0
  %160 = vmatprep.subr.bf16.mxu0 0
  %161 = vmatpush1.bf16.msra.mxu0 0
  %162 = vmatprep.subr.bf16.mxu0 0
  %163 = vmatpush1.bf16.msra.mxu0 0
  %164 = vmatprep.subr.bf16.mxu0 0
  %165 = vmatpush1.bf16.msra.mxu0 0
  %166 = vmatprep.subr.bf16.mxu0 0
  %167 = vmatpush1.bf16.msra.mxu0 0
  %168 = vmatprep.subr.bf16.mxu0 0
  %169 = vmatpush1.bf16.msra.mxu0 0
  %170 = vmatprep.subr.bf16.mxu0 0
  %171 = vmatpush1.bf16.msra.mxu0 0
  %172 = vmatprep.subr.bf16.mxu0 0
  %173 = vmatpush1.bf16.msra.mxu0 0
  %174 = vmatprep.mubr.bf16.mxu0 0
  %175 = vmatmul.mubr.bf16.gmra.mrb[0].mxu0 %v140
  %v176 = vpop.f32.mrb[0].mxu0
  %v177 = vadd.f32 %v110, %v176
  %v178 = vpop.f32.mrb[0].mxu0
  %v179 = vpop.f32.mrb[0].mxu0
  %v180 = vpop.f32.mrb[0].mxu0
  %181 = vdwg.mxu0
  %v183 = vlaneseq
  %v184 = vshrl.u32 %v183, 7
  %v185 = vsub.s32 0, %v184
  %v186 = vrot.slane %v35, %v185
  %v188 = vadd.f32 %v177, %v186
  %v189 = vxor.u32 %v188, 2147483648
  %v190 = vmul.f32 %v189, 1.442695
  %v191 = vpow.pop %v190
  %v192 = vadd.f32 %v191, 1.0
  %v193 = vrcp.pop %v192
  %v194 = vmul.f32 1.0, %v193
  %v195 = vtanh.pop %v188
  %v196 = vmul.f32 %v194, 0.0
  %198 = vrot.lane.b32.xlu0 %v195, 64
  %v199 = vpop.permute.xlu0 %198
  %v201 = vmul.f32 %v194, %v199
  %203 = vrot.lane.b32.xlu0 %v201, 32
  %v204 = vpop.permute.xlu0 %203
  %v206 = vadd.f32 %v196, %v204
  %v207 = vtanh.pop %v206
  %209 = vrot.lane.b32.xlu0 %v207, 64
  %v210 = vpop.permute.xlu0 %209
  %v212 = vmul.f32 %v194, %v210
  %v213 = vld [vmem:[%s1] sm:$0x3]
  %s214 = scalar_lea.vmem %s1, 6
  %v215 = vld [vmem:[%s214] sm:$0x3]
  %217 = vset.pattern.permute.xlu0 0
  %218 = vperm.xlu0 %217, %v213
  %v219 = vpop.permute.xlu0 %218
  %222 = vset.pattern.permute.xlu0 0
  %223 = vperm.xlu0 %222, %v215
  %v224 = vpop.permute.xlu0 %223
  %vm226 = vcmask 130048
  %v227 = vsel %vm226, %v219, %v224
  %229 = vrot.lane.b32.xlu0 %v227, 96
  %v230 = vpop.permute.xlu0 %229
  %v232 = vmul.f32 %v212, %v230
  %234 = vrot.lane.b32.xlu0 %v232, 32
  %v235 = vpop.permute.xlu0 %234
  %vm237 = vcmask 123904
  %238 = vst.msk [vmem:[%s5] sm:$0x3] %vm237, %v235
  %239 = vrot.lane.b32.xlu0 %v232, 16
  %v240 = vpop.permute.xlu0 %239
  %s242 = scalar_lea.vmem %s6, 6
  %243 = vst.msk [vmem:[%s242] sm:$0x3] %vm237, %v240
  %v244 = vsub.f32 1.0, %v227
  %v245 = vmul.f32 %v244, 0.0
  %247 = vrot.lane.b32.xlu0 %v245, 96
  %v248 = vpop.permute.xlu0 %247
  %v250 = vadd.f32 %v232, %v248
  %252 = vrot.lane.b32.xlu0 %v206, 96
  %v253 = vpop.permute.xlu0 %252
  %v255 = vmul.f32 %v227, %v253
  %v256 = vadd.f32 %v255, %v245
  %s257 = scalar_lea.vmem %s0, 1
  %v258 = vld [vmem:[%s257] sm:$0x1]
  %s259 = scalar_lea.vmem %s0, 2
  %v260 = vld [vmem:[%s259] sm:$0x1]
  %v263 = vunpack.c.l.s4 1966171168
  %v264 = vunpack.c.0.s8 %v263
  %v265 = vlaneseq
  %v266 = vshrl.u32 %v265, 7
  %v267 = vsub.s32 %v264, %v266
  %v268 = vrot.slane %v260, %v267
  %v270 = vunpack.c.l.s4 1966171168
  %v271 = vunpack.c.0.s8 %v270
  %v272 = vlaneseq
  %v273 = vshrl.u32 %v272, 7
  %v274 = vsub.s32 %v271, %v273
  %v275 = vrot.slane %v268, %v274
  %276 = vrot.lane.b32.xlu0 %v275, 32
  %v277 = vpop.permute.xlu0 %276
  %v280 = vsel %vm56, %v258, %v277
  %v281 = vpack.c.bf16 %v250, %v250
  %283 = vrot.lane.b32.xlu0 %v281, 32
  %v284 = vpop.permute.xlu0 %283
  %v286 = vsel %vm56, %v284, 0
  %288 = vmatprep.subr.bf16.mxu0 0
  %289 = vmatpush1.bf16.msra.mxu0 %v68
  %290 = vmatprep.subr.bf16.mxu0 0
  %291 = vmatpush1.bf16.msra.mxu0 %v69
  %292 = vmatprep.subr.bf16.mxu0 0
  %293 = vmatpush1.bf16.msra.mxu0 0
  %294 = vmatprep.subr.bf16.mxu0 0
  %295 = vmatpush1.bf16.msra.mxu0 0
  %296 = vmatprep.subr.bf16.mxu0 0
  %297 = vmatpush1.bf16.msra.mxu0 0
  %298 = vmatprep.subr.bf16.mxu0 0
  %299 = vmatpush1.bf16.msra.mxu0 0
  %300 = vmatprep.subr.bf16.mxu0 0
  %301 = vmatpush1.bf16.msra.mxu0 0
  %302 = vmatprep.subr.bf16.mxu0 0
  %303 = vmatpush1.bf16.msra.mxu0 0
  %304 = vmatprep.subr.bf16.mxu0 0
  %305 = vmatpush1.bf16.msra.mxu0 0
  %306 = vmatprep.subr.bf16.mxu0 0
  %307 = vmatpush1.bf16.msra.mxu0 0
  %308 = vmatprep.subr.bf16.mxu0 0
  %309 = vmatpush1.bf16.msra.mxu0 0
  %310 = vmatprep.subr.bf16.mxu0 0
  %311 = vmatpush1.bf16.msra.mxu0 0
  %312 = vmatprep.subr.bf16.mxu0 0
  %313 = vmatpush1.bf16.msra.mxu0 0
  %314 = vmatprep.subr.bf16.mxu0 0
  %315 = vmatpush1.bf16.msra.mxu0 0
  %316 = vmatprep.subr.bf16.mxu0 0
  %317 = vmatpush1.bf16.msra.mxu0 0
  %318 = vmatprep.subr.bf16.mxu0 0
  %319 = vmatpush1.bf16.msra.mxu0 0
  %320 = vmatprep.mubr.bf16.mxu0 0
  %321 = vmatmul.mubr.bf16.gmra.mrb[0].mxu0 %v286
  %v322 = vpop.f32.mrb[0].mxu0
  %v323 = vadd.f32 0.0, %v322
  %v324 = vpop.f32.mrb[0].mxu0
  %v325 = vpop.f32.mrb[0].mxu0
  %v326 = vpop.f32.mrb[0].mxu0
  %327 = vdwg.mxu0
  %v328 = vsel %vm139, %v280, 0
  %330 = vmatprep.subr.bf16.mxu0 0
  %331 = vmatpush1.bf16.msra.mxu0 %v131
  %332 = vmatprep.subr.bf16.mxu0 0
  %333 = vmatpush1.bf16.msra.mxu0 %v132
  %334 = vmatprep.subr.bf16.mxu0 0
  %335 = vmatpush1.bf16.msra.mxu0 %v133
  %336 = vmatprep.subr.bf16.mxu0 0
  %337 = vmatpush1.bf16.msra.mxu0 %v134
  %338 = vmatprep.subr.bf16.mxu0 0
  %339 = vmatpush1.bf16.msra.mxu0 0
  %340 = vmatprep.subr.bf16.mxu0 0
  %341 = vmatpush1.bf16.msra.mxu0 0
  %342 = vmatprep.subr.bf16.mxu0 0
  %343 = vmatpush1.bf16.msra.mxu0 0
  %344 = vmatprep.subr.bf16.mxu0 0
  %345 = vmatpush1.bf16.msra.mxu0 0
  %346 = vmatprep.subr.bf16.mxu0 0
  %347 = vmatpush1.bf16.msra.mxu0 0
  %348 = vmatprep.subr.bf16.mxu0 0
  %349 = vmatpush1.bf16.msra.mxu0 0
  %350 = vmatprep.subr.bf16.mxu0 0
  %351 = vmatpush1.bf16.msra.mxu0 0
  %352 = vmatprep.subr.bf16.mxu0 0
  %353 = vmatpush1.bf16.msra.mxu0 0
  %354 = vmatprep.subr.bf16.mxu0 0
  %355 = vmatpush1.bf16.msra.mxu0 0
  %356 = vmatprep.subr.bf16.mxu0 0
  %357 = vmatpush1.bf16.msra.mxu0 0
  %358 = vmatprep.subr.bf16.mxu0 0
  %359 = vmatpush1.bf16.msra.mxu0 0
  %360 = vmatprep.subr.bf16.mxu0 0
  %361 = vmatpush1.bf16.msra.mxu0 0
  %362 = vmatprep.mubr.bf16.mxu0 0
  %363 = vmatmul.mubr.bf16.gmra.mrb[0].mxu0 %v328
  %v364 = vpop.f32.mrb[0].mxu0
  %v365 = vadd.f32 %v323, %v364
  %v366 = vpop.f32.mrb[0].mxu0
  %v367 = vpop.f32.mrb[0].mxu0
  %v368 = vpop.f32.mrb[0].mxu0
  %369 = vdwg.mxu0
  %v370 = vadd.f32 %v365, %v186
  %v371 = vxor.u32 %v370, 2147483648
  %v372 = vmul.f32 %v371, 1.442695
  %v373 = vpow.pop %v372
  %v374 = vadd.f32 %v373, 1.0
  %v375 = vrcp.pop %v374
  %v376 = vmul.f32 1.0, %v375
  %v377 = vtanh.pop %v370
  %379 = vrot.lane.b32.xlu0 %v256, 32
  %v380 = vpop.permute.xlu0 %379
  %v382 = vmul.f32 %v376, %v380
  %384 = vrot.lane.b32.xlu0 %v377, 64
  %v385 = vpop.permute.xlu0 %384
  %v387 = vmul.f32 %v376, %v385
  %389 = vrot.lane.b32.xlu0 %v387, 32
  %v390 = vpop.permute.xlu0 %389
  %v392 = vadd.f32 %v382, %v390
  %v393 = vtanh.pop %v392
  %395 = vrot.lane.b32.xlu0 %v393, 64
  %v396 = vpop.permute.xlu0 %395
  %v398 = vmul.f32 %v376, %v396
  %s399 = scalar_lea.vmem %s1, 2
  %v400 = vld [vmem:[%s399] sm:$0x3]
  %s401 = scalar_lea.vmem %s1, 4
  %v402 = vld [vmem:[%s401] sm:$0x3]
  %404 = vset.pattern.permute.xlu0 0
  %405 = vperm.xlu0 %404, %v400
  %v406 = vpop.permute.xlu0 %405
  %409 = vset.pattern.permute.xlu0 0
  %410 = vperm.xlu0 %409, %v402
  %v411 = vpop.permute.xlu0 %410
  %v413 = vsel %vm226, %v406, %v411
  %415 = vrot.lane.b32.xlu0 %v413, 96
  %v416 = vpop.permute.xlu0 %415
  %v418 = vmul.f32 %v398, %v416
  %420 = vrot.lane.b32.xlu0 %v418, 32
  %v421 = vpop.permute.xlu0 %420
  %s423 = scalar_lea.vmem %s5, 2
  %424 = vst.msk [vmem:[%s423] sm:$0x3] %vm237, %v421
  %425 = vrot.lane.b32.xlu0 %v418, 16
  %v426 = vpop.permute.xlu0 %425
  %s428 = scalar_lea.vmem %s6, 4
  %429 = vst.msk [vmem:[%s428] sm:$0x3] %vm237, %v426
  %v430 = vsub.f32 1.0, %v413
  %432 = vrot.lane.b32.xlu0 %v250, 32
  %v433 = vpop.permute.xlu0 %432
  %v435 = vmul.f32 %v430, %v433
  %437 = vrot.lane.b32.xlu0 %v435, 96
  %v438 = vpop.permute.xlu0 %437
  %v440 = vadd.f32 %v418, %v438
  %442 = vrot.lane.b32.xlu0 %v392, 96
  %v443 = vpop.permute.xlu0 %442
  %v445 = vmul.f32 %v413, %v443
  %v446 = vmul.f32 %v430, %v256
  %v447 = vadd.f32 %v445, %v446
  %v448 = vld [vmem:[%s259] sm:$0x1]
  %v449 = vld [vmem:[%s257] sm:$0x1]
  %v452 = vunpack.c.l.s4 1966171168
  %v453 = vunpack.c.0.s8 %v452
  %v454 = vlaneseq
  %v455 = vshrl.u32 %v454, 7
  %v456 = vsub.s32 %v453, %v455
  %v457 = vrot.slane %v449, %v456
  %v459 = vunpack.c.l.s4 1966171168
  %v460 = vunpack.c.0.s8 %v459
  %v461 = vlaneseq
  %v462 = vshrl.u32 %v461, 7
  %v463 = vsub.s32 %v460, %v462
  %v464 = vrot.slane %v457, %v463
  %465 = vrot.lane.b32.xlu0 %v464, 32
  %v466 = vpop.permute.xlu0 %465
  %v469 = vsel %vm56, %v448, %v466
  %v470 = vpack.c.bf16 %v440, %v440
  %472 = vrot.lane.b32.xlu0 %v470, 32
  %v473 = vpop.permute.xlu0 %472
  %v475 = vsel %vm56, %v473, 0
  %477 = vmatprep.subr.bf16.mxu0 0
  %478 = vmatpush1.bf16.msra.mxu0 %v68
  %479 = vmatprep.subr.bf16.mxu0 0
  %480 = vmatpush1.bf16.msra.mxu0 %v69
  %481 = vmatprep.subr.bf16.mxu0 0
  %482 = vmatpush1.bf16.msra.mxu0 0
  %483 = vmatprep.subr.bf16.mxu0 0
  %484 = vmatpush1.bf16.msra.mxu0 0
  %485 = vmatprep.subr.bf16.mxu0 0
  %486 = vmatpush1.bf16.msra.mxu0 0
  %487 = vmatprep.subr.bf16.mxu0 0
  %488 = vmatpush1.bf16.msra.mxu0 0
  %489 = vmatprep.subr.bf16.mxu0 0
  %490 = vmatpush1.bf16.msra.mxu0 0
  %491 = vmatprep.subr.bf16.mxu0 0
  %492 = vmatpush1.bf16.msra.mxu0 0
  %493 = vmatprep.subr.bf16.mxu0 0
  %494 = vmatpush1.bf16.msra.mxu0 0
  %495 = vmatprep.subr.bf16.mxu0 0
  %496 = vmatpush1.bf16.msra.mxu0 0
  %497 = vmatprep.subr.bf16.mxu0 0
  %498 = vmatpush1.bf16.msra.mxu0 0
  %499 = vmatprep.subr.bf16.mxu0 0
  %500 = vmatpush1.bf16.msra.mxu0 0
  %501 = vmatprep.subr.bf16.mxu0 0
  %502 = vmatpush1.bf16.msra.mxu0 0
  %503 = vmatprep.subr.bf16.mxu0 0
  %504 = vmatpush1.bf16.msra.mxu0 0
  %505 = vmatprep.subr.bf16.mxu0 0
  %506 = vmatpush1.bf16.msra.mxu0 0
  %507 = vmatprep.subr.bf16.mxu0 0
  %508 = vmatpush1.bf16.msra.mxu0 0
  %509 = vmatprep.mubr.bf16.mxu0 0
  %510 = vmatmul.mubr.bf16.gmra.mrb[0].mxu0 %v475
  %v511 = vpop.f32.mrb[0].mxu0
  %v512 = vadd.f32 0.0, %v511
  %v513 = vpop.f32.mrb[0].mxu0
  %v514 = vpop.f32.mrb[0].mxu0
  %v515 = vpop.f32.mrb[0].mxu0
  %516 = vdwg.mxu0
  %v517 = vsel %vm139, %v469, 0
  %519 = vmatprep.subr.bf16.mxu0 0
  %520 = vmatpush1.bf16.msra.mxu0 %v131
  %521 = vmatprep.subr.bf16.mxu0 0
  %522 = vmatpush1.bf16.msra.mxu0 %v132
  %523 = vmatprep.subr.bf16.mxu0 0
  %524 = vmatpush1.bf16.msra.mxu0 %v133
  %525 = vmatprep.subr.bf16.mxu0 0
  %526 = vmatpush1.bf16.msra.mxu0 %v134
  %527 = vmatprep.subr.bf16.mxu0 0
  %528 = vmatpush1.bf16.msra.mxu0 0
  %529 = vmatprep.subr.bf16.mxu0 0
  %530 = vmatpush1.bf16.msra.mxu0 0
  %531 = vmatprep.subr.bf16.mxu0 0
  %532 = vmatpush1.bf16.msra.mxu0 0
  %533 = vmatprep.subr.bf16.mxu0 0
  %534 = vmatpush1.bf16.msra.mxu0 0
  %535 = vmatprep.subr.bf16.mxu0 0
  %536 = vmatpush1.bf16.msra.mxu0 0
  %537 = vmatprep.subr.bf16.mxu0 0
  %538 = vmatpush1.bf16.msra.mxu0 0
  %539 = vmatprep.subr.bf16.mxu0 0
  %540 = vmatpush1.bf16.msra.mxu0 0
  %541 = vmatprep.subr.bf16.mxu0 0
  %542 = vmatpush1.bf16.msra.mxu0 0
  %543 = vmatprep.subr.bf16.mxu0 0
  %544 = vmatpush1.bf16.msra.mxu0 0
  %545 = vmatprep.subr.bf16.mxu0 0
  %546 = vmatpush1.bf16.msra.mxu0 0
  %547 = vmatprep.subr.bf16.mxu0 0
  %548 = vmatpush1.bf16.msra.mxu0 0
  %549 = vmatprep.subr.bf16.mxu0 0
  %550 = vmatpush1.bf16.msra.mxu0 0
  %551 = vmatprep.mubr.bf16.mxu0 0
  %552 = vmatmul.mubr.bf16.gmra.mrb[0].mxu0 %v517
  %v553 = vpop.f32.mrb[0].mxu0
  %v554 = vadd.f32 %v512, %v553
  %v555 = vpop.f32.mrb[0].mxu0
  %v556 = vpop.f32.mrb[0].mxu0
  %v557 = vpop.f32.mrb[0].mxu0
  %558 = vdwg.mxu0
  %v559 = vadd.f32 %v554, %v186
  %v560 = vxor.u32 %v559, 2147483648
  %v561 = vmul.f32 %v560, 1.442695
  %v562 = vpow.pop %v561
  %v563 = vadd.f32 %v562, 1.0
  %v564 = vrcp.pop %v563
  %v565 = vmul.f32 1.0, %v564
  %v566 = vtanh.pop %v559
  %568 = vrot.lane.b32.xlu0 %v447, 32
  %v569 = vpop.permute.xlu0 %568
  %v571 = vmul.f32 %v565, %v569
  %573 = vrot.lane.b32.xlu0 %v566, 64
  %v574 = vpop.permute.xlu0 %573
  %v576 = vmul.f32 %v565, %v574
  %578 = vrot.lane.b32.xlu0 %v576, 32
  %v579 = vpop.permute.xlu0 %578
  %v581 = vadd.f32 %v571, %v579
  %v582 = vtanh.pop %v581
  %584 = vrot.lane.b32.xlu0 %v582, 64
  %v585 = vpop.permute.xlu0 %584
  %v587 = vmul.f32 %v565, %v585
  %v588 = vld [vmem:[%s401] sm:$0x3]
  %v589 = vld [vmem:[%s399] sm:$0x3]
  %591 = vset.pattern.permute.xlu0 0
  %592 = vperm.xlu0 %591, %v588
  %v593 = vpop.permute.xlu0 %592
  %596 = vset.pattern.permute.xlu0 0
  %597 = vperm.xlu0 %596, %v589
  %v598 = vpop.permute.xlu0 %597
  %v600 = vsel %vm226, %v593, %v598
  %602 = vrot.lane.b32.xlu0 %v600, 96
  %v603 = vpop.permute.xlu0 %602
  %v605 = vmul.f32 %v587, %v603
  %607 = vrot.lane.b32.xlu0 %v605, 32
  %v608 = vpop.permute.xlu0 %607
  %s610 = scalar_lea.vmem %s5, 4
  %611 = vst.msk [vmem:[%s610] sm:$0x3] %vm237, %v608
  %612 = vrot.lane.b32.xlu0 %v605, 16
  %v613 = vpop.permute.xlu0 %612
  %s615 = scalar_lea.vmem %s6, 2
  %616 = vst.msk [vmem:[%s615] sm:$0x3] %vm237, %v613
  %v617 = vsub.f32 1.0, %v600
  %619 = vrot.lane.b32.xlu0 %v440, 32
  %v620 = vpop.permute.xlu0 %619
  %v622 = vmul.f32 %v617, %v620
  %624 = vrot.lane.b32.xlu0 %v622, 96
  %v625 = vpop.permute.xlu0 %624
  %v627 = vadd.f32 %v605, %v625
  %629 = vrot.lane.b32.xlu0 %v581, 96
  %v630 = vpop.permute.xlu0 %629
  %v632 = vmul.f32 %v600, %v630
  %v633 = vmul.f32 %v617, %v447
  %v634 = vadd.f32 %v632, %v633
  %v635 = vld [vmem:[%s37] sm:$0x1]
  %v636 = vld [vmem:[%s0] sm:$0x1]
  %v639 = vunpack.c.l.s4 1966171168
  %v640 = vunpack.c.0.s8 %v639
  %v641 = vlaneseq
  %v642 = vshrl.u32 %v641, 7
  %v643 = vsub.s32 %v640, %v642
  %v644 = vrot.slane %v636, %v643
  %v646 = vunpack.c.l.s4 1966171168
  %v647 = vunpack.c.0.s8 %v646
  %v648 = vlaneseq
  %v649 = vshrl.u32 %v648, 7
  %v650 = vsub.s32 %v647, %v649
  %v651 = vrot.slane %v644, %v650
  %652 = vrot.lane.b32.xlu0 %v651, 32
  %v653 = vpop.permute.xlu0 %652
  %v656 = vsel %vm56, %v635, %v653
  %v657 = vpack.c.bf16 %v627, %v627
  %659 = vrot.lane.b32.xlu0 %v657, 32
  %v660 = vpop.permute.xlu0 %659
  %v662 = vsel %vm56, %v660, 0
  %664 = vmatprep.subr.bf16.mxu0 0
  %665 = vmatpush1.bf16.msra.mxu0 %v68
  %666 = vmatprep.subr.bf16.mxu0 0
  %667 = vmatpush1.bf16.msra.mxu0 %v69
  %668 = vmatprep.subr.bf16.mxu0 0
  %669 = vmatpush1.bf16.msra.mxu0 0
  %670 = vmatprep.subr.bf16.mxu0 0
  %671 = vmatpush1.bf16.msra.mxu0 0
  %672 = vmatprep.subr.bf16.mxu0 0
  %673 = vmatpush1.bf16.msra.mxu0 0
  %674 = vmatprep.subr.bf16.mxu0 0
  %675 = vmatpush1.bf16.msra.mxu0 0
  %676 = vmatprep.subr.bf16.mxu0 0
  %677 = vmatpush1.bf16.msra.mxu0 0
  %678 = vmatprep.subr.bf16.mxu0 0
  %679 = vmatpush1.bf16.msra.mxu0 0
  %680 = vmatprep.subr.bf16.mxu0 0
  %681 = vmatpush1.bf16.msra.mxu0 0
  %682 = vmatprep.subr.bf16.mxu0 0
  %683 = vmatpush1.bf16.msra.mxu0 0
  %684 = vmatprep.subr.bf16.mxu0 0
  %685 = vmatpush1.bf16.msra.mxu0 0
  %686 = vmatprep.subr.bf16.mxu0 0
  %687 = vmatpush1.bf16.msra.mxu0 0
  %688 = vmatprep.subr.bf16.mxu0 0
  %689 = vmatpush1.bf16.msra.mxu0 0
  %690 = vmatprep.subr.bf16.mxu0 0
  %691 = vmatpush1.bf16.msra.mxu0 0
  %692 = vmatprep.subr.bf16.mxu0 0
  %693 = vmatpush1.bf16.msra.mxu0 0
  %694 = vmatprep.subr.bf16.mxu0 0
  %695 = vmatpush1.bf16.msra.mxu0 0
  %696 = vmatprep.mubr.bf16.mxu0 0
  %697 = vmatmul.mubr.bf16.gmra.mrb[0].mxu0 %v662
  %v698 = vpop.f32.mrb[0].mxu0
  %v699 = vadd.f32 0.0, %v698
  %v700 = vpop.f32.mrb[0].mxu0
  %v701 = vpop.f32.mrb[0].mxu0
  %v702 = vpop.f32.mrb[0].mxu0
  %703 = vdwg.mxu0
  %v704 = vsel %vm139, %v656, 0
  %706 = vmatprep.subr.bf16.mxu0 0
  %707 = vmatpush1.bf16.msra.mxu0 %v131
  %708 = vmatprep.subr.bf16.mxu0 0
  %709 = vmatpush1.bf16.msra.mxu0 %v132
  %710 = vmatprep.subr.bf16.mxu0 0
  %711 = vmatpush1.bf16.msra.mxu0 %v133
  %712 = vmatprep.subr.bf16.mxu0 0
  %713 = vmatpush1.bf16.msra.mxu0 %v134
  %714 = vmatprep.subr.bf16.mxu0 0
  %715 = vmatpush1.bf16.msra.mxu0 0
  %716 = vmatprep.subr.bf16.mxu0 0
  %717 = vmatpush1.bf16.msra.mxu0 0
  %718 = vmatprep.subr.bf16.mxu0 0
  %719 = vmatpush1.bf16.msra.mxu0 0
  %720 = vmatprep.subr.bf16.mxu0 0
  %721 = vmatpush1.bf16.msra.mxu0 0
  %722 = vmatprep.subr.bf16.mxu0 0
  %723 = vmatpush1.bf16.msra.mxu0 0
  %724 = vmatprep.subr.bf16.mxu0 0
  %725 = vmatpush1.bf16.msra.mxu0 0
  %726 = vmatprep.subr.bf16.mxu0 0
  %727 = vmatpush1.bf16.msra.mxu0 0
  %728 = vmatprep.subr.bf16.mxu0 0
  %729 = vmatpush1.bf16.msra.mxu0 0
  %730 = vmatprep.subr.bf16.mxu0 0
  %731 = vmatpush1.bf16.msra.mxu0 0
  %732 = vmatprep.subr.bf16.mxu0 0
  %733 = vmatpush1.bf16.msra.mxu0 0
  %734 = vmatprep.subr.bf16.mxu0 0
  %735 = vmatpush1.bf16.msra.mxu0 0
  %736 = vmatprep.subr.bf16.mxu0 0
  %737 = vmatpush1.bf16.msra.mxu0 0
  %738 = vmatprep.mubr.bf16.mxu0 0
  %739 = vmatmul.mubr.bf16.gmra.mrb[0].mxu0 %v704
  %v740 = vpop.f32.mrb[0].mxu0
  %v741 = vadd.f32 %v699, %v740
  %v742 = vpop.f32.mrb[0].mxu0
  %v743 = vpop.f32.mrb[0].mxu0
  %v744 = vpop.f32.mrb[0].mxu0
  %745 = vdwg.mxu0
  %v746 = vadd.f32 %v741, %v186
  %v747 = vxor.u32 %v746, 2147483648
  %v748 = vmul.f32 %v747, 1.442695
  %v749 = vpow.pop %v748
  %v750 = vadd.f32 %v749, 1.0
  %v751 = vrcp.pop %v750
  %v752 = vmul.f32 1.0, %v751
  %v753 = vtanh.pop %v746
  %755 = vrot.lane.b32.xlu0 %v634, 32
  %v756 = vpop.permute.xlu0 %755
  %v758 = vmul.f32 %v752, %v756
  %760 = vrot.lane.b32.xlu0 %v753, 64
  %v761 = vpop.permute.xlu0 %760
  %v763 = vmul.f32 %v752, %v761
  %765 = vrot.lane.b32.xlu0 %v763, 32
  %v766 = vpop.permute.xlu0 %765
  %v768 = vadd.f32 %v758, %v766
  %v769 = vtanh.pop %v768
  %771 = vrot.lane.b32.xlu0 %v769, 64
  %v772 = vpop.permute.xlu0 %771
  %v774 = vmul.f32 %v752, %v772
  %v775 = vld [vmem:[%s214] sm:$0x3]
  %v776 = vld [vmem:[%s1] sm:$0x3]
  %778 = vset.pattern.permute.xlu0 0
  %779 = vperm.xlu0 %778, %v775
  %v780 = vpop.permute.xlu0 %779
  %783 = vset.pattern.permute.xlu0 0
  %784 = vperm.xlu0 %783, %v776
  %v785 = vpop.permute.xlu0 %784
  %v787 = vsel %vm226, %v780, %v785
  %789 = vrot.lane.b32.xlu0 %v787, 96
  %v790 = vpop.permute.xlu0 %789
  %v792 = vmul.f32 %v774, %v790
  %794 = vrot.lane.b32.xlu0 %v792, 32
  %v795 = vpop.permute.xlu0 %794
  %s797 = scalar_lea.vmem %s5, 6
  %798 = vst.msk [vmem:[%s797] sm:$0x3] %vm237, %v795
  %799 = vrot.lane.b32.xlu0 %v792, 16
  %v800 = vpop.permute.xlu0 %799
  %802 = vst.msk [vmem:[%s6] sm:$0x3] %vm237, %v800
  // Predicated region
  $region22: #{mimn_forward.5} parent=0 // pred_check
    _
  $region23: #{mimn_forward.5} parent=0 // pred_check_branch
    %804 = sbr.rel (0) target = $region25
  $region24: #{mimn_forward.5} parent=0 // pred_region
    _
  $region25: #{mimn_forward.5} parent=0 // pred_fallthru
    _
  // Predicated region
  $region26: #{mimn_forward.5} parent=0 // pred_check
    _
  $region27: #{mimn_forward.5} parent=0 // pred_check_branch
    %806 = sbr.rel (0) target = $region29
  $region28: #{mimn_forward.5} parent=0 // pred_region
    _
  $region29: #{mimn_forward.5} parent=0 // pred_fallthru
    _
  // Predicated region
  $region30: #{mimn_forward.5} parent=0 // pred_check
    _
  $region31: #{mimn_forward.5} parent=0 // pred_check_branch
    %808 = sbr.rel (0) target = $region33
  $region32: #{mimn_forward.5} parent=0 // pred_region
    _
  $region33: #{mimn_forward.5} parent=0 // pred_fallthru
    _
  // Predicated region
  $region34: #{mimn_forward.5} parent=0 // pred_check
    _
  $region35: #{mimn_forward.5} parent=0 // pred_check_branch
    %810 = sbr.rel (0) target = $region37
  $region36: #{mimn_forward.5} parent=0 // pred_region
    _
  $region37: #{mimn_forward.5} parent=0 // pred_fallthru
    _

// kernel: mimn_forward.7
$region0: #{mimn_forward.7}
  #allocation0 [shape = 'u32[]', space=smem, size = 0x4, offset = 0x4, fixed_abs, tag = 'smem constant byte address 0x4 - core index']
  #allocation1 [shape = 'u32[144,128]{1,0:T(1,128)}', space=vmem, size = 0x12000, scoped, tag = 'internal scratch']
  %s0 = inlined_call_operand.vmem [shape: bf16[2,8,32], index: 0, kind: input, shape index: {}]
  %s1 = inlined_call_operand.vmem [shape: bf16[2,3,32], index: 1, kind: input, shape index: {}]
  %s2 = inlined_call_operand.vmem [shape: f32[2,4,32], index: 2, kind: input, shape index: {}]
  %s3 = inlined_call_operand.vmem [shape: f32[2,1], index: 3, kind: input, shape index: {}]
  %s4 = inlined_call_operand.vmem [shape: bf16[32,64], index: 4, kind: input, shape index: {}]
  %s5 = inlined_call_operand.vmem [shape: f32[1,64], index: 5, kind: input, shape index: {}]
  %s6 = inlined_call_operand.vmem [shape: f32[1,64], index: 6, kind: input, shape index: {}]
  %s7 = inlined_call_operand.vmem [shape: bf16[32,64], index: 7, kind: input, shape index: {}]
  %s8 = inlined_call_operand.vmem [shape: f32[1,64], index: 8, kind: input, shape index: {}]
  %s9 = inlined_call_operand.vmem [shape: f32[1,64], index: 9, kind: input, shape index: {}]
  %s10 = inlined_call_operand.vmem [shape: bf16[32,64], index: 10, kind: input, shape index: {}]
  %s11 = inlined_call_operand.vmem [shape: f32[1,64], index: 11, kind: input, shape index: {}]
  %s12 = inlined_call_operand.vmem [shape: f32[1,64], index: 12, kind: input, shape index: {}]
  %s13 = inlined_call_operand.vmem [shape: bf16[32,64], index: 13, kind: input, shape index: {}]
  %s14 = inlined_call_operand.vmem [shape: f32[1,64], index: 14, kind: input, shape index: {}]
  %s15 = inlined_call_operand.vmem [shape: f32[1,64], index: 15, kind: input, shape index: {}]
  %s16 = inlined_call_operand.vmem [shape: bf16[64,32], index: 16, kind: input, shape index: {}]
  %s17 = inlined_call_operand.vmem [shape: f32[1,32], index: 17, kind: input, shape index: {}]
  %s18 = inlined_call_operand.vmem [shape: bf16[64,32], index: 18, kind: input, shape index: {}]
  %s19 = inlined_call_operand.vmem [shape: f32[1,32], index: 19, kind: input, shape index: {}]
  %s20 = inlined_call_operand.vmem [shape: bf16[2,32,96], index: 20, kind: input, shape index: {}]
  %s21 = inlined_call_operand.vmem [shape: bf16[2,32,96], index: 21, kind: input, shape index: {}]
  %s22 = inlined_call_operand.vmem [shape: f32[2,96], index: 22, kind: input, shape index: {}]
  %s23 = inlined_call_operand.vmem [shape: f32[2,96], index: 23, kind: input, shape index: {}]
  %s24 = inlined_call_operand.vmem [shape: bf16[64,3], index: 24, kind: input, shape index: {}]
  %s25 = inlined_call_operand.vmem [shape: f32[1,3], index: 25, kind: input, shape index: {}]
  %s26 = inlined_call_operand.hbm [shape: f32[2,3], index: 26, kind: output, shape index: {}]
  %s27 = sld [smem:[#allocation0]]
  $region114: #{mimn_forward.7} parent=0
    _
  %s29 = ssub.s32 1, %s27
  %s30 = scalar_select 0, %s29, %s27
  $region1: #{mimn_forward.7} parent=0
    #allocation2 [shape = 'u8[1024]{0}', space=vmem, size = 0x400, scoped, tag = 'output window, operand 0, single buffered']
    #allocation3 [shape = 's32[1]{0}', space=sflag, size = 0x4, scoped, tag = 'scoped memory for mimn_forward.7']
    %31 = vsyncpa [#allocation3], 0
    // Predicated region
    $region2: #{mimn_forward.7} parent=1 // pred_check
      _
    $region3: #{mimn_forward.7} parent=1 // pred_check_branch
      %33 = sbr.rel (0) target = $region5
    $region4: #{mimn_forward.7} parent=1 // pred_region
      _
    $region5: #{mimn_forward.7} parent=1 // pred_fallthru
      _
    // Predicated region
    $region6: #{mimn_forward.7} parent=1 // pred_check
      _
    $region7: #{mimn_forward.7} parent=1 // pred_check_branch
      %35 = sbr.rel (0) target = $region9
    $region8: #{mimn_forward.7} parent=1 // pred_region
      _
    $region9: #{mimn_forward.7} parent=1 // pred_fallthru
      _
    // Predicated region
    $region10: #{mimn_forward.7} parent=1 // pred_check
      _
    $region11: #{mimn_forward.7} parent=1 // pred_check_branch
      %37 = sbr.rel (0) target = $region13
    $region12: #{mimn_forward.7} parent=1 // pred_region
      _
    $region13: #{mimn_forward.7} parent=1 // pred_fallthru
      _
    // Predicated region
    $region14: #{mimn_forward.7} parent=1 // pred_check
      _
    $region15: #{mimn_forward.7} parent=1 // pred_check_branch
      %39 = sbr.rel (0) target = $region17
    $region16: #{mimn_forward.7} parent=1 // pred_region
      _
    $region17: #{mimn_forward.7} parent=1 // pred_fallthru
      _
    // Predicated region
    $region18: #{mimn_forward.7} parent=1 // pred_check
      _
    $region19: #{mimn_forward.7} parent=1 // pred_check_branch
      %41 = sbr.rel (0) target = $region21
    $region20: #{mimn_forward.7} parent=1 // pred_region
      _
    $region21: #{mimn_forward.7} parent=1 // pred_fallthru
      _
    // Predicated region
    $region22: #{mimn_forward.7} parent=1 // pred_check
      _
    $region23: #{mimn_forward.7} parent=1 // pred_check_branch
      %43 = sbr.rel (0) target = $region25
    $region24: #{mimn_forward.7} parent=1 // pred_region
      _
    $region25: #{mimn_forward.7} parent=1 // pred_fallthru
      _
    // Predicated region
    $region26: #{mimn_forward.7} parent=1 // pred_check
      _
    $region27: #{mimn_forward.7} parent=1 // pred_check_branch
      %45 = sbr.rel (0) target = $region29
    $region28: #{mimn_forward.7} parent=1 // pred_region
      _
    $region29: #{mimn_forward.7} parent=1 // pred_fallthru
      _
    // Predicated region
    $region30: #{mimn_forward.7} parent=1 // pred_check
      _
    $region31: #{mimn_forward.7} parent=1 // pred_check_branch
      %47 = sbr.rel (0) target = $region33
    $region32: #{mimn_forward.7} parent=1 // pred_region
      _
    $region33: #{mimn_forward.7} parent=1 // pred_fallthru
      _
    // Predicated region
    $region34: #{mimn_forward.7} parent=1 // pred_check
      _
    $region35: #{mimn_forward.7} parent=1 // pred_check_branch
      %49 = sbr.rel (0) target = $region37
    $region36: #{mimn_forward.7} parent=1 // pred_region
      _
    $region37: #{mimn_forward.7} parent=1 // pred_fallthru
      _
    // Predicated region
    $region38: #{mimn_forward.7} parent=1 // pred_check
      _
    $region39: #{mimn_forward.7} parent=1 // pred_check_branch
      %51 = sbr.rel (0) target = $region41
    $region40: #{mimn_forward.7} parent=1 // pred_region
      _
    $region41: #{mimn_forward.7} parent=1 // pred_fallthru
      _
    // Predicated region
    $region42: #{mimn_forward.7} parent=1 // pred_check
      _
    $region43: #{mimn_forward.7} parent=1 // pred_check_branch
      %53 = sbr.rel (0) target = $region45
    $region44: #{mimn_forward.7} parent=1 // pred_region
      _
    $region45: #{mimn_forward.7} parent=1 // pred_fallthru
      _
    // Predicated region
    $region46: #{mimn_forward.7} parent=1 // pred_check
      _
    $region47: #{mimn_forward.7} parent=1 // pred_check_branch
      %55 = sbr.rel (0) target = $region49
    $region48: #{mimn_forward.7} parent=1 // pred_region
      _
    $region49: #{mimn_forward.7} parent=1 // pred_fallthru
      _
    // Predicated region
    $region50: #{mimn_forward.7} parent=1 // pred_check
      _
    $region51: #{mimn_forward.7} parent=1 // pred_check_branch
      %57 = sbr.rel (0) target = $region53
    $region52: #{mimn_forward.7} parent=1 // pred_region
      _
    $region53: #{mimn_forward.7} parent=1 // pred_fallthru
      _
    // Predicated region
    $region54: #{mimn_forward.7} parent=1 // pred_check
      _
    $region55: #{mimn_forward.7} parent=1 // pred_check_branch
      %59 = sbr.rel (0) target = $region57
    $region56: #{mimn_forward.7} parent=1 // pred_region
      _
    $region57: #{mimn_forward.7} parent=1 // pred_fallthru
      _
    // Predicated region
    $region58: #{mimn_forward.7} parent=1 // pred_check
      _
    $region59: #{mimn_forward.7} parent=1 // pred_check_branch
      %61 = sbr.rel (0) target = $region61
    $region60: #{mimn_forward.7} parent=1 // pred_region
      _
    $region61: #{mimn_forward.7} parent=1 // pred_fallthru
      _
    // Predicated region
    $region62: #{mimn_forward.7} parent=1 // pred_check
      _
    $region63: #{mimn_forward.7} parent=1 // pred_check_branch
      %63 = sbr.rel (0) target = $region65
    $region64: #{mimn_forward.7} parent=1 // pred_region
      _
    $region65: #{mimn_forward.7} parent=1 // pred_fallthru
      _
    // Predicated region
    $region66: #{mimn_forward.7} parent=1 // pred_check
      _
    $region67: #{mimn_forward.7} parent=1 // pred_check_branch
      %65 = sbr.rel (0) target = $region69
    $region68: #{mimn_forward.7} parent=1 // pred_region
      _
    $region69: #{mimn_forward.7} parent=1 // pred_fallthru
      _
    // Predicated region
    $region70: #{mimn_forward.7} parent=1 // pred_check
      _
    $region71: #{mimn_forward.7} parent=1 // pred_check_branch
      %67 = sbr.rel (0) target = $region73
    $region72: #{mimn_forward.7} parent=1 // pred_region
      _
    $region73: #{mimn_forward.7} parent=1 // pred_fallthru
      _
    // Predicated region
    $region74: #{mimn_forward.7} parent=1 // pred_check
      _
    $region75: #{mimn_forward.7} parent=1 // pred_check_branch
      %69 = sbr.rel (0) target = $region77
    $region76: #{mimn_forward.7} parent=1 // pred_region
      _
    $region77: #{mimn_forward.7} parent=1 // pred_fallthru
      _
    // Predicated region
    $region78: #{mimn_forward.7} parent=1 // pred_check
      _
    $region79: #{mimn_forward.7} parent=1 // pred_check_branch
      %71 = sbr.rel (0) target = $region81
    $region80: #{mimn_forward.7} parent=1 // pred_region
      _
    $region81: #{mimn_forward.7} parent=1 // pred_fallthru
      _
    // Predicated region
    $region82: #{mimn_forward.7} parent=1 // pred_check
      _
    $region83: #{mimn_forward.7} parent=1 // pred_check_branch
      %73 = sbr.rel (0) target = $region85
    $region84: #{mimn_forward.7} parent=1 // pred_region
      _
    $region85: #{mimn_forward.7} parent=1 // pred_fallthru
      _
    // Predicated region
    $region86: #{mimn_forward.7} parent=1 // pred_check
      _
    $region87: #{mimn_forward.7} parent=1 // pred_check_branch
      %75 = sbr.rel (0) target = $region89
    $region88: #{mimn_forward.7} parent=1 // pred_region
      _
    $region89: #{mimn_forward.7} parent=1 // pred_fallthru
      _
    // Predicated region
    $region90: #{mimn_forward.7} parent=1 // pred_check
      _
    $region91: #{mimn_forward.7} parent=1 // pred_check_branch
      %77 = sbr.rel (0) target = $region93
    $region92: #{mimn_forward.7} parent=1 // pred_region
      _
    $region93: #{mimn_forward.7} parent=1 // pred_fallthru
      _
    // Predicated region
    $region94: #{mimn_forward.7} parent=1 // pred_check
      _
    $region95: #{mimn_forward.7} parent=1 // pred_check_branch
      %79 = sbr.rel (0) target = $region97
    $region96: #{mimn_forward.7} parent=1 // pred_region
      _
    $region97: #{mimn_forward.7} parent=1 // pred_fallthru
      _
    // Predicated region
    $region98: #{mimn_forward.7} parent=1 // pred_check
      _
    $region99: #{mimn_forward.7} parent=1 // pred_check_branch
      %81 = sbr.rel (0) target = $region101
    $region100: #{mimn_forward.7} parent=1 // pred_region
      _
    $region101: #{mimn_forward.7} parent=1 // pred_fallthru
      _
    // Predicated region
    $region102: #{mimn_forward.7} parent=1 // pred_check
      _
    $region103: #{mimn_forward.7} parent=1 // pred_check_branch
      %83 = sbr.rel (0) target = $region105
    $region104: #{mimn_forward.7} parent=1 // pred_region
      _
    $region105: #{mimn_forward.7} parent=1 // pred_fallthru
      _
    %v85 = vld [vmem:[%s2] sm:$0xf]
    %v86 = vld [vmem:[%s2 + $0x4] sm:$0xf]
    %vm87 = vcmask 257024
    %v88 = vsel %vm87, %v85, 0.0
    %v89 = vrot.slane %v88, 4
    %v90 = vadd.f32 %v88, %v89
    %v91 = vrot.slane %v90, 2
    %v92 = vadd.f32 %v90, %v91
    %v93 = vrot.slane %v92, 1
    %v94 = vadd.f32 %v92, %v93
    %v95 = vsel %vm87, %v86, 0.0
    %v96 = vrot.slane %v95, 4
    %v97 = vadd.f32 %v95, %v96
    %v98 = vrot.slane %v97, 2
    %v99 = vadd.f32 %v97, %v98
    %v100 = vrot.slane %v99, 1
    %v101 = vadd.f32 %v99, %v100
    %v102 = vld [vmem:[%s3] sm:$0x3]
    %104 = vset.pattern.permute.xlu0 0
    %105 = vperm.xlu0 %104, %v102
    %v106 = vpop.permute.xlu0 %105
    %v107 = vrot.slane %v106, 1
    %v110 = vmul.f32 %v94, %v106
    %v111 = vmul.f32 %v101, %v107
    %v112 = vld [vmem:[%s0] sm:$0xf]
    %v113 = vld [vmem:[%s0 + $0x4] sm:$0xf]
    %v114 = vld [vmem:[%s4] sm:$0xf]
    %v115 = vld [vmem:[%s4 + $0x4] sm:$0xf]
    %v116 = vld [vmem:[%s4 + $0x8] sm:$0xf]
    %v117 = vld [vmem:[%s4 + $0xc] sm:$0xf]
    %v118 = vld [vmem:[%s5] sm:$0x1]
    %v120 = vlaneseq
    %v121 = vshrl.u32 %v120, 7
    %v122 = vsub.s32 0, %v121
    %v123 = vrot.slane %v118, %v122
    %v127 = vunpack.c.l.b16 %v112
    %v128 = vunpack.c.l.b16 %v113
    %v129 = vpack.c.b16 %v128, %v127
    %v134 = vunpack.c.l.b16 %v114
    %v135 = vunpack.c.l.b16 %v115
    %v136 = vunpack.c.l.b16 %v116
    %v137 = vunpack.c.l.b16 %v117
    %v138 = vpack.c.b16 %v135, %v134
    %v139 = vpack.c.b16 %v137, %v136
    %vm142 = vcmask 261120
    %v144 = vsel %vm142, %v129, 0
    %146 = vmatprep.subr.bf16.mxu0 0
    %147 = vmatpush1.bf16.msra.mxu0 %v138
    %148 = vmatprep.subr.bf16.mxu0 0
    %149 = vmatpush1.bf16.msra.mxu0 %v139
    %150 = vmatprep.subr.bf16.mxu0 0
    %151 = vmatpush1.bf16.msra.mxu0 0
    %152 = vmatprep.subr.bf16.mxu0 0
    %153 = vmatpush1.bf16.msra.mxu0 0
    %154 = vmatprep.subr.bf16.mxu0 0
    %155 = vmatpush1.bf16.msra.mxu0 0
    %156 = vmatprep.subr.bf16.mxu0 0
    %157 = vmatpush1.bf16.msra.mxu0 0
    %158 = vmatprep.subr.bf16.mxu0 0
    %159 = vmatpush1.bf16.msra.mxu0 0
    %160 = vmatprep.subr.bf16.mxu0 0
    %161 = vmatpush1.bf16.msra.mxu0 0
    %162 = vmatprep.subr.bf16.mxu0 0
    %163 = vmatpush1.bf16.msra.mxu0 0
    %164 = vmatprep.subr.bf16.mxu0 0
    %165 = vmatpush1.bf16.msra.mxu0 0
    %166 = vmatprep.subr.bf16.mxu0 0
    %167 = vmatpush1.bf16.msra.mxu0 0
    %168 = vmatprep.subr.bf16.mxu0 0
    %169 = vmatpush1.bf16.msra.mxu0 0
    %170 = vmatprep.subr.bf16.mxu0 0
    %171 = vmatpush1.bf16.msra.mxu0 0
    %172 = vmatprep.subr.bf16.mxu0 0
    %173 = vmatpush1.bf16.msra.mxu0 0
    %174 = vmatprep.subr.bf16.mxu0 0
    %175 = vmatpush1.bf16.msra.mxu0 0
    %176 = vmatprep.subr.bf16.mxu0 0
    %177 = vmatpush1.bf16.msra.mxu0 0
    %178 = vmatprep.mubr.bf16.mxu0 0
    %179 = vmatmul.mubr.bf16.gmra.mrb[0].mxu0 %v144
    %v180 = vpop.f32.mrb[0].mxu0
    %v181 = vadd.f32 %v123, %v180
    %v182 = vpop.f32.mrb[0].mxu0
    %v183 = vpop.f32.mrb[0].mxu0
    %v184 = vadd.f32 %v123, %v183
    %v185 = vpop.f32.mrb[0].mxu0
    %186 = vdwg.mxu0
    %v187 = vld [vmem:[%s6] sm:$0x1]
    %v189 = vlaneseq
    %v190 = vshrl.u32 %v189, 7
    %v191 = vsub.s32 0, %v190
    %v192 = vrot.slane %v187, %v191
    %v194 = vmul.f32 %v181, %v192
    %v195 = vmul.f32 %v184, %v192
    %v196 = vsel %vm142, %v194, 0.0
    %197 = vadd.xlane.f32.xlu0 %v196
    %v198 = vpop.xlane.xlu0 %197
    %v199 = vsel %vm142, %v195, 0.0
    %200 = vadd.xlane.f32.xlu0 %v199
    %v201 = vpop.xlane.xlu0 %200
    %204 = vrot.lane.b32.xlu0 %v194, 96
    %v205 = vpop.permute.xlu0 %204
    %206 = vrot.lane.b32.xlu0 %v195, 96
    %v207 = vpop.permute.xlu0 %206
    %v210 = vsel %vm142, %v205, 0.0
    %211 = vadd.xlane.f32.xlu0 %v210
    %v212 = vpop.xlane.xlu0 %211
    %v213 = vsel %vm142, %v207, 0.0
    %214 = vadd.xlane.f32.xlu0 %v213
    %v215 = vpop.xlane.xlu0 %214
    %v216 = vpack.c.bf16 %v181, %v181
    %v217 = vpack.c.bf16 %v184, %v184
    %v218 = vld [vmem:[%s1] sm:$0x3]
    %v219 = vld [vmem:[%s1 + $0x2] sm:$0x3]
    %v220 = vld [vmem:[%s7] sm:$0xf]
    %v221 = vld [vmem:[%s7 + $0x4] sm:$0xf]
    %v222 = vld [vmem:[%s7 + $0x8] sm:$0xf]
    %v223 = vld [vmem:[%s7 + $0xc] sm:$0xf]
    %v224 = vld [vmem:[%s8] sm:$0x1]
    %v226 = vlaneseq
    %v227 = vshrl.u32 %v226, 7
    %v228 = vsub.s32 0, %v227
    %v229 = vrot.slane %v224, %v228
    %v233 = vunpack.c.l.s4 1966171168
    %v234 = vunpack.c.0.s8 %v233
    %v235 = vlaneseq
    %v236 = vshrl.u32 %v235, 7
    %v237 = vsub.s32 %v234, %v236
    %v238 = vrot.slane %v218, %v237
    %v239 = vcombine.high %v238, %v238
    %v241 = vunpack.c.l.s4 1966171168
    %v242 = vunpack.c.0.s8 %v241
    %v243 = vlaneseq
    %v244 = vshrl.u32 %v243, 7
    %v245 = vsub.s32 %v242, %v244
    %v246 = vrot.slane %v219, %v245
    %v247 = vcombine.high %v246, %v246
    %v248 = vunpack.i.l.s16 %v238
    %v249 = vunpack.i.h.s16 %v238
    %v250 = vunpack.i.l.s16 %v239
    %v251 = vunpack.i.l.s16 %v246
    %v252 = vunpack.i.h.s16 %v246
    %v253 = vunpack.i.l.s16 %v247
    %v255 = vunpack.c.l.s4 1966171168
    %v256 = vunpack.c.0.s8 %v255
    %v257 = vlaneseq
    %v258 = vshrl.u32 %v257, 7
    %v259 = vsub.s32 %v256, %v258
    %v260 = vrot.slane %v229, %v259
    %v261 = vcombine.high %v260, %v260
    %v263 = vunpack.c.l.s4 1966171168
    %v264 = vunpack.c.0.s8 %v263
    %v265 = vlaneseq
    %v266 = vshrl.u32 %v265, 7
    %v267 = vsub.s32 %v264, %v266
    %v268 = vrot.slane %v260, %v267
    %v270 = vunpack.c.l.s4 1966171168
    %v271 = vunpack.c.0.s8 %v270
    %v272 = vlaneseq
    %v273 = vshrl.u32 %v272, 7
    %v274 = vsub.s32 %v271, %v273
    %v275 = vrot.slane %v261, %v274
    %v276 = vcombine.high %v268, %v268
    %v277 = vpack.i.b16 %v249, %v248
    %v278 = vpack.i.b16 %v251, %v250
    %v279 = vpack.i.b16 %v253, %v252
    %v280 = vcombine.low %v277, %v278
    %v282 = vunpack.c.l.s4 1966171168
    %v283 = vunpack.c.0.s8 %v282
    %v284 = vlaneseq
    %v285 = vshrl.u32 %v284, 7
    %v286 = vsub.s32 %v283, %v285
    %v287 = vrot.slane %v280, %v286
    %v289 = vunpack.c.l.s4 1966171168
    %v290 = vunpack.c.0.s8 %v289
    %v291 = vlaneseq
    %v292 = vshrl.u32 %v291, 7
    %v293 = vsub.s32 %v290, %v292
    %v294 = vrot.slane %v279, %v293
    %v295 = vcombine.low %v287, %v294
    %v297 = vunpack.c.l.s4 1966171168
    %v298 = vunpack.c.0.s8 %v297
    %v299 = vlaneseq
    %v300 = vshrl.u32 %v299, 7
    %v301 = vsub.s32 %v298, %v300
    %v302 = vrot.slane %v295, %v301
    %v307 = vunpack.c.l.b16 %v220
    %v308 = vunpack.c.l.b16 %v221
    %v309 = vunpack.c.l.b16 %v222
    %v310 = vunpack.c.l.b16 %v223
    %v311 = vpack.c.b16 %v308, %v307
    %v312 = vpack.c.b16 %v310, %v309
    %v315 = vcombine.low %v268, %v275
    %v316 = vcombine.low %v276, %v268
    %v317 = vcombine.low %v275, %v276
    %v319 = vunpack.c.l.s4 1966171168
    %v320 = vunpack.c.0.s8 %v319
    %v321 = vlaneseq
    %v322 = vshrl.u32 %v321, 7
    %v323 = vsub.s32 %v320, %v322
    %v324 = vrot.slane %v315, %v323
    %v326 = vunpack.c.l.s4 1966171168
    %v327 = vunpack.c.0.s8 %v326
    %v328 = vlaneseq
    %v329 = vshrl.u32 %v328, 7
    %v330 = vsub.s32 %v327, %v329
    %v331 = vrot.slane %v316, %v330
    %v333 = vunpack.c.l.s4 1966171168
    %v334 = vunpack.c.0.s8 %v333
    %v335 = vlaneseq
    %v336 = vshrl.u32 %v335, 7
    %v337 = vsub.s32 %v334, %v336
    %v338 = vrot.slane %v317, %v337
    %v339 = vcombine.low %v324, %v331
    %v341 = vunpack.c.l.s4 1966171168
    %v342 = vunpack.c.0.s8 %v341
    %v343 = vlaneseq
    %v344 = vshrl.u32 %v343, 7
    %v345 = vsub.s32 %v342, %v344
    %v346 = vrot.slane %v339, %v345
    %v348 = vunpack.c.l.s4 1966171168
    %v349 = vunpack.c.0.s8 %v348
    %v350 = vlaneseq
    %v351 = vshrl.u32 %v350, 7
    %v352 = vsub.s32 %v349, %v351
    %v353 = vrot.slane %v338, %v352
    %v354 = vcombine.low %v346, %v353
    %v357 = vsel %vm142, %v302, 0
    %359 = vmatprep.subr.bf16.mxu0 0
    %360 = vmatpush1.bf16.msra.mxu0 %v311
    %361 = vmatprep.subr.bf16.mxu0 0
    %362 = vmatpush1.bf16.msra.mxu0 %v312
    %363 = vmatprep.subr.bf16.mxu0 0
    %364 = vmatpush1.bf16.msra.mxu0 0
    %365 = vmatprep.subr.bf16.mxu0 0
    %366 = vmatpush1.bf16.msra.mxu0 0
    %367 = vmatprep.subr.bf16.mxu0 0
    %368 = vmatpush1.bf16.msra.mxu0 0
    %369 = vmatprep.subr.bf16.mxu0 0
    %370 = vmatpush1.bf16.msra.mxu0 0
    %371 = vmatprep.subr.bf16.mxu0 0
    %372 = vmatpush1.bf16.msra.mxu0 0
    %373 = vmatprep.subr.bf16.mxu0 0
    %374 = vmatpush1.bf16.msra.mxu0 0
    %375 = vmatprep.subr.bf16.mxu0 0
    %376 = vmatpush1.bf16.msra.mxu0 0
    %377 = vmatprep.subr.bf16.mxu0 0
    %378 = vmatpush1.bf16.msra.mxu0 0
    %379 = vmatprep.subr.bf16.mxu0 0
    %380 = vmatpush1.bf16.msra.mxu0 0
    %381 = vmatprep.subr.bf16.mxu0 0
    %382 = vmatpush1.bf16.msra.mxu0 0
    %383 = vmatprep.subr.bf16.mxu0 0
    %384 = vmatpush1.bf16.msra.mxu0 0
    %385 = vmatprep.subr.bf16.mxu0 0
    %386 = vmatpush1.bf16.msra.mxu0 0
    %387 = vmatprep.subr.bf16.mxu0 0
    %388 = vmatpush1.bf16.msra.mxu0 0
    %389 = vmatprep.subr.bf16.mxu0 0
    %390 = vmatpush1.bf16.msra.mxu0 0
    %391 = vmatprep.mubr.bf16.mxu0 0
    %392 = vmatmul.mubr.bf16.gmra.mrb[0].mxu0 %v357
    %v393 = vpop.f32.mrb[0].mxu0
    %v394 = vadd.f32 %v354, %v393
    %v395 = vpop.f32.mrb[0].mxu0
    %v396 = vpop.f32.mrb[0].mxu0
    %v397 = vpop.f32.mrb[0].mxu0
    %398 = vdwg.mxu0
    %v400 = vcombine.high %v394, %v394
    %v402 = vunpack.c.l.s4 1966171168
    %v403 = vunpack.c.0.s8 %v402
    %v404 = vlaneseq
    %v405 = vshrl.u32 %v404, 7
    %v406 = vsub.s32 %v403, %v405
    %v407 = vrot.slane %v394, %v406
    %v409 = vunpack.c.l.s4 1966171168
    %v410 = vunpack.c.0.s8 %v409
    %v411 = vlaneseq
    %v412 = vshrl.u32 %v411, 7
    %v413 = vsub.s32 %v410, %v412
    %v414 = vrot.slane %v400, %v413
    %v415 = vcombine.high %v407, %v407
    %v416 = vcombine.high %v414, %v414
    %v418 = vunpack.c.l.s4 1966171168
    %v419 = vunpack.c.0.s8 %v418
    %v420 = vlaneseq
    %v421 = vshrl.u32 %v420, 7
    %v422 = vsub.s32 %v419, %v421
    %v423 = vrot.slane %v407, %v422
    %v425 = vunpack.c.l.s4 1966171168
    %v426 = vunpack.c.0.s8 %v425
    %v427 = vlaneseq
    %v428 = vshrl.u32 %v427, 7
    %v429 = vsub.s32 %v426, %v428
    %v430 = vrot.slane %v414, %v429
    %v432 = vunpack.c.l.s4 1966171168
    %v433 = vunpack.c.0.s8 %v432
    %v434 = vlaneseq
    %v435 = vshrl.u32 %v434, 7
    %v436 = vsub.s32 %v433, %v435
    %v437 = vrot.slane %v415, %v436
    %v439 = vunpack.c.l.s4 1966171168
    %v440 = vunpack.c.0.s8 %v439
    %v441 = vlaneseq
    %v442 = vshrl.u32 %v441, 7
    %v443 = vsub.s32 %v440, %v442
    %v444 = vrot.slane %v416, %v443
    %v445 = vcombine.high %v423, %v423
    %v446 = vcombine.high %v437, %v437
    %v453 = vld [vmem:[%s9] sm:$0x1]
    %v455 = vlaneseq
    %v456 = vshrl.u32 %v455, 7
    %v457 = vsub.s32 0, %v456
    %v458 = vrot.slane %v453, %v457
    %v460 = vunpack.c.l.s4 1966171168
    %v461 = vunpack.c.0.s8 %v460
    %v462 = vlaneseq
    %v463 = vshrl.u32 %v462, 7
    %v464 = vsub.s32 %v461, %v463
    %v465 = vrot.slane %v458, %v464
    %v466 = vcombine.high %v465, %v465
    %v468 = vunpack.c.l.s4 1966171168
    %v469 = vunpack.c.0.s8 %v468
    %v470 = vlaneseq
    %v471 = vshrl.u32 %v470, 7
    %v472 = vsub.s32 %v469, %v471
    %v473 = vrot.slane %v465, %v472
    %v475 = vunpack.c.l.s4 1966171168
    %v476 = vunpack.c.0.s8 %v475
    %v477 = vlaneseq
    %v478 = vshrl.u32 %v477, 7
    %v479 = vsub.s32 %v476, %v478
    %v480 = vrot.slane %v466, %v479
    %v481 = vcombine.high %v473, %v473
    %v485 = vmul.f32 %v423, %v473
    %v486 = vmul.f32 %v437, %v480
    %v487 = vmul.f32 %v445, %v481
    %v488 = vmul.f32 %v446, %v473
    %v489 = vmul.f32 %v430, %v480
    %v490 = vmul.f32 %v444, %v481
    %v497 = vcombine.low %v485, %v486
    %v499 = vunpack.c.l.s4 1966171168
    %v500 = vunpack.c.0.s8 %v499
    %v501 = vlaneseq
    %v502 = vshrl.u32 %v501, 7
    %v503 = vsub.s32 %v500, %v502
    %v504 = vrot.slane %v497, %v503
    %v506 = vunpack.c.l.s4 1966171168
    %v507 = vunpack.c.0.s8 %v506
    %v508 = vlaneseq
    %v509 = vshrl.u32 %v508, 7
    %v510 = vsub.s32 %v507, %v509
    %v511 = vrot.slane %v487, %v510
    %v512 = vcombine.low %v504, %v511
    %v514 = vunpack.c.l.s4 1966171168
    %v515 = vunpack.c.0.s8 %v514
    %v516 = vlaneseq
    %v517 = vshrl.u32 %v516, 7
    %v518 = vsub.s32 %v515, %v517
    %v519 = vrot.slane %v512, %v518
    %v520 = vcombine.low %v488, %v489
    %v522 = vunpack.c.l.s4 1966171168
    %v523 = vunpack.c.0.s8 %v522
    %v524 = vlaneseq
    %v525 = vshrl.u32 %v524, 7
    %v526 = vsub.s32 %v523, %v525
    %v527 = vrot.slane %v520, %v526
    %v529 = vunpack.c.l.s4 1966171168
    %v530 = vunpack.c.0.s8 %v529
    %v531 = vlaneseq
    %v532 = vshrl.u32 %v531, 7
    %v533 = vsub.s32 %v530, %v532
    %v534 = vrot.slane %v490, %v533
    %v535 = vcombine.low %v527, %v534
    %v537 = vunpack.c.l.s4 1966171168
    %v538 = vunpack.c.0.s8 %v537
    %v539 = vlaneseq
    %v540 = vshrl.u32 %v539, 7
    %v541 = vsub.s32 %v538, %v540
    %v542 = vrot.slane %v535, %v541
    %vm545 = vcmask 256000
    %v546 = vsel %vm545, %v519, 0.0
    %547 = vadd.xlane.f32.xlu0 %v546
    %v548 = vpop.xlane.xlu0 %547
    %v549 = vsel %vm545, %v542, 0.0
    %550 = vadd.xlane.f32.xlu0 %v549
    %v551 = vpop.xlane.xlu0 %550
    %552 = vrot.lane.b32.xlu0 %v519, 96
    %v553 = vpop.permute.xlu0 %552
    %554 = vrot.lane.b32.xlu0 %v542, 96
    %v555 = vpop.permute.xlu0 %554
    %v558 = vsel %vm545, %v553, 0.0
    %559 = vadd.xlane.f32.xlu0 %v558
    %v560 = vpop.xlane.xlu0 %559
    %v561 = vsel %vm545, %v555, 0.0
    %562 = vadd.xlane.f32.xlu0 %v561
    %v563 = vpop.xlane.xlu0 %562
    %v564 = vcombine.low %v423, %v437
    %v566 = vunpack.c.l.s4 1966171168
    %v567 = vunpack.c.0.s8 %v566
    %v568 = vlaneseq
    %v569 = vshrl.u32 %v568, 7
    %v570 = vsub.s32 %v567, %v569
    %v571 = vrot.slane %v564, %v570
    %v573 = vunpack.c.l.s4 1966171168
    %v574 = vunpack.c.0.s8 %v573
    %v575 = vlaneseq
    %v576 = vshrl.u32 %v575, 7
    %v577 = vsub.s32 %v574, %v576
    %v578 = vrot.slane %v445, %v577
    %v579 = vcombine.low %v571, %v578
    %v581 = vunpack.c.l.s4 1966171168
    %v582 = vunpack.c.0.s8 %v581
    %v583 = vlaneseq
    %v584 = vshrl.u32 %v583, 7
    %v585 = vsub.s32 %v582, %v584
    %v586 = vrot.slane %v579, %v585
    %v587 = vcombine.low %v446, %v430
    %v589 = vunpack.c.l.s4 1966171168
    %v590 = vunpack.c.0.s8 %v589
    %v591 = vlaneseq
    %v592 = vshrl.u32 %v591, 7
    %v593 = vsub.s32 %v590, %v592
    %v594 = vrot.slane %v587, %v593
    %v596 = vunpack.c.l.s4 1966171168
    %v597 = vunpack.c.0.s8 %v596
    %v598 = vlaneseq
    %v599 = vshrl.u32 %v598, 7
    %v600 = vsub.s32 %v597, %v599
    %v601 = vrot.slane %v444, %v600
    %v602 = vcombine.low %v594, %v601
    %v604 = vunpack.c.l.s4 1966171168
    %v605 = vunpack.c.0.s8 %v604
    %v606 = vlaneseq
    %v607 = vshrl.u32 %v606, 7
    %v608 = vsub.s32 %v605, %v607
    %v609 = vrot.slane %v602, %v608
    %v612 = vpack.c.bf16 %v586, %v586
    %v613 = vpack.c.bf16 %v609, %v609
    %v614 = vld [vmem:[%s10] sm:$0xf]
    %v615 = vld [vmem:[%s10 + $0x4] sm:$0xf]
    %v616 = vld [vmem:[%s10 + $0x8] sm:$0xf]
    %v617 = vld [vmem:[%s10 + $0xc] sm:$0xf]
    %v618 = vld [vmem:[%s11] sm:$0x1]
    %v619 = vld [vmem:[%s12] sm:$0x1]
    %v620 = vld [vmem:[%s13] sm:$0xf]
    %v621 = vld [vmem:[%s13 + $0x4] sm:$0xf]
    %v622 = vld [vmem:[%s13 + $0x8] sm:$0xf]
    %v623 = vld [vmem:[%s13 + $0xc] sm:$0xf]
    %v624 = vld [vmem:[%s14] sm:$0x1]
    %v625 = vld [vmem:[%s15] sm:$0x1]
    %v626 = vld [vmem:[%s16] sm:$0xf]
    %v627 = vld [vmem:[%s16 + $0x4] sm:$0xf]
    %v628 = vld [vmem:[%s16 + $0x8] sm:$0xf]
    %v629 = vld [vmem:[%s16 + $0xc] sm:$0xf]
    %v630 = vld [vmem:[%s16 + $0x10] sm:$0xf]
    %v631 = vld [vmem:[%s16 + $0x14] sm:$0xf]
    %v632 = vld [vmem:[%s16 + $0x18] sm:$0xf]
    %v633 = vld [vmem:[%s16 + $0x1c] sm:$0xf]
    %v634 = vld [vmem:[%s17] sm:$0x1]
    %v635 = vld [vmem:[%s18] sm:$0xf]
    %v636 = vld [vmem:[%s18 + $0x4] sm:$0xf]
    %v637 = vld [vmem:[%s18 + $0x8] sm:$0xf]
    %v638 = vld [vmem:[%s18 + $0xc] sm:$0xf]
    %v639 = vld [vmem:[%s18 + $0x10] sm:$0xf]
    %v640 = vld [vmem:[%s18 + $0x14] sm:$0xf]
    %v641 = vld [vmem:[%s18 + $0x18] sm:$0xf]
    %v642 = vld [vmem:[%s18 + $0x1c] sm:$0xf]
    %v643 = vld [vmem:[%s19] sm:$0x1]
    %v644 = vld [vmem:[%s20] sm:$0xf]
    %v645 = vld [vmem:[%s20 + $0x4] sm:$0xf]
    %v646 = vld [vmem:[%s20 + $0x8] sm:$0xf]
    %v647 = vld [vmem:[%s20 + $0xc] sm:$0xf]
    %v648 = vld [vmem:[%s20 + $0x10] sm:$0xf]
    %v649 = vld [vmem:[%s20 + $0x14] sm:$0xf]
    %v650 = vld [vmem:[%s20 + $0x18] sm:$0xf]
    %v651 = vld [vmem:[%s20 + $0x1c] sm:$0xf]
    %v652 = vld [vmem:[%s21] sm:$0xf]
    %v653 = vld [vmem:[%s21 + $0x4] sm:$0xf]
    %v654 = vld [vmem:[%s21 + $0x8] sm:$0xf]
    %v655 = vld [vmem:[%s21 + $0xc] sm:$0xf]
    %v656 = vld [vmem:[%s21 + $0x10] sm:$0xf]
    %v657 = vld [vmem:[%s21 + $0x14] sm:$0xf]
    %v658 = vld [vmem:[%s21 + $0x18] sm:$0xf]
    %v659 = vld [vmem:[%s21 + $0x1c] sm:$0xf]
    %v660 = vld [vmem:[%s22] sm:$0x3]
    %v661 = vld [vmem:[%s23] sm:$0x3]
    %v662 = vpack.c.bf16 %v110, %v110
    %v663 = vpack.c.bf16 %v111, %v111
    %v665 = vlaneseq
    %v666 = vshrl.u32 %v665, 7
    %v667 = vsub.s32 0, %v666
    %v668 = vrot.slane %v618, %v667
    %v672 = vunpack.c.l.b16 %v662
    %v673 = vunpack.c.l.b16 %v663
    %v674 = vrot.slane %v673, 7
    %vm675 = vcmask 1041409
    %v676 = vsel %vm675, %v674, %v672
    %v677 = vpack.c.b16 %v676, %v676
    %v682 = vunpack.c.l.b16 %v614
    %v683 = vunpack.c.l.b16 %v615
    %v684 = vunpack.c.l.b16 %v616
    %v685 = vunpack.c.l.b16 %v617
    %v686 = vpack.c.b16 %v683, %v682
    %v687 = vpack.c.b16 %v685, %v684
    %v691 = vsel %vm142, %v677, 0
    %693 = vmatprep.subr.bf16.mxu0 0
    %694 = vmatpush1.bf16.msra.mxu0 %v686
    %695 = vmatprep.subr.bf16.mxu0 0
    %696 = vmatpush1.bf16.msra.mxu0 %v687
    %697 = vmatprep.subr.bf16.mxu0 0
    %698 = vmatpush1.bf16.msra.mxu0 0
    %699 = vmatprep.subr.bf16.mxu0 0
    %700 = vmatpush1.bf16.msra.mxu0 0
    %701 = vmatprep.subr.bf16.mxu0 0
    %702 = vmatpush1.bf16.msra.mxu0 0
    %703 = vmatprep.subr.bf16.mxu0 0
    %704 = vmatpush1.bf16.msra.mxu0 0
    %705 = vmatprep.subr.bf16.mxu0 0
    %706 = vmatpush1.bf16.msra.mxu0 0
    %707 = vmatprep.subr.bf16.mxu0 0
    %708 = vmatpush1.bf16.msra.mxu0 0
    %709 = vmatprep.subr.bf16.mxu0 0
    %710 = vmatpush1.bf16.msra.mxu0 0
    %711 = vmatprep.subr.bf16.mxu0 0
    %712 = vmatpush1.bf16.msra.mxu0 0
    %713 = vmatprep.subr.bf16.mxu0 0
    %714 = vmatpush1.bf16.msra.mxu0 0
    %715 = vmatprep.subr.bf16.mxu0 0
    %716 = vmatpush1.bf16.msra.mxu0 0
    %717 = vmatprep.subr.bf16.mxu0 0
    %718 = vmatpush1.bf16.msra.mxu0 0
    %719 = vmatprep.subr.bf16.mxu0 0
    %720 = vmatpush1.bf16.msra.mxu0 0
    %721 = vmatprep.subr.bf16.mxu0 0
    %722 = vmatpush1.bf16.msra.mxu0 0
    %723 = vmatprep.subr.bf16.mxu0 0
    %724 = vmatpush1.bf16.msra.mxu0 0
    %725 = vmatprep.mubr.bf16.mxu0 0
    %726 = vmatmul.mubr.bf16.gmra.mrb[0].mxu0 %v691
    %v727 = vpop.f32.mrb[0].mxu0
    %v728 = vadd.f32 %v668, %v727
    %v729 = vpop.f32.mrb[0].mxu0
    %v730 = vpop.f32.mrb[0].mxu0
    %v731 = vpop.f32.mrb[0].mxu0
    %732 = vdwg.mxu0
    %v734 = vlaneseq
    %v735 = vshrl.u32 %v734, 7
    %v736 = vsub.s32 0, %v735
    %v737 = vrot.slane %v624, %v736
    %v743 = vunpack.c.l.b16 %v620
    %v744 = vunpack.c.l.b16 %v621
    %v745 = vunpack.c.l.b16 %v622
    %v746 = vunpack.c.l.b16 %v623
    %v747 = vpack.c.b16 %v744, %v743
    %v748 = vpack.c.b16 %v746, %v745
    %751 = vmatprep.subr.bf16.mxu0 0
    %752 = vmatpush1.bf16.msra.mxu0 %v747
    %753 = vmatprep.subr.bf16.mxu0 0
    %754 = vmatpush1.bf16.msra.mxu0 %v748
    %755 = vmatprep.subr.bf16.mxu0 0
    %756 = vmatpush1.bf16.msra.mxu0 0
    %757 = vmatprep.subr.bf16.mxu0 0
    %758 = vmatpush1.bf16.msra.mxu0 0
    %759 = vmatprep.subr.bf16.mxu0 0
    %760 = vmatpush1.bf16.msra.mxu0 0
    %761 = vmatprep.subr.bf16.mxu0 0
    %762 = vmatpush1.bf16.msra.mxu0 0
    %763 = vmatprep.subr.bf16.mxu0 0
    %764 = vmatpush1.bf16.msra.mxu0 0
    %765 = vmatprep.subr.bf16.mxu0 0
    %766 = vmatpush1.bf16.msra.mxu0 0
    %767 = vmatprep.subr.bf16.mxu0 0
    %768 = vmatpush1.bf16.msra.mxu0 0
    %769 = vmatprep.subr.bf16.mxu0 0
    %770 = vmatpush1.bf16.msra.mxu0 0
    %771 = vmatprep.subr.bf16.mxu0 0
    %772 = vmatpush1.bf16.msra.mxu0 0
    %773 = vmatprep.subr.bf16.mxu0 0
    %774 = vmatpush1.bf16.msra.mxu0 0
    %775 = vmatprep.subr.bf16.mxu0 0
    %776 = vmatpush1.bf16.msra.mxu0 0
    %777 = vmatprep.subr.bf16.mxu0 0
    %778 = vmatpush1.bf16.msra.mxu0 0
    %779 = vmatprep.subr.bf16.mxu0 0
    %780 = vmatpush1.bf16.msra.mxu0 0
    %781 = vmatprep.subr.bf16.mxu0 0
    %782 = vmatpush1.bf16.msra.mxu0 0
    %783 = vmatprep.mubr.bf16.mxu0 0
    %784 = vmatmul.mubr.bf16.gmra.mrb[0].mxu0 %v691
    %v785 = vpop.f32.mrb[0].mxu0
    %v786 = vadd.f32 %v737, %v785
    %v787 = vpop.f32.mrb[0].mxu0
    %v788 = vpop.f32.mrb[0].mxu0
    %v789 = vpop.f32.mrb[0].mxu0
    %790 = vdwg.mxu0
    %v792 = vlaneseq
    %v793 = vshrl.u32 %v792, 7
    %v794 = vsub.s32 0, %v793
    %v795 = vrot.slane %v619, %v794
    %v797 = vmul.f32 %v728, %v795
    %v799 = vlaneseq
    %v800 = vshrl.u32 %v799, 7
    %v801 = vsub.s32 0, %v800
    %v802 = vrot.slane %v625, %v801
    %v804 = vmul.f32 %v786, %v802
    %vm805 = vcmask 254976
    %v806 = vsel %vm805, %v797, 0.0
    %807 = vadd.xlane.f32.xlu0 %v806
    %v808 = vpop.xlane.xlu0 %807
    %810 = vrot.lane.b32.xlu0 %v797, 96
    %v811 = vpop.permute.xlu0 %810
    %v813 = vsel %vm805, %v811, 0.0
    %814 = vadd.xlane.f32.xlu0 %v813
    %v815 = vpop.xlane.xlu0 %814
    %v816 = vsel %vm805, %v804, 0.0
    %817 = vadd.xlane.f32.xlu0 %v816
    %v818 = vpop.xlane.xlu0 %817
    %820 = vrot.lane.b32.xlu0 %v804, 96
    %v821 = vpop.permute.xlu0 %820
    %v823 = vsel %vm805, %v821, 0.0
    %824 = vadd.xlane.f32.xlu0 %v823
    %v825 = vpop.xlane.xlu0 %824
    %v827 = vlaneseq
    %v828 = vshrl.u32 %v827, 7
    %v829 = vsub.s32 0, %v828
    %v830 = vrot.slane %v808, %v829
    %v831 = vlaneseq
    %v832 = vshrl.u32 %v831, 7
    %v833 = vsub.s32 1, %v832
    %v834 = vrot.slane %v808, %v833
    %v837 = vadd.f32 %v198, %v830
    %v838 = vadd.f32 %v201, %v834
    %v839 = vtanh.pop %v837
    %v840 = vtanh.pop %v838
    %843 = vset.pattern.permute.xlu0 0
    %844 = vperm.xlu0 %843, %v839
    %v845 = vpop.permute.xlu0 %844
    %846 = vset.pattern.permute.xlu0 0
    %847 = vperm.xlu0 %846, %v840
    %v848 = vpop.permute.xlu0 %847
    %v849 = vlaneseq
    %v850 = vand.u32 %v849, 127
    %v851 = vlaneseq
    %v852 = vshrl.u32 %v851, 7
    %v853 = vsub.s32 %v850, %v852
    %v854 = vrot.slane %v845, %v853
    %v855 = vlaneseq
    %v856 = vshrl.u32 %v855, 7
    %v857 = vsub.s32 %v850, %v856
    %v858 = vrot.slane %v848, %v857
    %v859 = vsel %vm675, %v858, %v854
    %vm861 = vcmask 58368
    %v862 = vsel %vm861, %v859, -inf
    %863 = vmax.xlane.f32.xlu0 %v862
    %v864 = vpop.xlane.xlu0 %863
    %v866 = vlaneseq
    %v867 = vshrl.u32 %v866, 7
    %v868 = vsub.s32 0, %v867
    %v869 = vrot.slane %v864, %v868
    %v870 = vlaneseq
    %v871 = vshrl.u32 %v870, 7
    %v872 = vsub.s32 1, %v871
    %v873 = vrot.slane %v864, %v872
    %v876 = vsub.f32 %v839, %v869
    %v877 = vsub.f32 %v840, %v873
    %v878 = vmul.f32 %v876, 1.442695
    %v879 = vpow.pop %v878
    %v880 = vmul.f32 %v877, 1.442695
    %v881 = vpow.pop %v880
    %884 = vset.pattern.permute.xlu0 0
    %885 = vperm.xlu0 %884, %v879
    %v886 = vpop.permute.xlu0 %885
    %887 = vset.pattern.permute.xlu0 0
    %888 = vperm.xlu0 %887, %v881
    %v889 = vpop.permute.xlu0 %888
    %v890 = vlaneseq
    %v891 = vshrl.u32 %v890, 7
    %v892 = vsub.s32 %v850, %v891
    %v893 = vrot.slane %v886, %v892
    %v894 = vlaneseq
    %v895 = vshrl.u32 %v894, 7
    %v896 = vsub.s32 %v850, %v895
    %v897 = vrot.slane %v889, %v896
    %v898 = vsel %vm675, %v897, %v893
    %v900 = vsel %vm861, %v898, 0.0
    %901 = vadd.xlane.f32.xlu0 %v900
    %v902 = vpop.xlane.xlu0 %901
    %v904 = vlaneseq
    %v905 = vshrl.u32 %v904, 7
    %v906 = vsub.s32 0, %v905
    %v907 = vrot.slane %v902, %v906
    %v908 = vlaneseq
    %v909 = vshrl.u32 %v908, 7
    %v910 = vsub.s32 1, %v909
    %v911 = vrot.slane %v902, %v910
    %v914 = vrcp.pop %v907
    %v915 = vmul.f32 %v879, %v914
    %v916 = vrcp.pop %v911
    %v917 = vmul.f32 %v881, %v916
    %v918 = vunpack.c.l.bf16 %v216
    %v919 = vunpack.c.l.bf16 %v217
    %921 = vset.pattern.permute.xlu0 0
    %922 = vperm.xlu0 %921, %v915
    %v923 = vpop.permute.xlu0 %922
    %926 = vset.pattern.permute.xlu0 0
    %927 = vperm.xlu0 %926, %v917
    %v928 = vpop.permute.xlu0 %927
    %v930 = vmul.f32 %v923, %v918
    %v931 = vmul.f32 %v928, %v919
    %v932 = vsel %vm142, %v930, 0.0
    %v933 = vrot.slane %v932, 4
    %v934 = vadd.f32 %v932, %v933
    %v935 = vrot.slane %v934, 2
    %v936 = vadd.f32 %v934, %v935
    %v937 = vrot.slane %v936, 1
    %v938 = vadd.f32 %v936, %v937
    %v939 = vsel %vm142, %v931, 0.0
    %v940 = vrot.slane %v939, 4
    %v941 = vadd.f32 %v939, %v940
    %v942 = vrot.slane %v941, 2
    %v943 = vadd.f32 %v941, %v942
    %v944 = vrot.slane %v943, 1
    %v945 = vadd.f32 %v943, %v944
    %v947 = vlaneseq
    %v948 = vshrl.u32 %v947, 7
    %v949 = vsub.s32 0, %v948
    %v950 = vrot.slane %v818, %v949
    %v951 = vlaneseq
    %v952 = vshrl.u32 %v951, 7
    %v953 = vsub.s32 1, %v952
    %v954 = vrot.slane %v818, %v953
    %v957 = vadd.f32 %v212, %v950
    %v958 = vadd.f32 %v215, %v954
    %v959 = vtanh.pop %v957
    %v960 = vtanh.pop %v958
    %963 = vset.pattern.permute.xlu0 0
    %964 = vperm.xlu0 %963, %v959
    %v965 = vpop.permute.xlu0 %964
    %966 = vset.pattern.permute.xlu0 0
    %967 = vperm.xlu0 %966, %v960
    %v968 = vpop.permute.xlu0 %967
    %v969 = vlaneseq
    %v970 = vshrl.u32 %v969, 7
    %v971 = vsub.s32 %v850, %v970
    %v972 = vrot.slane %v965, %v971
    %v973 = vlaneseq
    %v974 = vshrl.u32 %v973, 7
    %v975 = vsub.s32 %v850, %v974
    %v976 = vrot.slane %v968, %v975
    %v977 = vsel %vm675, %v976, %v972
    %v979 = vsel %vm861, %v977, -inf
    %980 = vmax.xlane.f32.xlu0 %v979
    %v981 = vpop.xlane.xlu0 %980
    %v983 = vlaneseq
    %v984 = vshrl.u32 %v983, 7
    %v985 = vsub.s32 0, %v984
    %v986 = vrot.slane %v981, %v985
    %v987 = vlaneseq
    %v988 = vshrl.u32 %v987, 7
    %v989 = vsub.s32 1, %v988
    %v990 = vrot.slane %v981, %v989
    %v993 = vsub.f32 %v959, %v986
    %v994 = vsub.f32 %v960, %v990
    %v995 = vmul.f32 %v993, 1.442695
    %v996 = vpow.pop %v995
    %v997 = vmul.f32 %v994, 1.442695
    %v998 = vpow.pop %v997
    %1001 = vset.pattern.permute.xlu0 0
    %1002 = vperm.xlu0 %1001, %v996
    %v1003 = vpop.permute.xlu0 %1002
    %1004 = vset.pattern.permute.xlu0 0
    %1005 = vperm.xlu0 %1004, %v998
    %v1006 = vpop.permute.xlu0 %1005
    %v1007 = vlaneseq
    %v1008 = vshrl.u32 %v1007, 7
    %v1009 = vsub.s32 %v850, %v1008
    %v1010 = vrot.slane %v1003, %v1009
    %v1011 = vlaneseq
    %v1012 = vshrl.u32 %v1011, 7
    %v1013 = vsub.s32 %v850, %v1012
    %v1014 = vrot.slane %v1006, %v1013
    %v1015 = vsel %vm675, %v1014, %v1010
    %v1017 = vsel %vm861, %v1015, 0.0
    %1018 = vadd.xlane.f32.xlu0 %v1017
    %v1019 = vpop.xlane.xlu0 %1018
    %v1021 = vlaneseq
    %v1022 = vshrl.u32 %v1021, 7
    %v1023 = vsub.s32 0, %v1022
    %v1024 = vrot.slane %v1019, %v1023
    %v1025 = vlaneseq
    %v1026 = vshrl.u32 %v1025, 7
    %v1027 = vsub.s32 1, %v1026
    %v1028 = vrot.slane %v1019, %v1027
    %v1031 = vrcp.pop %v1024
    %v1032 = vmul.f32 %v996, %v1031
    %v1033 = vrcp.pop %v1028
    %v1034 = vmul.f32 %v998, %v1033
    %1036 = vset.pattern.permute.xlu0 0
    %1037 = vperm.xlu0 %1036, %v1032
    %v1038 = vpop.permute.xlu0 %1037
    %1041 = vset.pattern.permute.xlu0 0
    %1042 = vperm.xlu0 %1041, %v1034
    %v1043 = vpop.permute.xlu0 %1042
    %v1045 = vmul.f32 %v1038, %v918
    %v1046 = vmul.f32 %v1043, %v919
    %vm1047 = vcmask 523520
    %v1048 = vsel %vm1047, %v1045, 0.0
    %v1049 = vrot.slane %v1048, 4
    %v1050 = vadd.f32 %v1048, %v1049
    %v1051 = vrot.slane %v1050, 2
    %v1052 = vadd.f32 %v1050, %v1051
    %v1053 = vrot.slane %v1052, 1
    %v1054 = vadd.f32 %v1052, %v1053
    %v1055 = vsel %vm1047, %v1046, 0.0
    %v1056 = vrot.slane %v1055, 4
    %v1057 = vadd.f32 %v1055, %v1056
    %v1058 = vrot.slane %v1057, 2
    %v1059 = vadd.f32 %v1057, %v1058
    %v1060 = vrot.slane %v1059, 1
    %v1061 = vadd.f32 %v1059, %v1060
    %v1063 = vlaneseq
    %v1064 = vshrl.u32 %v1063, 7
    %v1065 = vsub.s32 0, %v1064
    %v1066 = vrot.slane %v825, %v1065
    %v1067 = vlaneseq
    %v1068 = vshrl.u32 %v1067, 7
    %v1069 = vsub.s32 1, %v1068
    %v1070 = vrot.slane %v825, %v1069
    %v1073 = vadd.f32 %v548, %v1066
    %v1074 = vadd.f32 %v551, %v1070
    %v1075 = vtanh.pop %v1073
    %v1076 = vtanh.pop %v1074
    %1079 = vset.pattern.permute.xlu0 0
    %1080 = vperm.xlu0 %1079, %v1075
    %v1081 = vpop.permute.xlu0 %1080
    %1082 = vset.pattern.permute.xlu0 0
    %1083 = vperm.xlu0 %1082, %v1076
    %v1084 = vpop.permute.xlu0 %1083
    %v1085 = vlaneseq
    %v1086 = vshrl.u32 %v1085, 7
    %v1087 = vsub.s32 %v850, %v1086
    %v1088 = vrot.slane %v1081, %v1087
    %v1089 = vlaneseq
    %v1090 = vshrl.u32 %v1089, 7
    %v1091 = vsub.s32 %v850, %v1090
    %v1092 = vrot.slane %v1084, %v1091
    %v1093 = vsel %vm675, %v1092, %v1088
    %vm1095 = vcmask 17408
    %v1096 = vsel %vm1095, %v1093, -inf
    %1097 = vmax.xlane.f32.xlu0 %v1096
    %v1098 = vpop.xlane.xlu0 %1097
    %v1100 = vlaneseq
    %v1101 = vshrl.u32 %v1100, 7
    %v1102 = vsub.s32 0, %v1101
    %v1103 = vrot.slane %v1098, %v1102
    %v1104 = vlaneseq
    %v1105 = vshrl.u32 %v1104, 7
    %v1106 = vsub.s32 1, %v1105
    %v1107 = vrot.slane %v1098, %v1106
    %v1110 = vsub.f32 %v1075, %v1103
    %v1111 = vsub.f32 %v1076, %v1107
    %v1112 = vmul.f32 %v1110, 1.442695
    %v1113 = vpow.pop %v1112
    %v1114 = vmul.f32 %v1111, 1.442695
    %v1115 = vpow.pop %v1114
    %1118 = vset.pattern.permute.xlu0 0
    %1119 = vperm.xlu0 %1118, %v1113
    %v1120 = vpop.permute.xlu0 %1119
    %1121 = vset.pattern.permute.xlu0 0
    %1122 = vperm.xlu0 %1121, %v1115
    %v1123 = vpop.permute.xlu0 %1122
    %v1124 = vlaneseq
    %v1125 = vshrl.u32 %v1124, 7
    %v1126 = vsub.s32 %v850, %v1125
    %v1127 = vrot.slane %v1120, %v1126
    %v1128 = vlaneseq
    %v1129 = vshrl.u32 %v1128, 7
    %v1130 = vsub.s32 %v850, %v1129
    %v1131 = vrot.slane %v1123, %v1130
    %v1132 = vsel %vm675, %v1131, %v1127
    %v1134 = vsel %vm1095, %v1132, 0.0
    %1135 = vadd.xlane.f32.xlu0 %v1134
    %v1136 = vpop.xlane.xlu0 %1135
    %v1138 = vlaneseq
    %v1139 = vshrl.u32 %v1138, 7
    %v1140 = vsub.s32 0, %v1139
    %v1141 = vrot.slane %v1136, %v1140
    %v1142 = vlaneseq
    %v1143 = vshrl.u32 %v1142, 7
    %v1144 = vsub.s32 1, %v1143
    %v1145 = vrot.slane %v1136, %v1144
    %v1148 = vrcp.pop %v1141
    %v1149 = vmul.f32 %v1113, %v1148
    %v1150 = vrcp.pop %v1145
    %v1151 = vmul.f32 %v1115, %v1150
    %v1152 = vunpack.c.l.bf16 %v612
    %v1153 = vunpack.c.l.bf16 %v613
    %1155 = vset.pattern.permute.xlu0 0
    %1156 = vperm.xlu0 %1155, %v1149
    %v1157 = vpop.permute.xlu0 %1156
    %1160 = vset.pattern.permute.xlu0 0
    %1161 = vperm.xlu0 %1160, %v1151
    %v1162 = vpop.permute.xlu0 %1161
    %v1164 = vmul.f32 %v1157, %v1152
    %v1165 = vmul.f32 %v1162, %v1153
    %v1166 = vsel %vm545, %v1164, 0.0
    %v1167 = vrot.slane %v1166, 4
    %v1168 = vadd.f32 %v1166, %v1167
    %v1169 = vrot.slane %v1168, 2
    %v1170 = vadd.f32 %v1168, %v1169
    %v1171 = vrot.slane %v1170, 1
    %v1172 = vadd.f32 %v1170, %v1171
    %v1173 = vsel %vm545, %v1165, 0.0
    %v1174 = vrot.slane %v1173, 4
    %v1175 = vadd.f32 %v1173, %v1174
    %v1176 = vrot.slane %v1175, 2
    %v1177 = vadd.f32 %v1175, %v1176
    %v1178 = vrot.slane %v1177, 1
    %v1179 = vadd.f32 %v1177, %v1178
    %v1181 = vlaneseq
    %v1182 = vshrl.u32 %v1181, 7
    %v1183 = vsub.s32 0, %v1182
    %v1184 = vrot.slane %v815, %v1183
    %v1185 = vlaneseq
    %v1186 = vshrl.u32 %v1185, 7
    %v1187 = vsub.s32 1, %v1186
    %v1188 = vrot.slane %v815, %v1187
    %v1191 = vadd.f32 %v560, %v1184
    %v1192 = vadd.f32 %v563, %v1188
    %v1193 = vtanh.pop %v1191
    %v1194 = vtanh.pop %v1192
    %1197 = vset.pattern.permute.xlu0 0
    %1198 = vperm.xlu0 %1197, %v1193
    %v1199 = vpop.permute.xlu0 %1198
    %1200 = vset.pattern.permute.xlu0 0
    %1201 = vperm.xlu0 %1200, %v1194
    %v1202 = vpop.permute.xlu0 %1201
    %v1203 = vlaneseq
    %v1204 = vshrl.u32 %v1203, 7
    %v1205 = vsub.s32 %v850, %v1204
    %v1206 = vrot.slane %v1199, %v1205
    %v1207 = vlaneseq
    %v1208 = vshrl.u32 %v1207, 7
    %v1209 = vsub.s32 %v850, %v1208
    %v1210 = vrot.slane %v1202, %v1209
    %v1211 = vsel %vm675, %v1210, %v1206
    %v1213 = vsel %vm1095, %v1211, -inf
    %1214 = vmax.xlane.f32.xlu0 %v1213
    %v1215 = vpop.xlane.xlu0 %1214
    %v1217 = vlaneseq
    %v1218 = vshrl.u32 %v1217, 7
    %v1219 = vsub.s32 0, %v1218
    %v1220 = vrot.slane %v1215, %v1219
    %v1221 = vlaneseq
    %v1222 = vshrl.u32 %v1221, 7
    %v1223 = vsub.s32 1, %v1222
    %v1224 = vrot.slane %v1215, %v1223
    %v1227 = vsub.f32 %v1193, %v1220
    %v1228 = vsub.f32 %v1194, %v1224
    %v1229 = vmul.f32 %v1227, 1.442695
    %v1230 = vpow.pop %v1229
    %v1231 = vmul.f32 %v1228, 1.442695
    %v1232 = vpow.pop %v1231
    %1235 = vset.pattern.permute.xlu0 0
    %1236 = vperm.xlu0 %1235, %v1230
    %v1237 = vpop.permute.xlu0 %1236
    %1238 = vset.pattern.permute.xlu0 0
    %1239 = vperm.xlu0 %1238, %v1232
    %v1240 = vpop.permute.xlu0 %1239
    %v1241 = vlaneseq
    %v1242 = vshrl.u32 %v1241, 7
    %v1243 = vsub.s32 %v850, %v1242
    %v1244 = vrot.slane %v1237, %v1243
    %v1245 = vlaneseq
    %v1246 = vshrl.u32 %v1245, 7
    %v1247 = vsub.s32 %v850, %v1246
    %v1248 = vrot.slane %v1240, %v1247
    %v1249 = vsel %vm675, %v1248, %v1244
    %v1251 = vsel %vm1095, %v1249, 0.0
    %1252 = vadd.xlane.f32.xlu0 %v1251
    %v1253 = vpop.xlane.xlu0 %1252
    %v1255 = vlaneseq
    %v1256 = vshrl.u32 %v1255, 7
    %v1257 = vsub.s32 0, %v1256
    %v1258 = vrot.slane %v1253, %v1257
    %v1259 = vlaneseq
    %v1260 = vshrl.u32 %v1259, 7
    %v1261 = vsub.s32 1, %v1260
    %v1262 = vrot.slane %v1253, %v1261
    %v1265 = vrcp.pop %v1258
    %v1266 = vmul.f32 %v1230, %v1265
    %v1267 = vrcp.pop %v1262
    %v1268 = vmul.f32 %v1232, %v1267
    %1270 = vset.pattern.permute.xlu0 0
    %1271 = vperm.xlu0 %1270, %v1266
    %v1272 = vpop.permute.xlu0 %1271
    %1275 = vset.pattern.permute.xlu0 0
    %1276 = vperm.xlu0 %1275, %v1268
    %v1277 = vpop.permute.xlu0 %1276
    %v1279 = vmul.f32 %v1272, %v1152
    %v1280 = vmul.f32 %v1277, %v1153
    %vm1281 = vcmask 518400
    %v1282 = vsel %vm1281, %v1279, 0.0
    %v1283 = vrot.slane %v1282, 4
    %v1284 = vadd.f32 %v1282, %v1283
    %v1285 = vrot.slane %v1284, 2
    %v1286 = vadd.f32 %v1284, %v1285
    %v1287 = vrot.slane %v1286, 1
    %v1288 = vadd.f32 %v1286, %v1287
    %v1289 = vsel %vm1281, %v1280, 0.0
    %v1290 = vrot.slane %v1289, 4
    %v1291 = vadd.f32 %v1289, %v1290
    %v1292 = vrot.slane %v1291, 2
    %v1293 = vadd.f32 %v1291, %v1292
    %v1294 = vrot.slane %v1293, 1
    %v1295 = vadd.f32 %v1293, %v1294
    %v1298 = vsel %vm675, %v945, %v938
    %v1302 = vsel %vm675, %v1061, %v1054
    %v1304 = vsel %vm142, %v1298, %v1302
    %v1305 = vpack.c.bf16 %v1304, %v1304
    %v1308 = vsel %vm675, %v1179, %v1172
    %v1312 = vsel %vm675, %v1295, %v1288
    %v1314 = vsel %vm142, %v1308, %v1312
    %v1315 = vpack.c.bf16 %v1314, %v1314
    %v1317 = vlaneseq
    %v1318 = vshrl.u32 %v1317, 7
    %v1319 = vsub.s32 0, %v1318
    %v1320 = vrot.slane %v634, %v1319
    %v1330 = vunpack.c.l.b16 %v626
    %v1331 = vunpack.c.l.b16 %v627
    %v1332 = vunpack.c.l.b16 %v628
    %v1333 = vunpack.c.l.b16 %v629
    %v1334 = vunpack.c.l.b16 %v630
    %v1335 = vunpack.c.l.b16 %v631
    %v1336 = vunpack.c.l.b16 %v632
    %v1337 = vunpack.c.l.b16 %v633
    %v1338 = vpack.c.b16 %v1331, %v1330
    %v1339 = vpack.c.b16 %v1333, %v1332
    %v1340 = vpack.c.b16 %v1335, %v1334
    %v1341 = vpack.c.b16 %v1337, %v1336
    %vm1346 = vcmask 523264
    %v1348 = vsel %vm1346, %v1305, 0
    %1350 = vmatprep.subr.bf16.mxu0 0
    %1351 = vmatpush1.bf16.msra.mxu0 %v1338
    %1352 = vmatprep.subr.bf16.mxu0 0
    %1353 = vmatpush1.bf16.msra.mxu0 %v1339
    %1354 = vmatprep.subr.bf16.mxu0 0
    %1355 = vmatpush1.bf16.msra.mxu0 %v1340
    %1356 = vmatprep.subr.bf16.mxu0 0
    %1357 = vmatpush1.bf16.msra.mxu0 %v1341
    %1358 = vmatprep.subr.bf16.mxu0 0
    %1359 = vmatpush1.bf16.msra.mxu0 0
    %1360 = vmatprep.subr.bf16.mxu0 0
    %1361 = vmatpush1.bf16.msra.mxu0 0
    %1362 = vmatprep.subr.bf16.mxu0 0
    %1363 = vmatpush1.bf16.msra.mxu0 0
    %1364 = vmatprep.subr.bf16.mxu0 0
    %1365 = vmatpush1.bf16.msra.mxu0 0
    %1366 = vmatprep.subr.bf16.mxu0 0
    %1367 = vmatpush1.bf16.msra.mxu0 0
    %1368 = vmatprep.subr.bf16.mxu0 0
    %1369 = vmatpush1.bf16.msra.mxu0 0
    %1370 = vmatprep.subr.bf16.mxu0 0
    %1371 = vmatpush1.bf16.msra.mxu0 0
    %1372 = vmatprep.subr.bf16.mxu0 0
    %1373 = vmatpush1.bf16.msra.mxu0 0
    %1374 = vmatprep.subr.bf16.mxu0 0
    %1375 = vmatpush1.bf16.msra.mxu0 0
    %1376 = vmatprep.subr.bf16.mxu0 0
    %1377 = vmatpush1.bf16.msra.mxu0 0
    %1378 = vmatprep.subr.bf16.mxu0 0
    %1379 = vmatpush1.bf16.msra.mxu0 0
    %1380 = vmatprep.subr.bf16.mxu0 0
    %1381 = vmatpush1.bf16.msra.mxu0 0
    %1382 = vmatprep.mubr.bf16.mxu0 0
    %1383 = vmatmul.mubr.bf16.gmra.mrb[0].mxu0 %v1348
    %v1384 = vpop.f32.mrb[0].mxu0
    %v1385 = vadd.f32 %v1320, %v1384
    %v1386 = vpop.f32.mrb[0].mxu0
    %v1387 = vpop.f32.mrb[0].mxu0
    %v1388 = vpop.f32.mrb[0].mxu0
    %1389 = vdwg.mxu0
    %v1390 = vmul.f32 %v1385, 0.5
    %v1392 = vlaneseq
    %v1393 = vshrl.u32 %v1392, 7
    %v1394 = vsub.s32 0, %v1393
    %v1395 = vrot.slane %v643, %v1394
    %v1405 = vunpack.c.l.b16 %v635
    %v1406 = vunpack.c.l.b16 %v636
    %v1407 = vunpack.c.l.b16 %v637
    %v1408 = vunpack.c.l.b16 %v638
    %v1409 = vunpack.c.l.b16 %v639
    %v1410 = vunpack.c.l.b16 %v640
    %v1411 = vunpack.c.l.b16 %v641
    %v1412 = vunpack.c.l.b16 %v642
    %v1413 = vpack.c.b16 %v1406, %v1405
    %v1414 = vpack.c.b16 %v1408, %v1407
    %v1415 = vpack.c.b16 %v1410, %v1409
    %v1416 = vpack.c.b16 %v1412, %v1411
    %v1422 = vsel %vm1346, %v1315, 0
    %1424 = vmatprep.subr.bf16.mxu0 0
    %1425 = vmatpush1.bf16.msra.mxu0 %v1413
    %1426 = vmatprep.subr.bf16.mxu0 0
    %1427 = vmatpush1.bf16.msra.mxu0 %v1414
    %1428 = vmatprep.subr.bf16.mxu0 0
    %1429 = vmatpush1.bf16.msra.mxu0 %v1415
    %1430 = vmatprep.subr.bf16.mxu0 0
    %1431 = vmatpush1.bf16.msra.mxu0 %v1416
    %1432 = vmatprep.subr.bf16.mxu0 0
    %1433 = vmatpush1.bf16.msra.mxu0 0
    %1434 = vmatprep.subr.bf16.mxu0 0
    %1435 = vmatpush1.bf16.msra.mxu0 0
    %1436 = vmatprep.subr.bf16.mxu0 0
    %1437 = vmatpush1.bf16.msra.mxu0 0
    %1438 = vmatprep.subr.bf16.mxu0 0
    %1439 = vmatpush1.bf16.msra.mxu0 0
    %1440 = vmatprep.subr.bf16.mxu0 0
    %1441 = vmatpush1.bf16.msra.mxu0 0
    %1442 = vmatprep.subr.bf16.mxu0 0
    %1443 = vmatpush1.bf16.msra.mxu0 0
    %1444 = vmatprep.subr.bf16.mxu0 0
    %1445 = vmatpush1.bf16.msra.mxu0 0
    %1446 = vmatprep.subr.bf16.mxu0 0
    %1447 = vmatpush1.bf16.msra.mxu0 0
    %1448 = vmatprep.subr.bf16.mxu0 0
    %1449 = vmatpush1.bf16.msra.mxu0 0
    %1450 = vmatprep.subr.bf16.mxu0 0
    %1451 = vmatpush1.bf16.msra.mxu0 0
    %1452 = vmatprep.subr.bf16.mxu0 0
    %1453 = vmatpush1.bf16.msra.mxu0 0
    %1454 = vmatprep.subr.bf16.mxu0 0
    %1455 = vmatpush1.bf16.msra.mxu0 0
    %1456 = vmatprep.mubr.bf16.mxu0 0
    %1457 = vmatmul.mubr.bf16.gmra.mrb[0].mxu0 %v1422
    %v1458 = vpop.f32.mrb[0].mxu0
    %v1459 = vadd.f32 %v1395, %v1458
    %v1460 = vpop.f32.mrb[0].mxu0
    %v1461 = vpop.f32.mrb[0].mxu0
    %v1462 = vpop.f32.mrb[0].mxu0
    %1463 = vdwg.mxu0
    %v1464 = vmul.f32 %v1459, 0.5
    %v1465 = vpack.c.bf16 %v1390, %v1390
    %v1466 = vlaneseq
    %v1467 = vshrl.u32 %v1466, 7
    %v1468 = vsub.s32 0, %v1467
    %v1469 = vrot.slane %v660, %v1468
    %v1474 = vunpack.c.l.b16 %v644
    %v1475 = vunpack.c.l.b16 %v645
    %v1476 = vunpack.c.l.b16 %v646
    %v1477 = vunpack.c.l.b16 %v647
    %v1478 = vpack.c.b16 %v1475, %v1474
    %v1479 = vpack.c.b16 %v1477, %v1476
    %v1483 = vsel %vm142, %v1465, 0
    %1485 = vmatprep.subr.bf16.mxu0 0
    %1486 = vmatpush1.bf16.msra.mxu0 %v1478
    %1487 = vmatprep.subr.bf16.mxu0 0
    %1488 = vmatpush1.bf16.msra.mxu0 %v1479
    %1489 = vmatprep.subr.bf16.mxu0 0
    %1490 = vmatpush1.bf16.msra.mxu0 0
    %1491 = vmatprep.subr.bf16.mxu0 0
    %1492 = vmatpush1.bf16.msra.mxu0 0
    %1493 = vmatprep.subr.bf16.mxu0 0
    %1494 = vmatpush1.bf16.msra.mxu0 0
    %1495 = vmatprep.subr.bf16.mxu0 0
    %1496 = vmatpush1.bf16.msra.mxu0 0
    %1497 = vmatprep.subr.bf16.mxu0 0
    %1498 = vmatpush1.bf16.msra.mxu0 0
    %1499 = vmatprep.subr.bf16.mxu0 0
    %1500 = vmatpush1.bf16.msra.mxu0 0
    %1501 = vmatprep.subr.bf16.mxu0 0
    %1502 = vmatpush1.bf16.msra.mxu0 0
    %1503 = vmatprep.subr.bf16.mxu0 0
    %1504 = vmatpush1.bf16.msra.mxu0 0
    %1505 = vmatprep.subr.bf16.mxu0 0
    %1506 = vmatpush1.bf16.msra.mxu0 0
    %1507 = vmatprep.subr.bf16.mxu0 0
    %1508 = vmatpush1.bf16.msra.mxu0 0
    %1509 = vmatprep.subr.bf16.mxu0 0
    %1510 = vmatpush1.bf16.msra.mxu0 0
    %1511 = vmatprep.subr.bf16.mxu0 0
    %1512 = vmatpush1.bf16.msra.mxu0 0
    %1513 = vmatprep.subr.bf16.mxu0 0
    %1514 = vmatpush1.bf16.msra.mxu0 0
    %1515 = vmatprep.subr.bf16.mxu0 0
    %1516 = vmatpush1.bf16.msra.mxu0 0
    %1517 = vmatprep.mubr.bf16.mxu0 0
    %1518 = vmatmul.mubr.bf16.gmra.mrb[0].mxu0 %v1483
    %v1519 = vpop.f32.mrb[0].mxu0
    %v1520 = vadd.f32 %v1469, %v1519
    %v1521 = vpop.f32.mrb[0].mxu0
    %v1522 = vpop.f32.mrb[0].mxu0
    %v1523 = vpop.f32.mrb[0].mxu0
    %1524 = vdwg.mxu0
    %v1525 = vlaneseq
    %v1526 = vshrl.u32 %v1525, 7
    %v1527 = vsub.s32 0, %v1526
    %v1528 = vrot.slane %v661, %v1527
    %v1533 = vunpack.c.l.b16 %v652
    %v1534 = vunpack.c.l.b16 %v653
    %v1535 = vunpack.c.l.b16 %v654
    %v1536 = vunpack.c.l.b16 %v655
    %v1537 = vpack.c.b16 %v1534, %v1533
    %v1538 = vpack.c.b16 %v1536, %v1535
    %1541 = vmatprep.subr.bf16.mxu0 0
    %1542 = vmatpush1.bf16.msra.mxu0 %v1537
    %1543 = vmatprep.subr.bf16.mxu0 0
    %1544 = vmatpush1.bf16.msra.mxu0 %v1538
    %1545 = vmatprep.subr.bf16.mxu0 0
    %1546 = vmatpush1.bf16.msra.mxu0 0
    %1547 = vmatprep.subr.bf16.mxu0 0
    %1548 = vmatpush1.bf16.msra.mxu0 0
    %1549 = vmatprep.subr.bf16.mxu0 0
    %1550 = vmatpush1.bf16.msra.mxu0 0
    %1551 = vmatprep.subr.bf16.mxu0 0
    %1552 = vmatpush1.bf16.msra.mxu0 0
    %1553 = vmatprep.subr.bf16.mxu0 0
    %1554 = vmatpush1.bf16.msra.mxu0 0
    %1555 = vmatprep.subr.bf16.mxu0 0
    %1556 = vmatpush1.bf16.msra.mxu0 0
    %1557 = vmatprep.subr.bf16.mxu0 0
    %1558 = vmatpush1.bf16.msra.mxu0 0
    %1559 = vmatprep.subr.bf16.mxu0 0
    %1560 = vmatpush1.bf16.msra.mxu0 0
    %1561 = vmatprep.subr.bf16.mxu0 0
    %1562 = vmatpush1.bf16.msra.mxu0 0
    %1563 = vmatprep.subr.bf16.mxu0 0
    %1564 = vmatpush1.bf16.msra.mxu0 0
    %1565 = vmatprep.subr.bf16.mxu0 0
    %1566 = vmatpush1.bf16.msra.mxu0 0
    %1567 = vmatprep.subr.bf16.mxu0 0
    %1568 = vmatpush1.bf16.msra.mxu0 0
    %1569 = vmatprep.subr.bf16.mxu0 0
    %1570 = vmatpush1.bf16.msra.mxu0 0
    %1571 = vmatprep.subr.bf16.mxu0 0
    %1572 = vmatpush1.bf16.msra.mxu0 0
    %1573 = vmatprep.mubr.bf16.mxu0 0
    %1574 = vmatmul.mubr.bf16.gmra.mrb[0].mxu0 %v691
    %v1575 = vpop.f32.mrb[0].mxu0
    %v1576 = vadd.f32 %v1528, %v1575
    %v1577 = vpop.f32.mrb[0].mxu0
    %v1578 = vpop.f32.mrb[0].mxu0
    %v1579 = vpop.f32.mrb[0].mxu0
    %1580 = vdwg.mxu0
    %v1581 = vadd.f32 %v1520, %v1576
    %v1582 = vxor.u32 %v1581, 2147483648
    %v1583 = vmul.f32 %v1582, 1.442695
    %v1584 = vpow.pop %v1583
    %v1585 = vadd.f32 %v1584, 1.0
    %v1586 = vrcp.pop %v1585
    %v1587 = vmul.f32 1.0, %v1586
    %1589 = vrot.lane.b32.xlu0 %v1576, 64
    %v1590 = vpop.permute.xlu0 %1589
    %v1592 = vmul.f32 %v1587, %v1590
    %1594 = vrot.lane.b32.xlu0 %v1592, 64
    %v1595 = vpop.permute.xlu0 %1594
    %v1597 = vadd.f32 %v1520, %v1595
    %v1598 = vtanh.pop %v1597
    %v1599 = vsub.f32 1.0, %v1587
    %1601 = vrot.lane.b32.xlu0 %v1598, 96
    %v1602 = vpop.permute.xlu0 %1601
    %v1604 = vmul.f32 %v1599, %v1602
    %v1607 = vrot.slane %v111, 7
    %v1608 = vsel %vm675, %v1607, %v110
    %1609 = vrot.lane.b32.xlu0 %v1608, 32
    %v1610 = vpop.permute.xlu0 %1609
    %v1612 = vmul.f32 %v1587, %v1610
    %v1613 = vadd.f32 %v1604, %v1612
    %v1614 = vpack.c.bf16 %v1464, %v1464
    %v1615 = vlaneseq
    %v1616 = vshrl.u32 %v1615, 7
    %v1617 = vsub.s32 1, %v1616
    %v1618 = vrot.slane %v660, %v1617
    %v1623 = vunpack.c.l.b16 %v648
    %v1624 = vunpack.c.l.b16 %v649
    %v1625 = vunpack.c.l.b16 %v650
    %v1626 = vunpack.c.l.b16 %v651
    %v1627 = vpack.c.b16 %v1624, %v1623
    %v1628 = vpack.c.b16 %v1626, %v1625
    %v1632 = vsel %vm142, %v1614, 0
    %1634 = vmatprep.subr.bf16.mxu0 0
    %1635 = vmatpush1.bf16.msra.mxu0 %v1627
    %1636 = vmatprep.subr.bf16.mxu0 0
    %1637 = vmatpush1.bf16.msra.mxu0 %v1628
    %1638 = vmatprep.subr.bf16.mxu0 0
    %1639 = vmatpush1.bf16.msra.mxu0 0
    %1640 = vmatprep.subr.bf16.mxu0 0
    %1641 = vmatpush1.bf16.msra.mxu0 0
    %1642 = vmatprep.subr.bf16.mxu0 0
    %1643 = vmatpush1.bf16.msra.mxu0 0
    %1644 = vmatprep.subr.bf16.mxu0 0
    %1645 = vmatpush1.bf16.msra.mxu0 0
    %1646 = vmatprep.subr.bf16.mxu0 0
    %1647 = vmatpush1.bf16.msra.mxu0 0
    %1648 = vmatprep.subr.bf16.mxu0 0
    %1649 = vmatpush1.bf16.msra.mxu0 0
    %1650 = vmatprep.subr.bf16.mxu0 0
    %1651 = vmatpush1.bf16.msra.mxu0 0
    %1652 = vmatprep.subr.bf16.mxu0 0
    %1653 = vmatpush1.bf16.msra.mxu0 0
    %1654 = vmatprep.subr.bf16.mxu0 0
    %1655 = vmatpush1.bf16.msra.mxu0 0
    %1656 = vmatprep.subr.bf16.mxu0 0
    %1657 = vmatpush1.bf16.msra.mxu0 0
    %1658 = vmatprep.subr.bf16.mxu0 0
    %1659 = vmatpush1.bf16.msra.mxu0 0
    %1660 = vmatprep.subr.bf16.mxu0 0
    %1661 = vmatpush1.bf16.msra.mxu0 0
    %1662 = vmatprep.subr.bf16.mxu0 0
    %1663 = vmatpush1.bf16.msra.mxu0 0
    %1664 = vmatprep.subr.bf16.mxu0 0
    %1665 = vmatpush1.bf16.msra.mxu0 0
    %1666 = vmatprep.mubr.bf16.mxu0 0
    %1667 = vmatmul.mubr.bf16.gmra.mrb[0].mxu0 %v1632
    %v1668 = vpop.f32.mrb[0].mxu0
    %v1669 = vadd.f32 %v1618, %v1668
    %v1670 = vpop.f32.mrb[0].mxu0
    %v1671 = vpop.f32.mrb[0].mxu0
    %v1672 = vpop.f32.mrb[0].mxu0
    %1673 = vdwg.mxu0
    %v1674 = vlaneseq
    %v1675 = vshrl.u32 %v1674, 7
    %v1676 = vsub.s32 1, %v1675
    %v1677 = vrot.slane %v661, %v1676
    %v1682 = vunpack.c.l.b16 %v656
    %v1683 = vunpack.c.l.b16 %v657
    %v1684 = vunpack.c.l.b16 %v658
    %v1685 = vunpack.c.l.b16 %v659
    %v1686 = vpack.c.b16 %v1683, %v1682
    %v1687 = vpack.c.b16 %v1685, %v1684
    %1690 = vmatprep.subr.bf16.mxu0 0
    %1691 = vmatpush1.bf16.msra.mxu0 %v1686
    %1692 = vmatprep.subr.bf16.mxu0 0
    %1693 = vmatpush1.bf16.msra.mxu0 %v1687
    %1694 = vmatprep.subr.bf16.mxu0 0
    %1695 = vmatpush1.bf16.msra.mxu0 0
    %1696 = vmatprep.subr.bf16.mxu0 0
    %1697 = vmatpush1.bf16.msra.mxu0 0
    %1698 = vmatprep.subr.bf16.mxu0 0
    %1699 = vmatpush1.bf16.msra.mxu0 0
    %1700 = vmatprep.subr.bf16.mxu0 0
    %1701 = vmatpush1.bf16.msra.mxu0 0
    %1702 = vmatprep.subr.bf16.mxu0 0
    %1703 = vmatpush1.bf16.msra.mxu0 0
    %1704 = vmatprep.subr.bf16.mxu0 0
    %1705 = vmatpush1.bf16.msra.mxu0 0
    %1706 = vmatprep.subr.bf16.mxu0 0
    %1707 = vmatpush1.bf16.msra.mxu0 0
    %1708 = vmatprep.subr.bf16.mxu0 0
    %1709 = vmatpush1.bf16.msra.mxu0 0
    %1710 = vmatprep.subr.bf16.mxu0 0
    %1711 = vmatpush1.bf16.msra.mxu0 0
    %1712 = vmatprep.subr.bf16.mxu0 0
    %1713 = vmatpush1.bf16.msra.mxu0 0
    %1714 = vmatprep.subr.bf16.mxu0 0
    %1715 = vmatpush1.bf16.msra.mxu0 0
    %1716 = vmatprep.subr.bf16.mxu0 0
    %1717 = vmatpush1.bf16.msra.mxu0 0
    %1718 = vmatprep.subr.bf16.mxu0 0
    %1719 = vmatpush1.bf16.msra.mxu0 0
    %1720 = vmatprep.subr.bf16.mxu0 0
    %1721 = vmatpush1.bf16.msra.mxu0 0
    %1722 = vmatprep.mubr.bf16.mxu0 0
    %1723 = vmatmul.mubr.bf16.gmra.mrb[0].mxu0 %v691
    %v1724 = vpop.f32.mrb[0].mxu0
    %v1725 = vadd.f32 %v1677, %v1724
    %v1726 = vpop.f32.mrb[0].mxu0
    %v1727 = vpop.f32.mrb[0].mxu0
    %v1728 = vpop.f32.mrb[0].mxu0
    %1729 = vdwg.mxu0
    %v1730 = vadd.f32 %v1669, %v1725
    %v1731 = vxor.u32 %v1730, 2147483648
    %v1732 = vmul.f32 %v1731, 1.442695
    %v1733 = vpow.pop %v1732
    %v1734 = vadd.f32 %v1733, 1.0
    %v1735 = vrcp.pop %v1734
    %v1736 = vmul.f32 1.0, %v1735
    %1738 = vrot.lane.b32.xlu0 %v1725, 64
    %v1739 = vpop.permute.xlu0 %1738
    %v1741 = vmul.f32 %v1736, %v1739
    %1743 = vrot.lane.b32.xlu0 %v1741, 64
    %v1744 = vpop.permute.xlu0 %1743
    %v1746 = vadd.f32 %v1669, %v1744
    %v1747 = vtanh.pop %v1746
    %v1748 = vsub.f32 1.0, %v1736
    %1750 = vrot.lane.b32.xlu0 %v1747, 96
    %v1751 = vpop.permute.xlu0 %1750
    %v1753 = vmul.f32 %v1748, %v1751
    %v1754 = vmul.f32 %v1736, %v1610
    %v1755 = vadd.f32 %v1753, %v1754
    %v1756 = vpack.c.bf16 %v1613, %v1613
    %1758 = vrot.lane.b32.xlu0 %v1756, 96
    %v1759 = vpop.permute.xlu0 %1758
    %v1761 = vsel %vm142, %v1759, 0
    %1763 = vmatprep.subr.bf16.mxu0 0
    %1764 = vmatpush1.bf16.msra.mxu0 %v686
    %1765 = vmatprep.subr.bf16.mxu0 0
    %1766 = vmatpush1.bf16.msra.mxu0 %v687
    %1767 = vmatprep.subr.bf16.mxu0 0
    %1768 = vmatpush1.bf16.msra.mxu0 0
    %1769 = vmatprep.subr.bf16.mxu0 0
    %1770 = vmatpush1.bf16.msra.mxu0 0
    %1771 = vmatprep.subr.bf16.mxu0 0
    %1772 = vmatpush1.bf16.msra.mxu0 0
    %1773 = vmatprep.subr.bf16.mxu0 0
    %1774 = vmatpush1.bf16.msra.mxu0 0
    %1775 = vmatprep.subr.bf16.mxu0 0
    %1776 = vmatpush1.bf16.msra.mxu0 0
    %1777 = vmatprep.subr.bf16.mxu0 0
    %1778 = vmatpush1.bf16.msra.mxu0 0
    %1779 = vmatprep.subr.bf16.mxu0 0
    %1780 = vmatpush1.bf16.msra.mxu0 0
    %1781 = vmatprep.subr.bf16.mxu0 0
    %1782 = vmatpush1.bf16.msra.mxu0 0
    %1783 = vmatprep.subr.bf16.mxu0 0
    %1784 = vmatpush1.bf16.msra.mxu0 0
    %1785 = vmatprep.subr.bf16.mxu0 0
    %1786 = vmatpush1.bf16.msra.mxu0 0
    %1787 = vmatprep.subr.bf16.mxu0 0
    %1788 = vmatpush1.bf16.msra.mxu0 0
    %1789 = vmatprep.subr.bf16.mxu0 0
    %1790 = vmatpush1.bf16.msra.mxu0 0
    %1791 = vmatprep.subr.bf16.mxu0 0
    %1792 = vmatpush1.bf16.msra.mxu0 0
    %1793 = vmatprep.subr.bf16.mxu0 0
    %1794 = vmatpush1.bf16.msra.mxu0 0
    %1795 = vmatprep.mubr.bf16.mxu0 0
    %1796 = vmatmul.mubr.bf16.gmra.mrb[0].mxu0 %v1761
    %v1797 = vpop.f32.mrb[0].mxu0
    %v1798 = vadd.f32 %v668, %v1797
    %v1799 = vpop.f32.mrb[0].mxu0
    %v1800 = vpop.f32.mrb[0].mxu0
    %v1801 = vpop.f32.mrb[0].mxu0
    %1802 = vdwg.mxu0
    %v1803 = vpack.c.bf16 %v1755, %v1755
    %1805 = vrot.lane.b32.xlu0 %v1803, 96
    %v1806 = vpop.permute.xlu0 %1805
    %v1808 = vsel %vm142, %v1806, 0
    %1810 = vmatprep.subr.bf16.mxu0 0
    %1811 = vmatpush1.bf16.msra.mxu0 %v747
    %1812 = vmatprep.subr.bf16.mxu0 0
    %1813 = vmatpush1.bf16.msra.mxu0 %v748
    %1814 = vmatprep.subr.bf16.mxu0 0
    %1815 = vmatpush1.bf16.msra.mxu0 0
    %1816 = vmatprep.subr.bf16.mxu0 0
    %1817 = vmatpush1.bf16.msra.mxu0 0
    %1818 = vmatprep.subr.bf16.mxu0 0
    %1819 = vmatpush1.bf16.msra.mxu0 0
    %1820 = vmatprep.subr.bf16.mxu0 0
    %1821 = vmatpush1.bf16.msra.mxu0 0
    %1822 = vmatprep.subr.bf16.mxu0 0
    %1823 = vmatpush1.bf16.msra.mxu0 0
    %1824 = vmatprep.subr.bf16.mxu0 0
    %1825 = vmatpush1.bf16.msra.mxu0 0
    %1826 = vmatprep.subr.bf16.mxu0 0
    %1827 = vmatpush1.bf16.msra.mxu0 0
    %1828 = vmatprep.subr.bf16.mxu0 0
    %1829 = vmatpush1.bf16.msra.mxu0 0
    %1830 = vmatprep.subr.bf16.mxu0 0
    %1831 = vmatpush1.bf16.msra.mxu0 0
    %1832 = vmatprep.subr.bf16.mxu0 0
    %1833 = vmatpush1.bf16.msra.mxu0 0
    %1834 = vmatprep.subr.bf16.mxu0 0
    %1835 = vmatpush1.bf16.msra.mxu0 0
    %1836 = vmatprep.subr.bf16.mxu0 0
    %1837 = vmatpush1.bf16.msra.mxu0 0
    %1838 = vmatprep.subr.bf16.mxu0 0
    %1839 = vmatpush1.bf16.msra.mxu0 0
    %1840 = vmatprep.subr.bf16.mxu0 0
    %1841 = vmatpush1.bf16.msra.mxu0 0
    %1842 = vmatprep.mubr.bf16.mxu0 0
    %1843 = vmatmul.mubr.bf16.gmra.mrb[0].mxu0 %v1808
    %v1844 = vpop.f32.mrb[0].mxu0
    %v1845 = vadd.f32 %v737, %v1844
    %v1846 = vpop.f32.mrb[0].mxu0
    %v1847 = vpop.f32.mrb[0].mxu0
    %v1848 = vpop.f32.mrb[0].mxu0
    %1849 = vdwg.mxu0
    %v1850 = vmul.f32 %v1798, %v795
    %v1851 = vmul.f32 %v1845, %v802
    %v1852 = vsel %vm805, %v1850, 0.0
    %1853 = vadd.xlane.f32.xlu0 %v1852
    %v1854 = vpop.xlane.xlu0 %1853
    %1856 = vrot.lane.b32.xlu0 %v1850, 96
    %v1857 = vpop.permute.xlu0 %1856
    %v1859 = vsel %vm805, %v1857, 0.0
    %1860 = vadd.xlane.f32.xlu0 %v1859
    %v1861 = vpop.xlane.xlu0 %1860
    %v1862 = vsel %vm805, %v1851, 0.0
    %1863 = vadd.xlane.f32.xlu0 %v1862
    %v1864 = vpop.xlane.xlu0 %1863
    %1866 = vrot.lane.b32.xlu0 %v1851, 96
    %v1867 = vpop.permute.xlu0 %1866
    %v1869 = vsel %vm805, %v1867, 0.0
    %1870 = vadd.xlane.f32.xlu0 %v1869
    %v1871 = vpop.xlane.xlu0 %1870
    %v1873 = vlaneseq
    %v1874 = vshrl.u32 %v1873, 7
    %v1875 = vsub.s32 0, %v1874
    %v1876 = vrot.slane %v1854, %v1875
    %v1877 = vlaneseq
    %v1878 = vshrl.u32 %v1877, 7
    %v1879 = vsub.s32 1, %v1878
    %v1880 = vrot.slane %v1854, %v1879
    %v1883 = vadd.f32 %v198, %v1876
    %v1884 = vadd.f32 %v201, %v1880
    %v1885 = vtanh.pop %v1883
    %v1886 = vtanh.pop %v1884
    %1889 = vset.pattern.permute.xlu0 0
    %1890 = vperm.xlu0 %1889, %v1885
    %v1891 = vpop.permute.xlu0 %1890
    %1892 = vset.pattern.permute.xlu0 0
    %1893 = vperm.xlu0 %1892, %v1886
    %v1894 = vpop.permute.xlu0 %1893
    %v1895 = vlaneseq
    %v1896 = vshrl.u32 %v1895, 7
    %v1897 = vsub.s32 %v850, %v1896
    %v1898 = vrot.slane %v1891, %v1897
    %v1899 = vlaneseq
    %v1900 = vshrl.u32 %v1899, 7
    %v1901 = vsub.s32 %v850, %v1900
    %v1902 = vrot.slane %v1894, %v1901
    %v1903 = vsel %vm675, %v1902, %v1898
    %v1905 = vsel %vm861, %v1903, -inf
    %1906 = vmax.xlane.f32.xlu0 %v1905
    %v1907 = vpop.xlane.xlu0 %1906
    %v1909 = vlaneseq
    %v1910 = vshrl.u32 %v1909, 7
    %v1911 = vsub.s32 0, %v1910
    %v1912 = vrot.slane %v1907, %v1911
    %v1913 = vlaneseq
    %v1914 = vshrl.u32 %v1913, 7
    %v1915 = vsub.s32 1, %v1914
    %v1916 = vrot.slane %v1907, %v1915
    %v1919 = vsub.f32 %v1885, %v1912
    %v1920 = vsub.f32 %v1886, %v1916
    %v1921 = vmul.f32 %v1919, 1.442695
    %v1922 = vpow.pop %v1921
    %v1923 = vmul.f32 %v1920, 1.442695
    %v1924 = vpow.pop %v1923
    %1927 = vset.pattern.permute.xlu0 0
    %1928 = vperm.xlu0 %1927, %v1922
    %v1929 = vpop.permute.xlu0 %1928
    %1930 = vset.pattern.permute.xlu0 0
    %1931 = vperm.xlu0 %1930, %v1924
    %v1932 = vpop.permute.xlu0 %1931
    %v1933 = vlaneseq
    %v1934 = vshrl.u32 %v1933, 7
    %v1935 = vsub.s32 %v850, %v1934
    %v1936 = vrot.slane %v1929, %v1935
    %v1937 = vlaneseq
    %v1938 = vshrl.u32 %v1937, 7
    %v1939 = vsub.s32 %v850, %v1938
    %v1940 = vrot.slane %v1932, %v1939
    %v1941 = vsel %vm675, %v1940, %v1936
    %v1943 = vsel %vm861, %v1941, 0.0
    %1944 = vadd.xlane.f32.xlu0 %v1943
    %v1945 = vpop.xlane.xlu0 %1944
    %v1947 = vlaneseq
    %v1948 = vshrl.u32 %v1947, 7
    %v1949 = vsub.s32 0, %v1948
    %v1950 = vrot.slane %v1945, %v1949
    %v1951 = vlaneseq
    %v1952 = vshrl.u32 %v1951, 7
    %v1953 = vsub.s32 1, %v1952
    %v1954 = vrot.slane %v1945, %v1953
    %v1957 = vrcp.pop %v1950
    %v1958 = vmul.f32 %v1922, %v1957
    %v1959 = vrcp.pop %v1954
    %v1960 = vmul.f32 %v1924, %v1959
    %1962 = vset.pattern.permute.xlu0 0
    %1963 = vperm.xlu0 %1962, %v1958
    %v1964 = vpop.permute.xlu0 %1963
    %1967 = vset.pattern.permute.xlu0 0
    %1968 = vperm.xlu0 %1967, %v1960
    %v1969 = vpop.permute.xlu0 %1968
    %v1971 = vmul.f32 %v1964, %v918
    %v1972 = vmul.f32 %v1969, %v919
    %v1973 = vsel %vm142, %v1971, 0.0
    %v1974 = vrot.slane %v1973, 4
    %v1975 = vadd.f32 %v1973, %v1974
    %v1976 = vrot.slane %v1975, 2
    %v1977 = vadd.f32 %v1975, %v1976
    %v1978 = vrot.slane %v1977, 1
    %v1979 = vadd.f32 %v1977, %v1978
    %v1980 = vsel %vm142, %v1972, 0.0
    %v1981 = vrot.slane %v1980, 4
    %v1982 = vadd.f32 %v1980, %v1981
    %v1983 = vrot.slane %v1982, 2
    %v1984 = vadd.f32 %v1982, %v1983
    %v1985 = vrot.slane %v1984, 1
    %v1986 = vadd.f32 %v1984, %v1985
    %v1988 = vlaneseq
    %v1989 = vshrl.u32 %v1988, 7
    %v1990 = vsub.s32 0, %v1989
    %v1991 = vrot.slane %v1864, %v1990
    %v1992 = vlaneseq
    %v1993 = vshrl.u32 %v1992, 7
    %v1994 = vsub.s32 1, %v1993
    %v1995 = vrot.slane %v1864, %v1994
    %v1998 = vadd.f32 %v212, %v1991
    %v1999 = vadd.f32 %v215, %v1995
    %v2000 = vtanh.pop %v1998
    %v2001 = vtanh.pop %v1999
    %2004 = vset.pattern.permute.xlu0 0
    %2005 = vperm.xlu0 %2004, %v2000
    %v2006 = vpop.permute.xlu0 %2005
    %2007 = vset.pattern.permute.xlu0 0
    %2008 = vperm.xlu0 %2007, %v2001
    %v2009 = vpop.permute.xlu0 %2008
    %v2010 = vlaneseq
    %v2011 = vshrl.u32 %v2010, 7
    %v2012 = vsub.s32 %v850, %v2011
    %v2013 = vrot.slane %v2006, %v2012
    %v2014 = vlaneseq
    %v2015 = vshrl.u32 %v2014, 7
    %v2016 = vsub.s32 %v850, %v2015
    %v2017 = vrot.slane %v2009, %v2016
    %v2018 = vsel %vm675, %v2017, %v2013
    %v2020 = vsel %vm861, %v2018, -inf
    %2021 = vmax.xlane.f32.xlu0 %v2020
    %v2022 = vpop.xlane.xlu0 %2021
    %v2024 = vlaneseq
    %v2025 = vshrl.u32 %v2024, 7
    %v2026 = vsub.s32 0, %v2025
    %v2027 = vrot.slane %v2022, %v2026
    %v2028 = vlaneseq
    %v2029 = vshrl.u32 %v2028, 7
    %v2030 = vsub.s32 1, %v2029
    %v2031 = vrot.slane %v2022, %v2030
    %v2034 = vsub.f32 %v2000, %v2027
    %v2035 = vsub.f32 %v2001, %v2031
    %v2036 = vmul.f32 %v2034, 1.442695
    %v2037 = vpow.pop %v2036
    %v2038 = vmul.f32 %v2035, 1.442695
    %v2039 = vpow.pop %v2038
    %2042 = vset.pattern.permute.xlu0 0
    %2043 = vperm.xlu0 %2042, %v2037
    %v2044 = vpop.permute.xlu0 %2043
    %2045 = vset.pattern.permute.xlu0 0
    %2046 = vperm.xlu0 %2045, %v2039
    %v2047 = vpop.permute.xlu0 %2046
    %v2048 = vlaneseq
    %v2049 = vshrl.u32 %v2048, 7
    %v2050 = vsub.s32 %v850, %v2049
    %v2051 = vrot.slane %v2044, %v2050
    %v2052 = vlaneseq
    %v2053 = vshrl.u32 %v2052, 7
    %v2054 = vsub.s32 %v850, %v2053
    %v2055 = vrot.slane %v2047, %v2054
    %v2056 = vsel %vm675, %v2055, %v2051
    %v2058 = vsel %vm861, %v2056, 0.0
    %2059 = vadd.xlane.f32.xlu0 %v2058
    %v2060 = vpop.xlane.xlu0 %2059
    %v2062 = vlaneseq
    %v2063 = vshrl.u32 %v2062, 7
    %v2064 = vsub.s32 0, %v2063
    %v2065 = vrot.slane %v2060, %v2064
    %v2066 = vlaneseq
    %v2067 = vshrl.u32 %v2066, 7
    %v2068 = vsub.s32 1, %v2067
    %v2069 = vrot.slane %v2060, %v2068
    %v2072 = vrcp.pop %v2065
    %v2073 = vmul.f32 %v2037, %v2072
    %v2074 = vrcp.pop %v2069
    %v2075 = vmul.f32 %v2039, %v2074
    %2077 = vset.pattern.permute.xlu0 0
    %2078 = vperm.xlu0 %2077, %v2073
    %v2079 = vpop.permute.xlu0 %2078
    %2082 = vset.pattern.permute.xlu0 0
    %2083 = vperm.xlu0 %2082, %v2075
    %v2084 = vpop.permute.xlu0 %2083
    %v2086 = vmul.f32 %v2079, %v918
    %v2087 = vmul.f32 %v2084, %v919
    %v2088 = vsel %vm1047, %v2086, 0.0
    %v2089 = vrot.slane %v2088, 4
    %v2090 = vadd.f32 %v2088, %v2089
    %v2091 = vrot.slane %v2090, 2
    %v2092 = vadd.f32 %v2090, %v2091
    %v2093 = vrot.slane %v2092, 1
    %v2094 = vadd.f32 %v2092, %v2093
    %v2095 = vsel %vm1047, %v2087, 0.0
    %v2096 = vrot.slane %v2095, 4
    %v2097 = vadd.f32 %v2095, %v2096
    %v2098 = vrot.slane %v2097, 2
    %v2099 = vadd.f32 %v2097, %v2098
    %v2100 = vrot.slane %v2099, 1
    %v2101 = vadd.f32 %v2099, %v2100
    %v2103 = vlaneseq
    %v2104 = vshrl.u32 %v2103, 7
    %v2105 = vsub.s32 0, %v2104
    %v2106 = vrot.slane %v1871, %v2105
    %v2107 = vlaneseq
    %v2108 = vshrl.u32 %v2107, 7
    %v2109 = vsub.s32 1, %v2108
    %v2110 = vrot.slane %v1871, %v2109
    %v2113 = vadd.f32 %v548, %v2106
    %v2114 = vadd.f32 %v551, %v2110
    %v2115 = vtanh.pop %v2113
    %v2116 = vtanh.pop %v2114
    %2119 = vset.pattern.permute.xlu0 0
    %2120 = vperm.xlu0 %2119, %v2115
    %v2121 = vpop.permute.xlu0 %2120
    %2122 = vset.pattern.permute.xlu0 0
    %2123 = vperm.xlu0 %2122, %v2116
    %v2124 = vpop.permute.xlu0 %2123
    %v2125 = vlaneseq
    %v2126 = vshrl.u32 %v2125, 7
    %v2127 = vsub.s32 %v850, %v2126
    %v2128 = vrot.slane %v2121, %v2127
    %v2129 = vlaneseq
    %v2130 = vshrl.u32 %v2129, 7
    %v2131 = vsub.s32 %v850, %v2130
    %v2132 = vrot.slane %v2124, %v2131
    %v2133 = vsel %vm675, %v2132, %v2128
    %v2135 = vsel %vm1095, %v2133, -inf
    %2136 = vmax.xlane.f32.xlu0 %v2135
    %v2137 = vpop.xlane.xlu0 %2136
    %v2139 = vlaneseq
    %v2140 = vshrl.u32 %v2139, 7
    %v2141 = vsub.s32 0, %v2140
    %v2142 = vrot.slane %v2137, %v2141
    %v2143 = vlaneseq
    %v2144 = vshrl.u32 %v2143, 7
    %v2145 = vsub.s32 1, %v2144
    %v2146 = vrot.slane %v2137, %v2145
    %v2149 = vsub.f32 %v2115, %v2142
    %v2150 = vsub.f32 %v2116, %v2146
    %v2151 = vmul.f32 %v2149, 1.442695
    %v2152 = vpow.pop %v2151
    %v2153 = vmul.f32 %v2150, 1.442695
    %v2154 = vpow.pop %v2153
    %2157 = vset.pattern.permute.xlu0 0
    %2158 = vperm.xlu0 %2157, %v2152
    %v2159 = vpop.permute.xlu0 %2158
    %2160 = vset.pattern.permute.xlu0 0
    %2161 = vperm.xlu0 %2160, %v2154
    %v2162 = vpop.permute.xlu0 %2161
    %v2163 = vlaneseq
    %v2164 = vshrl.u32 %v2163, 7
    %v2165 = vsub.s32 %v850, %v2164
    %v2166 = vrot.slane %v2159, %v2165
    %v2167 = vlaneseq
    %v2168 = vshrl.u32 %v2167, 7
    %v2169 = vsub.s32 %v850, %v2168
    %v2170 = vrot.slane %v2162, %v2169
    %v2171 = vsel %vm675, %v2170, %v2166
    %v2173 = vsel %vm1095, %v2171, 0.0
    %2174 = vadd.xlane.f32.xlu0 %v2173
    %v2175 = vpop.xlane.xlu0 %2174
    %v2177 = vlaneseq
    %v2178 = vshrl.u32 %v2177, 7
    %v2179 = vsub.s32 0, %v2178
    %v2180 = vrot.slane %v2175, %v2179
    %v2181 = vlaneseq
    %v2182 = vshrl.u32 %v2181, 7
    %v2183 = vsub.s32 1, %v2182
    %v2184 = vrot.slane %v2175, %v2183
    %v2187 = vrcp.pop %v2180
    %v2188 = vmul.f32 %v2152, %v2187
    %v2189 = vrcp.pop %v2184
    %v2190 = vmul.f32 %v2154, %v2189
    %2192 = vset.pattern.permute.xlu0 0
    %2193 = vperm.xlu0 %2192, %v2188
    %v2194 = vpop.permute.xlu0 %2193
    %2197 = vset.pattern.permute.xlu0 0
    %2198 = vperm.xlu0 %2197, %v2190
    %v2199 = vpop.permute.xlu0 %2198
    %v2201 = vmul.f32 %v2194, %v1152
    %v2202 = vmul.f32 %v2199, %v1153
    %v2203 = vsel %vm545, %v2201, 0.0
    %v2204 = vrot.slane %v2203, 4
    %v2205 = vadd.f32 %v2203, %v2204
    %v2206 = vrot.slane %v2205, 2
    %v2207 = vadd.f32 %v2205, %v2206
    %v2208 = vrot.slane %v2207, 1
    %v2209 = vadd.f32 %v2207, %v2208
    %v2210 = vsel %vm545, %v2202, 0.0
    %v2211 = vrot.slane %v2210, 4
    %v2212 = vadd.f32 %v2210, %v2211
    %v2213 = vrot.slane %v2212, 2
    %v2214 = vadd.f32 %v2212, %v2213
    %v2215 = vrot.slane %v2214, 1
    %v2216 = vadd.f32 %v2214, %v2215
    %v2218 = vlaneseq
    %v2219 = vshrl.u32 %v2218, 7
    %v2220 = vsub.s32 0, %v2219
    %v2221 = vrot.slane %v1861, %v2220
    %v2222 = vlaneseq
    %v2223 = vshrl.u32 %v2222, 7
    %v2224 = vsub.s32 1, %v2223
    %v2225 = vrot.slane %v1861, %v2224
    %v2228 = vadd.f32 %v560, %v2221
    %v2229 = vadd.f32 %v563, %v2225
    %v2230 = vtanh.pop %v2228
    %v2231 = vtanh.pop %v2229
    %2234 = vset.pattern.permute.xlu0 0
    %2235 = vperm.xlu0 %2234, %v2230
    %v2236 = vpop.permute.xlu0 %2235
    %2237 = vset.pattern.permute.xlu0 0
    %2238 = vperm.xlu0 %2237, %v2231
    %v2239 = vpop.permute.xlu0 %2238
    %v2240 = vlaneseq
    %v2241 = vshrl.u32 %v2240, 7
    %v2242 = vsub.s32 %v850, %v2241
    %v2243 = vrot.slane %v2236, %v2242
    %v2244 = vlaneseq
    %v2245 = vshrl.u32 %v2244, 7
    %v2246 = vsub.s32 %v850, %v2245
    %v2247 = vrot.slane %v2239, %v2246
    %v2248 = vsel %vm675, %v2247, %v2243
    %v2250 = vsel %vm1095, %v2248, -inf
    %2251 = vmax.xlane.f32.xlu0 %v2250
    %v2252 = vpop.xlane.xlu0 %2251
    %v2254 = vlaneseq
    %v2255 = vshrl.u32 %v2254, 7
    %v2256 = vsub.s32 0, %v2255
    %v2257 = vrot.slane %v2252, %v2256
    %v2258 = vlaneseq
    %v2259 = vshrl.u32 %v2258, 7
    %v2260 = vsub.s32 1, %v2259
    %v2261 = vrot.slane %v2252, %v2260
    %v2264 = vsub.f32 %v2230, %v2257
    %v2265 = vsub.f32 %v2231, %v2261
    %v2266 = vmul.f32 %v2264, 1.442695
    %v2267 = vpow.pop %v2266
    %v2268 = vmul.f32 %v2265, 1.442695
    %v2269 = vpow.pop %v2268
    %2272 = vset.pattern.permute.xlu0 0
    %2273 = vperm.xlu0 %2272, %v2267
    %v2274 = vpop.permute.xlu0 %2273
    %2275 = vset.pattern.permute.xlu0 0
    %2276 = vperm.xlu0 %2275, %v2269
    %v2277 = vpop.permute.xlu0 %2276
    %v2278 = vlaneseq
    %v2279 = vshrl.u32 %v2278, 7
    %v2280 = vsub.s32 %v850, %v2279
    %v2281 = vrot.slane %v2274, %v2280
    %v2282 = vlaneseq
    %v2283 = vshrl.u32 %v2282, 7
    %v2284 = vsub.s32 %v850, %v2283
    %v2285 = vrot.slane %v2277, %v2284
    %v2286 = vsel %vm675, %v2285, %v2281
    %v2288 = vsel %vm1095, %v2286, 0.0
    %2289 = vadd.xlane.f32.xlu0 %v2288
    %v2290 = vpop.xlane.xlu0 %2289
    %v2292 = vlaneseq
    %v2293 = vshrl.u32 %v2292, 7
    %v2294 = vsub.s32 0, %v2293
    %v2295 = vrot.slane %v2290, %v2294
    %v2296 = vlaneseq
    %v2297 = vshrl.u32 %v2296, 7
    %v2298 = vsub.s32 1, %v2297
    %v2299 = vrot.slane %v2290, %v2298
    %v2302 = vrcp.pop %v2295
    %v2303 = vmul.f32 %v2267, %v2302
    %v2304 = vrcp.pop %v2299
    %v2305 = vmul.f32 %v2269, %v2304
    %2307 = vset.pattern.permute.xlu0 0
    %2308 = vperm.xlu0 %2307, %v2303
    %v2309 = vpop.permute.xlu0 %2308
    %2312 = vset.pattern.permute.xlu0 0
    %2313 = vperm.xlu0 %2312, %v2305
    %v2314 = vpop.permute.xlu0 %2313
    %v2316 = vmul.f32 %v2309, %v1152
    %v2317 = vmul.f32 %v2314, %v1153
    %v2318 = vsel %vm1281, %v2316, 0.0
    %v2319 = vrot.slane %v2318, 4
    %v2320 = vadd.f32 %v2318, %v2319
    %v2321 = vrot.slane %v2320, 2
    %v2322 = vadd.f32 %v2320, %v2321
    %v2323 = vrot.slane %v2322, 1
    %v2324 = vadd.f32 %v2322, %v2323
    %v2325 = vsel %vm1281, %v2317, 0.0
    %v2326 = vrot.slane %v2325, 4
    %v2327 = vadd.f32 %v2325, %v2326
    %v2328 = vrot.slane %v2327, 2
    %v2329 = vadd.f32 %v2327, %v2328
    %v2330 = vrot.slane %v2329, 1
    %v2331 = vadd.f32 %v2329, %v2330
    %v2334 = vsel %vm675, %v1986, %v1979
    %v2338 = vsel %vm675, %v2101, %v2094
    %v2340 = vsel %vm142, %v2334, %v2338
    %v2341 = vpack.c.bf16 %v2340, %v2340
    %v2344 = vsel %vm675, %v2216, %v2209
    %v2348 = vsel %vm675, %v2331, %v2324
    %v2350 = vsel %vm142, %v2344, %v2348
    %v2351 = vpack.c.bf16 %v2350, %v2350
    %v2353 = vsel %vm1346, %v2341, 0
    %2355 = vmatprep.subr.bf16.mxu0 0
    %2356 = vmatpush1.bf16.msra.mxu0 %v1338
    %2357 = vmatprep.subr.bf16.mxu0 0
    %2358 = vmatpush1.bf16.msra.mxu0 %v1339
    %2359 = vmatprep.subr.bf16.mxu0 0
    %2360 = vmatpush1.bf16.msra.mxu0 %v1340
    %2361 = vmatprep.subr.bf16.mxu0 0
    %2362 = vmatpush1.bf16.msra.mxu0 %v1341
    %2363 = vmatprep.subr.bf16.mxu0 0
    %2364 = vmatpush1.bf16.msra.mxu0 0
    %2365 = vmatprep.subr.bf16.mxu0 0
    %2366 = vmatpush1.bf16.msra.mxu0 0
    %2367 = vmatprep.subr.bf16.mxu0 0
    %2368 = vmatpush1.bf16.msra.mxu0 0
    %2369 = vmatprep.subr.bf16.mxu0 0
    %2370 = vmatpush1.bf16.msra.mxu0 0
    %2371 = vmatprep.subr.bf16.mxu0 0
    %2372 = vmatpush1.bf16.msra.mxu0 0
    %2373 = vmatprep.subr.bf16.mxu0 0
    %2374 = vmatpush1.bf16.msra.mxu0 0
    %2375 = vmatprep.subr.bf16.mxu0 0
    %2376 = vmatpush1.bf16.msra.mxu0 0
    %2377 = vmatprep.subr.bf16.mxu0 0
    %2378 = vmatpush1.bf16.msra.mxu0 0
    %2379 = vmatprep.subr.bf16.mxu0 0
    %2380 = vmatpush1.bf16.msra.mxu0 0
    %2381 = vmatprep.subr.bf16.mxu0 0
    %2382 = vmatpush1.bf16.msra.mxu0 0
    %2383 = vmatprep.subr.bf16.mxu0 0
    %2384 = vmatpush1.bf16.msra.mxu0 0
    %2385 = vmatprep.subr.bf16.mxu0 0
    %2386 = vmatpush1.bf16.msra.mxu0 0
    %2387 = vmatprep.mubr.bf16.mxu0 0
    %2388 = vmatmul.mubr.bf16.gmra.mrb[0].mxu0 %v2353
    %v2389 = vpop.f32.mrb[0].mxu0
    %v2390 = vadd.f32 %v1320, %v2389
    %v2391 = vpop.f32.mrb[0].mxu0
    %v2392 = vpop.f32.mrb[0].mxu0
    %v2393 = vpop.f32.mrb[0].mxu0
    %2394 = vdwg.mxu0
    %v2395 = vmul.f32 %v2390, 0.5
    %v2397 = vsel %vm1346, %v2351, 0
    %2399 = vmatprep.subr.bf16.mxu0 0
    %2400 = vmatpush1.bf16.msra.mxu0 %v1413
    %2401 = vmatprep.subr.bf16.mxu0 0
    %2402 = vmatpush1.bf16.msra.mxu0 %v1414
    %2403 = vmatprep.subr.bf16.mxu0 0
    %2404 = vmatpush1.bf16.msra.mxu0 %v1415
    %2405 = vmatprep.subr.bf16.mxu0 0
    %2406 = vmatpush1.bf16.msra.mxu0 %v1416
    %2407 = vmatprep.subr.bf16.mxu0 0
    %2408 = vmatpush1.bf16.msra.mxu0 0
    %2409 = vmatprep.subr.bf16.mxu0 0
    %2410 = vmatpush1.bf16.msra.mxu0 0
    %2411 = vmatprep.subr.bf16.mxu0 0
    %2412 = vmatpush1.bf16.msra.mxu0 0
    %2413 = vmatprep.subr.bf16.mxu0 0
    %2414 = vmatpush1.bf16.msra.mxu0 0
    %2415 = vmatprep.subr.bf16.mxu0 0
    %2416 = vmatpush1.bf16.msra.mxu0 0
    %2417 = vmatprep.subr.bf16.mxu0 0
    %2418 = vmatpush1.bf16.msra.mxu0 0
    %2419 = vmatprep.subr.bf16.mxu0 0
    %2420 = vmatpush1.bf16.msra.mxu0 0
    %2421 = vmatprep.subr.bf16.mxu0 0
    %2422 = vmatpush1.bf16.msra.mxu0 0
    %2423 = vmatprep.subr.bf16.mxu0 0
    %2424 = vmatpush1.bf16.msra.mxu0 0
    %2425 = vmatprep.subr.bf16.mxu0 0
    %2426 = vmatpush1.bf16.msra.mxu0 0
    %2427 = vmatprep.subr.bf16.mxu0 0
    %2428 = vmatpush1.bf16.msra.mxu0 0
    %2429 = vmatprep.subr.bf16.mxu0 0
    %2430 = vmatpush1.bf16.msra.mxu0 0
    %2431 = vmatprep.mubr.bf16.mxu0 0
    %2432 = vmatmul.mubr.bf16.gmra.mrb[0].mxu0 %v2397
    %v2433 = vpop.f32.mrb[0].mxu0
    %v2434 = vadd.f32 %v1395, %v2433
    %v2435 = vpop.f32.mrb[0].mxu0
    %v2436 = vpop.f32.mrb[0].mxu0
    %v2437 = vpop.f32.mrb[0].mxu0
    %2438 = vdwg.mxu0
    %v2439 = vmul.f32 %v2434, 0.5
    %v2440 = vpack.c.bf16 %v2395, %v2395
    %v2442 = vsel %vm142, %v2440, 0
    %2444 = vmatprep.subr.bf16.mxu0 0
    %2445 = vmatpush1.bf16.msra.mxu0 %v1478
    %2446 = vmatprep.subr.bf16.mxu0 0
    %2447 = vmatpush1.bf16.msra.mxu0 %v1479
    %2448 = vmatprep.subr.bf16.mxu0 0
    %2449 = vmatpush1.bf16.msra.mxu0 0
    %2450 = vmatprep.subr.bf16.mxu0 0
    %2451 = vmatpush1.bf16.msra.mxu0 0
    %2452 = vmatprep.subr.bf16.mxu0 0
    %2453 = vmatpush1.bf16.msra.mxu0 0
    %2454 = vmatprep.subr.bf16.mxu0 0
    %2455 = vmatpush1.bf16.msra.mxu0 0
    %2456 = vmatprep.subr.bf16.mxu0 0
    %2457 = vmatpush1.bf16.msra.mxu0 0
    %2458 = vmatprep.subr.bf16.mxu0 0
    %2459 = vmatpush1.bf16.msra.mxu0 0
    %2460 = vmatprep.subr.bf16.mxu0 0
    %2461 = vmatpush1.bf16.msra.mxu0 0
    %2462 = vmatprep.subr.bf16.mxu0 0
    %2463 = vmatpush1.bf16.msra.mxu0 0
    %2464 = vmatprep.subr.bf16.mxu0 0
    %2465 = vmatpush1.bf16.msra.mxu0 0
    %2466 = vmatprep.subr.bf16.mxu0 0
    %2467 = vmatpush1.bf16.msra.mxu0 0
    %2468 = vmatprep.subr.bf16.mxu0 0
    %2469 = vmatpush1.bf16.msra.mxu0 0
    %2470 = vmatprep.subr.bf16.mxu0 0
    %2471 = vmatpush1.bf16.msra.mxu0 0
    %2472 = vmatprep.subr.bf16.mxu0 0
    %2473 = vmatpush1.bf16.msra.mxu0 0
    %2474 = vmatprep.subr.bf16.mxu0 0
    %2475 = vmatpush1.bf16.msra.mxu0 0
    %2476 = vmatprep.mubr.bf16.mxu0 0
    %2477 = vmatmul.mubr.bf16.gmra.mrb[0].mxu0 %v2442
    %v2478 = vpop.f32.mrb[0].mxu0
    %v2479 = vadd.f32 %v1469, %v2478
    %v2480 = vpop.f32.mrb[0].mxu0
    %v2481 = vpop.f32.mrb[0].mxu0
    %v2482 = vpop.f32.mrb[0].mxu0
    %2483 = vdwg.mxu0
    %2484 = vmatprep.subr.bf16.mxu0 0
    %2485 = vmatpush1.bf16.msra.mxu0 %v1537
    %2486 = vmatprep.subr.bf16.mxu0 0
    %2487 = vmatpush1.bf16.msra.mxu0 %v1538
    %2488 = vmatprep.subr.bf16.mxu0 0
    %2489 = vmatpush1.bf16.msra.mxu0 0
    %2490 = vmatprep.subr.bf16.mxu0 0
    %2491 = vmatpush1.bf16.msra.mxu0 0
    %2492 = vmatprep.subr.bf16.mxu0 0
    %2493 = vmatpush1.bf16.msra.mxu0 0
    %2494 = vmatprep.subr.bf16.mxu0 0
    %2495 = vmatpush1.bf16.msra.mxu0 0
    %2496 = vmatprep.subr.bf16.mxu0 0
    %2497 = vmatpush1.bf16.msra.mxu0 0
    %2498 = vmatprep.subr.bf16.mxu0 0
    %2499 = vmatpush1.bf16.msra.mxu0 0
    %2500 = vmatprep.subr.bf16.mxu0 0
    %2501 = vmatpush1.bf16.msra.mxu0 0
    %2502 = vmatprep.subr.bf16.mxu0 0
    %2503 = vmatpush1.bf16.msra.mxu0 0
    %2504 = vmatprep.subr.bf16.mxu0 0
    %2505 = vmatpush1.bf16.msra.mxu0 0
    %2506 = vmatprep.subr.bf16.mxu0 0
    %2507 = vmatpush1.bf16.msra.mxu0 0
    %2508 = vmatprep.subr.bf16.mxu0 0
    %2509 = vmatpush1.bf16.msra.mxu0 0
    %2510 = vmatprep.subr.bf16.mxu0 0
    %2511 = vmatpush1.bf16.msra.mxu0 0
    %2512 = vmatprep.subr.bf16.mxu0 0
    %2513 = vmatpush1.bf16.msra.mxu0 0
    %2514 = vmatprep.subr.bf16.mxu0 0
    %2515 = vmatpush1.bf16.msra.mxu0 0
    %2516 = vmatprep.mubr.bf16.mxu0 0
    %2517 = vmatmul.mubr.bf16.gmra.mrb[0].mxu0 %v1761
    %v2518 = vpop.f32.mrb[0].mxu0
    %v2519 = vadd.f32 %v1528, %v2518
    %v2520 = vpop.f32.mrb[0].mxu0
    %v2521 = vpop.f32.mrb[0].mxu0
    %v2522 = vpop.f32.mrb[0].mxu0
    %2523 = vdwg.mxu0
    %v2524 = vadd.f32 %v2479, %v2519
    %v2525 = vxor.u32 %v2524, 2147483648
    %v2526 = vmul.f32 %v2525, 1.442695
    %v2527 = vpow.pop %v2526
    %v2528 = vadd.f32 %v2527, 1.0
    %v2529 = vrcp.pop %v2528
    %v2530 = vmul.f32 1.0, %v2529
    %2532 = vrot.lane.b32.xlu0 %v2519, 64
    %v2533 = vpop.permute.xlu0 %2532
    %v2535 = vmul.f32 %v2530, %v2533
    %2537 = vrot.lane.b32.xlu0 %v2535, 64
    %v2538 = vpop.permute.xlu0 %2537
    %v2540 = vadd.f32 %v2479, %v2538
    %v2541 = vtanh.pop %v2540
    %v2542 = vsub.f32 1.0, %v2530
    %2544 = vrot.lane.b32.xlu0 %v2541, 96
    %v2545 = vpop.permute.xlu0 %2544
    %v2547 = vmul.f32 %v2542, %v2545
    %v2548 = vmul.f32 %v2530, %v1613
    %v2549 = vadd.f32 %v2547, %v2548
    %v2550 = vpack.c.bf16 %v2439, %v2439
    %v2552 = vsel %vm142, %v2550, 0
    %2554 = vmatprep.subr.bf16.mxu0 0
    %2555 = vmatpush1.bf16.msra.mxu0 %v1627
    %2556 = vmatprep.subr.bf16.mxu0 0
    %2557 = vmatpush1.bf16.msra.mxu0 %v1628
    %2558 = vmatprep.subr.bf16.mxu0 0
    %2559 = vmatpush1.bf16.msra.mxu0 0
    %2560 = vmatprep.subr.bf16.mxu0 0
    %2561 = vmatpush1.bf16.msra.mxu0 0
    %2562 = vmatprep.subr.bf16.mxu0 0
    %2563 = vmatpush1.bf16.msra.mxu0 0
    %2564 = vmatprep.subr.bf16.mxu0 0
    %2565 = vmatpush1.bf16.msra.mxu0 0
    %2566 = vmatprep.subr.bf16.mxu0 0
    %2567 = vmatpush1.bf16.msra.mxu0 0
    %2568 = vmatprep.subr.bf16.mxu0 0
    %2569 = vmatpush1.bf16.msra.mxu0 0
    %2570 = vmatprep.subr.bf16.mxu0 0
    %2571 = vmatpush1.bf16.msra.mxu0 0
    %2572 = vmatprep.subr.bf16.mxu0 0
    %2573 = vmatpush1.bf16.msra.mxu0 0
    %2574 = vmatprep.subr.bf16.mxu0 0
    %2575 = vmatpush1.bf16.msra.mxu0 0
    %2576 = vmatprep.subr.bf16.mxu0 0
    %2577 = vmatpush1.bf16.msra.mxu0 0
    %2578 = vmatprep.subr.bf16.mxu0 0
    %2579 = vmatpush1.bf16.msra.mxu0 0
    %2580 = vmatprep.subr.bf16.mxu0 0
    %2581 = vmatpush1.bf16.msra.mxu0 0
    %2582 = vmatprep.subr.bf16.mxu0 0
    %2583 = vmatpush1.bf16.msra.mxu0 0
    %2584 = vmatprep.subr.bf16.mxu0 0
    %2585 = vmatpush1.bf16.msra.mxu0 0
    %2586 = vmatprep.mubr.bf16.mxu0 0
    %2587 = vmatmul.mubr.bf16.gmra.mrb[0].mxu0 %v2552
    %v2588 = vpop.f32.mrb[0].mxu0
    %v2589 = vadd.f32 %v1618, %v2588
    %v2590 = vpop.f32.mrb[0].mxu0
    %v2591 = vpop.f32.mrb[0].mxu0
    %v2592 = vpop.f32.mrb[0].mxu0
    %2593 = vdwg.mxu0
    %2594 = vmatprep.subr.bf16.mxu0 0
    %2595 = vmatpush1.bf16.msra.mxu0 %v1686
    %2596 = vmatprep.subr.bf16.mxu0 0
    %2597 = vmatpush1.bf16.msra.mxu0 %v1687
    %2598 = vmatprep.subr.bf16.mxu0 0
    %2599 = vmatpush1.bf16.msra.mxu0 0
    %2600 = vmatprep.subr.bf16.mxu0 0
    %2601 = vmatpush1.bf16.msra.mxu0 0
    %2602 = vmatprep.subr.bf16.mxu0 0
    %2603 = vmatpush1.bf16.msra.mxu0 0
    %2604 = vmatprep.subr.bf16.mxu0 0
    %2605 = vmatpush1.bf16.msra.mxu0 0
    %2606 = vmatprep.subr.bf16.mxu0 0
    %2607 = vmatpush1.bf16.msra.mxu0 0
    %2608 = vmatprep.subr.bf16.mxu0 0
    %2609 = vmatpush1.bf16.msra.mxu0 0
    %2610 = vmatprep.subr.bf16.mxu0 0
    %2611 = vmatpush1.bf16.msra.mxu0 0
    %2612 = vmatprep.subr.bf16.mxu0 0
    %2613 = vmatpush1.bf16.msra.mxu0 0
    %2614 = vmatprep.subr.bf16.mxu0 0
    %2615 = vmatpush1.bf16.msra.mxu0 0
    %2616 = vmatprep.subr.bf16.mxu0 0
    %2617 = vmatpush1.bf16.msra.mxu0 0
    %2618 = vmatprep.subr.bf16.mxu0 0
    %2619 = vmatpush1.bf16.msra.mxu0 0
    %2620 = vmatprep.subr.bf16.mxu0 0
    %2621 = vmatpush1.bf16.msra.mxu0 0
    %2622 = vmatprep.subr.bf16.mxu0 0
    %2623 = vmatpush1.bf16.msra.mxu0 0
    %2624 = vmatprep.subr.bf16.mxu0 0
    %2625 = vmatpush1.bf16.msra.mxu0 0
    %2626 = vmatprep.mubr.bf16.mxu0 0
    %2627 = vmatmul.mubr.bf16.gmra.mrb[0].mxu0 %v1808
    %v2628 = vpop.f32.mrb[0].mxu0
    %v2629 = vadd.f32 %v1677, %v2628
    %v2630 = vpop.f32.mrb[0].mxu0
    %v2631 = vpop.f32.mrb[0].mxu0
    %v2632 = vpop.f32.mrb[0].mxu0
    %2633 = vdwg.mxu0
    %v2634 = vadd.f32 %v2589, %v2629
    %v2635 = vxor.u32 %v2634, 2147483648
    %v2636 = vmul.f32 %v2635, 1.442695
    %v2637 = vpow.pop %v2636
    %v2638 = vadd.f32 %v2637, 1.0
    %v2639 = vrcp.pop %v2638
    %v2640 = vmul.f32 1.0, %v2639
    %2642 = vrot.lane.b32.xlu0 %v2629, 64
    %v2643 = vpop.permute.xlu0 %2642
    %v2645 = vmul.f32 %v2640, %v2643
    %2647 = vrot.lane.b32.xlu0 %v2645, 64
    %v2648 = vpop.permute.xlu0 %2647
    %v2650 = vadd.f32 %v2589, %v2648
    %v2651 = vtanh.pop %v2650
    %v2652 = vsub.f32 1.0, %v2640
    %2654 = vrot.lane.b32.xlu0 %v2651, 96
    %v2655 = vpop.permute.xlu0 %2654
    %v2657 = vmul.f32 %v2652, %v2655
    %v2658 = vmul.f32 %v2640, %v1755
    %v2659 = vadd.f32 %v2657, %v2658
    %2661 = vrot.lane.b32.xlu0 %v2549, 96
    %v2662 = vpop.permute.xlu0 %2661
    %v2664 = vsel %vm142, %v2662, %v2659
    %v2665 = vpack.c.bf16 %v2664, %v2664
    %v2666 = vld [vmem:[%s24] sm:$0xf]
    %v2667 = vld [vmem:[%s24 + $0x4] sm:$0xf]
    %v2668 = vld [vmem:[%s24 + $0x8] sm:$0xf]
    %v2669 = vld [vmem:[%s24 + $0xc] sm:$0xf]
    %v2670 = vld [vmem:[%s24 + $0x10] sm:$0xf]
    %v2671 = vld [vmem:[%s24 + $0x14] sm:$0xf]
    %v2672 = vld [vmem:[%s24 + $0x18] sm:$0xf]
    %v2673 = vld [vmem:[%s24 + $0x1c] sm:$0xf]
    %v2674 = vld [vmem:[%s25] sm:$0x1]
    %v2676 = vlaneseq
    %v2677 = vshrl.u32 %v2676, 7
    %v2678 = vsub.s32 0, %v2677
    %v2679 = vrot.slane %v2674, %v2678
    %v2689 = vunpack.c.l.b16 %v2666
    %v2690 = vunpack.c.l.b16 %v2667
    %v2691 = vunpack.c.l.b16 %v2668
    %v2692 = vunpack.c.l.b16 %v2669
    %v2693 = vunpack.c.l.b16 %v2670
    %v2694 = vunpack.c.l.b16 %v2671
    %v2695 = vunpack.c.l.b16 %v2672
    %v2696 = vunpack.c.l.b16 %v2673
    %v2697 = vpack.c.b16 %v2690, %v2689
    %v2698 = vpack.c.b16 %v2692, %v2691
    %v2699 = vpack.c.b16 %v2694, %v2693
    %v2700 = vpack.c.b16 %v2696, %v2695
    %v2706 = vsel %vm1346, %v2665, 0
    %2708 = vmatprep.subr.bf16.mxu0 0
    %2709 = vmatpush1.bf16.msra.mxu0 %v2697
    %2710 = vmatprep.subr.bf16.mxu0 0
    %2711 = vmatpush1.bf16.msra.mxu0 %v2698
    %2712 = vmatprep.subr.bf16.mxu0 0
    %2713 = vmatpush1.bf16.msra.mxu0 %v2699
    %2714 = vmatprep.subr.bf16.mxu0 0
    %2715 = vmatpush1.bf16.msra.mxu0 %v2700
    %2716 = vmatprep.subr.bf16.mxu0 0
    %2717 = vmatpush1.bf16.msra.mxu0 0
    %2718 = vmatprep.subr.bf16.mxu0 0
    %2719 = vmatpush1.bf16.msra.mxu0 0
    %2720 = vmatprep.subr.bf16.mxu0 0
    %2721 = vmatpush1.bf16.msra.mxu0 0
    %2722 = vmatprep.subr.bf16.mxu0 0
    %2723 = vmatpush1.bf16.msra.mxu0 0
    %2724 = vmatprep.subr.bf16.mxu0 0
    %2725 = vmatpush1.bf16.msra.mxu0 0
    %2726 = vmatprep.subr.bf16.mxu0 0
    %2727 = vmatpush1.bf16.msra.mxu0 0
    %2728 = vmatprep.subr.bf16.mxu0 0
    %2729 = vmatpush1.bf16.msra.mxu0 0
    %2730 = vmatprep.subr.bf16.mxu0 0
    %2731 = vmatpush1.bf16.msra.mxu0 0
    %2732 = vmatprep.subr.bf16.mxu0 0
    %2733 = vmatpush1.bf16.msra.mxu0 0
    %2734 = vmatprep.subr.bf16.mxu0 0
    %2735 = vmatpush1.bf16.msra.mxu0 0
    %2736 = vmatprep.subr.bf16.mxu0 0
    %2737 = vmatpush1.bf16.msra.mxu0 0
    %2738 = vmatprep.subr.bf16.mxu0 0
    %2739 = vmatpush1.bf16.msra.mxu0 0
    %2740 = vmatprep.mubr.bf16.mxu0 0
    %2741 = vmatmul.mubr.bf16.gmra.mrb[0].mxu0 %v2706
    %v2742 = vpop.f32.mrb[0].mxu0
    %v2743 = vadd.f32 %v2679, %v2742
    %v2744 = vpop.f32.mrb[0].mxu0
    %v2745 = vpop.f32.mrb[0].mxu0
    %v2746 = vpop.f32.mrb[0].mxu0
    %2747 = vdwg.mxu0
    %v2748 = vsel %vm1095, %v2743, -inf
    %2749 = vmax.xlane.f32.xlu0 %v2748
    %v2750 = vpop.xlane.xlu0 %2749
    %v2751 = vsub.f32 %v2743, %v2750
    %v2752 = vmul.f32 %v2751, 1.442695
    %v2753 = vpow.pop %v2752
    %v2754 = vsel %vm1095, %v2753, 0.0
    %2755 = vadd.xlane.f32.xlu0 %v2754
    %v2756 = vpop.xlane.xlu0 %2755
    %v2757 = vrcp.pop %v2756
    %v2758 = vmul.f32 %v2753, %v2757
    %2759 = vst.msk [vmem:[#allocation2] sm:$0x3] %vm1095, %v2758
    // Predicated region
    $region106: #{mimn_forward.7} parent=1 // pred_check
      _
    $region107: #{mimn_forward.7} parent=1 // pred_check_branch
      %2761 = sbr.rel (0) target = $region109
    $region108: #{mimn_forward.7} parent=1 // pred_region
      %s2763 = ssub.s32 32, 32
      %2764 = vsyncadd [#allocation3], %s2763
      %s2766 = sshll.u32 [#allocation2], 4
      %s2767 = int_to_ptr.vmem [resolvable:$true] %s2766
      %2769 = dma.vmem_to_hbm [thread:$0]  %s2767, 32, %s26, [#allocation3]
    $region109: #{mimn_forward.7} parent=1 // pred_fallthru
      _
    // Predicated region
    $region110: #{mimn_forward.7} parent=1 // pred_check
      _
    $region111: #{mimn_forward.7} parent=1 // pred_check_branch
      %2771 = sbr.rel (0) target = $region113
    $region112: #{mimn_forward.7} parent=1 // pred_region
      %2772 = dma.done [#allocation3], 32
    $region113: #{mimn_forward.7} parent=1 // pred_fallthru
      _
    %2773 = vsyncpa [#allocation3], 1

</llo_original>
